<compile_context>
chip_gen: v6e
topology: v6e:2x2x1
jax: 0.10.0
libtpu: 0.0.40
codegen_flags: <defaults>
</compile_context>

<pallas_src>
import functools

import jax
import jax.numpy as jnp
import numpy as np
from jax.experimental import pallas as pl
from jax.experimental.pallas import tpu as pltpu


def _round_up(x, m):
    return ((x + m - 1) // m) * m


# ----------------------------------------------------------------------------
# Pallas kernel: one bidirectional LSTM layer
# ----------------------------------------------------------------------------
def bidir_lstm_layer_kernel(x_ref, wih_ref, whh_ref, b_ref, out_ref,
                            gx_sc, h_sc, c_sc):
    """One bidirectional LSTM layer.  NDIR = out_ref.shape[0] directions are
    processed per grid program:
      * NDIR=1, grid=(2,): one direction per program  (v7x: one per TC).
      * NDIR=2, grid=(1,): both directions fused/interleaved per time step
        (v5e/v6e: hides the latency-bound recurrence on a single TC).

    x_ref    : (C, T*Bp, Din)       bf16 shared input chunks (C=1 layer0, else 2)
    wih_ref  : (NDIR, C, Din, 4Hp)  bf16 input weights per direction & chunk
    whh_ref  : (NDIR, Hp, 4Hp)      bf16 recurrent weights
    b_ref    : (NDIR, 1, 4Hp)       f32  combined bias b_ih + b_hh
    out_ref  : (NDIR, T, Bp, Hp)    bf16 per-direction outputs
    gx_sc    : (NDIR*T*Bp, 4Hp)     f32  scratch: hoisted input projection
    h_sc/c_sc: (NDIR, Bp, Hp)       f32  scratch: recurrent state
    """
    NDIR, T, Bp, Hp = out_ref.shape
    C = x_ref.shape[0]
    TB = T * Bp
    prog = pl.program_id(0)

    # Shared input chunks, loaded once (bf16).
    x = [x_ref[c] for c in range(C)]

    # Hoisted, time-independent input projection per direction: one big
    # (T*Bp, Din) x (Din, 4Hp) bf16 MXU matmul per chunk with f32 accumulate,
    # bias folded in once, and a SINGLE bulk store into the scratch
    # (no per-time-step scatter).
    for d in range(NDIR):
        acc = jnp.dot(x[0], wih_ref[d, 0], preferred_element_type=jnp.float32)
        for c in range(1, C):
            acc = acc + jnp.dot(x[c], wih_ref[d, c],
                                preferred_element_type=jnp.float32)
        gx_sc[d * TB:(d + 1) * TB, :] = acc + b_ref[d]
        h_sc[d] = jnp.zeros((Bp, Hp), jnp.float32)
        c_sc[d] = jnp.zeros((Bp, Hp), jnp.float32)

    whh = [whh_ref[d] for d in range(NDIR)]      # bf16 (Hp, 4Hp), loaded once

    def step(s, carry):
        for d in range(NDIR):                    # static: 1 or 2 directions
            gdir = prog * NDIR + d               # global direction index
            t = s + gdir * (T - 1 - 2 * s)       # fwd: t = s ; bwd: t = T-1-s
            row = pl.multiple_of(d * TB + t * Bp, Bp)
            gates = gx_sc[pl.ds(row, Bp), :] + jnp.dot(
                h_sc[d].astype(jnp.bfloat16), whh[d],
                preferred_element_type=jnp.float32)
            # PyTorch gate order i, f, g, o.  Hp is a multiple of 128, so all
            # four slices are whole-vreg, lane-aligned (no XLU shifts).
            i_g = jax.nn.sigmoid(gates[:, 0 * Hp:1 * Hp])
            f_g = jax.nn.sigmoid(gates[:, 1 * Hp:2 * Hp])
            g_g = jnp.tanh(gates[:, 2 * Hp:3 * Hp])
            o_g = jax.nn.sigmoid(gates[:, 3 * Hp:4 * Hp])
            c_new = f_g * c_sc[d] + i_g * g_g
            h_new = o_g * jnp.tanh(c_new)
            c_sc[d] = c_new
            h_sc[d] = h_new
            out_ref[d, t] = h_new.astype(out_ref.dtype)
        return carry

    # Capped unroll: full unroll for tiny T, bounded for long sequences
    # (vreg pressure / compile time).
    jax.lax.fori_loop(0, T, step, 0, unroll=min(T, 8))


# ----------------------------------------------------------------------------
# Wrappers
# ----------------------------------------------------------------------------
def bidir_lstm_layer(x2d, wih_s, whh_s, b_s, T, Bp, dirs_per_prog):
    """x2d: (C, T*Bp, Din) bf16 -> (2, T, Bp, Hp) bf16 (chunk 0=fwd, 1=bwd)."""
    C, TB, Din = x2d.shape
    Hp = whh_s.shape[1]
    G = 4 * Hp
    nd = dirs_per_prog
    n_prog = 2 // nd
    # TODO(synk): for long sequences, move x to memory_space=pl.ANY and compute
    # the hoisted projection in time chunks (pltpu.emit_pipeline) so VMEM use
    # does not scale with T (matters most on v7x's 64 MiB VMEM).
    return pl.pallas_call(
        bidir_lstm_layer_kernel,
        out_shape=jax.ShapeDtypeStruct((2, T, Bp, Hp), jnp.bfloat16),
        grid=(n_prog,),
        in_specs=[
            pl.BlockSpec((C, TB, Din), lambda i: (0, 0, 0)),        # shared x
            pl.BlockSpec((nd, C, Din, G), lambda i: (i, 0, 0, 0)),  # W_ih
            pl.BlockSpec((nd, Hp, G), lambda i: (i, 0, 0)),         # W_hh
            pl.BlockSpec((nd, 1, G), lambda i: (i, 0, 0)),          # bias
        ],
        out_specs=pl.BlockSpec((nd, T, Bp, Hp), lambda i: (i, 0, 0, 0)),
        scratch_shapes=[
            pltpu.VMEM((nd * T * Bp, G), jnp.float32),   # hoisted gates_x
            pltpu.VMEM((nd, Bp, Hp), jnp.float32),       # h state
            pltpu.VMEM((nd, Bp, Hp), jnp.float32),       # c state
        ],
        compiler_params=pltpu.CompilerParams(
            dimension_semantics=("parallel",)),   # 2 TCs on v7x when n_prog=2
    )(x2d, wih_s, whh_s, b_s)


def dirs_per_program():
    """2 = fuse both directions in one program (single-TC chips: v5e/v6e);
       1 = one direction per grid program (2 TensorCores per chip: v7x)."""
    try:
        kind = jax.devices()[0].device_kind.lower()
    except Exception:
        kind = ""
    return 1 if "v7" in kind else 2


def lstm_model_forward(token_ids, packed, dirs_per_prog):
    """token_ids: (B, T) int32.  Returns (B, output_size) float32."""
    B, T = token_ids.shape
    Bp = packed["Bp"]
    H = packed["H"]

    emb = packed["embedding"][token_ids]                 # (B, T, Ep) bf16 gather (glue)
    x = jnp.transpose(emb, (1, 0, 2))                    # (T, B, Ep) time-major
    x = jnp.pad(x, ((0, 0), (0, Bp - B), (0, 0)))        # pad batch to sublane multiple
    x2d = x.reshape(1, T * Bp, x.shape[-1])              # single feature chunk

    out = None
    # TODO(synk): on v5e/v6e the per-layer HBM roundtrip of activations could be
    # removed by fusing the layer loop into one pallas_call (layer as an outer
    # 'arbitrary' grid axis); kept separate here for VMEM headroom.
    for (wih_s, whh_s, b_s) in packed["layers"]:
        out = bidir_lstm_layer(x2d, wih_s, whh_s, b_s, T, Bp, dirs_per_prog)
        Hp = whh_s.shape[1]
        x2d = out.reshape(2, T * Bp, Hp)                 # contiguous view, no concat

    # PyTorch out[:, -1, :] == (h_fwd, h_bwd) at time position T-1.
    last = out[:, T - 1, :B, :H].astype(jnp.float32)     # (2, B, H)
    # Tiny final FC (output_size=4) in plain JAX: a standalone pallas_call is
    # pure launch/pipeline overhead at this size (perf review).
    fc_w = packed["fc_w_stack"]                          # (2, H, O)
    return last[0] @ fc_w[0] + last[1] @ fc_w[1] + packed["fc_b"][0]


# ----------------------------------------------------------------------------
# Pure-JAX reference (for correctness check)
# ----------------------------------------------------------------------------
def ref_lstm_dir(x_tm, wih_t, whh_t, b):
    H = whh_t.shape[0]
    B = x_tm.shape[1]

    def step(carry, x_t):
        h, c = carry
        gates = x_t @ wih_t + h @ whh_t + b
        i = jax.nn.sigmoid(gates[:, :H])
        f = jax.nn.sigmoid(gates[:, H:2 * H])
        g = jnp.tanh(gates[:, 2 * H:3 * H])
        o = jax.nn.sigmoid(gates[:, 3 * H:])
        c = f * c + i * g
        h = o * jnp.tanh(c)
        return (h, c), h

    init = (jnp.zeros((B, H), jnp.float32), jnp.zeros((B, H), jnp.float32))
    _, hs = jax.lax.scan(step, init, x_tm)
    return hs


def ref_forward(token_ids, params):
    emb = params["embedding"][token_ids]
    x = jnp.transpose(emb, (1, 0, 2)).astype(jnp.float32)
    for layer in params["lstm_layers"]:
        h_fwd = ref_lstm_dir(x, layer["fwd"]["wih_t"], layer["fwd"]["whh_t"],
                             layer["fwd"]["b"])
        h_bwd = ref_lstm_dir(x[::-1], layer["bwd"]["wih_t"], layer["bwd"]["whh_t"],
                             layer["bwd"]["b"])[::-1]
        x = jnp.concatenate([h_fwd, h_bwd], axis=-1)
    return x[-1] @ params["fc_w_t"] + params["fc_b"]


# ----------------------------------------------------------------------------
# Parameter construction (mirrors nn.Embedding / nn.LSTM / nn.Linear)
# ----------------------------------------------------------------------------
def init_params(key, input_size, hidden_size, layers, output_size,
                vocab_size, embedding_dim):
    keys = iter(jax.random.split(key, 64))
    k = 1.0 / np.sqrt(hidden_size)

    emb = jax.random.normal(next(keys), (vocab_size, embedding_dim), jnp.float32)
    emb = emb.at[vocab_size - 1].set(0.0)              # padding_idx

    lstm_layers = []
    for l in range(layers):
        d_in = input_size if l == 0 else 2 * hidden_size
        layer = {}
        for dname in ("fwd", "bwd"):
            wih = jax.random.uniform(next(keys), (4 * hidden_size, d_in),
                                     jnp.float32, -k, k)
            whh = jax.random.uniform(next(keys), (4 * hidden_size, hidden_size),
                                     jnp.float32, -k, k)
            b_ih = jax.random.uniform(next(keys), (4 * hidden_size,),
                                      jnp.float32, -k, k)
            b_hh = jax.random.uniform(next(keys), (4 * hidden_size,),
                                      jnp.float32, -k, k)
            layer[dname] = {
                "wih_t": wih.T,                          # (d_in, 4H)
                "whh_t": whh.T,                          # (H, 4H)
                "b": (b_ih + b_hh)[None, :],             # (1, 4H)
            }
        lstm_layers.append(layer)

    kf = 1.0 / np.sqrt(2 * hidden_size)
    fc_w = jax.random.uniform(next(keys), (output_size, 2 * hidden_size),
                              jnp.float32, -kf, kf)
    fc_b = jax.random.uniform(next(keys), (output_size,), jnp.float32, -kf, kf)

    return {
        "embedding": emb,
        "lstm_layers": lstm_layers,
        "fc_w_t": fc_w.T,                                # (2H, O)
        "fc_b": fc_b[None, :],                           # (1, O)
    }


def _pad_gate_cols(w, H, Hp):
    """w: (rows, 4H) gate-blocked [i|f|g|o] -> (rows, 4Hp), zero-pad per gate."""
    rows = w.shape[0]
    w4 = w.reshape(rows, 4, H)
    w4 = jnp.pad(w4, ((0, 0), (0, 0), (0, Hp - H)))
    return w4.reshape(rows, 4 * Hp)


def pack_params(params, hidden_size, batch_size):
    """Repack weights into the stacked / chunked / padded bf16 Pallas layout."""
    H = hidden_size
    Hp = _round_up(H, 128)                      # lane-pad hidden (aligned gates)
    Bp = _round_up(max(batch_size, 8), 8)       # sublane-pad batch
    E = params["embedding"].shape[1]
    Ep = _round_up(E, 128)

    emb = jnp.pad(params["embedding"], ((0, 0), (0, Ep - E))).astype(jnp.bfloat16)

    layers = []
    for l, layer in enumerate(params["lstm_layers"]):
        C = 1 if l == 0 else 2
        d_in = E if l == 0 else 2 * H
        d_in_p = Ep if l == 0 else Hp           # padded per-chunk input dim
        wih_stack, whh_stack, b_stack = [], [], []
        for dname in ("fwd", "bwd"):
            wih = _pad_gate_cols(layer[dname]["wih_t"], H, Hp)       # (d_in, 4Hp)
            wih = wih.reshape(C, d_in // C, 4 * Hp)                  # chunk 0 = fwd-half rows
            wih = jnp.pad(wih, ((0, 0), (0, d_in_p - d_in // C), (0, 0)))
            wih_stack.append(wih)
            whh = _pad_gate_cols(layer[dname]["whh_t"], H, Hp)       # (H, 4Hp)
            whh_stack.append(jnp.pad(whh, ((0, Hp - H), (0, 0))))    # (Hp, 4Hp)
            b_stack.append(_pad_gate_cols(layer[dname]["b"], H, Hp))  # (1, 4Hp)
        layers.append((jnp.stack(wih_stack).astype(jnp.bfloat16),    # (2,C,Din_p,4Hp)
                       jnp.stack(whh_stack).astype(jnp.bfloat16),    # (2,Hp,4Hp)
                       jnp.stack(b_stack)))                          # (2,1,4Hp) f32

    O = params["fc_w_t"].shape[1]
    return {
        "embedding": emb,
        "layers": layers,
        "fc_w_stack": params["fc_w_t"].reshape(2, H, O),   # rows 0:H -> fwd half
        "fc_b": params["fc_b"],
        "Bp": Bp,
        "H": H,
    }


# ----------------------------------------------------------------------------
if __name__ == "__main__":
    B, T = 2, 8
    vocab_size = 20
    embedding_dim = 16
    input_size = embedding_dim      # LSTM input_size must match embedding dim
    hidden_size = 32
    layers = 2
    output_size = 4

    key = jax.random.PRNGKey(0)
    pkey, dkey = jax.random.split(key)
    params = init_params(pkey, input_size, hidden_size, layers, output_size,
                         vocab_size, embedding_dim)
    packed = pack_params(params, hidden_size, B)

    token_ids = jax.random.randint(dkey, (B, T), 0, vocab_size, dtype=jnp.int32)
    ref = ref_forward(token_ids, params)

    # Validate both layouts (fused directions for v5e/v6e; direction-parallel
    # grid for v7x), keep the chip-appropriate one as the result.
    chosen = dirs_per_program()
    out = None
    for nd in (2, 1):
        fwd = jax.jit(functools.partial(lstm_model_forward, packed=packed,
                                        dirs_per_prog=nd))
        o = jax.block_until_ready(fwd(token_ids))
        # bf16 matmul operands (f32 accumulate) -> loosened tolerance vs f32 ref.
        np.testing.assert_allclose(np.asarray(o), np.asarray(ref),
                                   rtol=5e-2, atol=2e-2)
        if nd == chosen:
            out = o
    if out is None:
        out = o
    assert out.shape == (B, output_size)
    print("KERNEL_OK")
</pallas_src>

<mosaic_0001>
module attributes {stable_mosaic.version = 11 : i64} {
  func.func @bidir_lstm_layer_kernel(%arg0: i32, %arg1: memref<1x64x128xbf16, #tpu.memory_space<vmem>>, %arg2: memref<2x1x128x512xbf16, #tpu.memory_space<vmem>>, %arg3: memref<2x128x512xbf16, #tpu.memory_space<vmem>>, %arg4: memref<2x1x512xf32, #tpu.memory_space<vmem>>, %arg5: memref<2x8x8x128xbf16, #tpu.memory_space<vmem>>, %arg6: memref<128x512xf32, #tpu.memory_space<vmem>>, %arg7: memref<2x8x128xf32, #tpu.memory_space<vmem>>, %arg8: memref<2x8x128xf32, #tpu.memory_space<vmem>>) attributes {dimension_semantics = [#tpu.dimension_semantics<parallel>], iteration_bounds = array<i64: 1>, scalar_prefetch = 0 : i64, scratch_operands = 3 : i64, tpu.core_type = #tpu.core_type<tc>, window_params = [{pipeline_mode = #tpu.pipeline_mode<synchronous>, transform_indices = @transform_0, window_bounds = array<i64: 1, 64, 128>}, {transform_indices = @transform_1, window_bounds = array<i64: 2, 1, 128, 512>}, {transform_indices = @transform_2, window_bounds = array<i64: 2, 128, 512>}, {transform_indices = @transform_3, window_bounds = array<i64: 2, 1, 512>}, {transform_indices = @transform_4, window_bounds = array<i64: 2, 8, 8, 128>}]} {
    %c0 = arith.constant 0 : index
    %c0_0 = arith.constant 0 : index
    %c0_1 = arith.constant 0 : index
    %0 = vector.load %arg1[%c0, %c0_0, %c0_1] : memref<1x64x128xbf16, #tpu.memory_space<vmem>>, vector<1x64x128xbf16>
    %1 = vector.shape_cast %0 : vector<1x64x128xbf16> to vector<64x128xbf16>
    %c0_2 = arith.constant 0 : index
    %c0_3 = arith.constant 0 : index
    %c0_4 = arith.constant 0 : index
    %c0_5 = arith.constant 0 : index
    %2 = vector.load %arg2[%c0_2, %c0_3, %c0_4, %c0_5] : memref<2x1x128x512xbf16, #tpu.memory_space<vmem>>, vector<1x1x128x512xbf16>
    %3 = vector.shape_cast %2 : vector<1x1x128x512xbf16> to vector<128x512xbf16>
    %cst = arith.constant dense<0.000000e+00> : vector<64x512xf32>
    %4 = tpu.matmul %1, %3, %cst {dimension_numbers = #tpu.dot_dimension_numbers<[1], [0], [0], [1], [0, 0, 1, 1], [], []>} : vector<64x128xbf16>, vector<128x512xbf16>, vector<64x512xf32> -> vector<64x512xf32>
    %c0_6 = arith.constant 0 : index
    %c0_7 = arith.constant 0 : index
    %c0_8 = arith.constant 0 : index
    %5 = vector.load %arg4[%c0_6, %c0_7, %c0_8] : memref<2x1x512xf32, #tpu.memory_space<vmem>>, vector<1x1x512xf32>
    %6 = vector.shape_cast %5 : vector<1x1x512xf32> to vector<1x512xf32>
    %7 = vector.broadcast %6 : vector<1x512xf32> to vector<64x512xf32>
    %8 = arith.addf %4, %7 : vector<64x512xf32>
    %c0_9 = arith.constant 0 : index
    %c0_10 = arith.constant 0 : index
    %9 = vector.load %arg6[%c0_9, %c0_10] : memref<128x512xf32, #tpu.memory_space<vmem>>, vector<64x512xf32>
    tpu.vector_store %arg6[%c0_9, %c0_10], %8 {strides = array<i32>} : memref<128x512xf32, #tpu.memory_space<vmem>>, vector<64x512xf32>,
    %cst_11 = arith.constant 0.000000e+00 : f32
    %10 = vector.broadcast %cst_11 : f32 to vector<8x128xf32>
    %c0_12 = arith.constant 0 : index
    %c0_13 = arith.constant 0 : index
    %c0_14 = arith.constant 0 : index
    %11 = vector.load %arg7[%c0_12, %c0_13, %c0_14] : memref<2x8x128xf32, #tpu.memory_space<vmem>>, vector<1x8x128xf32>
    %12 = vector.shape_cast %11 : vector<1x8x128xf32> to vector<8x128xf32>
    %13 = vector.shape_cast %10 : vector<8x128xf32> to vector<1x8x128xf32>
    tpu.vector_store %arg7[%c0_12, %c0_13, %c0_14], %13 {strides = array<i32>} : memref<2x8x128xf32, #tpu.memory_space<vmem>>, vector<1x8x128xf32>,
    %cst_15 = arith.constant 0.000000e+00 : f32
    %14 = vector.broadcast %cst_15 : f32 to vector<8x128xf32>
    %c0_16 = arith.constant 0 : index
    %c0_17 = arith.constant 0 : index
    %c0_18 = arith.constant 0 : index
    %15 = vector.load %arg8[%c0_16, %c0_17, %c0_18] : memref<2x8x128xf32, #tpu.memory_space<vmem>>, vector<1x8x128xf32>
    %16 = vector.shape_cast %15 : vector<1x8x128xf32> to vector<8x128xf32>
    %17 = vector.shape_cast %14 : vector<8x128xf32> to vector<1x8x128xf32>
    tpu.vector_store %arg8[%c0_16, %c0_17, %c0_18], %17 {strides = array<i32>} : memref<2x8x128xf32, #tpu.memory_space<vmem>>, vector<1x8x128xf32>,
    %c1 = arith.constant 1 : index
    %c0_19 = arith.constant 0 : index
    %c0_20 = arith.constant 0 : index
    %c0_21 = arith.constant 0 : index
    %18 = vector.load %arg2[%c1, %c0_19, %c0_20, %c0_21] : memref<2x1x128x512xbf16, #tpu.memory_space<vmem>>, vector<1x1x128x512xbf16>
    %19 = vector.shape_cast %18 : vector<1x1x128x512xbf16> to vector<128x512xbf16>
    %cst_22 = arith.constant dense<0.000000e+00> : vector<64x512xf32>
    %20 = tpu.matmul %1, %19, %cst_22 {dimension_numbers = #tpu.dot_dimension_numbers<[1], [0], [0], [1], [0, 0, 1, 1], [], []>} : vector<64x128xbf16>, vector<128x512xbf16>, vector<64x512xf32> -> vector<64x512xf32>
    %c1_23 = arith.constant 1 : index
    %c0_24 = arith.constant 0 : index
    %c0_25 = arith.constant 0 : index
    %21 = vector.load %arg4[%c1_23, %c0_24, %c0_25] : memref<2x1x512xf32, #tpu.memory_space<vmem>>, vector<1x1x512xf32>
    %22 = vector.shape_cast %21 : vector<1x1x512xf32> to vector<1x512xf32>
    %23 = vector.broadcast %22 : vector<1x512xf32> to vector<64x512xf32>
    %24 = arith.addf %20, %23 : vector<64x512xf32>
    %c64 = arith.constant 64 : index
    %c0_26 = arith.constant 0 : index
    %25 = vector.load %arg6[%c64, %c0_26] : memref<128x512xf32, #tpu.memory_space<vmem>>, vector<64x512xf32>
    tpu.vector_store %arg6[%c64, %c0_26], %24 {strides = array<i32>} : memref<128x512xf32, #tpu.memory_space<vmem>>, vector<64x512xf32>,
    %cst_27 = arith.constant 0.000000e+00 : f32
    %26 = vector.broadcast %cst_27 : f32 to vector<8x128xf32>
    %c1_28 = arith.constant 1 : index
    %c0_29 = arith.constant 0 : index
    %c0_30 = arith.constant 0 : index
    %27 = vector.load %arg7[%c1_28, %c0_29, %c0_30] : memref<2x8x128xf32, #tpu.memory_space<vmem>>, vector<1x8x128xf32>
    %28 = vector.shape_cast %27 : vector<1x8x128xf32> to vector<8x128xf32>
    %29 = vector.shape_cast %26 : vector<8x128xf32> to vector<1x8x128xf32>
    tpu.vector_store %arg7[%c1_28, %c0_29, %c0_30], %29 {strides = array<i32>} : memref<2x8x128xf32, #tpu.memory_space<vmem>>, vector<1x8x128xf32>,
    %cst_31 = arith.constant 0.000000e+00 : f32
    %30 = vector.broadcast %cst_31 : f32 to vector<8x128xf32>
    %c1_32 = arith.constant 1 : index
    %c0_33 = arith.constant 0 : index
    %c0_34 = arith.constant 0 : index
    %31 = vector.load %arg8[%c1_32, %c0_33, %c0_34] : memref<2x8x128xf32, #tpu.memory_space<vmem>>, vector<1x8x128xf32>
    %32 = vector.shape_cast %31 : vector<1x8x128xf32> to vector<8x128xf32>
    %33 = vector.shape_cast %30 : vector<8x128xf32> to vector<1x8x128xf32>
    tpu.vector_store %arg8[%c1_32, %c0_33, %c0_34], %33 {strides = array<i32>} : memref<2x8x128xf32, #tpu.memory_space<vmem>>, vector<1x8x128xf32>,
    %c0_35 = arith.constant 0 : index
    %c0_36 = arith.constant 0 : index
    %c0_37 = arith.constant 0 : index
    %34 = vector.load %arg3[%c0_35, %c0_36, %c0_37] : memref<2x128x512xbf16, #tpu.memory_space<vmem>>, vector<1x128x512xbf16>
    %35 = vector.shape_cast %34 : vector<1x128x512xbf16> to vector<128x512xbf16>
    %c1_38 = arith.constant 1 : index
    %c0_39 = arith.constant 0 : index
    %c0_40 = arith.constant 0 : index
    %36 = vector.load %arg3[%c1_38, %c0_39, %c0_40] : memref<2x128x512xbf16, #tpu.memory_space<vmem>>, vector<1x128x512xbf16>
    %37 = vector.shape_cast %36 : vector<1x128x512xbf16> to vector<128x512xbf16>
    %c0_i32 = arith.constant 0 : i32
    %c2_i32 = arith.constant 2 : i32
    %38 = arith.muli %arg0, %c2_i32 : i32
    %c0_i32_41 = arith.constant 0 : i32
    %39 = arith.addi %38, %c0_i32_41 : i32
    %c2_i32_42 = arith.constant 2 : i32
    %40 = arith.muli %c2_i32_42, %c0_i32 : i32
    %c7_i32 = arith.constant 7 : i32
    %41 = arith.subi %c7_i32, %40 : i32
    %42 = arith.muli %39, %41 : i32
    %43 = arith.addi %c0_i32, %42 : i32
    %c8_i32 = arith.constant 8 : i32
    %44 = arith.muli %43, %c8_i32 : i32
    %c0_i32_43 = arith.constant 0 : i32
    %45 = arith.addi %c0_i32_43, %44 : i32
    %46 = tpu.assume_multiple %45, 8 : i32
    %47 = arith.index_cast %46 : i32 to index
    %c0_44 = arith.constant 0 : index
    %48 = vector.load %arg6[%47, %c0_44] : memref<128x512xf32, #tpu.memory_space<vmem>>, vector<8x512xf32>
    %c0_45 = arith.constant 0 : index
    %c0_46 = arith.constant 0 : index
    %c0_47 = arith.constant 0 : index
    %49 = vector.load %arg7[%c0_45, %c0_46, %c0_47] : memref<2x8x128xf32, #tpu.memory_space<vmem>>, vector<1x8x128xf32>
    %50 = vector.shape_cast %49 : vector<1x8x128xf32> to vector<8x128xf32>
    %51 = arith.truncf %50 : vector<8x128xf32> to vector<8x128xbf16>
    %cst_48 = arith.constant dense<0.000000e+00> : vector<8x512xf32>
    %52 = tpu.matmul %51, %35, %cst_48 {dimension_numbers = #tpu.dot_dimension_numbers<[1], [0], [0], [1], [0, 0, 1, 1], [], []>} : vector<8x128xbf16>, vector<128x512xbf16>, vector<8x512xf32> -> vector<8x512xf32>
    %53 = arith.addf %48, %52 : vector<8x512xf32>
    %54 = vector.extract_strided_slice %53 {offsets = [0, 0], sizes = [8, 128], strides = [1, 1]} : vector<8x512xf32> to vector<8x128xf32>
    %55 = arith.negf %54 : vector<8x128xf32>
    %56 = math.exp %55 : vector<8x128xf32>
    %cst_49 = arith.constant 1.000000e+00 : f32
    %57 = vector.broadcast %cst_49 : f32 to vector<8x128xf32>
    %58 = arith.addf %57, %56 : vector<8x128xf32>
    %59 = arith.divf %57, %58 : vector<8x128xf32>
    %60 = vector.extract_strided_slice %53 {offsets = [0, 128], sizes = [8, 128], strides = [1, 1]} : vector<8x512xf32> to vector<8x128xf32>
    %61 = arith.negf %60 : vector<8x128xf32>
    %62 = math.exp %61 : vector<8x128xf32>
    %cst_50 = arith.constant 1.000000e+00 : f32
    %63 = vector.broadcast %cst_50 : f32 to vector<8x128xf32>
    %64 = arith.addf %63, %62 : vector<8x128xf32>
    %65 = arith.divf %63, %64 : vector<8x128xf32>
    %66 = vector.extract_strided_slice %53 {offsets = [0, 256], sizes = [8, 128], strides = [1, 1]} : vector<8x512xf32> to vector<8x128xf32>
    %67 = math.tanh %66 : vector<8x128xf32>
    %68 = vector.extract_strided_slice %53 {offsets = [0, 384], sizes = [8, 128], strides = [1, 1]} : vector<8x512xf32> to vector<8x128xf32>
    %69 = arith.negf %68 : vector<8x128xf32>
    %70 = math.exp %69 : vector<8x128xf32>
    %cst_51 = arith.constant 1.000000e+00 : f32
    %71 = vector.broadcast %cst_51 : f32 to vector<8x128xf32>
    %72 = arith.addf %71, %70 : vector<8x128xf32>
    %73 = arith.divf %71, %72 : vector<8x128xf32>
    %c0_52 = arith.constant 0 : index
    %c0_53 = arith.constant 0 : index
    %c0_54 = arith.constant 0 : index
    %74 = vector.load %arg8[%c0_52, %c0_53, %c0_54] : memref<2x8x128xf32, #tpu.memory_space<vmem>>, vector<1x8x128xf32>
    %75 = vector.shape_cast %74 : vector<1x8x128xf32> to vector<8x128xf32>
    %76 = arith.mulf %65, %75 : vector<8x128xf32>
    %77 = arith.mulf %59, %67 : vector<8x128xf32>
    %78 = arith.addf %76, %77 : vector<8x128xf32>
    %79 = math.tanh %78 : vector<8x128xf32>
    %80 = arith.mulf %73, %79 : vector<8x128xf32>
    %c0_55 = arith.constant 0 : index
    %c0_56 = arith.constant 0 : index
    %c0_57 = arith.constant 0 : index
    %81 = vector.load %arg8[%c0_55, %c0_56, %c0_57] : memref<2x8x128xf32, #tpu.memory_space<vmem>>, vector<1x8x128xf32>
    %82 = vector.shape_cast %81 : vector<1x8x128xf32> to vector<8x128xf32>
    %83 = vector.shape_cast %78 : vector<8x128xf32> to vector<1x8x128xf32>
    tpu.vector_store %arg8[%c0_55, %c0_56, %c0_57], %83 {strides = array<i32>} : memref<2x8x128xf32, #tpu.memory_space<vmem>>, vector<1x8x128xf32>,
    %c0_58 = arith.constant 0 : index
    %c0_59 = arith.constant 0 : index
    %c0_60 = arith.constant 0 : index
    %84 = vector.load %arg7[%c0_58, %c0_59, %c0_60] : memref<2x8x128xf32, #tpu.memory_space<vmem>>, vector<1x8x128xf32>
    %85 = vector.shape_cast %84 : vector<1x8x128xf32> to vector<8x128xf32>
    %86 = vector.shape_cast %80 : vector<8x128xf32> to vector<1x8x128xf32>
    tpu.vector_store %arg7[%c0_58, %c0_59, %c0_60], %86 {strides = array<i32>} : memref<2x8x128xf32, #tpu.memory_space<vmem>>, vector<1x8x128xf32>,
    %87 = arith.truncf %80 : vector<8x128xf32> to vector<8x128xbf16>
    %c0_61 = arith.constant 0 : index
    %88 = arith.index_cast %43 : i32 to index
    %c0_62 = arith.constant 0 : index
    %c0_63 = arith.constant 0 : index
    %89 = vector.load %arg5[%c0_61, %88, %c0_62, %c0_63] : memref<2x8x8x128xbf16, #tpu.memory_space<vmem>>, vector<1x1x8x128xbf16>
    %90 = vector.shape_cast %89 : vector<1x1x8x128xbf16> to vector<8x128xbf16>
    %91 = vector.shape_cast %87 : vector<8x128xbf16> to vector<1x1x8x128xbf16>
    tpu.vector_store %arg5[%c0_61, %88, %c0_62, %c0_63], %91 {strides = array<i32>} : memref<2x8x8x128xbf16, #tpu.memory_space<vmem>>, vector<1x1x8x128xbf16>,
    %c2_i32_64 = arith.constant 2 : i32
    %92 = arith.muli %arg0, %c2_i32_64 : i32
    %c1_i32 = arith.constant 1 : i32
    %93 = arith.addi %92, %c1_i32 : i32
    %c2_i32_65 = arith.constant 2 : i32
    %94 = arith.muli %c2_i32_65, %c0_i32 : i32
    %c7_i32_66 = arith.constant 7 : i32
    %95 = arith.subi %c7_i32_66, %94 : i32
    %96 = arith.muli %93, %95 : i32
    %97 = arith.addi %c0_i32, %96 : i32
    %c8_i32_67 = arith.constant 8 : i32
    %98 = arith.muli %97, %c8_i32_67 : i32
    %c64_i32 = arith.constant 64 : i32
    %99 = arith.addi %c64_i32, %98 : i32
    %100 = tpu.assume_multiple %99, 8 : i32
    %101 = arith.index_cast %100 : i32 to index
    %c0_68 = arith.constant 0 : index
    %102 = vector.load %arg6[%101, %c0_68] : memref<128x512xf32, #tpu.memory_space<vmem>>, vector<8x512xf32>
    %c1_69 = arith.constant 1 : index
    %c0_70 = arith.constant 0 : index
    %c0_71 = arith.constant 0 : index
    %103 = vector.load %arg7[%c1_69, %c0_70, %c0_71] : memref<2x8x128xf32, #tpu.memory_space<vmem>>, vector<1x8x128xf32>
    %104 = vector.shape_cast %103 : vector<1x8x128xf32> to vector<8x128xf32>
    %105 = arith.truncf %104 : vector<8x128xf32> to vector<8x128xbf16>
    %cst_72 = arith.constant dense<0.000000e+00> : vector<8x512xf32>
    %106 = tpu.matmul %105, %37, %cst_72 {dimension_numbers = #tpu.dot_dimension_numbers<[1], [0], [0], [1], [0, 0, 1, 1], [], []>} : vector<8x128xbf16>, vector<128x512xbf16>, vector<8x512xf32> -> vector<8x512xf32>
    %107 = arith.addf %102, %106 : vector<8x512xf32>
    %108 = vector.extract_strided_slice %107 {offsets = [0, 0], sizes = [8, 128], strides = [1, 1]} : vector<8x512xf32> to vector<8x128xf32>
    %109 = arith.negf %108 : vector<8x128xf32>
    %110 = math.exp %109 : vector<8x128xf32>
    %cst_73 = arith.constant 1.000000e+00 : f32
    %111 = vector.broadcast %cst_73 : f32 to vector<8x128xf32>
    %112 = arith.addf %111, %110 : vector<8x128xf32>
    %113 = arith.divf %111, %112 : vector<8x128xf32>
    %114 = vector.extract_strided_slice %107 {offsets = [0, 128], sizes = [8, 128], strides = [1, 1]} : vector<8x512xf32> to vector<8x128xf32>
    %115 = arith.negf %114 : vector<8x128xf32>
    %116 = math.exp %115 : vector<8x128xf32>
    %cst_74 = arith.constant 1.000000e+00 : f32
    %117 = vector.broadcast %cst_74 : f32 to vector<8x128xf32>
    %118 = arith.addf %117, %116 : vector<8x128xf32>
    %119 = arith.divf %117, %118 : vector<8x128xf32>
    %120 = vector.extract_strided_slice %107 {offsets = [0, 256], sizes = [8, 128], strides = [1, 1]} : vector<8x512xf32> to vector<8x128xf32>
    %121 = math.tanh %120 : vector<8x128xf32>
    %122 = vector.extract_strided_slice %107 {offsets = [0, 384], sizes = [8, 128], strides = [1, 1]} : vector<8x512xf32> to vector<8x128xf32>
    %123 = arith.negf %122 : vector<8x128xf32>
    %124 = math.exp %123 : vector<8x128xf32>
    %cst_75 = arith.constant 1.000000e+00 : f32
    %125 = vector.broadcast %cst_75 : f32 to vector<8x128xf32>
    %126 = arith.addf %125, %124 : vector<8x128xf32>
    %127 = arith.divf %125, %126 : vector<8x128xf32>
    %c1_76 = arith.constant 1 : index
    %c0_77 = arith.constant 0 : index
    %c0_78 = arith.constant 0 : index
    %128 = vector.load %arg8[%c1_76, %c0_77, %c0_78] : memref<2x8x128xf32, #tpu.memory_space<vmem>>, vector<1x8x128xf32>
    %129 = vector.shape_cast %128 : vector<1x8x128xf32> to vector<8x128xf32>
    %130 = arith.mulf %119, %129 : vector<8x128xf32>
    %131 = arith.mulf %113, %121 : vector<8x128xf32>
    %132 = arith.addf %130, %131 : vector<8x128xf32>
    %133 = math.tanh %132 : vector<8x128xf32>
    %134 = arith.mulf %127, %133 : vector<8x128xf32>
    %c1_79 = arith.constant 1 : index
    %c0_80 = arith.constant 0 : index
    %c0_81 = arith.constant 0 : index
    %135 = vector.load %arg8[%c1_79, %c0_80, %c0_81] : memref<2x8x128xf32, #tpu.memory_space<vmem>>, vector<1x8x128xf32>
    %136 = vector.shape_cast %135 : vector<1x8x128xf32> to vector<8x128xf32>
    %137 = vector.shape_cast %132 : vector<8x128xf32> to vector<1x8x128xf32>
    tpu.vector_store %arg8[%c1_79, %c0_80, %c0_81], %137 {strides = array<i32>} : memref<2x8x128xf32, #tpu.memory_space<vmem>>, vector<1x8x128xf32>,
    %c1_82 = arith.constant 1 : index
    %c0_83 = arith.constant 0 : index
    %c0_84 = arith.constant 0 : index
    %138 = vector.load %arg7[%c1_82, %c0_83, %c0_84] : memref<2x8x128xf32, #tpu.memory_space<vmem>>, vector<1x8x128xf32>
    %139 = vector.shape_cast %138 : vector<1x8x128xf32> to vector<8x128xf32>
    %140 = vector.shape_cast %134 : vector<8x128xf32> to vector<1x8x128xf32>
    tpu.vector_store %arg7[%c1_82, %c0_83, %c0_84], %140 {strides = array<i32>} : memref<2x8x128xf32, #tpu.memory_space<vmem>>, vector<1x8x128xf32>,
    %141 = arith.truncf %134 : vector<8x128xf32> to vector<8x128xbf16>
    %c1_85 = arith.constant 1 : index
    %142 = arith.index_cast %97 : i32 to index
    %c0_86 = arith.constant 0 : index
    %c0_87 = arith.constant 0 : index
    %143 = vector.load %arg5[%c1_85, %142, %c0_86, %c0_87] : memref<2x8x8x128xbf16, #tpu.memory_space<vmem>>, vector<1x1x8x128xbf16>
    %144 = vector.shape_cast %143 : vector<1x1x8x128xbf16> to vector<8x128xbf16>
    %145 = vector.shape_cast %141 : vector<8x128xbf16> to vector<1x1x8x128xbf16>
    tpu.vector_store %arg5[%c1_85, %142, %c0_86, %c0_87], %145 {strides = array<i32>} : memref<2x8x8x128xbf16, #tpu.memory_space<vmem>>, vector<1x1x8x128xbf16>,
    %c1_i32_88 = arith.constant 1 : i32
    %c2_i32_89 = arith.constant 2 : i32
    %146 = arith.muli %arg0, %c2_i32_89 : i32
    %c0_i32_90 = arith.constant 0 : i32
    %147 = arith.addi %146, %c0_i32_90 : i32
    %c2_i32_91 = arith.constant 2 : i32
    %148 = arith.muli %c2_i32_91, %c1_i32_88 : i32
    %c7_i32_92 = arith.constant 7 : i32
    %149 = arith.subi %c7_i32_92, %148 : i32
    %150 = arith.muli %147, %149 : i32
    %151 = arith.addi %c1_i32_88, %150 : i32
    %c8_i32_93 = arith.constant 8 : i32
    %152 = arith.muli %151, %c8_i32_93 : i32
    %c0_i32_94 = arith.constant 0 : i32
    %153 = arith.addi %c0_i32_94, %152 : i32
    %154 = tpu.assume_multiple %153, 8 : i32
    %155 = arith.index_cast %154 : i32 to index
    %c0_95 = arith.constant 0 : index
    %156 = vector.load %arg6[%155, %c0_95] : memref<128x512xf32, #tpu.memory_space<vmem>>, vector<8x512xf32>
    %c0_96 = arith.constant 0 : index
    %c0_97 = arith.constant 0 : index
    %c0_98 = arith.constant 0 : index
    %157 = vector.load %arg7[%c0_96, %c0_97, %c0_98] : memref<2x8x128xf32, #tpu.memory_space<vmem>>, vector<1x8x128xf32>
    %158 = vector.shape_cast %157 : vector<1x8x128xf32> to vector<8x128xf32>
    %159 = arith.truncf %158 : vector<8x128xf32> to vector<8x128xbf16>
    %cst_99 = arith.constant dense<0.000000e+00> : vector<8x512xf32>
    %160 = tpu.matmul %159, %35, %cst_99 {dimension_numbers = #tpu.dot_dimension_numbers<[1], [0], [0], [1], [0, 0, 1, 1], [], []>} : vector<8x128xbf16>, vector<128x512xbf16>, vector<8x512xf32> -> vector<8x512xf32>
    %161 = arith.addf %156, %160 : vector<8x512xf32>
    %162 = vector.extract_strided_slice %161 {offsets = [0, 0], sizes = [8, 128], strides = [1, 1]} : vector<8x512xf32> to vector<8x128xf32>
    %163 = arith.negf %162 : vector<8x128xf32>
    %164 = math.exp %163 : vector<8x128xf32>
    %cst_100 = arith.constant 1.000000e+00 : f32
    %165 = vector.broadcast %cst_100 : f32 to vector<8x128xf32>
    %166 = arith.addf %165, %164 : vector<8x128xf32>
    %167 = arith.divf %165, %166 : vector<8x128xf32>
    %168 = vector.extract_strided_slice %161 {offsets = [0, 128], sizes = [8, 128], strides = [1, 1]} : vector<8x512xf32> to vector<8x128xf32>
    %169 = arith.negf %168 : vector<8x128xf32>
    %170 = math.exp %169 : vector<8x128xf32>
    %cst_101 = arith.constant 1.000000e+00 : f32
    %171 = vector.broadcast %cst_101 : f32 to vector<8x128xf32>
    %172 = arith.addf %171, %170 : vector<8x128xf32>
    %173 = arith.divf %171, %172 : vector<8x128xf32>
    %174 = vector.extract_strided_slice %161 {offsets = [0, 256], sizes = [8, 128], strides = [1, 1]} : vector<8x512xf32> to vector<8x128xf32>
    %175 = math.tanh %174 : vector<8x128xf32>
    %176 = vector.extract_strided_slice %161 {offsets = [0, 384], sizes = [8, 128], strides = [1, 1]} : vector<8x512xf32> to vector<8x128xf32>
    %177 = arith.negf %176 : vector<8x128xf32>
    %178 = math.exp %177 : vector<8x128xf32>
    %cst_102 = arith.constant 1.000000e+00 : f32
    %179 = vector.broadcast %cst_102 : f32 to vector<8x128xf32>
    %180 = arith.addf %179, %178 : vector<8x128xf32>
    %181 = arith.divf %179, %180 : vector<8x128xf32>
    %c0_103 = arith.constant 0 : index
    %c0_104 = arith.constant 0 : index
    %c0_105 = arith.constant 0 : index
    %182 = vector.load %arg8[%c0_103, %c0_104, %c0_105] : memref<2x8x128xf32, #tpu.memory_space<vmem>>, vector<1x8x128xf32>
    %183 = vector.shape_cast %182 : vector<1x8x128xf32> to vector<8x128xf32>
    %184 = arith.mulf %173, %183 : vector<8x128xf32>
    %185 = arith.mulf %167, %175 : vector<8x128xf32>
    %186 = arith.addf %184, %185 : vector<8x128xf32>
    %187 = math.tanh %186 : vector<8x128xf32>
    %188 = arith.mulf %181, %187 : vector<8x128xf32>
    %c0_106 = arith.constant 0 : index
    %c0_107 = arith.constant 0 : index
    %c0_108 = arith.constant 0 : index
    %189 = vector.load %arg8[%c0_106, %c0_107, %c0_108] : memref<2x8x128xf32, #tpu.memory_space<vmem>>, vector<1x8x128xf32>
    %190 = vector.shape_cast %189 : vector<1x8x128xf32> to vector<8x128xf32>
    %191 = vector.shape_cast %186 : vector<8x128xf32> to vector<1x8x128xf32>
    tpu.vector_store %arg8[%c0_106, %c0_107, %c0_108], %191 {strides = array<i32>} : memref<2x8x128xf32, #tpu.memory_space<vmem>>, vector<1x8x128xf32>,
    %c0_109 = arith.constant 0 : index
    %c0_110 = arith.constant 0 : index
    %c0_111 = arith.constant 0 : index
    %192 = vector.load %arg7[%c0_109, %c0_110, %c0_111] : memref<2x8x128xf32, #tpu.memory_space<vmem>>, vector<1x8x128xf32>
    %193 = vector.shape_cast %192 : vector<1x8x128xf32> to vector<8x128xf32>
    %194 = vector.shape_cast %188 : vector<8x128xf32> to vector<1x8x128xf32>
    tpu.vector_store %arg7[%c0_109, %c0_110, %c0_111], %194 {strides = array<i32>} : memref<2x8x128xf32, #tpu.memory_space<vmem>>, vector<1x8x128xf32>,
    %195 = arith.truncf %188 : vector<8x128xf32> to vector<8x128xbf16>
    %c0_112 = arith.constant 0 : index
    %196 = arith.index_cast %151 : i32 to index
    %c0_113 = arith.constant 0 : index
    %c0_114 = arith.constant 0 : index
    %197 = vector.load %arg5[%c0_112, %196, %c0_113, %c0_114] : memref<2x8x8x128xbf16, #tpu.memory_space<vmem>>, vector<1x1x8x128xbf16>
    %198 = vector.shape_cast %197 : vector<1x1x8x128xbf16> to vector<8x128xbf16>
    %199 = vector.shape_cast %195 : vector<8x128xbf16> to vector<1x1x8x128xbf16>
    tpu.vector_store %arg5[%c0_112, %196, %c0_113, %c0_114], %199 {strides = array<i32>} : memref<2x8x8x128xbf16, #tpu.memory_space<vmem>>, vector<1x1x8x128xbf16>,
    %c2_i32_115 = arith.constant 2 : i32
    %200 = arith.muli %arg0, %c2_i32_115 : i32
    %c1_i32_116 = arith.constant 1 : i32
    %201 = arith.addi %200, %c1_i32_116 : i32
    %c2_i32_117 = arith.constant 2 : i32
    %202 = arith.muli %c2_i32_117, %c1_i32_88 : i32
    %c7_i32_118 = arith.constant 7 : i32
    %203 = arith.subi %c7_i32_118, %202 : i32
    %204 = arith.muli %201, %203 : i32
    %205 = arith.addi %c1_i32_88, %204 : i32
    %c8_i32_119 = arith.constant 8 : i32
    %206 = arith.muli %205, %c8_i32_119 : i32
    %c64_i32_120 = arith.constant 64 : i32
    %207 = arith.addi %c64_i32_120, %206 : i32
    %208 = tpu.assume_multiple %207, 8 : i32
    %209 = arith.index_cast %208 : i32 to index
    %c0_121 = arith.constant 0 : index
    %210 = vector.load %arg6[%209, %c0_121] : memref<128x512xf32, #tpu.memory_space<vmem>>, vector<8x512xf32>
    %c1_122 = arith.constant 1 : index
    %c0_123 = arith.constant 0 : index
    %c0_124 = arith.constant 0 : index
    %211 = vector.load %arg7[%c1_122, %c0_123, %c0_124] : memref<2x8x128xf32, #tpu.memory_space<vmem>>, vector<1x8x128xf32>
    %212 = vector.shape_cast %211 : vector<1x8x128xf32> to vector<8x128xf32>
    %213 = arith.truncf %212 : vector<8x128xf32> to vector<8x128xbf16>
    %cst_125 = arith.constant dense<0.000000e+00> : vector<8x512xf32>
    %214 = tpu.matmul %213, %37, %cst_125 {dimension_numbers = #tpu.dot_dimension_numbers<[1], [0], [0], [1], [0, 0, 1, 1], [], []>} : vector<8x128xbf16>, vector<128x512xbf16>, vector<8x512xf32> -> vector<8x512xf32>
    %215 = arith.addf %210, %214 : vector<8x512xf32>
    %216 = vector.extract_strided_slice %215 {offsets = [0, 0], sizes = [8, 128], strides = [1, 1]} : vector<8x512xf32> to vector<8x128xf32>
    %217 = arith.negf %216 : vector<8x128xf32>
    %218 = math.exp %217 : vector<8x128xf32>
    %cst_126 = arith.constant 1.000000e+00 : f32
    %219 = vector.broadcast %cst_126 : f32 to vector<8x128xf32>
    %220 = arith.addf %219, %218 : vector<8x128xf32>
    %221 = arith.divf %219, %220 : vector<8x128xf32>
    %222 = vector.extract_strided_slice %215 {offsets = [0, 128], sizes = [8, 128], strides = [1, 1]} : vector<8x512xf32> to vector<8x128xf32>
    %223 = arith.negf %222 : vector<8x128xf32>
    %224 = math.exp %223 : vector<8x128xf32>
    %cst_127 = arith.constant 1.000000e+00 : f32
    %225 = vector.broadcast %cst_127 : f32 to vector<8x128xf32>
    %226 = arith.addf %225, %224 : vector<8x128xf32>
    %227 = arith.divf %225, %226 : vector<8x128xf32>
    %228 = vector.extract_strided_slice %215 {offsets = [0, 256], sizes = [8, 128], strides = [1, 1]} : vector<8x512xf32> to vector<8x128xf32>
    %229 = math.tanh %228 : vector<8x128xf32>
    %230 = vector.extract_strided_slice %215 {offsets = [0, 384], sizes = [8, 128], strides = [1, 1]} : vector<8x512xf32> to vector<8x128xf32>
    %231 = arith.negf %230 : vector<8x128xf32>
    %232 = math.exp %231 : vector<8x128xf32>
    %cst_128 = arith.constant 1.000000e+00 : f32
    %233 = vector.broadcast %cst_128 : f32 to vector<8x128xf32>
    %234 = arith.addf %233, %232 : vector<8x128xf32>
    %235 = arith.divf %233, %234 : vector<8x128xf32>
    %c1_129 = arith.constant 1 : index
    %c0_130 = arith.constant 0 : index
    %c0_131 = arith.constant 0 : index
    %236 = vector.load %arg8[%c1_129, %c0_130, %c0_131] : memref<2x8x128xf32, #tpu.memory_space<vmem>>, vector<1x8x128xf32>
    %237 = vector.shape_cast %236 : vector<1x8x128xf32> to vector<8x128xf32>
    %238 = arith.mulf %227, %237 : vector<8x128xf32>
    %239 = arith.mulf %221, %229 : vector<8x128xf32>
    %240 = arith.addf %238, %239 : vector<8x128xf32>
    %241 = math.tanh %240 : vector<8x128xf32>
    %242 = arith.mulf %235, %241 : vector<8x128xf32>
    %c1_132 = arith.constant 1 : index
    %c0_133 = arith.constant 0 : index
    %c0_134 = arith.constant 0 : index
    %243 = vector.load %arg8[%c1_132, %c0_133, %c0_134] : memref<2x8x128xf32, #tpu.memory_space<vmem>>, vector<1x8x128xf32>
    %244 = vector.shape_cast %243 : vector<1x8x128xf32> to vector<8x128xf32>
    %245 = vector.shape_cast %240 : vector<8x128xf32> to vector<1x8x128xf32>
    tpu.vector_store %arg8[%c1_132, %c0_133, %c0_134], %245 {strides = array<i32>} : memref<2x8x128xf32, #tpu.memory_space<vmem>>, vector<1x8x128xf32>,
    %c1_135 = arith.constant 1 : index
    %c0_136 = arith.constant 0 : index
    %c0_137 = arith.constant 0 : index
    %246 = vector.load %arg7[%c1_135, %c0_136, %c0_137] : memref<2x8x128xf32, #tpu.memory_space<vmem>>, vector<1x8x128xf32>
    %247 = vector.shape_cast %246 : vector<1x8x128xf32> to vector<8x128xf32>
    %248 = vector.shape_cast %242 : vector<8x128xf32> to vector<1x8x128xf32>
    tpu.vector_store %arg7[%c1_135, %c0_136, %c0_137], %248 {strides = array<i32>} : memref<2x8x128xf32, #tpu.memory_space<vmem>>, vector<1x8x128xf32>,
    %249 = arith.truncf %242 : vector<8x128xf32> to vector<8x128xbf16>
    %c1_138 = arith.constant 1 : index
    %250 = arith.index_cast %205 : i32 to index
    %c0_139 = arith.constant 0 : index
    %c0_140 = arith.constant 0 : index
    %251 = vector.load %arg5[%c1_138, %250, %c0_139, %c0_140] : memref<2x8x8x128xbf16, #tpu.memory_space<vmem>>, vector<1x1x8x128xbf16>
    %252 = vector.shape_cast %251 : vector<1x1x8x128xbf16> to vector<8x128xbf16>
    %253 = vector.shape_cast %249 : vector<8x128xbf16> to vector<1x1x8x128xbf16>
    tpu.vector_store %arg5[%c1_138, %250, %c0_139, %c0_140], %253 {strides = array<i32>} : memref<2x8x8x128xbf16, #tpu.memory_space<vmem>>, vector<1x1x8x128xbf16>,
    %c2_i32_141 = arith.constant 2 : i32
    %c2_i32_142 = arith.constant 2 : i32
    %254 = arith.muli %arg0, %c2_i32_142 : i32
    %c0_i32_143 = arith.constant 0 : i32
    %255 = arith.addi %254, %c0_i32_143 : i32
    %c2_i32_144 = arith.constant 2 : i32
    %256 = arith.muli %c2_i32_144, %c2_i32_141 : i32
    %c7_i32_145 = arith.constant 7 : i32
    %257 = arith.subi %c7_i32_145, %256 : i32
    %258 = arith.muli %255, %257 : i32
    %259 = arith.addi %c2_i32_141, %258 : i32
    %c8_i32_146 = arith.constant 8 : i32
    %260 = arith.muli %259, %c8_i32_146 : i32
    %c0_i32_147 = arith.constant 0 : i32
    %261 = arith.addi %c0_i32_147, %260 : i32
    %262 = tpu.assume_multiple %261, 8 : i32
    %263 = arith.index_cast %262 : i32 to index
    %c0_148 = arith.constant 0 : index
    %264 = vector.load %arg6[%263, %c0_148] : memref<128x512xf32, #tpu.memory_space<vmem>>, vector<8x512xf32>
    %c0_149 = arith.constant 0 : index
    %c0_150 = arith.constant 0 : index
    %c0_151 = arith.constant 0 : index
    %265 = vector.load %arg7[%c0_149, %c0_150, %c0_151] : memref<2x8x128xf32, #tpu.memory_space<vmem>>, vector<1x8x128xf32>
    %266 = vector.shape_cast %265 : vector<1x8x128xf32> to vector<8x128xf32>
    %267 = arith.truncf %266 : vector<8x128xf32> to vector<8x128xbf16>
    %cst_152 = arith.constant dense<0.000000e+00> : vector<8x512xf32>
    %268 = tpu.matmul %267, %35, %cst_152 {dimension_numbers = #tpu.dot_dimension_numbers<[1], [0], [0], [1], [0, 0, 1, 1], [], []>} : vector<8x128xbf16>, vector<128x512xbf16>, vector<8x512xf32> -> vector<8x512xf32>
    %269 = arith.addf %264, %268 : vector<8x512xf32>
    %270 = vector.extract_strided_slice %269 {offsets = [0, 0], sizes = [8, 128], strides = [1, 1]} : vector<8x512xf32> to vector<8x128xf32>
    %271 = arith.negf %270 : vector<8x128xf32>
    %272 = math.exp %271 : vector<8x128xf32>
    %cst_153 = arith.constant 1.000000e+00 : f32
    %273 = vector.broadcast %cst_153 : f32 to vector<8x128xf32>
    %274 = arith.addf %273, %272 : vector<8x128xf32>
    %275 = arith.divf %273, %274 : vector<8x128xf32>
    %276 = vector.extract_strided_slice %269 {offsets = [0, 128], sizes = [8, 128], strides = [1, 1]} : vector<8x512xf32> to vector<8x128xf32>
    %277 = arith.negf %276 : vector<8x128xf32>
    %278 = math.exp %277 : vector<8x128xf32>
    %cst_154 = arith.constant 1.000000e+00 : f32
    %279 = vector.broadcast %cst_154 : f32 to vector<8x128xf32>
    %280 = arith.addf %279, %278 : vector<8x128xf32>
    %281 = arith.divf %279, %280 : vector<8x128xf32>
    %282 = vector.extract_strided_slice %269 {offsets = [0, 256], sizes = [8, 128], strides = [1, 1]} : vector<8x512xf32> to vector<8x128xf32>
    %283 = math.tanh %282 : vector<8x128xf32>
    %284 = vector.extract_strided_slice %269 {offsets = [0, 384], sizes = [8, 128], strides = [1, 1]} : vector<8x512xf32> to vector<8x128xf32>
    %285 = arith.negf %284 : vector<8x128xf32>
    %286 = math.exp %285 : vector<8x128xf32>
    %cst_155 = arith.constant 1.000000e+00 : f32
    %287 = vector.broadcast %cst_155 : f32 to vector<8x128xf32>
    %288 = arith.addf %287, %286 : vector<8x128xf32>
    %289 = arith.divf %287, %288 : vector<8x128xf32>
    %c0_156 = arith.constant 0 : index
    %c0_157 = arith.constant 0 : index
    %c0_158 = arith.constant 0 : index
    %290 = vector.load %arg8[%c0_156, %c0_157, %c0_158] : memref<2x8x128xf32, #tpu.memory_space<vmem>>, vector<1x8x128xf32>
    %291 = vector.shape_cast %290 : vector<1x8x128xf32> to vector<8x128xf32>
    %292 = arith.mulf %281, %291 : vector<8x128xf32>
    %293 = arith.mulf %275, %283 : vector<8x128xf32>
    %294 = arith.addf %292, %293 : vector<8x128xf32>
    %295 = math.tanh %294 : vector<8x128xf32>
    %296 = arith.mulf %289, %295 : vector<8x128xf32>
    %c0_159 = arith.constant 0 : index
    %c0_160 = arith.constant 0 : index
    %c0_161 = arith.constant 0 : index
    %297 = vector.load %arg8[%c0_159, %c0_160, %c0_161] : memref<2x8x128xf32, #tpu.memory_space<vmem>>, vector<1x8x128xf32>
    %298 = vector.shape_cast %297 : vector<1x8x128xf32> to vector<8x128xf32>
    %299 = vector.shape_cast %294 : vector<8x128xf32> to vector<1x8x128xf32>
    tpu.vector_store %arg8[%c0_159, %c0_160, %c0_161], %299 {strides = array<i32>} : memref<2x8x128xf32, #tpu.memory_space<vmem>>, vector<1x8x128xf32>,
    %c0_162 = arith.constant 0 : index
    %c0_163 = arith.constant 0 : index
    %c0_164 = arith.constant 0 : index
    %300 = vector.load %arg7[%c0_162, %c0_163, %c0_164] : memref<2x8x128xf32, #tpu.memory_space<vmem>>, vector<1x8x128xf32>
    %301 = vector.shape_cast %300 : vector<1x8x128xf32> to vector<8x128xf32>
    %302 = vector.shape_cast %296 : vector<8x128xf32> to vector<1x8x128xf32>
    tpu.vector_store %arg7[%c0_162, %c0_163, %c0_164], %302 {strides = array<i32>} : memref<2x8x128xf32, #tpu.memory_space<vmem>>, vector<1x8x128xf32>,
    %303 = arith.truncf %296 : vector<8x128xf32> to vector<8x128xbf16>
    %c0_165 = arith.constant 0 : index
    %304 = arith.index_cast %259 : i32 to index
    %c0_166 = arith.constant 0 : index
    %c0_167 = arith.constant 0 : index
    %305 = vector.load %arg5[%c0_165, %304, %c0_166, %c0_167] : memref<2x8x8x128xbf16, #tpu.memory_space<vmem>>, vector<1x1x8x128xbf16>
    %306 = vector.shape_cast %305 : vector<1x1x8x128xbf16> to vector<8x128xbf16>
    %307 = vector.shape_cast %303 : vector<8x128xbf16> to vector<1x1x8x128xbf16>
    tpu.vector_store %arg5[%c0_165, %304, %c0_166, %c0_167], %307 {strides = array<i32>} : memref<2x8x8x128xbf16, #tpu.memory_space<vmem>>, vector<1x1x8x128xbf16>,
    %c2_i32_168 = arith.constant 2 : i32
    %308 = arith.muli %arg0, %c2_i32_168 : i32
    %c1_i32_169 = arith.constant 1 : i32
    %309 = arith.addi %308, %c1_i32_169 : i32
    %c2_i32_170 = arith.constant 2 : i32
    %310 = arith.muli %c2_i32_170, %c2_i32_141 : i32
    %c7_i32_171 = arith.constant 7 : i32
    %311 = arith.subi %c7_i32_171, %310 : i32
    %312 = arith.muli %309, %311 : i32
    %313 = arith.addi %c2_i32_141, %312 : i32
    %c8_i32_172 = arith.constant 8 : i32
    %314 = arith.muli %313, %c8_i32_172 : i32
    %c64_i32_173 = arith.constant 64 : i32
    %315 = arith.addi %c64_i32_173, %314 : i32
    %316 = tpu.assume_multiple %315, 8 : i32
    %317 = arith.index_cast %316 : i32 to index
    %c0_174 = arith.constant 0 : index
    %318 = vector.load %arg6[%317, %c0_174] : memref<128x512xf32, #tpu.memory_space<vmem>>, vector<8x512xf32>
    %c1_175 = arith.constant 1 : index
    %c0_176 = arith.constant 0 : index
    %c0_177 = arith.constant 0 : index
    %319 = vector.load %arg7[%c1_175, %c0_176, %c0_177] : memref<2x8x128xf32, #tpu.memory_space<vmem>>, vector<1x8x128xf32>
    %320 = vector.shape_cast %319 : vector<1x8x128xf32> to vector<8x128xf32>
    %321 = arith.truncf %320 : vector<8x128xf32> to vector<8x128xbf16>
    %cst_178 = arith.constant dense<0.000000e+00> : vector<8x512xf32>
    %322 = tpu.matmul %321, %37, %cst_178 {dimension_numbers = #tpu.dot_dimension_numbers<[1], [0], [0], [1], [0, 0, 1, 1], [], []>} : vector<8x128xbf16>, vector<128x512xbf16>, vector<8x512xf32> -> vector<8x512xf32>
    %323 = arith.addf %318, %322 : vector<8x512xf32>
    %324 = vector.extract_strided_slice %323 {offsets = [0, 0], sizes = [8, 128], strides = [1, 1]} : vector<8x512xf32> to vector<8x128xf32>
    %325 = arith.negf %324 : vector<8x128xf32>
    %326 = math.exp %325 : vector<8x128xf32>
    %cst_179 = arith.constant 1.000000e+00 : f32
    %327 = vector.broadcast %cst_179 : f32 to vector<8x128xf32>
    %328 = arith.addf %327, %326 : vector<8x128xf32>
    %329 = arith.divf %327, %328 : vector<8x128xf32>
    %330 = vector.extract_strided_slice %323 {offsets = [0, 128], sizes = [8, 128], strides = [1, 1]} : vector<8x512xf32> to vector<8x128xf32>
    %331 = arith.negf %330 : vector<8x128xf32>
    %332 = math.exp %331 : vector<8x128xf32>
    %cst_180 = arith.constant 1.000000e+00 : f32
    %333 = vector.broadcast %cst_180 : f32 to vector<8x128xf32>
    %334 = arith.addf %333, %332 : vector<8x128xf32>
    %335 = arith.divf %333, %334 : vector<8x128xf32>
    %336 = vector.extract_strided_slice %323 {offsets = [0, 256], sizes = [8, 128], strides = [1, 1]} : vector<8x512xf32> to vector<8x128xf32>
    %337 = math.tanh %336 : vector<8x128xf32>
    %338 = vector.extract_strided_slice %323 {offsets = [0, 384], sizes = [8, 128], strides = [1, 1]} : vector<8x512xf32> to vector<8x128xf32>
    %339 = arith.negf %338 : vector<8x128xf32>
    %340 = math.exp %339 : vector<8x128xf32>
    %cst_181 = arith.constant 1.000000e+00 : f32
    %341 = vector.broadcast %cst_181 : f32 to vector<8x128xf32>
    %342 = arith.addf %341, %340 : vector<8x128xf32>
    %343 = arith.divf %341, %342 : vector<8x128xf32>
    %c1_182 = arith.constant 1 : index
    %c0_183 = arith.constant 0 : index
    %c0_184 = arith.constant 0 : index
    %344 = vector.load %arg8[%c1_182, %c0_183, %c0_184] : memref<2x8x128xf32, #tpu.memory_space<vmem>>, vector<1x8x128xf32>
    %345 = vector.shape_cast %344 : vector<1x8x128xf32> to vector<8x128xf32>
    %346 = arith.mulf %335, %345 : vector<8x128xf32>
    %347 = arith.mulf %329, %337 : vector<8x128xf32>
    %348 = arith.addf %346, %347 : vector<8x128xf32>
    %349 = math.tanh %348 : vector<8x128xf32>
    %350 = arith.mulf %343, %349 : vector<8x128xf32>
    %c1_185 = arith.constant 1 : index
    %c0_186 = arith.constant 0 : index
    %c0_187 = arith.constant 0 : index
    %351 = vector.load %arg8[%c1_185, %c0_186, %c0_187] : memref<2x8x128xf32, #tpu.memory_space<vmem>>, vector<1x8x128xf32>
    %352 = vector.shape_cast %351 : vector<1x8x128xf32> to vector<8x128xf32>
    %353 = vector.shape_cast %348 : vector<8x128xf32> to vector<1x8x128xf32>
    tpu.vector_store %arg8[%c1_185, %c0_186, %c0_187], %353 {strides = array<i32>} : memref<2x8x128xf32, #tpu.memory_space<vmem>>, vector<1x8x128xf32>,
    %c1_188 = arith.constant 1 : index
    %c0_189 = arith.constant 0 : index
    %c0_190 = arith.constant 0 : index
    %354 = vector.load %arg7[%c1_188, %c0_189, %c0_190] : memref<2x8x128xf32, #tpu.memory_space<vmem>>, vector<1x8x128xf32>
    %355 = vector.shape_cast %354 : vector<1x8x128xf32> to vector<8x128xf32>
    %356 = vector.shape_cast %350 : vector<8x128xf32> to vector<1x8x128xf32>
    tpu.vector_store %arg7[%c1_188, %c0_189, %c0_190], %356 {strides = array<i32>} : memref<2x8x128xf32, #tpu.memory_space<vmem>>, vector<1x8x128xf32>,
    %357 = arith.truncf %350 : vector<8x128xf32> to vector<8x128xbf16>
    %c1_191 = arith.constant 1 : index
    %358 = arith.index_cast %313 : i32 to index
    %c0_192 = arith.constant 0 : index
    %c0_193 = arith.constant 0 : index
    %359 = vector.load %arg5[%c1_191, %358, %c0_192, %c0_193] : memref<2x8x8x128xbf16, #tpu.memory_space<vmem>>, vector<1x1x8x128xbf16>
    %360 = vector.shape_cast %359 : vector<1x1x8x128xbf16> to vector<8x128xbf16>
    %361 = vector.shape_cast %357 : vector<8x128xbf16> to vector<1x1x8x128xbf16>
    tpu.vector_store %arg5[%c1_191, %358, %c0_192, %c0_193], %361 {strides = array<i32>} : memref<2x8x8x128xbf16, #tpu.memory_space<vmem>>, vector<1x1x8x128xbf16>,
    %c3_i32 = arith.constant 3 : i32
    %c2_i32_194 = arith.constant 2 : i32
    %362 = arith.muli %arg0, %c2_i32_194 : i32
    %c0_i32_195 = arith.constant 0 : i32
    %363 = arith.addi %362, %c0_i32_195 : i32
    %c2_i32_196 = arith.constant 2 : i32
    %364 = arith.muli %c2_i32_196, %c3_i32 : i32
    %c7_i32_197 = arith.constant 7 : i32
    %365 = arith.subi %c7_i32_197, %364 : i32
    %366 = arith.muli %363, %365 : i32
    %367 = arith.addi %c3_i32, %366 : i32
    %c8_i32_198 = arith.constant 8 : i32
    %368 = arith.muli %367, %c8_i32_198 : i32
    %c0_i32_199 = arith.constant 0 : i32
    %369 = arith.addi %c0_i32_199, %368 : i32
    %370 = tpu.assume_multiple %369, 8 : i32
    %371 = arith.index_cast %370 : i32 to index
    %c0_200 = arith.constant 0 : index
    %372 = vector.load %arg6[%371, %c0_200] : memref<128x512xf32, #tpu.memory_space<vmem>>, vector<8x512xf32>
    %c0_201 = arith.constant 0 : index
    %c0_202 = arith.constant 0 : index
    %c0_203 = arith.constant 0 : index
    %373 = vector.load %arg7[%c0_201, %c0_202, %c0_203] : memref<2x8x128xf32, #tpu.memory_space<vmem>>, vector<1x8x128xf32>
    %374 = vector.shape_cast %373 : vector<1x8x128xf32> to vector<8x128xf32>
    %375 = arith.truncf %374 : vector<8x128xf32> to vector<8x128xbf16>
    %cst_204 = arith.constant dense<0.000000e+00> : vector<8x512xf32>
    %376 = tpu.matmul %375, %35, %cst_204 {dimension_numbers = #tpu.dot_dimension_numbers<[1], [0], [0], [1], [0, 0, 1, 1], [], []>} : vector<8x128xbf16>, vector<128x512xbf16>, vector<8x512xf32> -> vector<8x512xf32>
    %377 = arith.addf %372, %376 : vector<8x512xf32>
    %378 = vector.extract_strided_slice %377 {offsets = [0, 0], sizes = [8, 128], strides = [1, 1]} : vector<8x512xf32> to vector<8x128xf32>
    %379 = arith.negf %378 : vector<8x128xf32>
    %380 = math.exp %379 : vector<8x128xf32>
    %cst_205 = arith.constant 1.000000e+00 : f32
    %381 = vector.broadcast %cst_205 : f32 to vector<8x128xf32>
    %382 = arith.addf %381, %380 : vector<8x128xf32>
    %383 = arith.divf %381, %382 : vector<8x128xf32>
    %384 = vector.extract_strided_slice %377 {offsets = [0, 128], sizes = [8, 128], strides = [1, 1]} : vector<8x512xf32> to vector<8x128xf32>
    %385 = arith.negf %384 : vector<8x128xf32>
    %386 = math.exp %385 : vector<8x128xf32>
    %cst_206 = arith.constant 1.000000e+00 : f32
    %387 = vector.broadcast %cst_206 : f32 to vector<8x128xf32>
    %388 = arith.addf %387, %386 : vector<8x128xf32>
    %389 = arith.divf %387, %388 : vector<8x128xf32>
    %390 = vector.extract_strided_slice %377 {offsets = [0, 256], sizes = [8, 128], strides = [1, 1]} : vector<8x512xf32> to vector<8x128xf32>
    %391 = math.tanh %390 : vector<8x128xf32>
    %392 = vector.extract_strided_slice %377 {offsets = [0, 384], sizes = [8, 128], strides = [1, 1]} : vector<8x512xf32> to vector<8x128xf32>
    %393 = arith.negf %392 : vector<8x128xf32>
    %394 = math.exp %393 : vector<8x128xf32>
    %cst_207 = arith.constant 1.000000e+00 : f32
    %395 = vector.broadcast %cst_207 : f32 to vector<8x128xf32>
    %396 = arith.addf %395, %394 : vector<8x128xf32>
    %397 = arith.divf %395, %396 : vector<8x128xf32>
    %c0_208 = arith.constant 0 : index
    %c0_209 = arith.constant 0 : index
    %c0_210 = arith.constant 0 : index
    %398 = vector.load %arg8[%c0_208, %c0_209, %c0_210] : memref<2x8x128xf32, #tpu.memory_space<vmem>>, vector<1x8x128xf32>
    %399 = vector.shape_cast %398 : vector<1x8x128xf32> to vector<8x128xf32>
    %400 = arith.mulf %389, %399 : vector<8x128xf32>
    %401 = arith.mulf %383, %391 : vector<8x128xf32>
    %402 = arith.addf %400, %401 : vector<8x128xf32>
    %403 = math.tanh %402 : vector<8x128xf32>
    %404 = arith.mulf %397, %403 : vector<8x128xf32>
    %c0_211 = arith.constant 0 : index
    %c0_212 = arith.constant 0 : index
    %c0_213 = arith.constant 0 : index
    %405 = vector.load %arg8[%c0_211, %c0_212, %c0_213] : memref<2x8x128xf32, #tpu.memory_space<vmem>>, vector<1x8x128xf32>
    %406 = vector.shape_cast %405 : vector<1x8x128xf32> to vector<8x128xf32>
    %407 = vector.shape_cast %402 : vector<8x128xf32> to vector<1x8x128xf32>
    tpu.vector_store %arg8[%c0_211, %c0_212, %c0_213], %407 {strides = array<i32>} : memref<2x8x128xf32, #tpu.memory_space<vmem>>, vector<1x8x128xf32>,
    %c0_214 = arith.constant 0 : index
    %c0_215 = arith.constant 0 : index
    %c0_216 = arith.constant 0 : index
    %408 = vector.load %arg7[%c0_214, %c0_215, %c0_216] : memref<2x8x128xf32, #tpu.memory_space<vmem>>, vector<1x8x128xf32>
    %409 = vector.shape_cast %408 : vector<1x8x128xf32> to vector<8x128xf32>
    %410 = vector.shape_cast %404 : vector<8x128xf32> to vector<1x8x128xf32>
    tpu.vector_store %arg7[%c0_214, %c0_215, %c0_216], %410 {strides = array<i32>} : memref<2x8x128xf32, #tpu.memory_space<vmem>>, vector<1x8x128xf32>,
    %411 = arith.truncf %404 : vector<8x128xf32> to vector<8x128xbf16>
    %c0_217 = arith.constant 0 : index
    %412 = arith.index_cast %367 : i32 to index
    %c0_218 = arith.constant 0 : index
    %c0_219 = arith.constant 0 : index
    %413 = vector.load %arg5[%c0_217, %412, %c0_218, %c0_219] : memref<2x8x8x128xbf16, #tpu.memory_space<vmem>>, vector<1x1x8x128xbf16>
    %414 = vector.shape_cast %413 : vector<1x1x8x128xbf16> to vector<8x128xbf16>
    %415 = vector.shape_cast %411 : vector<8x128xbf16> to vector<1x1x8x128xbf16>
    tpu.vector_store %arg5[%c0_217, %412, %c0_218, %c0_219], %415 {strides = array<i32>} : memref<2x8x8x128xbf16, #tpu.memory_space<vmem>>, vector<1x1x8x128xbf16>,
    %c2_i32_220 = arith.constant 2 : i32
    %416 = arith.muli %arg0, %c2_i32_220 : i32
    %c1_i32_221 = arith.constant 1 : i32
    %417 = arith.addi %416, %c1_i32_221 : i32
    %c2_i32_222 = arith.constant 2 : i32
    %418 = arith.muli %c2_i32_222, %c3_i32 : i32
    %c7_i32_223 = arith.constant 7 : i32
    %419 = arith.subi %c7_i32_223, %418 : i32
    %420 = arith.muli %417, %419 : i32
    %421 = arith.addi %c3_i32, %420 : i32
    %c8_i32_224 = arith.constant 8 : i32
    %422 = arith.muli %421, %c8_i32_224 : i32
    %c64_i32_225 = arith.constant 64 : i32
    %423 = arith.addi %c64_i32_225, %422 : i32
    %424 = tpu.assume_multiple %423, 8 : i32
    %425 = arith.index_cast %424 : i32 to index
    %c0_226 = arith.constant 0 : index
    %426 = vector.load %arg6[%425, %c0_226] : memref<128x512xf32, #tpu.memory_space<vmem>>, vector<8x512xf32>
    %c1_227 = arith.constant 1 : index
    %c0_228 = arith.constant 0 : index
    %c0_229 = arith.constant 0 : index
    %427 = vector.load %arg7[%c1_227, %c0_228, %c0_229] : memref<2x8x128xf32, #tpu.memory_space<vmem>>, vector<1x8x128xf32>
    %428 = vector.shape_cast %427 : vector<1x8x128xf32> to vector<8x128xf32>
    %429 = arith.truncf %428 : vector<8x128xf32> to vector<8x128xbf16>
    %cst_230 = arith.constant dense<0.000000e+00> : vector<8x512xf32>
    %430 = tpu.matmul %429, %37, %cst_230 {dimension_numbers = #tpu.dot_dimension_numbers<[1], [0], [0], [1], [0, 0, 1, 1], [], []>} : vector<8x128xbf16>, vector<128x512xbf16>, vector<8x512xf32> -> vector<8x512xf32>
    %431 = arith.addf %426, %430 : vector<8x512xf32>
    %432 = vector.extract_strided_slice %431 {offsets = [0, 0], sizes = [8, 128], strides = [1, 1]} : vector<8x512xf32> to vector<8x128xf32>
    %433 = arith.negf %432 : vector<8x128xf32>
    %434 = math.exp %433 : vector<8x128xf32>
    %cst_231 = arith.constant 1.000000e+00 : f32
    %435 = vector.broadcast %cst_231 : f32 to vector<8x128xf32>
    %436 = arith.addf %435, %434 : vector<8x128xf32>
    %437 = arith.divf %435, %436 : vector<8x128xf32>
    %438 = vector.extract_strided_slice %431 {offsets = [0, 128], sizes = [8, 128], strides = [1, 1]} : vector<8x512xf32> to vector<8x128xf32>
    %439 = arith.negf %438 : vector<8x128xf32>
    %440 = math.exp %439 : vector<8x128xf32>
    %cst_232 = arith.constant 1.000000e+00 : f32
    %441 = vector.broadcast %cst_232 : f32 to vector<8x128xf32>
    %442 = arith.addf %441, %440 : vector<8x128xf32>
    %443 = arith.divf %441, %442 : vector<8x128xf32>
    %444 = vector.extract_strided_slice %431 {offsets = [0, 256], sizes = [8, 128], strides = [1, 1]} : vector<8x512xf32> to vector<8x128xf32>
    %445 = math.tanh %444 : vector<8x128xf32>
    %446 = vector.extract_strided_slice %431 {offsets = [0, 384], sizes = [8, 128], strides = [1, 1]} : vector<8x512xf32> to vector<8x128xf32>
    %447 = arith.negf %446 : vector<8x128xf32>
    %448 = math.exp %447 : vector<8x128xf32>
    %cst_233 = arith.constant 1.000000e+00 : f32
    %449 = vector.broadcast %cst_233 : f32 to vector<8x128xf32>
    %450 = arith.addf %449, %448 : vector<8x128xf32>
    %451 = arith.divf %449, %450 : vector<8x128xf32>
    %c1_234 = arith.constant 1 : index
    %c0_235 = arith.constant 0 : index
    %c0_236 = arith.constant 0 : index
    %452 = vector.load %arg8[%c1_234, %c0_235, %c0_236] : memref<2x8x128xf32, #tpu.memory_space<vmem>>, vector<1x8x128xf32>
    %453 = vector.shape_cast %452 : vector<1x8x128xf32> to vector<8x128xf32>
    %454 = arith.mulf %443, %453 : vector<8x128xf32>
    %455 = arith.mulf %437, %445 : vector<8x128xf32>
    %456 = arith.addf %454, %455 : vector<8x128xf32>
    %457 = math.tanh %456 : vector<8x128xf32>
    %458 = arith.mulf %451, %457 : vector<8x128xf32>
    %c1_237 = arith.constant 1 : index
    %c0_238 = arith.constant 0 : index
    %c0_239 = arith.constant 0 : index
    %459 = vector.load %arg8[%c1_237, %c0_238, %c0_239] : memref<2x8x128xf32, #tpu.memory_space<vmem>>, vector<1x8x128xf32>
    %460 = vector.shape_cast %459 : vector<1x8x128xf32> to vector<8x128xf32>
    %461 = vector.shape_cast %456 : vector<8x128xf32> to vector<1x8x128xf32>
    tpu.vector_store %arg8[%c1_237, %c0_238, %c0_239], %461 {strides = array<i32>} : memref<2x8x128xf32, #tpu.memory_space<vmem>>, vector<1x8x128xf32>,
    %c1_240 = arith.constant 1 : index
    %c0_241 = arith.constant 0 : index
    %c0_242 = arith.constant 0 : index
    %462 = vector.load %arg7[%c1_240, %c0_241, %c0_242] : memref<2x8x128xf32, #tpu.memory_space<vmem>>, vector<1x8x128xf32>
    %463 = vector.shape_cast %462 : vector<1x8x128xf32> to vector<8x128xf32>
    %464 = vector.shape_cast %458 : vector<8x128xf32> to vector<1x8x128xf32>
    tpu.vector_store %arg7[%c1_240, %c0_241, %c0_242], %464 {strides = array<i32>} : memref<2x8x128xf32, #tpu.memory_space<vmem>>, vector<1x8x128xf32>,
    %465 = arith.truncf %458 : vector<8x128xf32> to vector<8x128xbf16>
    %c1_243 = arith.constant 1 : index
    %466 = arith.index_cast %421 : i32 to index
    %c0_244 = arith.constant 0 : index
    %c0_245 = arith.constant 0 : index
    %467 = vector.load %arg5[%c1_243, %466, %c0_244, %c0_245] : memref<2x8x8x128xbf16, #tpu.memory_space<vmem>>, vector<1x1x8x128xbf16>
    %468 = vector.shape_cast %467 : vector<1x1x8x128xbf16> to vector<8x128xbf16>
    %469 = vector.shape_cast %465 : vector<8x128xbf16> to vector<1x1x8x128xbf16>
    tpu.vector_store %arg5[%c1_243, %466, %c0_244, %c0_245], %469 {strides = array<i32>} : memref<2x8x8x128xbf16, #tpu.memory_space<vmem>>, vector<1x1x8x128xbf16>,
    %c4_i32 = arith.constant 4 : i32
    %c2_i32_246 = arith.constant 2 : i32
    %470 = arith.muli %arg0, %c2_i32_246 : i32
    %c0_i32_247 = arith.constant 0 : i32
    %471 = arith.addi %470, %c0_i32_247 : i32
    %c2_i32_248 = arith.constant 2 : i32
    %472 = arith.muli %c2_i32_248, %c4_i32 : i32
    %c7_i32_249 = arith.constant 7 : i32
    %473 = arith.subi %c7_i32_249, %472 : i32
    %474 = arith.muli %471, %473 : i32
    %475 = arith.addi %c4_i32, %474 : i32
    %c8_i32_250 = arith.constant 8 : i32
    %476 = arith.muli %475, %c8_i32_250 : i32
    %c0_i32_251 = arith.constant 0 : i32
    %477 = arith.addi %c0_i32_251, %476 : i32
    %478 = tpu.assume_multiple %477, 8 : i32
    %479 = arith.index_cast %478 : i32 to index
    %c0_252 = arith.constant 0 : index
    %480 = vector.load %arg6[%479, %c0_252] : memref<128x512xf32, #tpu.memory_space<vmem>>, vector<8x512xf32>
    %c0_253 = arith.constant 0 : index
    %c0_254 = arith.constant 0 : index
    %c0_255 = arith.constant 0 : index
    %481 = vector.load %arg7[%c0_253, %c0_254, %c0_255] : memref<2x8x128xf32, #tpu.memory_space<vmem>>, vector<1x8x128xf32>
    %482 = vector.shape_cast %481 : vector<1x8x128xf32> to vector<8x128xf32>
    %483 = arith.truncf %482 : vector<8x128xf32> to vector<8x128xbf16>
    %cst_256 = arith.constant dense<0.000000e+00> : vector<8x512xf32>
    %484 = tpu.matmul %483, %35, %cst_256 {dimension_numbers = #tpu.dot_dimension_numbers<[1], [0], [0], [1], [0, 0, 1, 1], [], []>} : vector<8x128xbf16>, vector<128x512xbf16>, vector<8x512xf32> -> vector<8x512xf32>
    %485 = arith.addf %480, %484 : vector<8x512xf32>
    %486 = vector.extract_strided_slice %485 {offsets = [0, 0], sizes = [8, 128], strides = [1, 1]} : vector<8x512xf32> to vector<8x128xf32>
    %487 = arith.negf %486 : vector<8x128xf32>
    %488 = math.exp %487 : vector<8x128xf32>
    %cst_257 = arith.constant 1.000000e+00 : f32
    %489 = vector.broadcast %cst_257 : f32 to vector<8x128xf32>
    %490 = arith.addf %489, %488 : vector<8x128xf32>
    %491 = arith.divf %489, %490 : vector<8x128xf32>
    %492 = vector.extract_strided_slice %485 {offsets = [0, 128], sizes = [8, 128], strides = [1, 1]} : vector<8x512xf32> to vector<8x128xf32>
    %493 = arith.negf %492 : vector<8x128xf32>
    %494 = math.exp %493 : vector<8x128xf32>
    %cst_258 = arith.constant 1.000000e+00 : f32
    %495 = vector.broadcast %cst_258 : f32 to vector<8x128xf32>
    %496 = arith.addf %495, %494 : vector<8x128xf32>
    %497 = arith.divf %495, %496 : vector<8x128xf32>
    %498 = vector.extract_strided_slice %485 {offsets = [0, 256], sizes = [8, 128], strides = [1, 1]} : vector<8x512xf32> to vector<8x128xf32>
    %499 = math.tanh %498 : vector<8x128xf32>
    %500 = vector.extract_strided_slice %485 {offsets = [0, 384], sizes = [8, 128], strides = [1, 1]} : vector<8x512xf32> to vector<8x128xf32>
    %501 = arith.negf %500 : vector<8x128xf32>
    %502 = math.exp %501 : vector<8x128xf32>
    %cst_259 = arith.constant 1.000000e+00 : f32
    %503 = vector.broadcast %cst_259 : f32 to vector<8x128xf32>
    %504 = arith.addf %503, %502 : vector<8x128xf32>
    %505 = arith.divf %503, %504 : vector<8x128xf32>
    %c0_260 = arith.constant 0 : index
    %c0_261 = arith.constant 0 : index
    %c0_262 = arith.constant 0 : index
    %506 = vector.load %arg8[%c0_260, %c0_261, %c0_262] : memref<2x8x128xf32, #tpu.memory_space<vmem>>, vector<1x8x128xf32>
    %507 = vector.shape_cast %506 : vector<1x8x128xf32> to vector<8x128xf32>
    %508 = arith.mulf %497, %507 : vector<8x128xf32>
    %509 = arith.mulf %491, %499 : vector<8x128xf32>
    %510 = arith.addf %508, %509 : vector<8x128xf32>
    %511 = math.tanh %510 : vector<8x128xf32>
    %512 = arith.mulf %505, %511 : vector<8x128xf32>
    %c0_263 = arith.constant 0 : index
    %c0_264 = arith.constant 0 : index
    %c0_265 = arith.constant 0 : index
    %513 = vector.load %arg8[%c0_263, %c0_264, %c0_265] : memref<2x8x128xf32, #tpu.memory_space<vmem>>, vector<1x8x128xf32>
    %514 = vector.shape_cast %513 : vector<1x8x128xf32> to vector<8x128xf32>
    %515 = vector.shape_cast %510 : vector<8x128xf32> to vector<1x8x128xf32>
    tpu.vector_store %arg8[%c0_263, %c0_264, %c0_265], %515 {strides = array<i32>} : memref<2x8x128xf32, #tpu.memory_space<vmem>>, vector<1x8x128xf32>,
    %c0_266 = arith.constant 0 : index
    %c0_267 = arith.constant 0 : index
    %c0_268 = arith.constant 0 : index
    %516 = vector.load %arg7[%c0_266, %c0_267, %c0_268] : memref<2x8x128xf32, #tpu.memory_space<vmem>>, vector<1x8x128xf32>
    %517 = vector.shape_cast %516 : vector<1x8x128xf32> to vector<8x128xf32>
    %518 = vector.shape_cast %512 : vector<8x128xf32> to vector<1x8x128xf32>
    tpu.vector_store %arg7[%c0_266, %c0_267, %c0_268], %518 {strides = array<i32>} : memref<2x8x128xf32, #tpu.memory_space<vmem>>, vector<1x8x128xf32>,
    %519 = arith.truncf %512 : vector<8x128xf32> to vector<8x128xbf16>
    %c0_269 = arith.constant 0 : index
    %520 = arith.index_cast %475 : i32 to index
    %c0_270 = arith.constant 0 : index
    %c0_271 = arith.constant 0 : index
    %521 = vector.load %arg5[%c0_269, %520, %c0_270, %c0_271] : memref<2x8x8x128xbf16, #tpu.memory_space<vmem>>, vector<1x1x8x128xbf16>
    %522 = vector.shape_cast %521 : vector<1x1x8x128xbf16> to vector<8x128xbf16>
    %523 = vector.shape_cast %519 : vector<8x128xbf16> to vector<1x1x8x128xbf16>
    tpu.vector_store %arg5[%c0_269, %520, %c0_270, %c0_271], %523 {strides = array<i32>} : memref<2x8x8x128xbf16, #tpu.memory_space<vmem>>, vector<1x1x8x128xbf16>,
    %c2_i32_272 = arith.constant 2 : i32
    %524 = arith.muli %arg0, %c2_i32_272 : i32
    %c1_i32_273 = arith.constant 1 : i32
    %525 = arith.addi %524, %c1_i32_273 : i32
    %c2_i32_274 = arith.constant 2 : i32
    %526 = arith.muli %c2_i32_274, %c4_i32 : i32
    %c7_i32_275 = arith.constant 7 : i32
    %527 = arith.subi %c7_i32_275, %526 : i32
    %528 = arith.muli %525, %527 : i32
    %529 = arith.addi %c4_i32, %528 : i32
    %c8_i32_276 = arith.constant 8 : i32
    %530 = arith.muli %529, %c8_i32_276 : i32
    %c64_i32_277 = arith.constant 64 : i32
    %531 = arith.addi %c64_i32_277, %530 : i32
    %532 = tpu.assume_multiple %531, 8 : i32
    %533 = arith.index_cast %532 : i32 to index
    %c0_278 = arith.constant 0 : index
    %534 = vector.load %arg6[%533, %c0_278] : memref<128x512xf32, #tpu.memory_space<vmem>>, vector<8x512xf32>
    %c1_279 = arith.constant 1 : index
    %c0_280 = arith.constant 0 : index
    %c0_281 = arith.constant 0 : index
    %535 = vector.load %arg7[%c1_279, %c0_280, %c0_281] : memref<2x8x128xf32, #tpu.memory_space<vmem>>, vector<1x8x128xf32>
    %536 = vector.shape_cast %535 : vector<1x8x128xf32> to vector<8x128xf32>
    %537 = arith.truncf %536 : vector<8x128xf32> to vector<8x128xbf16>
    %cst_282 = arith.constant dense<0.000000e+00> : vector<8x512xf32>
    %538 = tpu.matmul %537, %37, %cst_282 {dimension_numbers = #tpu.dot_dimension_numbers<[1], [0], [0], [1], [0, 0, 1, 1], [], []>} : vector<8x128xbf16>, vector<128x512xbf16>, vector<8x512xf32> -> vector<8x512xf32>
    %539 = arith.addf %534, %538 : vector<8x512xf32>
    %540 = vector.extract_strided_slice %539 {offsets = [0, 0], sizes = [8, 128], strides = [1, 1]} : vector<8x512xf32> to vector<8x128xf32>
    %541 = arith.negf %540 : vector<8x128xf32>
    %542 = math.exp %541 : vector<8x128xf32>
    %cst_283 = arith.constant 1.000000e+00 : f32
    %543 = vector.broadcast %cst_283 : f32 to vector<8x128xf32>
    %544 = arith.addf %543, %542 : vector<8x128xf32>
    %545 = arith.divf %543, %544 : vector<8x128xf32>
    %546 = vector.extract_strided_slice %539 {offsets = [0, 128], sizes = [8, 128], strides = [1, 1]} : vector<8x512xf32> to vector<8x128xf32>
    %547 = arith.negf %546 : vector<8x128xf32>
    %548 = math.exp %547 : vector<8x128xf32>
    %cst_284 = arith.constant 1.000000e+00 : f32
    %549 = vector.broadcast %cst_284 : f32 to vector<8x128xf32>
    %550 = arith.addf %549, %548 : vector<8x128xf32>
    %551 = arith.divf %549, %550 : vector<8x128xf32>
    %552 = vector.extract_strided_slice %539 {offsets = [0, 256], sizes = [8, 128], strides = [1, 1]} : vector<8x512xf32> to vector<8x128xf32>
    %553 = math.tanh %552 : vector<8x128xf32>
    %554 = vector.extract_strided_slice %539 {offsets = [0, 384], sizes = [8, 128], strides = [1, 1]} : vector<8x512xf32> to vector<8x128xf32>
    %555 = arith.negf %554 : vector<8x128xf32>
    %556 = math.exp %555 : vector<8x128xf32>
    %cst_285 = arith.constant 1.000000e+00 : f32
    %557 = vector.broadcast %cst_285 : f32 to vector<8x128xf32>
    %558 = arith.addf %557, %556 : vector<8x128xf32>
    %559 = arith.divf %557, %558 : vector<8x128xf32>
    %c1_286 = arith.constant 1 : index
    %c0_287 = arith.constant 0 : index
    %c0_288 = arith.constant 0 : index
    %560 = vector.load %arg8[%c1_286, %c0_287, %c0_288] : memref<2x8x128xf32, #tpu.memory_space<vmem>>, vector<1x8x128xf32>
    %561 = vector.shape_cast %560 : vector<1x8x128xf32> to vector<8x128xf32>
    %562 = arith.mulf %551, %561 : vector<8x128xf32>
    %563 = arith.mulf %545, %553 : vector<8x128xf32>
    %564 = arith.addf %562, %563 : vector<8x128xf32>
    %565 = math.tanh %564 : vector<8x128xf32>
    %566 = arith.mulf %559, %565 : vector<8x128xf32>
    %c1_289 = arith.constant 1 : index
    %c0_290 = arith.constant 0 : index
    %c0_291 = arith.constant 0 : index
    %567 = vector.load %arg8[%c1_289, %c0_290, %c0_291] : memref<2x8x128xf32, #tpu.memory_space<vmem>>, vector<1x8x128xf32>
    %568 = vector.shape_cast %567 : vector<1x8x128xf32> to vector<8x128xf32>
    %569 = vector.shape_cast %564 : vector<8x128xf32> to vector<1x8x128xf32>
    tpu.vector_store %arg8[%c1_289, %c0_290, %c0_291], %569 {strides = array<i32>} : memref<2x8x128xf32, #tpu.memory_space<vmem>>, vector<1x8x128xf32>,
    %c1_292 = arith.constant 1 : index
    %c0_293 = arith.constant 0 : index
    %c0_294 = arith.constant 0 : index
    %570 = vector.load %arg7[%c1_292, %c0_293, %c0_294] : memref<2x8x128xf32, #tpu.memory_space<vmem>>, vector<1x8x128xf32>
    %571 = vector.shape_cast %570 : vector<1x8x128xf32> to vector<8x128xf32>
    %572 = vector.shape_cast %566 : vector<8x128xf32> to vector<1x8x128xf32>
    tpu.vector_store %arg7[%c1_292, %c0_293, %c0_294], %572 {strides = array<i32>} : memref<2x8x128xf32, #tpu.memory_space<vmem>>, vector<1x8x128xf32>,
    %573 = arith.truncf %566 : vector<8x128xf32> to vector<8x128xbf16>
    %c1_295 = arith.constant 1 : index
    %574 = arith.index_cast %529 : i32 to index
    %c0_296 = arith.constant 0 : index
    %c0_297 = arith.constant 0 : index
    %575 = vector.load %arg5[%c1_295, %574, %c0_296, %c0_297] : memref<2x8x8x128xbf16, #tpu.memory_space<vmem>>, vector<1x1x8x128xbf16>
    %576 = vector.shape_cast %575 : vector<1x1x8x128xbf16> to vector<8x128xbf16>
    %577 = vector.shape_cast %573 : vector<8x128xbf16> to vector<1x1x8x128xbf16>
    tpu.vector_store %arg5[%c1_295, %574, %c0_296, %c0_297], %577 {strides = array<i32>} : memref<2x8x8x128xbf16, #tpu.memory_space<vmem>>, vector<1x1x8x128xbf16>,
    %c5_i32 = arith.constant 5 : i32
    %c2_i32_298 = arith.constant 2 : i32
    %578 = arith.muli %arg0, %c2_i32_298 : i32
    %c0_i32_299 = arith.constant 0 : i32
    %579 = arith.addi %578, %c0_i32_299 : i32
    %c2_i32_300 = arith.constant 2 : i32
    %580 = arith.muli %c2_i32_300, %c5_i32 : i32
    %c7_i32_301 = arith.constant 7 : i32
    %581 = arith.subi %c7_i32_301, %580 : i32
    %582 = arith.muli %579, %581 : i32
    %583 = arith.addi %c5_i32, %582 : i32
    %c8_i32_302 = arith.constant 8 : i32
    %584 = arith.muli %583, %c8_i32_302 : i32
    %c0_i32_303 = arith.constant 0 : i32
    %585 = arith.addi %c0_i32_303, %584 : i32
    %586 = tpu.assume_multiple %585, 8 : i32
    %587 = arith.index_cast %586 : i32 to index
    %c0_304 = arith.constant 0 : index
    %588 = vector.load %arg6[%587, %c0_304] : memref<128x512xf32, #tpu.memory_space<vmem>>, vector<8x512xf32>
    %c0_305 = arith.constant 0 : index
    %c0_306 = arith.constant 0 : index
    %c0_307 = arith.constant 0 : index
    %589 = vector.load %arg7[%c0_305, %c0_306, %c0_307] : memref<2x8x128xf32, #tpu.memory_space<vmem>>, vector<1x8x128xf32>
    %590 = vector.shape_cast %589 : vector<1x8x128xf32> to vector<8x128xf32>
    %591 = arith.truncf %590 : vector<8x128xf32> to vector<8x128xbf16>
    %cst_308 = arith.constant dense<0.000000e+00> : vector<8x512xf32>
    %592 = tpu.matmul %591, %35, %cst_308 {dimension_numbers = #tpu.dot_dimension_numbers<[1], [0], [0], [1], [0, 0, 1, 1], [], []>} : vector<8x128xbf16>, vector<128x512xbf16>, vector<8x512xf32> -> vector<8x512xf32>
    %593 = arith.addf %588, %592 : vector<8x512xf32>
    %594 = vector.extract_strided_slice %593 {offsets = [0, 0], sizes = [8, 128], strides = [1, 1]} : vector<8x512xf32> to vector<8x128xf32>
    %595 = arith.negf %594 : vector<8x128xf32>
    %596 = math.exp %595 : vector<8x128xf32>
    %cst_309 = arith.constant 1.000000e+00 : f32
    %597 = vector.broadcast %cst_309 : f32 to vector<8x128xf32>
    %598 = arith.addf %597, %596 : vector<8x128xf32>
    %599 = arith.divf %597, %598 : vector<8x128xf32>
    %600 = vector.extract_strided_slice %593 {offsets = [0, 128], sizes = [8, 128], strides = [1, 1]} : vector<8x512xf32> to vector<8x128xf32>
    %601 = arith.negf %600 : vector<8x128xf32>
    %602 = math.exp %601 : vector<8x128xf32>
    %cst_310 = arith.constant 1.000000e+00 : f32
    %603 = vector.broadcast %cst_310 : f32 to vector<8x128xf32>
    %604 = arith.addf %603, %602 : vector<8x128xf32>
    %605 = arith.divf %603, %604 : vector<8x128xf32>
    %606 = vector.extract_strided_slice %593 {offsets = [0, 256], sizes = [8, 128], strides = [1, 1]} : vector<8x512xf32> to vector<8x128xf32>
    %607 = math.tanh %606 : vector<8x128xf32>
    %608 = vector.extract_strided_slice %593 {offsets = [0, 384], sizes = [8, 128], strides = [1, 1]} : vector<8x512xf32> to vector<8x128xf32>
    %609 = arith.negf %608 : vector<8x128xf32>
    %610 = math.exp %609 : vector<8x128xf32>
    %cst_311 = arith.constant 1.000000e+00 : f32
    %611 = vector.broadcast %cst_311 : f32 to vector<8x128xf32>
    %612 = arith.addf %611, %610 : vector<8x128xf32>
    %613 = arith.divf %611, %612 : vector<8x128xf32>
    %c0_312 = arith.constant 0 : index
    %c0_313 = arith.constant 0 : index
    %c0_314 = arith.constant 0 : index
    %614 = vector.load %arg8[%c0_312, %c0_313, %c0_314] : memref<2x8x128xf32, #tpu.memory_space<vmem>>, vector<1x8x128xf32>
    %615 = vector.shape_cast %614 : vector<1x8x128xf32> to vector<8x128xf32>
    %616 = arith.mulf %605, %615 : vector<8x128xf32>
    %617 = arith.mulf %599, %607 : vector<8x128xf32>
    %618 = arith.addf %616, %617 : vector<8x128xf32>
    %619 = math.tanh %618 : vector<8x128xf32>
    %620 = arith.mulf %613, %619 : vector<8x128xf32>
    %c0_315 = arith.constant 0 : index
    %c0_316 = arith.constant 0 : index
    %c0_317 = arith.constant 0 : index
    %621 = vector.load %arg8[%c0_315, %c0_316, %c0_317] : memref<2x8x128xf32, #tpu.memory_space<vmem>>, vector<1x8x128xf32>
    %622 = vector.shape_cast %621 : vector<1x8x128xf32> to vector<8x128xf32>
    %623 = vector.shape_cast %618 : vector<8x128xf32> to vector<1x8x128xf32>
    tpu.vector_store %arg8[%c0_315, %c0_316, %c0_317], %623 {strides = array<i32>} : memref<2x8x128xf32, #tpu.memory_space<vmem>>, vector<1x8x128xf32>,
    %c0_318 = arith.constant 0 : index
    %c0_319 = arith.constant 0 : index
    %c0_320 = arith.constant 0 : index
    %624 = vector.load %arg7[%c0_318, %c0_319, %c0_320] : memref<2x8x128xf32, #tpu.memory_space<vmem>>, vector<1x8x128xf32>
    %625 = vector.shape_cast %624 : vector<1x8x128xf32> to vector<8x128xf32>
    %626 = vector.shape_cast %620 : vector<8x128xf32> to vector<1x8x128xf32>
    tpu.vector_store %arg7[%c0_318, %c0_319, %c0_320], %626 {strides = array<i32>} : memref<2x8x128xf32, #tpu.memory_space<vmem>>, vector<1x8x128xf32>,
    %627 = arith.truncf %620 : vector<8x128xf32> to vector<8x128xbf16>
    %c0_321 = arith.constant 0 : index
    %628 = arith.index_cast %583 : i32 to index
    %c0_322 = arith.constant 0 : index
    %c0_323 = arith.constant 0 : index
    %629 = vector.load %arg5[%c0_321, %628, %c0_322, %c0_323] : memref<2x8x8x128xbf16, #tpu.memory_space<vmem>>, vector<1x1x8x128xbf16>
    %630 = vector.shape_cast %629 : vector<1x1x8x128xbf16> to vector<8x128xbf16>
    %631 = vector.shape_cast %627 : vector<8x128xbf16> to vector<1x1x8x128xbf16>
    tpu.vector_store %arg5[%c0_321, %628, %c0_322, %c0_323], %631 {strides = array<i32>} : memref<2x8x8x128xbf16, #tpu.memory_space<vmem>>, vector<1x1x8x128xbf16>,
    %c2_i32_324 = arith.constant 2 : i32
    %632 = arith.muli %arg0, %c2_i32_324 : i32
    %c1_i32_325 = arith.constant 1 : i32
    %633 = arith.addi %632, %c1_i32_325 : i32
    %c2_i32_326 = arith.constant 2 : i32
    %634 = arith.muli %c2_i32_326, %c5_i32 : i32
    %c7_i32_327 = arith.constant 7 : i32
    %635 = arith.subi %c7_i32_327, %634 : i32
    %636 = arith.muli %633, %635 : i32
    %637 = arith.addi %c5_i32, %636 : i32
    %c8_i32_328 = arith.constant 8 : i32
    %638 = arith.muli %637, %c8_i32_328 : i32
    %c64_i32_329 = arith.constant 64 : i32
    %639 = arith.addi %c64_i32_329, %638 : i32
    %640 = tpu.assume_multiple %639, 8 : i32
    %641 = arith.index_cast %640 : i32 to index
    %c0_330 = arith.constant 0 : index
    %642 = vector.load %arg6[%641, %c0_330] : memref<128x512xf32, #tpu.memory_space<vmem>>, vector<8x512xf32>
    %c1_331 = arith.constant 1 : index
    %c0_332 = arith.constant 0 : index
    %c0_333 = arith.constant 0 : index
    %643 = vector.load %arg7[%c1_331, %c0_332, %c0_333] : memref<2x8x128xf32, #tpu.memory_space<vmem>>, vector<1x8x128xf32>
    %644 = vector.shape_cast %643 : vector<1x8x128xf32> to vector<8x128xf32>
    %645 = arith.truncf %644 : vector<8x128xf32> to vector<8x128xbf16>
    %cst_334 = arith.constant dense<0.000000e+00> : vector<8x512xf32>
    %646 = tpu.matmul %645, %37, %cst_334 {dimension_numbers = #tpu.dot_dimension_numbers<[1], [0], [0], [1], [0, 0, 1, 1], [], []>} : vector<8x128xbf16>, vector<128x512xbf16>, vector<8x512xf32> -> vector<8x512xf32>
    %647 = arith.addf %642, %646 : vector<8x512xf32>
    %648 = vector.extract_strided_slice %647 {offsets = [0, 0], sizes = [8, 128], strides = [1, 1]} : vector<8x512xf32> to vector<8x128xf32>
    %649 = arith.negf %648 : vector<8x128xf32>
    %650 = math.exp %649 : vector<8x128xf32>
    %cst_335 = arith.constant 1.000000e+00 : f32
    %651 = vector.broadcast %cst_335 : f32 to vector<8x128xf32>
    %652 = arith.addf %651, %650 : vector<8x128xf32>
    %653 = arith.divf %651, %652 : vector<8x128xf32>
    %654 = vector.extract_strided_slice %647 {offsets = [0, 128], sizes = [8, 128], strides = [1, 1]} : vector<8x512xf32> to vector<8x128xf32>
    %655 = arith.negf %654 : vector<8x128xf32>
    %656 = math.exp %655 : vector<8x128xf32>
    %cst_336 = arith.constant 1.000000e+00 : f32
    %657 = vector.broadcast %cst_336 : f32 to vector<8x128xf32>
    %658 = arith.addf %657, %656 : vector<8x128xf32>
    %659 = arith.divf %657, %658 : vector<8x128xf32>
    %660 = vector.extract_strided_slice %647 {offsets = [0, 256], sizes = [8, 128], strides = [1, 1]} : vector<8x512xf32> to vector<8x128xf32>
    %661 = math.tanh %660 : vector<8x128xf32>
    %662 = vector.extract_strided_slice %647 {offsets = [0, 384], sizes = [8, 128], strides = [1, 1]} : vector<8x512xf32> to vector<8x128xf32>
    %663 = arith.negf %662 : vector<8x128xf32>
    %664 = math.exp %663 : vector<8x128xf32>
    %cst_337 = arith.constant 1.000000e+00 : f32
    %665 = vector.broadcast %cst_337 : f32 to vector<8x128xf32>
    %666 = arith.addf %665, %664 : vector<8x128xf32>
    %667 = arith.divf %665, %666 : vector<8x128xf32>
    %c1_338 = arith.constant 1 : index
    %c0_339 = arith.constant 0 : index
    %c0_340 = arith.constant 0 : index
    %668 = vector.load %arg8[%c1_338, %c0_339, %c0_340] : memref<2x8x128xf32, #tpu.memory_space<vmem>>, vector<1x8x128xf32>
    %669 = vector.shape_cast %668 : vector<1x8x128xf32> to vector<8x128xf32>
    %670 = arith.mulf %659, %669 : vector<8x128xf32>
    %671 = arith.mulf %653, %661 : vector<8x128xf32>
    %672 = arith.addf %670, %671 : vector<8x128xf32>
    %673 = math.tanh %672 : vector<8x128xf32>
    %674 = arith.mulf %667, %673 : vector<8x128xf32>
    %c1_341 = arith.constant 1 : index
    %c0_342 = arith.constant 0 : index
    %c0_343 = arith.constant 0 : index
    %675 = vector.load %arg8[%c1_341, %c0_342, %c0_343] : memref<2x8x128xf32, #tpu.memory_space<vmem>>, vector<1x8x128xf32>
    %676 = vector.shape_cast %675 : vector<1x8x128xf32> to vector<8x128xf32>
    %677 = vector.shape_cast %672 : vector<8x128xf32> to vector<1x8x128xf32>
    tpu.vector_store %arg8[%c1_341, %c0_342, %c0_343], %677 {strides = array<i32>} : memref<2x8x128xf32, #tpu.memory_space<vmem>>, vector<1x8x128xf32>,
    %c1_344 = arith.constant 1 : index
    %c0_345 = arith.constant 0 : index
    %c0_346 = arith.constant 0 : index
    %678 = vector.load %arg7[%c1_344, %c0_345, %c0_346] : memref<2x8x128xf32, #tpu.memory_space<vmem>>, vector<1x8x128xf32>
    %679 = vector.shape_cast %678 : vector<1x8x128xf32> to vector<8x128xf32>
    %680 = vector.shape_cast %674 : vector<8x128xf32> to vector<1x8x128xf32>
    tpu.vector_store %arg7[%c1_344, %c0_345, %c0_346], %680 {strides = array<i32>} : memref<2x8x128xf32, #tpu.memory_space<vmem>>, vector<1x8x128xf32>,
    %681 = arith.truncf %674 : vector<8x128xf32> to vector<8x128xbf16>
    %c1_347 = arith.constant 1 : index
    %682 = arith.index_cast %637 : i32 to index
    %c0_348 = arith.constant 0 : index
    %c0_349 = arith.constant 0 : index
    %683 = vector.load %arg5[%c1_347, %682, %c0_348, %c0_349] : memref<2x8x8x128xbf16, #tpu.memory_space<vmem>>, vector<1x1x8x128xbf16>
    %684 = vector.shape_cast %683 : vector<1x1x8x128xbf16> to vector<8x128xbf16>
    %685 = vector.shape_cast %681 : vector<8x128xbf16> to vector<1x1x8x128xbf16>
    tpu.vector_store %arg5[%c1_347, %682, %c0_348, %c0_349], %685 {strides = array<i32>} : memref<2x8x8x128xbf16, #tpu.memory_space<vmem>>, vector<1x1x8x128xbf16>,
    %c6_i32 = arith.constant 6 : i32
    %c2_i32_350 = arith.constant 2 : i32
    %686 = arith.muli %arg0, %c2_i32_350 : i32
    %c0_i32_351 = arith.constant 0 : i32
    %687 = arith.addi %686, %c0_i32_351 : i32
    %c2_i32_352 = arith.constant 2 : i32
    %688 = arith.muli %c2_i32_352, %c6_i32 : i32
    %c7_i32_353 = arith.constant 7 : i32
    %689 = arith.subi %c7_i32_353, %688 : i32
    %690 = arith.muli %687, %689 : i32
    %691 = arith.addi %c6_i32, %690 : i32
    %c8_i32_354 = arith.constant 8 : i32
    %692 = arith.muli %691, %c8_i32_354 : i32
    %c0_i32_355 = arith.constant 0 : i32
    %693 = arith.addi %c0_i32_355, %692 : i32
    %694 = tpu.assume_multiple %693, 8 : i32
    %695 = arith.index_cast %694 : i32 to index
    %c0_356 = arith.constant 0 : index
    %696 = vector.load %arg6[%695, %c0_356] : memref<128x512xf32, #tpu.memory_space<vmem>>, vector<8x512xf32>
    %c0_357 = arith.constant 0 : index
    %c0_358 = arith.constant 0 : index
    %c0_359 = arith.constant 0 : index
    %697 = vector.load %arg7[%c0_357, %c0_358, %c0_359] : memref<2x8x128xf32, #tpu.memory_space<vmem>>, vector<1x8x128xf32>
    %698 = vector.shape_cast %697 : vector<1x8x128xf32> to vector<8x128xf32>
    %699 = arith.truncf %698 : vector<8x128xf32> to vector<8x128xbf16>
    %cst_360 = arith.constant dense<0.000000e+00> : vector<8x512xf32>
    %700 = tpu.matmul %699, %35, %cst_360 {dimension_numbers = #tpu.dot_dimension_numbers<[1], [0], [0], [1], [0, 0, 1, 1], [], []>} : vector<8x128xbf16>, vector<128x512xbf16>, vector<8x512xf32> -> vector<8x512xf32>
    %701 = arith.addf %696, %700 : vector<8x512xf32>
    %702 = vector.extract_strided_slice %701 {offsets = [0, 0], sizes = [8, 128], strides = [1, 1]} : vector<8x512xf32> to vector<8x128xf32>
    %703 = arith.negf %702 : vector<8x128xf32>
    %704 = math.exp %703 : vector<8x128xf32>
    %cst_361 = arith.constant 1.000000e+00 : f32
    %705 = vector.broadcast %cst_361 : f32 to vector<8x128xf32>
    %706 = arith.addf %705, %704 : vector<8x128xf32>
    %707 = arith.divf %705, %706 : vector<8x128xf32>
    %708 = vector.extract_strided_slice %701 {offsets = [0, 128], sizes = [8, 128], strides = [1, 1]} : vector<8x512xf32> to vector<8x128xf32>
    %709 = arith.negf %708 : vector<8x128xf32>
    %710 = math.exp %709 : vector<8x128xf32>
    %cst_362 = arith.constant 1.000000e+00 : f32
    %711 = vector.broadcast %cst_362 : f32 to vector<8x128xf32>
    %712 = arith.addf %711, %710 : vector<8x128xf32>
    %713 = arith.divf %711, %712 : vector<8x128xf32>
    %714 = vector.extract_strided_slice %701 {offsets = [0, 256], sizes = [8, 128], strides = [1, 1]} : vector<8x512xf32> to vector<8x128xf32>
    %715 = math.tanh %714 : vector<8x128xf32>
    %716 = vector.extract_strided_slice %701 {offsets = [0, 384], sizes = [8, 128], strides = [1, 1]} : vector<8x512xf32> to vector<8x128xf32>
    %717 = arith.negf %716 : vector<8x128xf32>
    %718 = math.exp %717 : vector<8x128xf32>
    %cst_363 = arith.constant 1.000000e+00 : f32
    %719 = vector.broadcast %cst_363 : f32 to vector<8x128xf32>
    %720 = arith.addf %719, %718 : vector<8x128xf32>
    %721 = arith.divf %719, %720 : vector<8x128xf32>
    %c0_364 = arith.constant 0 : index
    %c0_365 = arith.constant 0 : index
    %c0_366 = arith.constant 0 : index
    %722 = vector.load %arg8[%c0_364, %c0_365, %c0_366] : memref<2x8x128xf32, #tpu.memory_space<vmem>>, vector<1x8x128xf32>
    %723 = vector.shape_cast %722 : vector<1x8x128xf32> to vector<8x128xf32>
    %724 = arith.mulf %713, %723 : vector<8x128xf32>
    %725 = arith.mulf %707, %715 : vector<8x128xf32>
    %726 = arith.addf %724, %725 : vector<8x128xf32>
    %727 = math.tanh %726 : vector<8x128xf32>
    %728 = arith.mulf %721, %727 : vector<8x128xf32>
    %c0_367 = arith.constant 0 : index
    %c0_368 = arith.constant 0 : index
    %c0_369 = arith.constant 0 : index
    %729 = vector.load %arg8[%c0_367, %c0_368, %c0_369] : memref<2x8x128xf32, #tpu.memory_space<vmem>>, vector<1x8x128xf32>
    %730 = vector.shape_cast %729 : vector<1x8x128xf32> to vector<8x128xf32>
    %731 = vector.shape_cast %726 : vector<8x128xf32> to vector<1x8x128xf32>
    tpu.vector_store %arg8[%c0_367, %c0_368, %c0_369], %731 {strides = array<i32>} : memref<2x8x128xf32, #tpu.memory_space<vmem>>, vector<1x8x128xf32>,
    %c0_370 = arith.constant 0 : index
    %c0_371 = arith.constant 0 : index
    %c0_372 = arith.constant 0 : index
    %732 = vector.load %arg7[%c0_370, %c0_371, %c0_372] : memref<2x8x128xf32, #tpu.memory_space<vmem>>, vector<1x8x128xf32>
    %733 = vector.shape_cast %732 : vector<1x8x128xf32> to vector<8x128xf32>
    %734 = vector.shape_cast %728 : vector<8x128xf32> to vector<1x8x128xf32>
    tpu.vector_store %arg7[%c0_370, %c0_371, %c0_372], %734 {strides = array<i32>} : memref<2x8x128xf32, #tpu.memory_space<vmem>>, vector<1x8x128xf32>,
    %735 = arith.truncf %728 : vector<8x128xf32> to vector<8x128xbf16>
    %c0_373 = arith.constant 0 : index
    %736 = arith.index_cast %691 : i32 to index
    %c0_374 = arith.constant 0 : index
    %c0_375 = arith.constant 0 : index
    %737 = vector.load %arg5[%c0_373, %736, %c0_374, %c0_375] : memref<2x8x8x128xbf16, #tpu.memory_space<vmem>>, vector<1x1x8x128xbf16>
    %738 = vector.shape_cast %737 : vector<1x1x8x128xbf16> to vector<8x128xbf16>
    %739 = vector.shape_cast %735 : vector<8x128xbf16> to vector<1x1x8x128xbf16>
    tpu.vector_store %arg5[%c0_373, %736, %c0_374, %c0_375], %739 {strides = array<i32>} : memref<2x8x8x128xbf16, #tpu.memory_space<vmem>>, vector<1x1x8x128xbf16>,
    %c2_i32_376 = arith.constant 2 : i32
    %740 = arith.muli %arg0, %c2_i32_376 : i32
    %c1_i32_377 = arith.constant 1 : i32
    %741 = arith.addi %740, %c1_i32_377 : i32
    %c2_i32_378 = arith.constant 2 : i32
    %742 = arith.muli %c2_i32_378, %c6_i32 : i32
    %c7_i32_379 = arith.constant 7 : i32
    %743 = arith.subi %c7_i32_379, %742 : i32
    %744 = arith.muli %741, %743 : i32
    %745 = arith.addi %c6_i32, %744 : i32
    %c8_i32_380 = arith.constant 8 : i32
    %746 = arith.muli %745, %c8_i32_380 : i32
    %c64_i32_381 = arith.constant 64 : i32
    %747 = arith.addi %c64_i32_381, %746 : i32
    %748 = tpu.assume_multiple %747, 8 : i32
    %749 = arith.index_cast %748 : i32 to index
    %c0_382 = arith.constant 0 : index
    %750 = vector.load %arg6[%749, %c0_382] : memref<128x512xf32, #tpu.memory_space<vmem>>, vector<8x512xf32>
    %c1_383 = arith.constant 1 : index
    %c0_384 = arith.constant 0 : index
    %c0_385 = arith.constant 0 : index
    %751 = vector.load %arg7[%c1_383, %c0_384, %c0_385] : memref<2x8x128xf32, #tpu.memory_space<vmem>>, vector<1x8x128xf32>
    %752 = vector.shape_cast %751 : vector<1x8x128xf32> to vector<8x128xf32>
    %753 = arith.truncf %752 : vector<8x128xf32> to vector<8x128xbf16>
    %cst_386 = arith.constant dense<0.000000e+00> : vector<8x512xf32>
    %754 = tpu.matmul %753, %37, %cst_386 {dimension_numbers = #tpu.dot_dimension_numbers<[1], [0], [0], [1], [0, 0, 1, 1], [], []>} : vector<8x128xbf16>, vector<128x512xbf16>, vector<8x512xf32> -> vector<8x512xf32>
    %755 = arith.addf %750, %754 : vector<8x512xf32>
    %756 = vector.extract_strided_slice %755 {offsets = [0, 0], sizes = [8, 128], strides = [1, 1]} : vector<8x512xf32> to vector<8x128xf32>
    %757 = arith.negf %756 : vector<8x128xf32>
    %758 = math.exp %757 : vector<8x128xf32>
    %cst_387 = arith.constant 1.000000e+00 : f32
    %759 = vector.broadcast %cst_387 : f32 to vector<8x128xf32>
    %760 = arith.addf %759, %758 : vector<8x128xf32>
    %761 = arith.divf %759, %760 : vector<8x128xf32>
    %762 = vector.extract_strided_slice %755 {offsets = [0, 128], sizes = [8, 128], strides = [1, 1]} : vector<8x512xf32> to vector<8x128xf32>
    %763 = arith.negf %762 : vector<8x128xf32>
    %764 = math.exp %763 : vector<8x128xf32>
    %cst_388 = arith.constant 1.000000e+00 : f32
    %765 = vector.broadcast %cst_388 : f32 to vector<8x128xf32>
    %766 = arith.addf %765, %764 : vector<8x128xf32>
    %767 = arith.divf %765, %766 : vector<8x128xf32>
    %768 = vector.extract_strided_slice %755 {offsets = [0, 256], sizes = [8, 128], strides = [1, 1]} : vector<8x512xf32> to vector<8x128xf32>
    %769 = math.tanh %768 : vector<8x128xf32>
    %770 = vector.extract_strided_slice %755 {offsets = [0, 384], sizes = [8, 128], strides = [1, 1]} : vector<8x512xf32> to vector<8x128xf32>
    %771 = arith.negf %770 : vector<8x128xf32>
    %772 = math.exp %771 : vector<8x128xf32>
    %cst_389 = arith.constant 1.000000e+00 : f32
    %773 = vector.broadcast %cst_389 : f32 to vector<8x128xf32>
    %774 = arith.addf %773, %772 : vector<8x128xf32>
    %775 = arith.divf %773, %774 : vector<8x128xf32>
    %c1_390 = arith.constant 1 : index
    %c0_391 = arith.constant 0 : index
    %c0_392 = arith.constant 0 : index
    %776 = vector.load %arg8[%c1_390, %c0_391, %c0_392] : memref<2x8x128xf32, #tpu.memory_space<vmem>>, vector<1x8x128xf32>
    %777 = vector.shape_cast %776 : vector<1x8x128xf32> to vector<8x128xf32>
    %778 = arith.mulf %767, %777 : vector<8x128xf32>
    %779 = arith.mulf %761, %769 : vector<8x128xf32>
    %780 = arith.addf %778, %779 : vector<8x128xf32>
    %781 = math.tanh %780 : vector<8x128xf32>
    %782 = arith.mulf %775, %781 : vector<8x128xf32>
    %c1_393 = arith.constant 1 : index
    %c0_394 = arith.constant 0 : index
    %c0_395 = arith.constant 0 : index
    %783 = vector.load %arg8[%c1_393, %c0_394, %c0_395] : memref<2x8x128xf32, #tpu.memory_space<vmem>>, vector<1x8x128xf32>
    %784 = vector.shape_cast %783 : vector<1x8x128xf32> to vector<8x128xf32>
    %785 = vector.shape_cast %780 : vector<8x128xf32> to vector<1x8x128xf32>
    tpu.vector_store %arg8[%c1_393, %c0_394, %c0_395], %785 {strides = array<i32>} : memref<2x8x128xf32, #tpu.memory_space<vmem>>, vector<1x8x128xf32>,
    %c1_396 = arith.constant 1 : index
    %c0_397 = arith.constant 0 : index
    %c0_398 = arith.constant 0 : index
    %786 = vector.load %arg7[%c1_396, %c0_397, %c0_398] : memref<2x8x128xf32, #tpu.memory_space<vmem>>, vector<1x8x128xf32>
    %787 = vector.shape_cast %786 : vector<1x8x128xf32> to vector<8x128xf32>
    %788 = vector.shape_cast %782 : vector<8x128xf32> to vector<1x8x128xf32>
    tpu.vector_store %arg7[%c1_396, %c0_397, %c0_398], %788 {strides = array<i32>} : memref<2x8x128xf32, #tpu.memory_space<vmem>>, vector<1x8x128xf32>,
    %789 = arith.truncf %782 : vector<8x128xf32> to vector<8x128xbf16>
    %c1_399 = arith.constant 1 : index
    %790 = arith.index_cast %745 : i32 to index
    %c0_400 = arith.constant 0 : index
    %c0_401 = arith.constant 0 : index
    %791 = vector.load %arg5[%c1_399, %790, %c0_400, %c0_401] : memref<2x8x8x128xbf16, #tpu.memory_space<vmem>>, vector<1x1x8x128xbf16>
    %792 = vector.shape_cast %791 : vector<1x1x8x128xbf16> to vector<8x128xbf16>
    %793 = vector.shape_cast %789 : vector<8x128xbf16> to vector<1x1x8x128xbf16>
    tpu.vector_store %arg5[%c1_399, %790, %c0_400, %c0_401], %793 {strides = array<i32>} : memref<2x8x8x128xbf16, #tpu.memory_space<vmem>>, vector<1x1x8x128xbf16>,
    %c7_i32_402 = arith.constant 7 : i32
    %c2_i32_403 = arith.constant 2 : i32
    %794 = arith.muli %arg0, %c2_i32_403 : i32
    %c0_i32_404 = arith.constant 0 : i32
    %795 = arith.addi %794, %c0_i32_404 : i32
    %c2_i32_405 = arith.constant 2 : i32
    %796 = arith.muli %c2_i32_405, %c7_i32_402 : i32
    %c7_i32_406 = arith.constant 7 : i32
    %797 = arith.subi %c7_i32_406, %796 : i32
    %798 = arith.muli %795, %797 : i32
    %799 = arith.addi %c7_i32_402, %798 : i32
    %c8_i32_407 = arith.constant 8 : i32
    %800 = arith.muli %799, %c8_i32_407 : i32
    %c0_i32_408 = arith.constant 0 : i32
    %801 = arith.addi %c0_i32_408, %800 : i32
    %802 = tpu.assume_multiple %801, 8 : i32
    %803 = arith.index_cast %802 : i32 to index
    %c0_409 = arith.constant 0 : index
    %804 = vector.load %arg6[%803, %c0_409] : memref<128x512xf32, #tpu.memory_space<vmem>>, vector<8x512xf32>
    %c0_410 = arith.constant 0 : index
    %c0_411 = arith.constant 0 : index
    %c0_412 = arith.constant 0 : index
    %805 = vector.load %arg7[%c0_410, %c0_411, %c0_412] : memref<2x8x128xf32, #tpu.memory_space<vmem>>, vector<1x8x128xf32>
    %806 = vector.shape_cast %805 : vector<1x8x128xf32> to vector<8x128xf32>
    %807 = arith.truncf %806 : vector<8x128xf32> to vector<8x128xbf16>
    %cst_413 = arith.constant dense<0.000000e+00> : vector<8x512xf32>
    %808 = tpu.matmul %807, %35, %cst_413 {dimension_numbers = #tpu.dot_dimension_numbers<[1], [0], [0], [1], [0, 0, 1, 1], [], []>} : vector<8x128xbf16>, vector<128x512xbf16>, vector<8x512xf32> -> vector<8x512xf32>
    %809 = arith.addf %804, %808 : vector<8x512xf32>
    %810 = vector.extract_strided_slice %809 {offsets = [0, 0], sizes = [8, 128], strides = [1, 1]} : vector<8x512xf32> to vector<8x128xf32>
    %811 = arith.negf %810 : vector<8x128xf32>
    %812 = math.exp %811 : vector<8x128xf32>
    %cst_414 = arith.constant 1.000000e+00 : f32
    %813 = vector.broadcast %cst_414 : f32 to vector<8x128xf32>
    %814 = arith.addf %813, %812 : vector<8x128xf32>
    %815 = arith.divf %813, %814 : vector<8x128xf32>
    %816 = vector.extract_strided_slice %809 {offsets = [0, 128], sizes = [8, 128], strides = [1, 1]} : vector<8x512xf32> to vector<8x128xf32>
    %817 = arith.negf %816 : vector<8x128xf32>
    %818 = math.exp %817 : vector<8x128xf32>
    %cst_415 = arith.constant 1.000000e+00 : f32
    %819 = vector.broadcast %cst_415 : f32 to vector<8x128xf32>
    %820 = arith.addf %819, %818 : vector<8x128xf32>
    %821 = arith.divf %819, %820 : vector<8x128xf32>
    %822 = vector.extract_strided_slice %809 {offsets = [0, 256], sizes = [8, 128], strides = [1, 1]} : vector<8x512xf32> to vector<8x128xf32>
    %823 = math.tanh %822 : vector<8x128xf32>
    %824 = vector.extract_strided_slice %809 {offsets = [0, 384], sizes = [8, 128], strides = [1, 1]} : vector<8x512xf32> to vector<8x128xf32>
    %825 = arith.negf %824 : vector<8x128xf32>
    %826 = math.exp %825 : vector<8x128xf32>
    %cst_416 = arith.constant 1.000000e+00 : f32
    %827 = vector.broadcast %cst_416 : f32 to vector<8x128xf32>
    %828 = arith.addf %827, %826 : vector<8x128xf32>
    %829 = arith.divf %827, %828 : vector<8x128xf32>
    %c0_417 = arith.constant 0 : index
    %c0_418 = arith.constant 0 : index
    %c0_419 = arith.constant 0 : index
    %830 = vector.load %arg8[%c0_417, %c0_418, %c0_419] : memref<2x8x128xf32, #tpu.memory_space<vmem>>, vector<1x8x128xf32>
    %831 = vector.shape_cast %830 : vector<1x8x128xf32> to vector<8x128xf32>
    %832 = arith.mulf %821, %831 : vector<8x128xf32>
    %833 = arith.mulf %815, %823 : vector<8x128xf32>
    %834 = arith.addf %832, %833 : vector<8x128xf32>
    %835 = math.tanh %834 : vector<8x128xf32>
    %836 = arith.mulf %829, %835 : vector<8x128xf32>
    %c0_420 = arith.constant 0 : index
    %c0_421 = arith.constant 0 : index
    %c0_422 = arith.constant 0 : index
    %837 = vector.load %arg8[%c0_420, %c0_421, %c0_422] : memref<2x8x128xf32, #tpu.memory_space<vmem>>, vector<1x8x128xf32>
    %838 = vector.shape_cast %837 : vector<1x8x128xf32> to vector<8x128xf32>
    %839 = vector.shape_cast %834 : vector<8x128xf32> to vector<1x8x128xf32>
    tpu.vector_store %arg8[%c0_420, %c0_421, %c0_422], %839 {strides = array<i32>} : memref<2x8x128xf32, #tpu.memory_space<vmem>>, vector<1x8x128xf32>,
    %c0_423 = arith.constant 0 : index
    %c0_424 = arith.constant 0 : index
    %c0_425 = arith.constant 0 : index
    %840 = vector.load %arg7[%c0_423, %c0_424, %c0_425] : memref<2x8x128xf32, #tpu.memory_space<vmem>>, vector<1x8x128xf32>
    %841 = vector.shape_cast %840 : vector<1x8x128xf32> to vector<8x128xf32>
    %842 = vector.shape_cast %836 : vector<8x128xf32> to vector<1x8x128xf32>
    tpu.vector_store %arg7[%c0_423, %c0_424, %c0_425], %842 {strides = array<i32>} : memref<2x8x128xf32, #tpu.memory_space<vmem>>, vector<1x8x128xf32>,
    %843 = arith.truncf %836 : vector<8x128xf32> to vector<8x128xbf16>
    %c0_426 = arith.constant 0 : index
    %844 = arith.index_cast %799 : i32 to index
    %c0_427 = arith.constant 0 : index
    %c0_428 = arith.constant 0 : index
    %845 = vector.load %arg5[%c0_426, %844, %c0_427, %c0_428] : memref<2x8x8x128xbf16, #tpu.memory_space<vmem>>, vector<1x1x8x128xbf16>
    %846 = vector.shape_cast %845 : vector<1x1x8x128xbf16> to vector<8x128xbf16>
    %847 = vector.shape_cast %843 : vector<8x128xbf16> to vector<1x1x8x128xbf16>
    tpu.vector_store %arg5[%c0_426, %844, %c0_427, %c0_428], %847 {strides = array<i32>} : memref<2x8x8x128xbf16, #tpu.memory_space<vmem>>, vector<1x1x8x128xbf16>,
    %c2_i32_429 = arith.constant 2 : i32
    %848 = arith.muli %arg0, %c2_i32_429 : i32
    %c1_i32_430 = arith.constant 1 : i32
    %849 = arith.addi %848, %c1_i32_430 : i32
    %c2_i32_431 = arith.constant 2 : i32
    %850 = arith.muli %c2_i32_431, %c7_i32_402 : i32
    %c7_i32_432 = arith.constant 7 : i32
    %851 = arith.subi %c7_i32_432, %850 : i32
    %852 = arith.muli %849, %851 : i32
    %853 = arith.addi %c7_i32_402, %852 : i32
    %c8_i32_433 = arith.constant 8 : i32
    %854 = arith.muli %853, %c8_i32_433 : i32
    %c64_i32_434 = arith.constant 64 : i32
    %855 = arith.addi %c64_i32_434, %854 : i32
    %856 = tpu.assume_multiple %855, 8 : i32
    %857 = arith.index_cast %856 : i32 to index
    %c0_435 = arith.constant 0 : index
    %858 = vector.load %arg6[%857, %c0_435] : memref<128x512xf32, #tpu.memory_space<vmem>>, vector<8x512xf32>
    %c1_436 = arith.constant 1 : index
    %c0_437 = arith.constant 0 : index
    %c0_438 = arith.constant 0 : index
    %859 = vector.load %arg7[%c1_436, %c0_437, %c0_438] : memref<2x8x128xf32, #tpu.memory_space<vmem>>, vector<1x8x128xf32>
    %860 = vector.shape_cast %859 : vector<1x8x128xf32> to vector<8x128xf32>
    %861 = arith.truncf %860 : vector<8x128xf32> to vector<8x128xbf16>
    %cst_439 = arith.constant dense<0.000000e+00> : vector<8x512xf32>
    %862 = tpu.matmul %861, %37, %cst_439 {dimension_numbers = #tpu.dot_dimension_numbers<[1], [0], [0], [1], [0, 0, 1, 1], [], []>} : vector<8x128xbf16>, vector<128x512xbf16>, vector<8x512xf32> -> vector<8x512xf32>
    %863 = arith.addf %858, %862 : vector<8x512xf32>
    %864 = vector.extract_strided_slice %863 {offsets = [0, 0], sizes = [8, 128], strides = [1, 1]} : vector<8x512xf32> to vector<8x128xf32>
    %865 = arith.negf %864 : vector<8x128xf32>
    %866 = math.exp %865 : vector<8x128xf32>
    %cst_440 = arith.constant 1.000000e+00 : f32
    %867 = vector.broadcast %cst_440 : f32 to vector<8x128xf32>
    %868 = arith.addf %867, %866 : vector<8x128xf32>
    %869 = arith.divf %867, %868 : vector<8x128xf32>
    %870 = vector.extract_strided_slice %863 {offsets = [0, 128], sizes = [8, 128], strides = [1, 1]} : vector<8x512xf32> to vector<8x128xf32>
    %871 = arith.negf %870 : vector<8x128xf32>
    %872 = math.exp %871 : vector<8x128xf32>
    %cst_441 = arith.constant 1.000000e+00 : f32
    %873 = vector.broadcast %cst_441 : f32 to vector<8x128xf32>
    %874 = arith.addf %873, %872 : vector<8x128xf32>
    %875 = arith.divf %873, %874 : vector<8x128xf32>
    %876 = vector.extract_strided_slice %863 {offsets = [0, 256], sizes = [8, 128], strides = [1, 1]} : vector<8x512xf32> to vector<8x128xf32>
    %877 = math.tanh %876 : vector<8x128xf32>
    %878 = vector.extract_strided_slice %863 {offsets = [0, 384], sizes = [8, 128], strides = [1, 1]} : vector<8x512xf32> to vector<8x128xf32>
    %879 = arith.negf %878 : vector<8x128xf32>
    %880 = math.exp %879 : vector<8x128xf32>
    %cst_442 = arith.constant 1.000000e+00 : f32
    %881 = vector.broadcast %cst_442 : f32 to vector<8x128xf32>
    %882 = arith.addf %881, %880 : vector<8x128xf32>
    %883 = arith.divf %881, %882 : vector<8x128xf32>
    %c1_443 = arith.constant 1 : index
    %c0_444 = arith.constant 0 : index
    %c0_445 = arith.constant 0 : index
    %884 = vector.load %arg8[%c1_443, %c0_444, %c0_445] : memref<2x8x128xf32, #tpu.memory_space<vmem>>, vector<1x8x128xf32>
    %885 = vector.shape_cast %884 : vector<1x8x128xf32> to vector<8x128xf32>
    %886 = arith.mulf %875, %885 : vector<8x128xf32>
    %887 = arith.mulf %869, %877 : vector<8x128xf32>
    %888 = arith.addf %886, %887 : vector<8x128xf32>
    %889 = math.tanh %888 : vector<8x128xf32>
    %890 = arith.mulf %883, %889 : vector<8x128xf32>
    %c1_446 = arith.constant 1 : index
    %c0_447 = arith.constant 0 : index
    %c0_448 = arith.constant 0 : index
    %891 = vector.load %arg8[%c1_446, %c0_447, %c0_448] : memref<2x8x128xf32, #tpu.memory_space<vmem>>, vector<1x8x128xf32>
    %892 = vector.shape_cast %891 : vector<1x8x128xf32> to vector<8x128xf32>
    %893 = vector.shape_cast %888 : vector<8x128xf32> to vector<1x8x128xf32>
    tpu.vector_store %arg8[%c1_446, %c0_447, %c0_448], %893 {strides = array<i32>} : memref<2x8x128xf32, #tpu.memory_space<vmem>>, vector<1x8x128xf32>,
    %c1_449 = arith.constant 1 : index
    %c0_450 = arith.constant 0 : index
    %c0_451 = arith.constant 0 : index
    %894 = vector.load %arg7[%c1_449, %c0_450, %c0_451] : memref<2x8x128xf32, #tpu.memory_space<vmem>>, vector<1x8x128xf32>
    %895 = vector.shape_cast %894 : vector<1x8x128xf32> to vector<8x128xf32>
    %896 = vector.shape_cast %890 : vector<8x128xf32> to vector<1x8x128xf32>
    tpu.vector_store %arg7[%c1_449, %c0_450, %c0_451], %896 {strides = array<i32>} : memref<2x8x128xf32, #tpu.memory_space<vmem>>, vector<1x8x128xf32>,
    %897 = arith.truncf %890 : vector<8x128xf32> to vector<8x128xbf16>
    %c1_452 = arith.constant 1 : index
    %898 = arith.index_cast %853 : i32 to index
    %c0_453 = arith.constant 0 : index
    %c0_454 = arith.constant 0 : index
    %899 = vector.load %arg5[%c1_452, %898, %c0_453, %c0_454] : memref<2x8x8x128xbf16, #tpu.memory_space<vmem>>, vector<1x1x8x128xbf16>
    %900 = vector.shape_cast %899 : vector<1x1x8x128xbf16> to vector<8x128xbf16>
    %901 = vector.shape_cast %897 : vector<8x128xbf16> to vector<1x1x8x128xbf16>
    tpu.vector_store %arg5[%c1_452, %898, %c0_453, %c0_454], %901 {strides = array<i32>} : memref<2x8x8x128xbf16, #tpu.memory_space<vmem>>, vector<1x1x8x128xbf16>,
    %c8_i32_455 = arith.constant 8 : i32
    return
  }
  func.func @transform_0(%arg0: i32) -> (i32, i32, i32) {
    %c0_i32 = arith.constant 0 : i32
    %c0_i32_0 = arith.constant 0 : i32
    %c0_i32_1 = arith.constant 0 : i32
    %c0_i32_2 = arith.constant 0 : i32
    return %c0_i32, %c0_i32_0, %c0_i32_1 : i32, i32, i32
  }
  func.func @transform_1(%arg0: i32) -> (i32, i32, i32, i32) {
    %c0_i32 = arith.constant 0 : i32
    %c0_i32_0 = arith.constant 0 : i32
    %c0_i32_1 = arith.constant 0 : i32
    %c0_i32_2 = arith.constant 0 : i32
    return %arg0, %c0_i32, %c0_i32_0, %c0_i32_1 : i32, i32, i32, i32
  }
  func.func @transform_2(%arg0: i32) -> (i32, i32, i32) {
    %c0_i32 = arith.constant 0 : i32
    %c0_i32_0 = arith.constant 0 : i32
    %c0_i32_1 = arith.constant 0 : i32
    return %arg0, %c0_i32, %c0_i32_0 : i32, i32, i32
  }
  func.func @transform_3(%arg0: i32) -> (i32, i32, i32) {
    %c0_i32 = arith.constant 0 : i32
    %c0_i32_0 = arith.constant 0 : i32
    %c0_i32_1 = arith.constant 0 : i32
    return %arg0, %c0_i32, %c0_i32_0 : i32, i32, i32
  }
  func.func @transform_4(%arg0: i32) -> (i32, i32, i32, i32) {
    %c0_i32 = arith.constant 0 : i32
    %c0_i32_0 = arith.constant 0 : i32
    %c0_i32_1 = arith.constant 0 : i32
    %c0_i32_2 = arith.constant 0 : i32
    return %arg0, %c0_i32, %c0_i32_0, %c0_i32_1 : i32, i32, i32, i32
  }
}

module attributes {stable_mosaic.version = 11 : i64} {
  func.func @bidir_lstm_layer_kernel(%arg0: i32, %arg1: memref<2x64x128xbf16, #tpu.memory_space<vmem>>, %arg2: memref<2x2x128x512xbf16, #tpu.memory_space<vmem>>, %arg3: memref<2x128x512xbf16, #tpu.memory_space<vmem>>, %arg4: memref<2x1x512xf32, #tpu.memory_space<vmem>>, %arg5: memref<2x8x8x128xbf16, #tpu.memory_space<vmem>>, %arg6: memref<128x512xf32, #tpu.memory_space<vmem>>, %arg7: memref<2x8x128xf32, #tpu.memory_space<vmem>>, %arg8: memref<2x8x128xf32, #tpu.memory_space<vmem>>) attributes {dimension_semantics = [#tpu.dimension_semantics<parallel>], iteration_bounds = array<i64: 1>, scalar_prefetch = 0 : i64, scratch_operands = 3 : i64, tpu.core_type = #tpu.core_type<tc>, window_params = [{pipeline_mode = #tpu.pipeline_mode<synchronous>, transform_indices = @transform_0, window_bounds = array<i64: 2, 64, 128>}, {transform_indices = @transform_1, window_bounds = array<i64: 2, 2, 128, 512>}, {transform_indices = @transform_2, window_bounds = array<i64: 2, 128, 512>}, {transform_indices = @transform_3, window_bounds = array<i64: 2, 1, 512>}, {transform_indices = @transform_4, window_bounds = array<i64: 2, 8, 8, 128>}]} {
    %c0 = arith.constant 0 : index
    %c0_0 = arith.constant 0 : index
    %c0_1 = arith.constant 0 : index
    %0 = vector.load %arg1[%c0, %c0_0, %c0_1] : memref<2x64x128xbf16, #tpu.memory_space<vmem>>, vector<1x64x128xbf16>
    %1 = vector.shape_cast %0 : vector<1x64x128xbf16> to vector<64x128xbf16>
    %c1 = arith.constant 1 : index
    %c0_2 = arith.constant 0 : index
    %c0_3 = arith.constant 0 : index
    %2 = vector.load %arg1[%c1, %c0_2, %c0_3] : memref<2x64x128xbf16, #tpu.memory_space<vmem>>, vector<1x64x128xbf16>
    %3 = vector.shape_cast %2 : vector<1x64x128xbf16> to vector<64x128xbf16>
    %c0_4 = arith.constant 0 : index
    %c0_5 = arith.constant 0 : index
    %c0_6 = arith.constant 0 : index
    %c0_7 = arith.constant 0 : index
    %4 = vector.load %arg2[%c0_4, %c0_5, %c0_6, %c0_7] : memref<2x2x128x512xbf16, #tpu.memory_space<vmem>>, vector<1x1x128x512xbf16>
    %5 = vector.shape_cast %4 : vector<1x1x128x512xbf16> to vector<128x512xbf16>
    %cst = arith.constant dense<0.000000e+00> : vector<64x512xf32>
    %6 = tpu.matmul %1, %5, %cst {dimension_numbers = #tpu.dot_dimension_numbers<[1], [0], [0], [1], [0, 0, 1, 1], [], []>} : vector<64x128xbf16>, vector<128x512xbf16>, vector<64x512xf32> -> vector<64x512xf32>
    %c0_8 = arith.constant 0 : index
    %c1_9 = arith.constant 1 : index
    %c0_10 = arith.constant 0 : index
    %c0_11 = arith.constant 0 : index
    %7 = vector.load %arg2[%c0_8, %c1_9, %c0_10, %c0_11] : memref<2x2x128x512xbf16, #tpu.memory_space<vmem>>, vector<1x1x128x512xbf16>
    %8 = vector.shape_cast %7 : vector<1x1x128x512xbf16> to vector<128x512xbf16>
    %cst_12 = arith.constant dense<0.000000e+00> : vector<64x512xf32>
    %9 = tpu.matmul %3, %8, %cst_12 {dimension_numbers = #tpu.dot_dimension_numbers<[1], [0], [0], [1], [0, 0, 1, 1], [], []>} : vector<64x128xbf16>, vector<128x512xbf16>, vector<64x512xf32> -> vector<64x512xf32>
    %10 = arith.addf %6, %9 : vector<64x512xf32>
    %c0_13 = arith.constant 0 : index
    %c0_14 = arith.constant 0 : index
    %c0_15 = arith.constant 0 : index
    %11 = vector.load %arg4[%c0_13, %c0_14, %c0_15] : memref<2x1x512xf32, #tpu.memory_space<vmem>>, vector<1x1x512xf32>
    %12 = vector.shape_cast %11 : vector<1x1x512xf32> to vector<1x512xf32>
    %13 = vector.broadcast %12 : vector<1x512xf32> to vector<64x512xf32>
    %14 = arith.addf %10, %13 : vector<64x512xf32>
    %c0_16 = arith.constant 0 : index
    %c0_17 = arith.constant 0 : index
    %15 = vector.load %arg6[%c0_16, %c0_17] : memref<128x512xf32, #tpu.memory_space<vmem>>, vector<64x512xf32>
    tpu.vector_store %arg6[%c0_16, %c0_17], %14 {strides = array<i32>} : memref<128x512xf32, #tpu.memory_space<vmem>>, vector<64x512xf32>,
    %cst_18 = arith.constant 0.000000e+00 : f32
    %16 = vector.broadcast %cst_18 : f32 to vector<8x128xf32>
    %c0_19 = arith.constant 0 : index
    %c0_20 = arith.constant 0 : index
    %c0_21 = arith.constant 0 : index
    %17 = vector.load %arg7[%c0_19, %c0_20, %c0_21] : memref<2x8x128xf32, #tpu.memory_space<vmem>>, vector<1x8x128xf32>
    %18 = vector.shape_cast %17 : vector<1x8x128xf32> to vector<8x128xf32>
    %19 = vector.shape_cast %16 : vector<8x128xf32> to vector<1x8x128xf32>
    tpu.vector_store %arg7[%c0_19, %c0_20, %c0_21], %19 {strides = array<i32>} : memref<2x8x128xf32, #tpu.memory_space<vmem>>, vector<1x8x128xf32>,
    %cst_22 = arith.constant 0.000000e+00 : f32
    %20 = vector.broadcast %cst_22 : f32 to vector<8x128xf32>
    %c0_23 = arith.constant 0 : index
    %c0_24 = arith.constant 0 : index
    %c0_25 = arith.constant 0 : index
    %21 = vector.load %arg8[%c0_23, %c0_24, %c0_25] : memref<2x8x128xf32, #tpu.memory_space<vmem>>, vector<1x8x128xf32>
    %22 = vector.shape_cast %21 : vector<1x8x128xf32> to vector<8x128xf32>
    %23 = vector.shape_cast %20 : vector<8x128xf32> to vector<1x8x128xf32>
    tpu.vector_store %arg8[%c0_23, %c0_24, %c0_25], %23 {strides = array<i32>} : memref<2x8x128xf32, #tpu.memory_space<vmem>>, vector<1x8x128xf32>,
    %c1_26 = arith.constant 1 : index
    %c0_27 = arith.constant 0 : index
    %c0_28 = arith.constant 0 : index
    %c0_29 = arith.constant 0 : index
    %24 = vector.load %arg2[%c1_26, %c0_27, %c0_28, %c0_29] : memref<2x2x128x512xbf16, #tpu.memory_space<vmem>>, vector<1x1x128x512xbf16>
    %25 = vector.shape_cast %24 : vector<1x1x128x512xbf16> to vector<128x512xbf16>
    %cst_30 = arith.constant dense<0.000000e+00> : vector<64x512xf32>
    %26 = tpu.matmul %1, %25, %cst_30 {dimension_numbers = #tpu.dot_dimension_numbers<[1], [0], [0], [1], [0, 0, 1, 1], [], []>} : vector<64x128xbf16>, vector<128x512xbf16>, vector<64x512xf32> -> vector<64x512xf32>
    %c1_31 = arith.constant 1 : index
    %c1_32 = arith.constant 1 : index
    %c0_33 = arith.constant 0 : index
    %c0_34 = arith.constant 0 : index
    %27 = vector.load %arg2[%c1_31, %c1_32, %c0_33, %c0_34] : memref<2x2x128x512xbf16, #tpu.memory_space<vmem>>, vector<1x1x128x512xbf16>
    %28 = vector.shape_cast %27 : vector<1x1x128x512xbf16> to vector<128x512xbf16>
    %cst_35 = arith.constant dense<0.000000e+00> : vector<64x512xf32>
    %29 = tpu.matmul %3, %28, %cst_35 {dimension_numbers = #tpu.dot_dimension_numbers<[1], [0], [0], [1], [0, 0, 1, 1], [], []>} : vector<64x128xbf16>, vector<128x512xbf16>, vector<64x512xf32> -> vector<64x512xf32>
    %30 = arith.addf %26, %29 : vector<64x512xf32>
    %c1_36 = arith.constant 1 : index
    %c0_37 = arith.constant 0 : index
    %c0_38 = arith.constant 0 : index
    %31 = vector.load %arg4[%c1_36, %c0_37, %c0_38] : memref<2x1x512xf32, #tpu.memory_space<vmem>>, vector<1x1x512xf32>
    %32 = vector.shape_cast %31 : vector<1x1x512xf32> to vector<1x512xf32>
    %33 = vector.broadcast %32 : vector<1x512xf32> to vector<64x512xf32>
    %34 = arith.addf %30, %33 : vector<64x512xf32>
    %c64 = arith.constant 64 : index
    %c0_39 = arith.constant 0 : index
    %35 = vector.load %arg6[%c64, %c0_39] : memref<128x512xf32, #tpu.memory_space<vmem>>, vector<64x512xf32>
    tpu.vector_store %arg6[%c64, %c0_39], %34 {strides = array<i32>} : memref<128x512xf32, #tpu.memory_space<vmem>>, vector<64x512xf32>,
    %cst_40 = arith.constant 0.000000e+00 : f32
    %36 = vector.broadcast %cst_40 : f32 to vector<8x128xf32>
    %c1_41 = arith.constant 1 : index
    %c0_42 = arith.constant 0 : index
    %c0_43 = arith.constant 0 : index
    %37 = vector.load %arg7[%c1_41, %c0_42, %c0_43] : memref<2x8x128xf32, #tpu.memory_space<vmem>>, vector<1x8x128xf32>
    %38 = vector.shape_cast %37 : vector<1x8x128xf32> to vector<8x128xf32>
    %39 = vector.shape_cast %36 : vector<8x128xf32> to vector<1x8x128xf32>
    tpu.vector_store %arg7[%c1_41, %c0_42, %c0_43], %39 {strides = array<i32>} : memref<2x8x128xf32, #tpu.memory_space<vmem>>, vector<1x8x128xf32>,
    %cst_44 = arith.constant 0.000000e+00 : f32
    %40 = vector.broadcast %cst_44 : f32 to vector<8x128xf32>
    %c1_45 = arith.constant 1 : index
    %c0_46 = arith.constant 0 : index
    %c0_47 = arith.constant 0 : index
    %41 = vector.load %arg8[%c1_45, %c0_46, %c0_47] : memref<2x8x128xf32, #tpu.memory_space<vmem>>, vector<1x8x128xf32>
    %42 = vector.shape_cast %41 : vector<1x8x128xf32> to vector<8x128xf32>
    %43 = vector.shape_cast %40 : vector<8x128xf32> to vector<1x8x128xf32>
    tpu.vector_store %arg8[%c1_45, %c0_46, %c0_47], %43 {strides = array<i32>} : memref<2x8x128xf32, #tpu.memory_space<vmem>>, vector<1x8x128xf32>,
    %c0_48 = arith.constant 0 : index
    %c0_49 = arith.constant 0 : index
    %c0_50 = arith.constant 0 : index
    %44 = vector.load %arg3[%c0_48, %c0_49, %c0_50] : memref<2x128x512xbf16, #tpu.memory_space<vmem>>, vector<1x128x512xbf16>
    %45 = vector.shape_cast %44 : vector<1x128x512xbf16> to vector<128x512xbf16>
    %c1_51 = arith.constant 1 : index
    %c0_52 = arith.constant 0 : index
    %c0_53 = arith.constant 0 : index
    %46 = vector.load %arg3[%c1_51, %c0_52, %c0_53] : memref<2x128x512xbf16, #tpu.memory_space<vmem>>, vector<1x128x512xbf16>
    %47 = vector.shape_cast %46 : vector<1x128x512xbf16> to vector<128x512xbf16>
    %c0_i32 = arith.constant 0 : i32
    %c2_i32 = arith.constant 2 : i32
    %48 = arith.muli %arg0, %c2_i32 : i32
    %c0_i32_54 = arith.constant 0 : i32
    %49 = arith.addi %48, %c0_i32_54 : i32
    %c2_i32_55 = arith.constant 2 : i32
    %50 = arith.muli %c2_i32_55, %c0_i32 : i32
    %c7_i32 = arith.constant 7 : i32
    %51 = arith.subi %c7_i32, %50 : i32
    %52 = arith.muli %49, %51 : i32
    %53 = arith.addi %c0_i32, %52 : i32
    %c8_i32 = arith.constant 8 : i32
    %54 = arith.muli %53, %c8_i32 : i32
    %c0_i32_56 = arith.constant 0 : i32
    %55 = arith.addi %c0_i32_56, %54 : i32
    %56 = tpu.assume_multiple %55, 8 : i32
    %57 = arith.index_cast %56 : i32 to index
    %c0_57 = arith.constant 0 : index
    %58 = vector.load %arg6[%57, %c0_57] : memref<128x512xf32, #tpu.memory_space<vmem>>, vector<8x512xf32>
    %c0_58 = arith.constant 0 : index
    %c0_59 = arith.constant 0 : index
    %c0_60 = arith.constant 0 : index
    %59 = vector.load %arg7[%c0_58, %c0_59, %c0_60] : memref<2x8x128xf32, #tpu.memory_space<vmem>>, vector<1x8x128xf32>
    %60 = vector.shape_cast %59 : vector<1x8x128xf32> to vector<8x128xf32>
    %61 = arith.truncf %60 : vector<8x128xf32> to vector<8x128xbf16>
    %cst_61 = arith.constant dense<0.000000e+00> : vector<8x512xf32>
    %62 = tpu.matmul %61, %45, %cst_61 {dimension_numbers = #tpu.dot_dimension_numbers<[1], [0], [0], [1], [0, 0, 1, 1], [], []>} : vector<8x128xbf16>, vector<128x512xbf16>, vector<8x512xf32> -> vector<8x512xf32>
    %63 = arith.addf %58, %62 : vector<8x512xf32>
    %64 = vector.extract_strided_slice %63 {offsets = [0, 0], sizes = [8, 128], strides = [1, 1]} : vector<8x512xf32> to vector<8x128xf32>
    %65 = arith.negf %64 : vector<8x128xf32>
    %66 = math.exp %65 : vector<8x128xf32>
    %cst_62 = arith.constant 1.000000e+00 : f32
    %67 = vector.broadcast %cst_62 : f32 to vector<8x128xf32>
    %68 = arith.addf %67, %66 : vector<8x128xf32>
    %69 = arith.divf %67, %68 : vector<8x128xf32>
    %70 = vector.extract_strided_slice %63 {offsets = [0, 128], sizes = [8, 128], strides = [1, 1]} : vector<8x512xf32> to vector<8x128xf32>
    %71 = arith.negf %70 : vector<8x128xf32>
    %72 = math.exp %71 : vector<8x128xf32>
    %cst_63 = arith.constant 1.000000e+00 : f32
    %73 = vector.broadcast %cst_63 : f32 to vector<8x128xf32>
    %74 = arith.addf %73, %72 : vector<8x128xf32>
    %75 = arith.divf %73, %74 : vector<8x128xf32>
    %76 = vector.extract_strided_slice %63 {offsets = [0, 256], sizes = [8, 128], strides = [1, 1]} : vector<8x512xf32> to vector<8x128xf32>
    %77 = math.tanh %76 : vector<8x128xf32>
    %78 = vector.extract_strided_slice %63 {offsets = [0, 384], sizes = [8, 128], strides = [1, 1]} : vector<8x512xf32> to vector<8x128xf32>
    %79 = arith.negf %78 : vector<8x128xf32>
    %80 = math.exp %79 : vector<8x128xf32>
    %cst_64 = arith.constant 1.000000e+00 : f32
    %81 = vector.broadcast %cst_64 : f32 to vector<8x128xf32>
    %82 = arith.addf %81, %80 : vector<8x128xf32>
    %83 = arith.divf %81, %82 : vector<8x128xf32>
    %c0_65 = arith.constant 0 : index
    %c0_66 = arith.constant 0 : index
    %c0_67 = arith.constant 0 : index
    %84 = vector.load %arg8[%c0_65, %c0_66, %c0_67] : memref<2x8x128xf32, #tpu.memory_space<vmem>>, vector<1x8x128xf32>
    %85 = vector.shape_cast %84 : vector<1x8x128xf32> to vector<8x128xf32>
    %86 = arith.mulf %75, %85 : vector<8x128xf32>
    %87 = arith.mulf %69, %77 : vector<8x128xf32>
    %88 = arith.addf %86, %87 : vector<8x128xf32>
    %89 = math.tanh %88 : vector<8x128xf32>
    %90 = arith.mulf %83, %89 : vector<8x128xf32>
    %c0_68 = arith.constant 0 : index
    %c0_69 = arith.constant 0 : index
    %c0_70 = arith.constant 0 : index
    %91 = vector.load %arg8[%c0_68, %c0_69, %c0_70] : memref<2x8x128xf32, #tpu.memory_space<vmem>>, vector<1x8x128xf32>
    %92 = vector.shape_cast %91 : vector<1x8x128xf32> to vector<8x128xf32>
    %93 = vector.shape_cast %88 : vector<8x128xf32> to vector<1x8x128xf32>
    tpu.vector_store %arg8[%c0_68, %c0_69, %c0_70], %93 {strides = array<i32>} : memref<2x8x128xf32, #tpu.memory_space<vmem>>, vector<1x8x128xf32>,
    %c0_71 = arith.constant 0 : index
    %c0_72 = arith.constant 0 : index
    %c0_73 = arith.constant 0 : index
    %94 = vector.load %arg7[%c0_71, %c0_72, %c0_73] : memref<2x8x128xf32, #tpu.memory_space<vmem>>, vector<1x8x128xf32>
    %95 = vector.shape_cast %94 : vector<1x8x128xf32> to vector<8x128xf32>
    %96 = vector.shape_cast %90 : vector<8x128xf32> to vector<1x8x128xf32>
    tpu.vector_store %arg7[%c0_71, %c0_72, %c0_73], %96 {strides = array<i32>} : memref<2x8x128xf32, #tpu.memory_space<vmem>>, vector<1x8x128xf32>,
    %97 = arith.truncf %90 : vector<8x128xf32> to vector<8x128xbf16>
    %c0_74 = arith.constant 0 : index
    %98 = arith.index_cast %53 : i32 to index
    %c0_75 = arith.constant 0 : index
    %c0_76 = arith.constant 0 : index
    %99 = vector.load %arg5[%c0_74, %98, %c0_75, %c0_76] : memref<2x8x8x128xbf16, #tpu.memory_space<vmem>>, vector<1x1x8x128xbf16>
    %100 = vector.shape_cast %99 : vector<1x1x8x128xbf16> to vector<8x128xbf16>
    %101 = vector.shape_cast %97 : vector<8x128xbf16> to vector<1x1x8x128xbf16>
    tpu.vector_store %arg5[%c0_74, %98, %c0_75, %c0_76], %101 {strides = array<i32>} : memref<2x8x8x128xbf16, #tpu.memory_space<vmem>>, vector<1x1x8x128xbf16>,
    %c2_i32_77 = arith.constant 2 : i32
    %102 = arith.muli %arg0, %c2_i32_77 : i32
    %c1_i32 = arith.constant 1 : i32
    %103 = arith.addi %102, %c1_i32 : i32
    %c2_i32_78 = arith.constant 2 : i32
    %104 = arith.muli %c2_i32_78, %c0_i32 : i32
    %c7_i32_79 = arith.constant 7 : i32
    %105 = arith.subi %c7_i32_79, %104 : i32
    %106 = arith.muli %103, %105 : i32
    %107 = arith.addi %c0_i32, %106 : i32
    %c8_i32_80 = arith.constant 8 : i32
    %108 = arith.muli %107, %c8_i32_80 : i32
    %c64_i32 = arith.constant 64 : i32
    %109 = arith.addi %c64_i32, %108 : i32
    %110 = tpu.assume_multiple %109, 8 : i32
    %111 = arith.index_cast %110 : i32 to index
    %c0_81 = arith.constant 0 : index
    %112 = vector.load %arg6[%111, %c0_81] : memref<128x512xf32, #tpu.memory_space<vmem>>, vector<8x512xf32>
    %c1_82 = arith.constant 1 : index
    %c0_83 = arith.constant 0 : index
    %c0_84 = arith.constant 0 : index
    %113 = vector.load %arg7[%c1_82, %c0_83, %c0_84] : memref<2x8x128xf32, #tpu.memory_space<vmem>>, vector<1x8x128xf32>
    %114 = vector.shape_cast %113 : vector<1x8x128xf32> to vector<8x128xf32>
    %115 = arith.truncf %114 : vector<8x128xf32> to vector<8x128xbf16>
    %cst_85 = arith.constant dense<0.000000e+00> : vector<8x512xf32>
    %116 = tpu.matmul %115, %47, %cst_85 {dimension_numbers = #tpu.dot_dimension_numbers<[1], [0], [0], [1], [0, 0, 1, 1], [], []>} : vector<8x128xbf16>, vector<128x512xbf16>, vector<8x512xf32> -> vector<8x512xf32>
    %117 = arith.addf %112, %116 : vector<8x512xf32>
    %118 = vector.extract_strided_slice %117 {offsets = [0, 0], sizes = [8, 128], strides = [1, 1]} : vector<8x512xf32> to vector<8x128xf32>
    %119 = arith.negf %118 : vector<8x128xf32>
    %120 = math.exp %119 : vector<8x128xf32>
    %cst_86 = arith.constant 1.000000e+00 : f32
    %121 = vector.broadcast %cst_86 : f32 to vector<8x128xf32>
    %122 = arith.addf %121, %120 : vector<8x128xf32>
    %123 = arith.divf %121, %122 : vector<8x128xf32>
    %124 = vector.extract_strided_slice %117 {offsets = [0, 128], sizes = [8, 128], strides = [1, 1]} : vector<8x512xf32> to vector<8x128xf32>
    %125 = arith.negf %124 : vector<8x128xf32>
    %126 = math.exp %125 : vector<8x128xf32>
    %cst_87 = arith.constant 1.000000e+00 : f32
    %127 = vector.broadcast %cst_87 : f32 to vector<8x128xf32>
    %128 = arith.addf %127, %126 : vector<8x128xf32>
    %129 = arith.divf %127, %128 : vector<8x128xf32>
    %130 = vector.extract_strided_slice %117 {offsets = [0, 256], sizes = [8, 128], strides = [1, 1]} : vector<8x512xf32> to vector<8x128xf32>
    %131 = math.tanh %130 : vector<8x128xf32>
    %132 = vector.extract_strided_slice %117 {offsets = [0, 384], sizes = [8, 128], strides = [1, 1]} : vector<8x512xf32> to vector<8x128xf32>
    %133 = arith.negf %132 : vector<8x128xf32>
    %134 = math.exp %133 : vector<8x128xf32>
    %cst_88 = arith.constant 1.000000e+00 : f32
    %135 = vector.broadcast %cst_88 : f32 to vector<8x128xf32>
    %136 = arith.addf %135, %134 : vector<8x128xf32>
    %137 = arith.divf %135, %136 : vector<8x128xf32>
    %c1_89 = arith.constant 1 : index
    %c0_90 = arith.constant 0 : index
    %c0_91 = arith.constant 0 : index
    %138 = vector.load %arg8[%c1_89, %c0_90, %c0_91] : memref<2x8x128xf32, #tpu.memory_space<vmem>>, vector<1x8x128xf32>
    %139 = vector.shape_cast %138 : vector<1x8x128xf32> to vector<8x128xf32>
    %140 = arith.mulf %129, %139 : vector<8x128xf32>
    %141 = arith.mulf %123, %131 : vector<8x128xf32>
    %142 = arith.addf %140, %141 : vector<8x128xf32>
    %143 = math.tanh %142 : vector<8x128xf32>
    %144 = arith.mulf %137, %143 : vector<8x128xf32>
    %c1_92 = arith.constant 1 : index
    %c0_93 = arith.constant 0 : index
    %c0_94 = arith.constant 0 : index
    %145 = vector.load %arg8[%c1_92, %c0_93, %c0_94] : memref<2x8x128xf32, #tpu.memory_space<vmem>>, vector<1x8x128xf32>
    %146 = vector.shape_cast %145 : vector<1x8x128xf32> to vector<8x128xf32>
    %147 = vector.shape_cast %142 : vector<8x128xf32> to vector<1x8x128xf32>
    tpu.vector_store %arg8[%c1_92, %c0_93, %c0_94], %147 {strides = array<i32>} : memref<2x8x128xf32, #tpu.memory_space<vmem>>, vector<1x8x128xf32>,
    %c1_95 = arith.constant 1 : index
    %c0_96 = arith.constant 0 : index
    %c0_97 = arith.constant 0 : index
    %148 = vector.load %arg7[%c1_95, %c0_96, %c0_97] : memref<2x8x128xf32, #tpu.memory_space<vmem>>, vector<1x8x128xf32>
    %149 = vector.shape_cast %148 : vector<1x8x128xf32> to vector<8x128xf32>
    %150 = vector.shape_cast %144 : vector<8x128xf32> to vector<1x8x128xf32>
    tpu.vector_store %arg7[%c1_95, %c0_96, %c0_97], %150 {strides = array<i32>} : memref<2x8x128xf32, #tpu.memory_space<vmem>>, vector<1x8x128xf32>,
    %151 = arith.truncf %144 : vector<8x128xf32> to vector<8x128xbf16>
    %c1_98 = arith.constant 1 : index
    %152 = arith.index_cast %107 : i32 to index
    %c0_99 = arith.constant 0 : index
    %c0_100 = arith.constant 0 : index
    %153 = vector.load %arg5[%c1_98, %152, %c0_99, %c0_100] : memref<2x8x8x128xbf16, #tpu.memory_space<vmem>>, vector<1x1x8x128xbf16>
    %154 = vector.shape_cast %153 : vector<1x1x8x128xbf16> to vector<8x128xbf16>
    %155 = vector.shape_cast %151 : vector<8x128xbf16> to vector<1x1x8x128xbf16>
    tpu.vector_store %arg5[%c1_98, %152, %c0_99, %c0_100], %155 {strides = array<i32>} : memref<2x8x8x128xbf16, #tpu.memory_space<vmem>>, vector<1x1x8x128xbf16>,
    %c1_i32_101 = arith.constant 1 : i32
    %c2_i32_102 = arith.constant 2 : i32
    %156 = arith.muli %arg0, %c2_i32_102 : i32
    %c0_i32_103 = arith.constant 0 : i32
    %157 = arith.addi %156, %c0_i32_103 : i32
    %c2_i32_104 = arith.constant 2 : i32
    %158 = arith.muli %c2_i32_104, %c1_i32_101 : i32
    %c7_i32_105 = arith.constant 7 : i32
    %159 = arith.subi %c7_i32_105, %158 : i32
    %160 = arith.muli %157, %159 : i32
    %161 = arith.addi %c1_i32_101, %160 : i32
    %c8_i32_106 = arith.constant 8 : i32
    %162 = arith.muli %161, %c8_i32_106 : i32
    %c0_i32_107 = arith.constant 0 : i32
    %163 = arith.addi %c0_i32_107, %162 : i32
    %164 = tpu.assume_multiple %163, 8 : i32
    %165 = arith.index_cast %164 : i32 to index
    %c0_108 = arith.constant 0 : index
    %166 = vector.load %arg6[%165, %c0_108] : memref<128x512xf32, #tpu.memory_space<vmem>>, vector<8x512xf32>
    %c0_109 = arith.constant 0 : index
    %c0_110 = arith.constant 0 : index
    %c0_111 = arith.constant 0 : index
    %167 = vector.load %arg7[%c0_109, %c0_110, %c0_111] : memref<2x8x128xf32, #tpu.memory_space<vmem>>, vector<1x8x128xf32>
    %168 = vector.shape_cast %167 : vector<1x8x128xf32> to vector<8x128xf32>
    %169 = arith.truncf %168 : vector<8x128xf32> to vector<8x128xbf16>
    %cst_112 = arith.constant dense<0.000000e+00> : vector<8x512xf32>
    %170 = tpu.matmul %169, %45, %cst_112 {dimension_numbers = #tpu.dot_dimension_numbers<[1], [0], [0], [1], [0, 0, 1, 1], [], []>} : vector<8x128xbf16>, vector<128x512xbf16>, vector<8x512xf32> -> vector<8x512xf32>
    %171 = arith.addf %166, %170 : vector<8x512xf32>
    %172 = vector.extract_strided_slice %171 {offsets = [0, 0], sizes = [8, 128], strides = [1, 1]} : vector<8x512xf32> to vector<8x128xf32>
    %173 = arith.negf %172 : vector<8x128xf32>
    %174 = math.exp %173 : vector<8x128xf32>
    %cst_113 = arith.constant 1.000000e+00 : f32
    %175 = vector.broadcast %cst_113 : f32 to vector<8x128xf32>
    %176 = arith.addf %175, %174 : vector<8x128xf32>
    %177 = arith.divf %175, %176 : vector<8x128xf32>
    %178 = vector.extract_strided_slice %171 {offsets = [0, 128], sizes = [8, 128], strides = [1, 1]} : vector<8x512xf32> to vector<8x128xf32>
    %179 = arith.negf %178 : vector<8x128xf32>
    %180 = math.exp %179 : vector<8x128xf32>
    %cst_114 = arith.constant 1.000000e+00 : f32
    %181 = vector.broadcast %cst_114 : f32 to vector<8x128xf32>
    %182 = arith.addf %181, %180 : vector<8x128xf32>
    %183 = arith.divf %181, %182 : vector<8x128xf32>
    %184 = vector.extract_strided_slice %171 {offsets = [0, 256], sizes = [8, 128], strides = [1, 1]} : vector<8x512xf32> to vector<8x128xf32>
    %185 = math.tanh %184 : vector<8x128xf32>
    %186 = vector.extract_strided_slice %171 {offsets = [0, 384], sizes = [8, 128], strides = [1, 1]} : vector<8x512xf32> to vector<8x128xf32>
    %187 = arith.negf %186 : vector<8x128xf32>
    %188 = math.exp %187 : vector<8x128xf32>
    %cst_115 = arith.constant 1.000000e+00 : f32
    %189 = vector.broadcast %cst_115 : f32 to vector<8x128xf32>
    %190 = arith.addf %189, %188 : vector<8x128xf32>
    %191 = arith.divf %189, %190 : vector<8x128xf32>
    %c0_116 = arith.constant 0 : index
    %c0_117 = arith.constant 0 : index
    %c0_118 = arith.constant 0 : index
    %192 = vector.load %arg8[%c0_116, %c0_117, %c0_118] : memref<2x8x128xf32, #tpu.memory_space<vmem>>, vector<1x8x128xf32>
    %193 = vector.shape_cast %192 : vector<1x8x128xf32> to vector<8x128xf32>
    %194 = arith.mulf %183, %193 : vector<8x128xf32>
    %195 = arith.mulf %177, %185 : vector<8x128xf32>
    %196 = arith.addf %194, %195 : vector<8x128xf32>
    %197 = math.tanh %196 : vector<8x128xf32>
    %198 = arith.mulf %191, %197 : vector<8x128xf32>
    %c0_119 = arith.constant 0 : index
    %c0_120 = arith.constant 0 : index
    %c0_121 = arith.constant 0 : index
    %199 = vector.load %arg8[%c0_119, %c0_120, %c0_121] : memref<2x8x128xf32, #tpu.memory_space<vmem>>, vector<1x8x128xf32>
    %200 = vector.shape_cast %199 : vector<1x8x128xf32> to vector<8x128xf32>
    %201 = vector.shape_cast %196 : vector<8x128xf32> to vector<1x8x128xf32>
    tpu.vector_store %arg8[%c0_119, %c0_120, %c0_121], %201 {strides = array<i32>} : memref<2x8x128xf32, #tpu.memory_space<vmem>>, vector<1x8x128xf32>,
    %c0_122 = arith.constant 0 : index
    %c0_123 = arith.constant 0 : index
    %c0_124 = arith.constant 0 : index
    %202 = vector.load %arg7[%c0_122, %c0_123, %c0_124] : memref<2x8x128xf32, #tpu.memory_space<vmem>>, vector<1x8x128xf32>
    %203 = vector.shape_cast %202 : vector<1x8x128xf32> to vector<8x128xf32>
    %204 = vector.shape_cast %198 : vector<8x128xf32> to vector<1x8x128xf32>
    tpu.vector_store %arg7[%c0_122, %c0_123, %c0_124], %204 {strides = array<i32>} : memref<2x8x128xf32, #tpu.memory_space<vmem>>, vector<1x8x128xf32>,
    %205 = arith.truncf %198 : vector<8x128xf32> to vector<8x128xbf16>
    %c0_125 = arith.constant 0 : index
    %206 = arith.index_cast %161 : i32 to index
    %c0_126 = arith.constant 0 : index
    %c0_127 = arith.constant 0 : index
    %207 = vector.load %arg5[%c0_125, %206, %c0_126, %c0_127] : memref<2x8x8x128xbf16, #tpu.memory_space<vmem>>, vector<1x1x8x128xbf16>
    %208 = vector.shape_cast %207 : vector<1x1x8x128xbf16> to vector<8x128xbf16>
    %209 = vector.shape_cast %205 : vector<8x128xbf16> to vector<1x1x8x128xbf16>
    tpu.vector_store %arg5[%c0_125, %206, %c0_126, %c0_127], %209 {strides = array<i32>} : memref<2x8x8x128xbf16, #tpu.memory_space<vmem>>, vector<1x1x8x128xbf16>,
    %c2_i32_128 = arith.constant 2 : i32
    %210 = arith.muli %arg0, %c2_i32_128 : i32
    %c1_i32_129 = arith.constant 1 : i32
    %211 = arith.addi %210, %c1_i32_129 : i32
    %c2_i32_130 = arith.constant 2 : i32
    %212 = arith.muli %c2_i32_130, %c1_i32_101 : i32
    %c7_i32_131 = arith.constant 7 : i32
    %213 = arith.subi %c7_i32_131, %212 : i32
    %214 = arith.muli %211, %213 : i32
    %215 = arith.addi %c1_i32_101, %214 : i32
    %c8_i32_132 = arith.constant 8 : i32
    %216 = arith.muli %215, %c8_i32_132 : i32
    %c64_i32_133 = arith.constant 64 : i32
    %217 = arith.addi %c64_i32_133, %216 : i32
    %218 = tpu.assume_multiple %217, 8 : i32
    %219 = arith.index_cast %218 : i32 to index
    %c0_134 = arith.constant 0 : index
    %220 = vector.load %arg6[%219, %c0_134] : memref<128x512xf32, #tpu.memory_space<vmem>>, vector<8x512xf32>
    %c1_135 = arith.constant 1 : index
    %c0_136 = arith.constant 0 : index
    %c0_137 = arith.constant 0 : index
    %221 = vector.load %arg7[%c1_135, %c0_136, %c0_137] : memref<2x8x128xf32, #tpu.memory_space<vmem>>, vector<1x8x128xf32>
    %222 = vector.shape_cast %221 : vector<1x8x128xf32> to vector<8x128xf32>
    %223 = arith.truncf %222 : vector<8x128xf32> to vector<8x128xbf16>
    %cst_138 = arith.constant dense<0.000000e+00> : vector<8x512xf32>
    %224 = tpu.matmul %223, %47, %cst_138 {dimension_numbers = #tpu.dot_dimension_numbers<[1], [0], [0], [1], [0, 0, 1, 1], [], []>} : vector<8x128xbf16>, vector<128x512xbf16>, vector<8x512xf32> -> vector<8x512xf32>
    %225 = arith.addf %220, %224 : vector<8x512xf32>
    %226 = vector.extract_strided_slice %225 {offsets = [0, 0], sizes = [8, 128], strides = [1, 1]} : vector<8x512xf32> to vector<8x128xf32>
    %227 = arith.negf %226 : vector<8x128xf32>
    %228 = math.exp %227 : vector<8x128xf32>
    %cst_139 = arith.constant 1.000000e+00 : f32
    %229 = vector.broadcast %cst_139 : f32 to vector<8x128xf32>
    %230 = arith.addf %229, %228 : vector<8x128xf32>
    %231 = arith.divf %229, %230 : vector<8x128xf32>
    %232 = vector.extract_strided_slice %225 {offsets = [0, 128], sizes = [8, 128], strides = [1, 1]} : vector<8x512xf32> to vector<8x128xf32>
    %233 = arith.negf %232 : vector<8x128xf32>
    %234 = math.exp %233 : vector<8x128xf32>
    %cst_140 = arith.constant 1.000000e+00 : f32
    %235 = vector.broadcast %cst_140 : f32 to vector<8x128xf32>
    %236 = arith.addf %235, %234 : vector<8x128xf32>
    %237 = arith.divf %235, %236 : vector<8x128xf32>
    %238 = vector.extract_strided_slice %225 {offsets = [0, 256], sizes = [8, 128], strides = [1, 1]} : vector<8x512xf32> to vector<8x128xf32>
    %239 = math.tanh %238 : vector<8x128xf32>
    %240 = vector.extract_strided_slice %225 {offsets = [0, 384], sizes = [8, 128], strides = [1, 1]} : vector<8x512xf32> to vector<8x128xf32>
    %241 = arith.negf %240 : vector<8x128xf32>
    %242 = math.exp %241 : vector<8x128xf32>
    %cst_141 = arith.constant 1.000000e+00 : f32
    %243 = vector.broadcast %cst_141 : f32 to vector<8x128xf32>
    %244 = arith.addf %243, %242 : vector<8x128xf32>
    %245 = arith.divf %243, %244 : vector<8x128xf32>
    %c1_142 = arith.constant 1 : index
    %c0_143 = arith.constant 0 : index
    %c0_144 = arith.constant 0 : index
    %246 = vector.load %arg8[%c1_142, %c0_143, %c0_144] : memref<2x8x128xf32, #tpu.memory_space<vmem>>, vector<1x8x128xf32>
    %247 = vector.shape_cast %246 : vector<1x8x128xf32> to vector<8x128xf32>
    %248 = arith.mulf %237, %247 : vector<8x128xf32>
    %249 = arith.mulf %231, %239 : vector<8x128xf32>
    %250 = arith.addf %248, %249 : vector<8x128xf32>
    %251 = math.tanh %250 : vector<8x128xf32>
    %252 = arith.mulf %245, %251 : vector<8x128xf32>
    %c1_145 = arith.constant 1 : index
    %c0_146 = arith.constant 0 : index
    %c0_147 = arith.constant 0 : index
    %253 = vector.load %arg8[%c1_145, %c0_146, %c0_147] : memref<2x8x128xf32, #tpu.memory_space<vmem>>, vector<1x8x128xf32>
    %254 = vector.shape_cast %253 : vector<1x8x128xf32> to vector<8x128xf32>
    %255 = vector.shape_cast %250 : vector<8x128xf32> to vector<1x8x128xf32>
    tpu.vector_store %arg8[%c1_145, %c0_146, %c0_147], %255 {strides = array<i32>} : memref<2x8x128xf32, #tpu.memory_space<vmem>>, vector<1x8x128xf32>,
    %c1_148 = arith.constant 1 : index
    %c0_149 = arith.constant 0 : index
    %c0_150 = arith.constant 0 : index
    %256 = vector.load %arg7[%c1_148, %c0_149, %c0_150] : memref<2x8x128xf32, #tpu.memory_space<vmem>>, vector<1x8x128xf32>
    %257 = vector.shape_cast %256 : vector<1x8x128xf32> to vector<8x128xf32>
    %258 = vector.shape_cast %252 : vector<8x128xf32> to vector<1x8x128xf32>
    tpu.vector_store %arg7[%c1_148, %c0_149, %c0_150], %258 {strides = array<i32>} : memref<2x8x128xf32, #tpu.memory_space<vmem>>, vector<1x8x128xf32>,
    %259 = arith.truncf %252 : vector<8x128xf32> to vector<8x128xbf16>
    %c1_151 = arith.constant 1 : index
    %260 = arith.index_cast %215 : i32 to index
    %c0_152 = arith.constant 0 : index
    %c0_153 = arith.constant 0 : index
    %261 = vector.load %arg5[%c1_151, %260, %c0_152, %c0_153] : memref<2x8x8x128xbf16, #tpu.memory_space<vmem>>, vector<1x1x8x128xbf16>
    %262 = vector.shape_cast %261 : vector<1x1x8x128xbf16> to vector<8x128xbf16>
    %263 = vector.shape_cast %259 : vector<8x128xbf16> to vector<1x1x8x128xbf16>
    tpu.vector_store %arg5[%c1_151, %260, %c0_152, %c0_153], %263 {strides = array<i32>} : memref<2x8x8x128xbf16, #tpu.memory_space<vmem>>, vector<1x1x8x128xbf16>,
    %c2_i32_154 = arith.constant 2 : i32
    %c2_i32_155 = arith.constant 2 : i32
    %264 = arith.muli %arg0, %c2_i32_155 : i32
    %c0_i32_156 = arith.constant 0 : i32
    %265 = arith.addi %264, %c0_i32_156 : i32
    %c2_i32_157 = arith.constant 2 : i32
    %266 = arith.muli %c2_i32_157, %c2_i32_154 : i32
    %c7_i32_158 = arith.constant 7 : i32
    %267 = arith.subi %c7_i32_158, %266 : i32
    %268 = arith.muli %265, %267 : i32
    %269 = arith.addi %c2_i32_154, %268 : i32
    %c8_i32_159 = arith.constant 8 : i32
    %270 = arith.muli %269, %c8_i32_159 : i32
    %c0_i32_160 = arith.constant 0 : i32
    %271 = arith.addi %c0_i32_160, %270 : i32
    %272 = tpu.assume_multiple %271, 8 : i32
    %273 = arith.index_cast %272 : i32 to index
    %c0_161 = arith.constant 0 : index
    %274 = vector.load %arg6[%273, %c0_161] : memref<128x512xf32, #tpu.memory_space<vmem>>, vector<8x512xf32>
    %c0_162 = arith.constant 0 : index
    %c0_163 = arith.constant 0 : index
    %c0_164 = arith.constant 0 : index
    %275 = vector.load %arg7[%c0_162, %c0_163, %c0_164] : memref<2x8x128xf32, #tpu.memory_space<vmem>>, vector<1x8x128xf32>
    %276 = vector.shape_cast %275 : vector<1x8x128xf32> to vector<8x128xf32>
    %277 = arith.truncf %276 : vector<8x128xf32> to vector<8x128xbf16>
    %cst_165 = arith.constant dense<0.000000e+00> : vector<8x512xf32>
    %278 = tpu.matmul %277, %45, %cst_165 {dimension_numbers = #tpu.dot_dimension_numbers<[1], [0], [0], [1], [0, 0, 1, 1], [], []>} : vector<8x128xbf16>, vector<128x512xbf16>, vector<8x512xf32> -> vector<8x512xf32>
    %279 = arith.addf %274, %278 : vector<8x512xf32>
    %280 = vector.extract_strided_slice %279 {offsets = [0, 0], sizes = [8, 128], strides = [1, 1]} : vector<8x512xf32> to vector<8x128xf32>
    %281 = arith.negf %280 : vector<8x128xf32>
    %282 = math.exp %281 : vector<8x128xf32>
    %cst_166 = arith.constant 1.000000e+00 : f32
    %283 = vector.broadcast %cst_166 : f32 to vector<8x128xf32>
    %284 = arith.addf %283, %282 : vector<8x128xf32>
    %285 = arith.divf %283, %284 : vector<8x128xf32>
    %286 = vector.extract_strided_slice %279 {offsets = [0, 128], sizes = [8, 128], strides = [1, 1]} : vector<8x512xf32> to vector<8x128xf32>
    %287 = arith.negf %286 : vector<8x128xf32>
    %288 = math.exp %287 : vector<8x128xf32>
    %cst_167 = arith.constant 1.000000e+00 : f32
    %289 = vector.broadcast %cst_167 : f32 to vector<8x128xf32>
    %290 = arith.addf %289, %288 : vector<8x128xf32>
    %291 = arith.divf %289, %290 : vector<8x128xf32>
    %292 = vector.extract_strided_slice %279 {offsets = [0, 256], sizes = [8, 128], strides = [1, 1]} : vector<8x512xf32> to vector<8x128xf32>
    %293 = math.tanh %292 : vector<8x128xf32>
    %294 = vector.extract_strided_slice %279 {offsets = [0, 384], sizes = [8, 128], strides = [1, 1]} : vector<8x512xf32> to vector<8x128xf32>
    %295 = arith.negf %294 : vector<8x128xf32>
    %296 = math.exp %295 : vector<8x128xf32>
    %cst_168 = arith.constant 1.000000e+00 : f32
    %297 = vector.broadcast %cst_168 : f32 to vector<8x128xf32>
    %298 = arith.addf %297, %296 : vector<8x128xf32>
    %299 = arith.divf %297, %298 : vector<8x128xf32>
    %c0_169 = arith.constant 0 : index
    %c0_170 = arith.constant 0 : index
    %c0_171 = arith.constant 0 : index
    %300 = vector.load %arg8[%c0_169, %c0_170, %c0_171] : memref<2x8x128xf32, #tpu.memory_space<vmem>>, vector<1x8x128xf32>
    %301 = vector.shape_cast %300 : vector<1x8x128xf32> to vector<8x128xf32>
    %302 = arith.mulf %291, %301 : vector<8x128xf32>
    %303 = arith.mulf %285, %293 : vector<8x128xf32>
    %304 = arith.addf %302, %303 : vector<8x128xf32>
    %305 = math.tanh %304 : vector<8x128xf32>
    %306 = arith.mulf %299, %305 : vector<8x128xf32>
    %c0_172 = arith.constant 0 : index
    %c0_173 = arith.constant 0 : index
    %c0_174 = arith.constant 0 : index
    %307 = vector.load %arg8[%c0_172, %c0_173, %c0_174] : memref<2x8x128xf32, #tpu.memory_space<vmem>>, vector<1x8x128xf32>
    %308 = vector.shape_cast %307 : vector<1x8x128xf32> to vector<8x128xf32>
    %309 = vector.shape_cast %304 : vector<8x128xf32> to vector<1x8x128xf32>
    tpu.vector_store %arg8[%c0_172, %c0_173, %c0_174], %309 {strides = array<i32>} : memref<2x8x128xf32, #tpu.memory_space<vmem>>, vector<1x8x128xf32>,
    %c0_175 = arith.constant 0 : index
    %c0_176 = arith.constant 0 : index
    %c0_177 = arith.constant 0 : index
    %310 = vector.load %arg7[%c0_175, %c0_176, %c0_177] : memref<2x8x128xf32, #tpu.memory_space<vmem>>, vector<1x8x128xf32>
    %311 = vector.shape_cast %310 : vector<1x8x128xf32> to vector<8x128xf32>
    %312 = vector.shape_cast %306 : vector<8x128xf32> to vector<1x8x128xf32>
    tpu.vector_store %arg7[%c0_175, %c0_176, %c0_177], %312 {strides = array<i32>} : memref<2x8x128xf32, #tpu.memory_space<vmem>>, vector<1x8x128xf32>,
    %313 = arith.truncf %306 : vector<8x128xf32> to vector<8x128xbf16>
    %c0_178 = arith.constant 0 : index
    %314 = arith.index_cast %269 : i32 to index
    %c0_179 = arith.constant 0 : index
    %c0_180 = arith.constant 0 : index
    %315 = vector.load %arg5[%c0_178, %314, %c0_179, %c0_180] : memref<2x8x8x128xbf16, #tpu.memory_space<vmem>>, vector<1x1x8x128xbf16>
    %316 = vector.shape_cast %315 : vector<1x1x8x128xbf16> to vector<8x128xbf16>
    %317 = vector.shape_cast %313 : vector<8x128xbf16> to vector<1x1x8x128xbf16>
    tpu.vector_store %arg5[%c0_178, %314, %c0_179, %c0_180], %317 {strides = array<i32>} : memref<2x8x8x128xbf16, #tpu.memory_space<vmem>>, vector<1x1x8x128xbf16>,
    %c2_i32_181 = arith.constant 2 : i32
    %318 = arith.muli %arg0, %c2_i32_181 : i32
    %c1_i32_182 = arith.constant 1 : i32
    %319 = arith.addi %318, %c1_i32_182 : i32
    %c2_i32_183 = arith.constant 2 : i32
    %320 = arith.muli %c2_i32_183, %c2_i32_154 : i32
    %c7_i32_184 = arith.constant 7 : i32
    %321 = arith.subi %c7_i32_184, %320 : i32
    %322 = arith.muli %319, %321 : i32
    %323 = arith.addi %c2_i32_154, %322 : i32
    %c8_i32_185 = arith.constant 8 : i32
    %324 = arith.muli %323, %c8_i32_185 : i32
    %c64_i32_186 = arith.constant 64 : i32
    %325 = arith.addi %c64_i32_186, %324 : i32
    %326 = tpu.assume_multiple %325, 8 : i32
    %327 = arith.index_cast %326 : i32 to index
    %c0_187 = arith.constant 0 : index
    %328 = vector.load %arg6[%327, %c0_187] : memref<128x512xf32, #tpu.memory_space<vmem>>, vector<8x512xf32>
    %c1_188 = arith.constant 1 : index
    %c0_189 = arith.constant 0 : index
    %c0_190 = arith.constant 0 : index
    %329 = vector.load %arg7[%c1_188, %c0_189, %c0_190] : memref<2x8x128xf32, #tpu.memory_space<vmem>>, vector<1x8x128xf32>
    %330 = vector.shape_cast %329 : vector<1x8x128xf32> to vector<8x128xf32>
    %331 = arith.truncf %330 : vector<8x128xf32> to vector<8x128xbf16>
    %cst_191 = arith.constant dense<0.000000e+00> : vector<8x512xf32>
    %332 = tpu.matmul %331, %47, %cst_191 {dimension_numbers = #tpu.dot_dimension_numbers<[1], [0], [0], [1], [0, 0, 1, 1], [], []>} : vector<8x128xbf16>, vector<128x512xbf16>, vector<8x512xf32> -> vector<8x512xf32>
    %333 = arith.addf %328, %332 : vector<8x512xf32>
    %334 = vector.extract_strided_slice %333 {offsets = [0, 0], sizes = [8, 128], strides = [1, 1]} : vector<8x512xf32> to vector<8x128xf32>
    %335 = arith.negf %334 : vector<8x128xf32>
    %336 = math.exp %335 : vector<8x128xf32>
    %cst_192 = arith.constant 1.000000e+00 : f32
    %337 = vector.broadcast %cst_192 : f32 to vector<8x128xf32>
    %338 = arith.addf %337, %336 : vector<8x128xf32>
    %339 = arith.divf %337, %338 : vector<8x128xf32>
    %340 = vector.extract_strided_slice %333 {offsets = [0, 128], sizes = [8, 128], strides = [1, 1]} : vector<8x512xf32> to vector<8x128xf32>
    %341 = arith.negf %340 : vector<8x128xf32>
    %342 = math.exp %341 : vector<8x128xf32>
    %cst_193 = arith.constant 1.000000e+00 : f32
    %343 = vector.broadcast %cst_193 : f32 to vector<8x128xf32>
    %344 = arith.addf %343, %342 : vector<8x128xf32>
    %345 = arith.divf %343, %344 : vector<8x128xf32>
    %346 = vector.extract_strided_slice %333 {offsets = [0, 256], sizes = [8, 128], strides = [1, 1]} : vector<8x512xf32> to vector<8x128xf32>
    %347 = math.tanh %346 : vector<8x128xf32>
    %348 = vector.extract_strided_slice %333 {offsets = [0, 384], sizes = [8, 128], strides = [1, 1]} : vector<8x512xf32> to vector<8x128xf32>
    %349 = arith.negf %348 : vector<8x128xf32>
    %350 = math.exp %349 : vector<8x128xf32>
    %cst_194 = arith.constant 1.000000e+00 : f32
    %351 = vector.broadcast %cst_194 : f32 to vector<8x128xf32>
    %352 = arith.addf %351, %350 : vector<8x128xf32>
    %353 = arith.divf %351, %352 : vector<8x128xf32>
    %c1_195 = arith.constant 1 : index
    %c0_196 = arith.constant 0 : index
    %c0_197 = arith.constant 0 : index
    %354 = vector.load %arg8[%c1_195, %c0_196, %c0_197] : memref<2x8x128xf32, #tpu.memory_space<vmem>>, vector<1x8x128xf32>
    %355 = vector.shape_cast %354 : vector<1x8x128xf32> to vector<8x128xf32>
    %356 = arith.mulf %345, %355 : vector<8x128xf32>
    %357 = arith.mulf %339, %347 : vector<8x128xf32>
    %358 = arith.addf %356, %357 : vector<8x128xf32>
    %359 = math.tanh %358 : vector<8x128xf32>
    %360 = arith.mulf %353, %359 : vector<8x128xf32>
    %c1_198 = arith.constant 1 : index
    %c0_199 = arith.constant 0 : index
    %c0_200 = arith.constant 0 : index
    %361 = vector.load %arg8[%c1_198, %c0_199, %c0_200] : memref<2x8x128xf32, #tpu.memory_space<vmem>>, vector<1x8x128xf32>
    %362 = vector.shape_cast %361 : vector<1x8x128xf32> to vector<8x128xf32>
    %363 = vector.shape_cast %358 : vector<8x128xf32> to vector<1x8x128xf32>
    tpu.vector_store %arg8[%c1_198, %c0_199, %c0_200], %363 {strides = array<i32>} : memref<2x8x128xf32, #tpu.memory_space<vmem>>, vector<1x8x128xf32>,
    %c1_201 = arith.constant 1 : index
    %c0_202 = arith.constant 0 : index
    %c0_203 = arith.constant 0 : index
    %364 = vector.load %arg7[%c1_201, %c0_202, %c0_203] : memref<2x8x128xf32, #tpu.memory_space<vmem>>, vector<1x8x128xf32>
    %365 = vector.shape_cast %364 : vector<1x8x128xf32> to vector<8x128xf32>
    %366 = vector.shape_cast %360 : vector<8x128xf32> to vector<1x8x128xf32>
    tpu.vector_store %arg7[%c1_201, %c0_202, %c0_203], %366 {strides = array<i32>} : memref<2x8x128xf32, #tpu.memory_space<vmem>>, vector<1x8x128xf32>,
    %367 = arith.truncf %360 : vector<8x128xf32> to vector<8x128xbf16>
    %c1_204 = arith.constant 1 : index
    %368 = arith.index_cast %323 : i32 to index
    %c0_205 = arith.constant 0 : index
    %c0_206 = arith.constant 0 : index
    %369 = vector.load %arg5[%c1_204, %368, %c0_205, %c0_206] : memref<2x8x8x128xbf16, #tpu.memory_space<vmem>>, vector<1x1x8x128xbf16>
    %370 = vector.shape_cast %369 : vector<1x1x8x128xbf16> to vector<8x128xbf16>
    %371 = vector.shape_cast %367 : vector<8x128xbf16> to vector<1x1x8x128xbf16>
    tpu.vector_store %arg5[%c1_204, %368, %c0_205, %c0_206], %371 {strides = array<i32>} : memref<2x8x8x128xbf16, #tpu.memory_space<vmem>>, vector<1x1x8x128xbf16>,
    %c3_i32 = arith.constant 3 : i32
    %c2_i32_207 = arith.constant 2 : i32
    %372 = arith.muli %arg0, %c2_i32_207 : i32
    %c0_i32_208 = arith.constant 0 : i32
    %373 = arith.addi %372, %c0_i32_208 : i32
    %c2_i32_209 = arith.constant 2 : i32
    %374 = arith.muli %c2_i32_209, %c3_i32 : i32
    %c7_i32_210 = arith.constant 7 : i32
    %375 = arith.subi %c7_i32_210, %374 : i32
    %376 = arith.muli %373, %375 : i32
    %377 = arith.addi %c3_i32, %376 : i32
    %c8_i32_211 = arith.constant 8 : i32
    %378 = arith.muli %377, %c8_i32_211 : i32
    %c0_i32_212 = arith.constant 0 : i32
    %379 = arith.addi %c0_i32_212, %378 : i32
    %380 = tpu.assume_multiple %379, 8 : i32
    %381 = arith.index_cast %380 : i32 to index
    %c0_213 = arith.constant 0 : index
    %382 = vector.load %arg6[%381, %c0_213] : memref<128x512xf32, #tpu.memory_space<vmem>>, vector<8x512xf32>
    %c0_214 = arith.constant 0 : index
    %c0_215 = arith.constant 0 : index
    %c0_216 = arith.constant 0 : index
    %383 = vector.load %arg7[%c0_214, %c0_215, %c0_216] : memref<2x8x128xf32, #tpu.memory_space<vmem>>, vector<1x8x128xf32>
    %384 = vector.shape_cast %383 : vector<1x8x128xf32> to vector<8x128xf32>
    %385 = arith.truncf %384 : vector<8x128xf32> to vector<8x128xbf16>
    %cst_217 = arith.constant dense<0.000000e+00> : vector<8x512xf32>
    %386 = tpu.matmul %385, %45, %cst_217 {dimension_numbers = #tpu.dot_dimension_numbers<[1], [0], [0], [1], [0, 0, 1, 1], [], []>} : vector<8x128xbf16>, vector<128x512xbf16>, vector<8x512xf32> -> vector<8x512xf32>
    %387 = arith.addf %382, %386 : vector<8x512xf32>
    %388 = vector.extract_strided_slice %387 {offsets = [0, 0], sizes = [8, 128], strides = [1, 1]} : vector<8x512xf32> to vector<8x128xf32>
    %389 = arith.negf %388 : vector<8x128xf32>
    %390 = math.exp %389 : vector<8x128xf32>
    %cst_218 = arith.constant 1.000000e+00 : f32
    %391 = vector.broadcast %cst_218 : f32 to vector<8x128xf32>
    %392 = arith.addf %391, %390 : vector<8x128xf32>
    %393 = arith.divf %391, %392 : vector<8x128xf32>
    %394 = vector.extract_strided_slice %387 {offsets = [0, 128], sizes = [8, 128], strides = [1, 1]} : vector<8x512xf32> to vector<8x128xf32>
    %395 = arith.negf %394 : vector<8x128xf32>
    %396 = math.exp %395 : vector<8x128xf32>
    %cst_219 = arith.constant 1.000000e+00 : f32
    %397 = vector.broadcast %cst_219 : f32 to vector<8x128xf32>
    %398 = arith.addf %397, %396 : vector<8x128xf32>
    %399 = arith.divf %397, %398 : vector<8x128xf32>
    %400 = vector.extract_strided_slice %387 {offsets = [0, 256], sizes = [8, 128], strides = [1, 1]} : vector<8x512xf32> to vector<8x128xf32>
    %401 = math.tanh %400 : vector<8x128xf32>
    %402 = vector.extract_strided_slice %387 {offsets = [0, 384], sizes = [8, 128], strides = [1, 1]} : vector<8x512xf32> to vector<8x128xf32>
    %403 = arith.negf %402 : vector<8x128xf32>
    %404 = math.exp %403 : vector<8x128xf32>
    %cst_220 = arith.constant 1.000000e+00 : f32
    %405 = vector.broadcast %cst_220 : f32 to vector<8x128xf32>
    %406 = arith.addf %405, %404 : vector<8x128xf32>
    %407 = arith.divf %405, %406 : vector<8x128xf32>
    %c0_221 = arith.constant 0 : index
    %c0_222 = arith.constant 0 : index
    %c0_223 = arith.constant 0 : index
    %408 = vector.load %arg8[%c0_221, %c0_222, %c0_223] : memref<2x8x128xf32, #tpu.memory_space<vmem>>, vector<1x8x128xf32>
    %409 = vector.shape_cast %408 : vector<1x8x128xf32> to vector<8x128xf32>
    %410 = arith.mulf %399, %409 : vector<8x128xf32>
    %411 = arith.mulf %393, %401 : vector<8x128xf32>
    %412 = arith.addf %410, %411 : vector<8x128xf32>
    %413 = math.tanh %412 : vector<8x128xf32>
    %414 = arith.mulf %407, %413 : vector<8x128xf32>
    %c0_224 = arith.constant 0 : index
    %c0_225 = arith.constant 0 : index
    %c0_226 = arith.constant 0 : index
    %415 = vector.load %arg8[%c0_224, %c0_225, %c0_226] : memref<2x8x128xf32, #tpu.memory_space<vmem>>, vector<1x8x128xf32>
    %416 = vector.shape_cast %415 : vector<1x8x128xf32> to vector<8x128xf32>
    %417 = vector.shape_cast %412 : vector<8x128xf32> to vector<1x8x128xf32>
    tpu.vector_store %arg8[%c0_224, %c0_225, %c0_226], %417 {strides = array<i32>} : memref<2x8x128xf32, #tpu.memory_space<vmem>>, vector<1x8x128xf32>,
    %c0_227 = arith.constant 0 : index
    %c0_228 = arith.constant 0 : index
    %c0_229 = arith.constant 0 : index
    %418 = vector.load %arg7[%c0_227, %c0_228, %c0_229] : memref<2x8x128xf32, #tpu.memory_space<vmem>>, vector<1x8x128xf32>
    %419 = vector.shape_cast %418 : vector<1x8x128xf32> to vector<8x128xf32>
    %420 = vector.shape_cast %414 : vector<8x128xf32> to vector<1x8x128xf32>
    tpu.vector_store %arg7[%c0_227, %c0_228, %c0_229], %420 {strides = array<i32>} : memref<2x8x128xf32, #tpu.memory_space<vmem>>, vector<1x8x128xf32>,
    %421 = arith.truncf %414 : vector<8x128xf32> to vector<8x128xbf16>
    %c0_230 = arith.constant 0 : index
    %422 = arith.index_cast %377 : i32 to index
    %c0_231 = arith.constant 0 : index
    %c0_232 = arith.constant 0 : index
    %423 = vector.load %arg5[%c0_230, %422, %c0_231, %c0_232] : memref<2x8x8x128xbf16, #tpu.memory_space<vmem>>, vector<1x1x8x128xbf16>
    %424 = vector.shape_cast %423 : vector<1x1x8x128xbf16> to vector<8x128xbf16>
    %425 = vector.shape_cast %421 : vector<8x128xbf16> to vector<1x1x8x128xbf16>
    tpu.vector_store %arg5[%c0_230, %422, %c0_231, %c0_232], %425 {strides = array<i32>} : memref<2x8x8x128xbf16, #tpu.memory_space<vmem>>, vector<1x1x8x128xbf16>,
    %c2_i32_233 = arith.constant 2 : i32
    %426 = arith.muli %arg0, %c2_i32_233 : i32
    %c1_i32_234 = arith.constant 1 : i32
    %427 = arith.addi %426, %c1_i32_234 : i32
    %c2_i32_235 = arith.constant 2 : i32
    %428 = arith.muli %c2_i32_235, %c3_i32 : i32
    %c7_i32_236 = arith.constant 7 : i32
    %429 = arith.subi %c7_i32_236, %428 : i32
    %430 = arith.muli %427, %429 : i32
    %431 = arith.addi %c3_i32, %430 : i32
    %c8_i32_237 = arith.constant 8 : i32
    %432 = arith.muli %431, %c8_i32_237 : i32
    %c64_i32_238 = arith.constant 64 : i32
    %433 = arith.addi %c64_i32_238, %432 : i32
    %434 = tpu.assume_multiple %433, 8 : i32
    %435 = arith.index_cast %434 : i32 to index
    %c0_239 = arith.constant 0 : index
    %436 = vector.load %arg6[%435, %c0_239] : memref<128x512xf32, #tpu.memory_space<vmem>>, vector<8x512xf32>
    %c1_240 = arith.constant 1 : index
    %c0_241 = arith.constant 0 : index
    %c0_242 = arith.constant 0 : index
    %437 = vector.load %arg7[%c1_240, %c0_241, %c0_242] : memref<2x8x128xf32, #tpu.memory_space<vmem>>, vector<1x8x128xf32>
    %438 = vector.shape_cast %437 : vector<1x8x128xf32> to vector<8x128xf32>
    %439 = arith.truncf %438 : vector<8x128xf32> to vector<8x128xbf16>
    %cst_243 = arith.constant dense<0.000000e+00> : vector<8x512xf32>
    %440 = tpu.matmul %439, %47, %cst_243 {dimension_numbers = #tpu.dot_dimension_numbers<[1], [0], [0], [1], [0, 0, 1, 1], [], []>} : vector<8x128xbf16>, vector<128x512xbf16>, vector<8x512xf32> -> vector<8x512xf32>
    %441 = arith.addf %436, %440 : vector<8x512xf32>
    %442 = vector.extract_strided_slice %441 {offsets = [0, 0], sizes = [8, 128], strides = [1, 1]} : vector<8x512xf32> to vector<8x128xf32>
    %443 = arith.negf %442 : vector<8x128xf32>
    %444 = math.exp %443 : vector<8x128xf32>
    %cst_244 = arith.constant 1.000000e+00 : f32
    %445 = vector.broadcast %cst_244 : f32 to vector<8x128xf32>
    %446 = arith.addf %445, %444 : vector<8x128xf32>
    %447 = arith.divf %445, %446 : vector<8x128xf32>
    %448 = vector.extract_strided_slice %441 {offsets = [0, 128], sizes = [8, 128], strides = [1, 1]} : vector<8x512xf32> to vector<8x128xf32>
    %449 = arith.negf %448 : vector<8x128xf32>
    %450 = math.exp %449 : vector<8x128xf32>
    %cst_245 = arith.constant 1.000000e+00 : f32
    %451 = vector.broadcast %cst_245 : f32 to vector<8x128xf32>
    %452 = arith.addf %451, %450 : vector<8x128xf32>
    %453 = arith.divf %451, %452 : vector<8x128xf32>
    %454 = vector.extract_strided_slice %441 {offsets = [0, 256], sizes = [8, 128], strides = [1, 1]} : vector<8x512xf32> to vector<8x128xf32>
    %455 = math.tanh %454 : vector<8x128xf32>
    %456 = vector.extract_strided_slice %441 {offsets = [0, 384], sizes = [8, 128], strides = [1, 1]} : vector<8x512xf32> to vector<8x128xf32>
    %457 = arith.negf %456 : vector<8x128xf32>
    %458 = math.exp %457 : vector<8x128xf32>
    %cst_246 = arith.constant 1.000000e+00 : f32
    %459 = vector.broadcast %cst_246 : f32 to vector<8x128xf32>
    %460 = arith.addf %459, %458 : vector<8x128xf32>
    %461 = arith.divf %459, %460 : vector<8x128xf32>
    %c1_247 = arith.constant 1 : index
    %c0_248 = arith.constant 0 : index
    %c0_249 = arith.constant 0 : index
    %462 = vector.load %arg8[%c1_247, %c0_248, %c0_249] : memref<2x8x128xf32, #tpu.memory_space<vmem>>, vector<1x8x128xf32>
    %463 = vector.shape_cast %462 : vector<1x8x128xf32> to vector<8x128xf32>
    %464 = arith.mulf %453, %463 : vector<8x128xf32>
    %465 = arith.mulf %447, %455 : vector<8x128xf32>
    %466 = arith.addf %464, %465 : vector<8x128xf32>
    %467 = math.tanh %466 : vector<8x128xf32>
    %468 = arith.mulf %461, %467 : vector<8x128xf32>
    %c1_250 = arith.constant 1 : index
    %c0_251 = arith.constant 0 : index
    %c0_252 = arith.constant 0 : index
    %469 = vector.load %arg8[%c1_250, %c0_251, %c0_252] : memref<2x8x128xf32, #tpu.memory_space<vmem>>, vector<1x8x128xf32>
    %470 = vector.shape_cast %469 : vector<1x8x128xf32> to vector<8x128xf32>
    %471 = vector.shape_cast %466 : vector<8x128xf32> to vector<1x8x128xf32>
    tpu.vector_store %arg8[%c1_250, %c0_251, %c0_252], %471 {strides = array<i32>} : memref<2x8x128xf32, #tpu.memory_space<vmem>>, vector<1x8x128xf32>,
    %c1_253 = arith.constant 1 : index
    %c0_254 = arith.constant 0 : index
    %c0_255 = arith.constant 0 : index
    %472 = vector.load %arg7[%c1_253, %c0_254, %c0_255] : memref<2x8x128xf32, #tpu.memory_space<vmem>>, vector<1x8x128xf32>
    %473 = vector.shape_cast %472 : vector<1x8x128xf32> to vector<8x128xf32>
    %474 = vector.shape_cast %468 : vector<8x128xf32> to vector<1x8x128xf32>
    tpu.vector_store %arg7[%c1_253, %c0_254, %c0_255], %474 {strides = array<i32>} : memref<2x8x128xf32, #tpu.memory_space<vmem>>, vector<1x8x128xf32>,
    %475 = arith.truncf %468 : vector<8x128xf32> to vector<8x128xbf16>
    %c1_256 = arith.constant 1 : index
    %476 = arith.index_cast %431 : i32 to index
    %c0_257 = arith.constant 0 : index
    %c0_258 = arith.constant 0 : index
    %477 = vector.load %arg5[%c1_256, %476, %c0_257, %c0_258] : memref<2x8x8x128xbf16, #tpu.memory_space<vmem>>, vector<1x1x8x128xbf16>
    %478 = vector.shape_cast %477 : vector<1x1x8x128xbf16> to vector<8x128xbf16>
    %479 = vector.shape_cast %475 : vector<8x128xbf16> to vector<1x1x8x128xbf16>
    tpu.vector_store %arg5[%c1_256, %476, %c0_257, %c0_258], %479 {strides = array<i32>} : memref<2x8x8x128xbf16, #tpu.memory_space<vmem>>, vector<1x1x8x128xbf16>,
    %c4_i32 = arith.constant 4 : i32
    %c2_i32_259 = arith.constant 2 : i32
    %480 = arith.muli %arg0, %c2_i32_259 : i32
    %c0_i32_260 = arith.constant 0 : i32
    %481 = arith.addi %480, %c0_i32_260 : i32
    %c2_i32_261 = arith.constant 2 : i32
    %482 = arith.muli %c2_i32_261, %c4_i32 : i32
    %c7_i32_262 = arith.constant 7 : i32
    %483 = arith.subi %c7_i32_262, %482 : i32
    %484 = arith.muli %481, %483 : i32
    %485 = arith.addi %c4_i32, %484 : i32
    %c8_i32_263 = arith.constant 8 : i32
    %486 = arith.muli %485, %c8_i32_263 : i32
    %c0_i32_264 = arith.constant 0 : i32
    %487 = arith.addi %c0_i32_264, %486 : i32
    %488 = tpu.assume_multiple %487, 8 : i32
    %489 = arith.index_cast %488 : i32 to index
    %c0_265 = arith.constant 0 : index
    %490 = vector.load %arg6[%489, %c0_265] : memref<128x512xf32, #tpu.memory_space<vmem>>, vector<8x512xf32>
    %c0_266 = arith.constant 0 : index
    %c0_267 = arith.constant 0 : index
    %c0_268 = arith.constant 0 : index
    %491 = vector.load %arg7[%c0_266, %c0_267, %c0_268] : memref<2x8x128xf32, #tpu.memory_space<vmem>>, vector<1x8x128xf32>
    %492 = vector.shape_cast %491 : vector<1x8x128xf32> to vector<8x128xf32>
    %493 = arith.truncf %492 : vector<8x128xf32> to vector<8x128xbf16>
    %cst_269 = arith.constant dense<0.000000e+00> : vector<8x512xf32>
    %494 = tpu.matmul %493, %45, %cst_269 {dimension_numbers = #tpu.dot_dimension_numbers<[1], [0], [0], [1], [0, 0, 1, 1], [], []>} : vector<8x128xbf16>, vector<128x512xbf16>, vector<8x512xf32> -> vector<8x512xf32>
    %495 = arith.addf %490, %494 : vector<8x512xf32>
    %496 = vector.extract_strided_slice %495 {offsets = [0, 0], sizes = [8, 128], strides = [1, 1]} : vector<8x512xf32> to vector<8x128xf32>
    %497 = arith.negf %496 : vector<8x128xf32>
    %498 = math.exp %497 : vector<8x128xf32>
    %cst_270 = arith.constant 1.000000e+00 : f32
    %499 = vector.broadcast %cst_270 : f32 to vector<8x128xf32>
    %500 = arith.addf %499, %498 : vector<8x128xf32>
    %501 = arith.divf %499, %500 : vector<8x128xf32>
    %502 = vector.extract_strided_slice %495 {offsets = [0, 128], sizes = [8, 128], strides = [1, 1]} : vector<8x512xf32> to vector<8x128xf32>
    %503 = arith.negf %502 : vector<8x128xf32>
    %504 = math.exp %503 : vector<8x128xf32>
    %cst_271 = arith.constant 1.000000e+00 : f32
    %505 = vector.broadcast %cst_271 : f32 to vector<8x128xf32>
    %506 = arith.addf %505, %504 : vector<8x128xf32>
    %507 = arith.divf %505, %506 : vector<8x128xf32>
    %508 = vector.extract_strided_slice %495 {offsets = [0, 256], sizes = [8, 128], strides = [1, 1]} : vector<8x512xf32> to vector<8x128xf32>
    %509 = math.tanh %508 : vector<8x128xf32>
    %510 = vector.extract_strided_slice %495 {offsets = [0, 384], sizes = [8, 128], strides = [1, 1]} : vector<8x512xf32> to vector<8x128xf32>
    %511 = arith.negf %510 : vector<8x128xf32>
    %512 = math.exp %511 : vector<8x128xf32>
    %cst_272 = arith.constant 1.000000e+00 : f32
    %513 = vector.broadcast %cst_272 : f32 to vector<8x128xf32>
    %514 = arith.addf %513, %512 : vector<8x128xf32>
    %515 = arith.divf %513, %514 : vector<8x128xf32>
    %c0_273 = arith.constant 0 : index
    %c0_274 = arith.constant 0 : index
    %c0_275 = arith.constant 0 : index
    %516 = vector.load %arg8[%c0_273, %c0_274, %c0_275] : memref<2x8x128xf32, #tpu.memory_space<vmem>>, vector<1x8x128xf32>
    %517 = vector.shape_cast %516 : vector<1x8x128xf32> to vector<8x128xf32>
    %518 = arith.mulf %507, %517 : vector<8x128xf32>
    %519 = arith.mulf %501, %509 : vector<8x128xf32>
    %520 = arith.addf %518, %519 : vector<8x128xf32>
    %521 = math.tanh %520 : vector<8x128xf32>
    %522 = arith.mulf %515, %521 : vector<8x128xf32>
    %c0_276 = arith.constant 0 : index
    %c0_277 = arith.constant 0 : index
    %c0_278 = arith.constant 0 : index
    %523 = vector.load %arg8[%c0_276, %c0_277, %c0_278] : memref<2x8x128xf32, #tpu.memory_space<vmem>>, vector<1x8x128xf32>
    %524 = vector.shape_cast %523 : vector<1x8x128xf32> to vector<8x128xf32>
    %525 = vector.shape_cast %520 : vector<8x128xf32> to vector<1x8x128xf32>
    tpu.vector_store %arg8[%c0_276, %c0_277, %c0_278], %525 {strides = array<i32>} : memref<2x8x128xf32, #tpu.memory_space<vmem>>, vector<1x8x128xf32>,
    %c0_279 = arith.constant 0 : index
    %c0_280 = arith.constant 0 : index
    %c0_281 = arith.constant 0 : index
    %526 = vector.load %arg7[%c0_279, %c0_280, %c0_281] : memref<2x8x128xf32, #tpu.memory_space<vmem>>, vector<1x8x128xf32>
    %527 = vector.shape_cast %526 : vector<1x8x128xf32> to vector<8x128xf32>
    %528 = vector.shape_cast %522 : vector<8x128xf32> to vector<1x8x128xf32>
    tpu.vector_store %arg7[%c0_279, %c0_280, %c0_281], %528 {strides = array<i32>} : memref<2x8x128xf32, #tpu.memory_space<vmem>>, vector<1x8x128xf32>,
    %529 = arith.truncf %522 : vector<8x128xf32> to vector<8x128xbf16>
    %c0_282 = arith.constant 0 : index
    %530 = arith.index_cast %485 : i32 to index
    %c0_283 = arith.constant 0 : index
    %c0_284 = arith.constant 0 : index
    %531 = vector.load %arg5[%c0_282, %530, %c0_283, %c0_284] : memref<2x8x8x128xbf16, #tpu.memory_space<vmem>>, vector<1x1x8x128xbf16>
    %532 = vector.shape_cast %531 : vector<1x1x8x128xbf16> to vector<8x128xbf16>
    %533 = vector.shape_cast %529 : vector<8x128xbf16> to vector<1x1x8x128xbf16>
    tpu.vector_store %arg5[%c0_282, %530, %c0_283, %c0_284], %533 {strides = array<i32>} : memref<2x8x8x128xbf16, #tpu.memory_space<vmem>>, vector<1x1x8x128xbf16>,
    %c2_i32_285 = arith.constant 2 : i32
    %534 = arith.muli %arg0, %c2_i32_285 : i32
    %c1_i32_286 = arith.constant 1 : i32
    %535 = arith.addi %534, %c1_i32_286 : i32
    %c2_i32_287 = arith.constant 2 : i32
    %536 = arith.muli %c2_i32_287, %c4_i32 : i32
    %c7_i32_288 = arith.constant 7 : i32
    %537 = arith.subi %c7_i32_288, %536 : i32
    %538 = arith.muli %535, %537 : i32
    %539 = arith.addi %c4_i32, %538 : i32
    %c8_i32_289 = arith.constant 8 : i32
    %540 = arith.muli %539, %c8_i32_289 : i32
    %c64_i32_290 = arith.constant 64 : i32
    %541 = arith.addi %c64_i32_290, %540 : i32
    %542 = tpu.assume_multiple %541, 8 : i32
    %543 = arith.index_cast %542 : i32 to index
    %c0_291 = arith.constant 0 : index
    %544 = vector.load %arg6[%543, %c0_291] : memref<128x512xf32, #tpu.memory_space<vmem>>, vector<8x512xf32>
    %c1_292 = arith.constant 1 : index
    %c0_293 = arith.constant 0 : index
    %c0_294 = arith.constant 0 : index
    %545 = vector.load %arg7[%c1_292, %c0_293, %c0_294] : memref<2x8x128xf32, #tpu.memory_space<vmem>>, vector<1x8x128xf32>
    %546 = vector.shape_cast %545 : vector<1x8x128xf32> to vector<8x128xf32>
    %547 = arith.truncf %546 : vector<8x128xf32> to vector<8x128xbf16>
    %cst_295 = arith.constant dense<0.000000e+00> : vector<8x512xf32>
    %548 = tpu.matmul %547, %47, %cst_295 {dimension_numbers = #tpu.dot_dimension_numbers<[1], [0], [0], [1], [0, 0, 1, 1], [], []>} : vector<8x128xbf16>, vector<128x512xbf16>, vector<8x512xf32> -> vector<8x512xf32>
    %549 = arith.addf %544, %548 : vector<8x512xf32>
    %550 = vector.extract_strided_slice %549 {offsets = [0, 0], sizes = [8, 128], strides = [1, 1]} : vector<8x512xf32> to vector<8x128xf32>
    %551 = arith.negf %550 : vector<8x128xf32>
    %552 = math.exp %551 : vector<8x128xf32>
    %cst_296 = arith.constant 1.000000e+00 : f32
    %553 = vector.broadcast %cst_296 : f32 to vector<8x128xf32>
    %554 = arith.addf %553, %552 : vector<8x128xf32>
    %555 = arith.divf %553, %554 : vector<8x128xf32>
    %556 = vector.extract_strided_slice %549 {offsets = [0, 128], sizes = [8, 128], strides = [1, 1]} : vector<8x512xf32> to vector<8x128xf32>
    %557 = arith.negf %556 : vector<8x128xf32>
    %558 = math.exp %557 : vector<8x128xf32>
    %cst_297 = arith.constant 1.000000e+00 : f32
    %559 = vector.broadcast %cst_297 : f32 to vector<8x128xf32>
    %560 = arith.addf %559, %558 : vector<8x128xf32>
    %561 = arith.divf %559, %560 : vector<8x128xf32>
    %562 = vector.extract_strided_slice %549 {offsets = [0, 256], sizes = [8, 128], strides = [1, 1]} : vector<8x512xf32> to vector<8x128xf32>
    %563 = math.tanh %562 : vector<8x128xf32>
    %564 = vector.extract_strided_slice %549 {offsets = [0, 384], sizes = [8, 128], strides = [1, 1]} : vector<8x512xf32> to vector<8x128xf32>
    %565 = arith.negf %564 : vector<8x128xf32>
    %566 = math.exp %565 : vector<8x128xf32>
    %cst_298 = arith.constant 1.000000e+00 : f32
    %567 = vector.broadcast %cst_298 : f32 to vector<8x128xf32>
    %568 = arith.addf %567, %566 : vector<8x128xf32>
    %569 = arith.divf %567, %568 : vector<8x128xf32>
    %c1_299 = arith.constant 1 : index
    %c0_300 = arith.constant 0 : index
    %c0_301 = arith.constant 0 : index
    %570 = vector.load %arg8[%c1_299, %c0_300, %c0_301] : memref<2x8x128xf32, #tpu.memory_space<vmem>>, vector<1x8x128xf32>
    %571 = vector.shape_cast %570 : vector<1x8x128xf32> to vector<8x128xf32>
    %572 = arith.mulf %561, %571 : vector<8x128xf32>
    %573 = arith.mulf %555, %563 : vector<8x128xf32>
    %574 = arith.addf %572, %573 : vector<8x128xf32>
    %575 = math.tanh %574 : vector<8x128xf32>
    %576 = arith.mulf %569, %575 : vector<8x128xf32>
    %c1_302 = arith.constant 1 : index
    %c0_303 = arith.constant 0 : index
    %c0_304 = arith.constant 0 : index
    %577 = vector.load %arg8[%c1_302, %c0_303, %c0_304] : memref<2x8x128xf32, #tpu.memory_space<vmem>>, vector<1x8x128xf32>
    %578 = vector.shape_cast %577 : vector<1x8x128xf32> to vector<8x128xf32>
    %579 = vector.shape_cast %574 : vector<8x128xf32> to vector<1x8x128xf32>
    tpu.vector_store %arg8[%c1_302, %c0_303, %c0_304], %579 {strides = array<i32>} : memref<2x8x128xf32, #tpu.memory_space<vmem>>, vector<1x8x128xf32>,
    %c1_305 = arith.constant 1 : index
    %c0_306 = arith.constant 0 : index
    %c0_307 = arith.constant 0 : index
    %580 = vector.load %arg7[%c1_305, %c0_306, %c0_307] : memref<2x8x128xf32, #tpu.memory_space<vmem>>, vector<1x8x128xf32>
    %581 = vector.shape_cast %580 : vector<1x8x128xf32> to vector<8x128xf32>
    %582 = vector.shape_cast %576 : vector<8x128xf32> to vector<1x8x128xf32>
    tpu.vector_store %arg7[%c1_305, %c0_306, %c0_307], %582 {strides = array<i32>} : memref<2x8x128xf32, #tpu.memory_space<vmem>>, vector<1x8x128xf32>,
    %583 = arith.truncf %576 : vector<8x128xf32> to vector<8x128xbf16>
    %c1_308 = arith.constant 1 : index
    %584 = arith.index_cast %539 : i32 to index
    %c0_309 = arith.constant 0 : index
    %c0_310 = arith.constant 0 : index
    %585 = vector.load %arg5[%c1_308, %584, %c0_309, %c0_310] : memref<2x8x8x128xbf16, #tpu.memory_space<vmem>>, vector<1x1x8x128xbf16>
    %586 = vector.shape_cast %585 : vector<1x1x8x128xbf16> to vector<8x128xbf16>
    %587 = vector.shape_cast %583 : vector<8x128xbf16> to vector<1x1x8x128xbf16>
    tpu.vector_store %arg5[%c1_308, %584, %c0_309, %c0_310], %587 {strides = array<i32>} : memref<2x8x8x128xbf16, #tpu.memory_space<vmem>>, vector<1x1x8x128xbf16>,
    %c5_i32 = arith.constant 5 : i32
    %c2_i32_311 = arith.constant 2 : i32
    %588 = arith.muli %arg0, %c2_i32_311 : i32
    %c0_i32_312 = arith.constant 0 : i32
    %589 = arith.addi %588, %c0_i32_312 : i32
    %c2_i32_313 = arith.constant 2 : i32
    %590 = arith.muli %c2_i32_313, %c5_i32 : i32
    %c7_i32_314 = arith.constant 7 : i32
    %591 = arith.subi %c7_i32_314, %590 : i32
    %592 = arith.muli %589, %591 : i32
    %593 = arith.addi %c5_i32, %592 : i32
    %c8_i32_315 = arith.constant 8 : i32
    %594 = arith.muli %593, %c8_i32_315 : i32
    %c0_i32_316 = arith.constant 0 : i32
    %595 = arith.addi %c0_i32_316, %594 : i32
    %596 = tpu.assume_multiple %595, 8 : i32
    %597 = arith.index_cast %596 : i32 to index
    %c0_317 = arith.constant 0 : index
    %598 = vector.load %arg6[%597, %c0_317] : memref<128x512xf32, #tpu.memory_space<vmem>>, vector<8x512xf32>
    %c0_318 = arith.constant 0 : index
    %c0_319 = arith.constant 0 : index
    %c0_320 = arith.constant 0 : index
    %599 = vector.load %arg7[%c0_318, %c0_319, %c0_320] : memref<2x8x128xf32, #tpu.memory_space<vmem>>, vector<1x8x128xf32>
    %600 = vector.shape_cast %599 : vector<1x8x128xf32> to vector<8x128xf32>
    %601 = arith.truncf %600 : vector<8x128xf32> to vector<8x128xbf16>
    %cst_321 = arith.constant dense<0.000000e+00> : vector<8x512xf32>
    %602 = tpu.matmul %601, %45, %cst_321 {dimension_numbers = #tpu.dot_dimension_numbers<[1], [0], [0], [1], [0, 0, 1, 1], [], []>} : vector<8x128xbf16>, vector<128x512xbf16>, vector<8x512xf32> -> vector<8x512xf32>
    %603 = arith.addf %598, %602 : vector<8x512xf32>
    %604 = vector.extract_strided_slice %603 {offsets = [0, 0], sizes = [8, 128], strides = [1, 1]} : vector<8x512xf32> to vector<8x128xf32>
    %605 = arith.negf %604 : vector<8x128xf32>
    %606 = math.exp %605 : vector<8x128xf32>
    %cst_322 = arith.constant 1.000000e+00 : f32
    %607 = vector.broadcast %cst_322 : f32 to vector<8x128xf32>
    %608 = arith.addf %607, %606 : vector<8x128xf32>
    %609 = arith.divf %607, %608 : vector<8x128xf32>
    %610 = vector.extract_strided_slice %603 {offsets = [0, 128], sizes = [8, 128], strides = [1, 1]} : vector<8x512xf32> to vector<8x128xf32>
    %611 = arith.negf %610 : vector<8x128xf32>
    %612 = math.exp %611 : vector<8x128xf32>
    %cst_323 = arith.constant 1.000000e+00 : f32
    %613 = vector.broadcast %cst_323 : f32 to vector<8x128xf32>
    %614 = arith.addf %613, %612 : vector<8x128xf32>
    %615 = arith.divf %613, %614 : vector<8x128xf32>
    %616 = vector.extract_strided_slice %603 {offsets = [0, 256], sizes = [8, 128], strides = [1, 1]} : vector<8x512xf32> to vector<8x128xf32>
    %617 = math.tanh %616 : vector<8x128xf32>
    %618 = vector.extract_strided_slice %603 {offsets = [0, 384], sizes = [8, 128], strides = [1, 1]} : vector<8x512xf32> to vector<8x128xf32>
    %619 = arith.negf %618 : vector<8x128xf32>
    %620 = math.exp %619 : vector<8x128xf32>
    %cst_324 = arith.constant 1.000000e+00 : f32
    %621 = vector.broadcast %cst_324 : f32 to vector<8x128xf32>
    %622 = arith.addf %621, %620 : vector<8x128xf32>
    %623 = arith.divf %621, %622 : vector<8x128xf32>
    %c0_325 = arith.constant 0 : index
    %c0_326 = arith.constant 0 : index
    %c0_327 = arith.constant 0 : index
    %624 = vector.load %arg8[%c0_325, %c0_326, %c0_327] : memref<2x8x128xf32, #tpu.memory_space<vmem>>, vector<1x8x128xf32>
    %625 = vector.shape_cast %624 : vector<1x8x128xf32> to vector<8x128xf32>
    %626 = arith.mulf %615, %625 : vector<8x128xf32>
    %627 = arith.mulf %609, %617 : vector<8x128xf32>
    %628 = arith.addf %626, %627 : vector<8x128xf32>
    %629 = math.tanh %628 : vector<8x128xf32>
    %630 = arith.mulf %623, %629 : vector<8x128xf32>
    %c0_328 = arith.constant 0 : index
    %c0_329 = arith.constant 0 : index
    %c0_330 = arith.constant 0 : index
    %631 = vector.load %arg8[%c0_328, %c0_329, %c0_330] : memref<2x8x128xf32, #tpu.memory_space<vmem>>, vector<1x8x128xf32>
    %632 = vector.shape_cast %631 : vector<1x8x128xf32> to vector<8x128xf32>
    %633 = vector.shape_cast %628 : vector<8x128xf32> to vector<1x8x128xf32>
    tpu.vector_store %arg8[%c0_328, %c0_329, %c0_330], %633 {strides = array<i32>} : memref<2x8x128xf32, #tpu.memory_space<vmem>>, vector<1x8x128xf32>,
    %c0_331 = arith.constant 0 : index
    %c0_332 = arith.constant 0 : index
    %c0_333 = arith.constant 0 : index
    %634 = vector.load %arg7[%c0_331, %c0_332, %c0_333] : memref<2x8x128xf32, #tpu.memory_space<vmem>>, vector<1x8x128xf32>
    %635 = vector.shape_cast %634 : vector<1x8x128xf32> to vector<8x128xf32>
    %636 = vector.shape_cast %630 : vector<8x128xf32> to vector<1x8x128xf32>
    tpu.vector_store %arg7[%c0_331, %c0_332, %c0_333], %636 {strides = array<i32>} : memref<2x8x128xf32, #tpu.memory_space<vmem>>, vector<1x8x128xf32>,
    %637 = arith.truncf %630 : vector<8x128xf32> to vector<8x128xbf16>
    %c0_334 = arith.constant 0 : index
    %638 = arith.index_cast %593 : i32 to index
    %c0_335 = arith.constant 0 : index
    %c0_336 = arith.constant 0 : index
    %639 = vector.load %arg5[%c0_334, %638, %c0_335, %c0_336] : memref<2x8x8x128xbf16, #tpu.memory_space<vmem>>, vector<1x1x8x128xbf16>
    %640 = vector.shape_cast %639 : vector<1x1x8x128xbf16> to vector<8x128xbf16>
    %641 = vector.shape_cast %637 : vector<8x128xbf16> to vector<1x1x8x128xbf16>
    tpu.vector_store %arg5[%c0_334, %638, %c0_335, %c0_336], %641 {strides = array<i32>} : memref<2x8x8x128xbf16, #tpu.memory_space<vmem>>, vector<1x1x8x128xbf16>,
    %c2_i32_337 = arith.constant 2 : i32
    %642 = arith.muli %arg0, %c2_i32_337 : i32
    %c1_i32_338 = arith.constant 1 : i32
    %643 = arith.addi %642, %c1_i32_338 : i32
    %c2_i32_339 = arith.constant 2 : i32
    %644 = arith.muli %c2_i32_339, %c5_i32 : i32
    %c7_i32_340 = arith.constant 7 : i32
    %645 = arith.subi %c7_i32_340, %644 : i32
    %646 = arith.muli %643, %645 : i32
    %647 = arith.addi %c5_i32, %646 : i32
    %c8_i32_341 = arith.constant 8 : i32
    %648 = arith.muli %647, %c8_i32_341 : i32
    %c64_i32_342 = arith.constant 64 : i32
    %649 = arith.addi %c64_i32_342, %648 : i32
    %650 = tpu.assume_multiple %649, 8 : i32
    %651 = arith.index_cast %650 : i32 to index
    %c0_343 = arith.constant 0 : index
    %652 = vector.load %arg6[%651, %c0_343] : memref<128x512xf32, #tpu.memory_space<vmem>>, vector<8x512xf32>
    %c1_344 = arith.constant 1 : index
    %c0_345 = arith.constant 0 : index
    %c0_346 = arith.constant 0 : index
    %653 = vector.load %arg7[%c1_344, %c0_345, %c0_346] : memref<2x8x128xf32, #tpu.memory_space<vmem>>, vector<1x8x128xf32>
    %654 = vector.shape_cast %653 : vector<1x8x128xf32> to vector<8x128xf32>
    %655 = arith.truncf %654 : vector<8x128xf32> to vector<8x128xbf16>
    %cst_347 = arith.constant dense<0.000000e+00> : vector<8x512xf32>
    %656 = tpu.matmul %655, %47, %cst_347 {dimension_numbers = #tpu.dot_dimension_numbers<[1], [0], [0], [1], [0, 0, 1, 1], [], []>} : vector<8x128xbf16>, vector<128x512xbf16>, vector<8x512xf32> -> vector<8x512xf32>
    %657 = arith.addf %652, %656 : vector<8x512xf32>
    %658 = vector.extract_strided_slice %657 {offsets = [0, 0], sizes = [8, 128], strides = [1, 1]} : vector<8x512xf32> to vector<8x128xf32>
    %659 = arith.negf %658 : vector<8x128xf32>
    %660 = math.exp %659 : vector<8x128xf32>
    %cst_348 = arith.constant 1.000000e+00 : f32
    %661 = vector.broadcast %cst_348 : f32 to vector<8x128xf32>
    %662 = arith.addf %661, %660 : vector<8x128xf32>
    %663 = arith.divf %661, %662 : vector<8x128xf32>
    %664 = vector.extract_strided_slice %657 {offsets = [0, 128], sizes = [8, 128], strides = [1, 1]} : vector<8x512xf32> to vector<8x128xf32>
    %665 = arith.negf %664 : vector<8x128xf32>
    %666 = math.exp %665 : vector<8x128xf32>
    %cst_349 = arith.constant 1.000000e+00 : f32
    %667 = vector.broadcast %cst_349 : f32 to vector<8x128xf32>
    %668 = arith.addf %667, %666 : vector<8x128xf32>
    %669 = arith.divf %667, %668 : vector<8x128xf32>
    %670 = vector.extract_strided_slice %657 {offsets = [0, 256], sizes = [8, 128], strides = [1, 1]} : vector<8x512xf32> to vector<8x128xf32>
    %671 = math.tanh %670 : vector<8x128xf32>
    %672 = vector.extract_strided_slice %657 {offsets = [0, 384], sizes = [8, 128], strides = [1, 1]} : vector<8x512xf32> to vector<8x128xf32>
    %673 = arith.negf %672 : vector<8x128xf32>
    %674 = math.exp %673 : vector<8x128xf32>
    %cst_350 = arith.constant 1.000000e+00 : f32
    %675 = vector.broadcast %cst_350 : f32 to vector<8x128xf32>
    %676 = arith.addf %675, %674 : vector<8x128xf32>
    %677 = arith.divf %675, %676 : vector<8x128xf32>
    %c1_351 = arith.constant 1 : index
    %c0_352 = arith.constant 0 : index
    %c0_353 = arith.constant 0 : index
    %678 = vector.load %arg8[%c1_351, %c0_352, %c0_353] : memref<2x8x128xf32, #tpu.memory_space<vmem>>, vector<1x8x128xf32>
    %679 = vector.shape_cast %678 : vector<1x8x128xf32> to vector<8x128xf32>
    %680 = arith.mulf %669, %679 : vector<8x128xf32>
    %681 = arith.mulf %663, %671 : vector<8x128xf32>
    %682 = arith.addf %680, %681 : vector<8x128xf32>
    %683 = math.tanh %682 : vector<8x128xf32>
    %684 = arith.mulf %677, %683 : vector<8x128xf32>
    %c1_354 = arith.constant 1 : index
    %c0_355 = arith.constant 0 : index
    %c0_356 = arith.constant 0 : index
    %685 = vector.load %arg8[%c1_354, %c0_355, %c0_356] : memref<2x8x128xf32, #tpu.memory_space<vmem>>, vector<1x8x128xf32>
    %686 = vector.shape_cast %685 : vector<1x8x128xf32> to vector<8x128xf32>
    %687 = vector.shape_cast %682 : vector<8x128xf32> to vector<1x8x128xf32>
    tpu.vector_store %arg8[%c1_354, %c0_355, %c0_356], %687 {strides = array<i32>} : memref<2x8x128xf32, #tpu.memory_space<vmem>>, vector<1x8x128xf32>,
    %c1_357 = arith.constant 1 : index
    %c0_358 = arith.constant 0 : index
    %c0_359 = arith.constant 0 : index
    %688 = vector.load %arg7[%c1_357, %c0_358, %c0_359] : memref<2x8x128xf32, #tpu.memory_space<vmem>>, vector<1x8x128xf32>
    %689 = vector.shape_cast %688 : vector<1x8x128xf32> to vector<8x128xf32>
    %690 = vector.shape_cast %684 : vector<8x128xf32> to vector<1x8x128xf32>
    tpu.vector_store %arg7[%c1_357, %c0_358, %c0_359], %690 {strides = array<i32>} : memref<2x8x128xf32, #tpu.memory_space<vmem>>, vector<1x8x128xf32>,
    %691 = arith.truncf %684 : vector<8x128xf32> to vector<8x128xbf16>
    %c1_360 = arith.constant 1 : index
    %692 = arith.index_cast %647 : i32 to index
    %c0_361 = arith.constant 0 : index
    %c0_362 = arith.constant 0 : index
    %693 = vector.load %arg5[%c1_360, %692, %c0_361, %c0_362] : memref<2x8x8x128xbf16, #tpu.memory_space<vmem>>, vector<1x1x8x128xbf16>
    %694 = vector.shape_cast %693 : vector<1x1x8x128xbf16> to vector<8x128xbf16>
    %695 = vector.shape_cast %691 : vector<8x128xbf16> to vector<1x1x8x128xbf16>
    tpu.vector_store %arg5[%c1_360, %692, %c0_361, %c0_362], %695 {strides = array<i32>} : memref<2x8x8x128xbf16, #tpu.memory_space<vmem>>, vector<1x1x8x128xbf16>,
    %c6_i32 = arith.constant 6 : i32
    %c2_i32_363 = arith.constant 2 : i32
    %696 = arith.muli %arg0, %c2_i32_363 : i32
    %c0_i32_364 = arith.constant 0 : i32
    %697 = arith.addi %696, %c0_i32_364 : i32
    %c2_i32_365 = arith.constant 2 : i32
    %698 = arith.muli %c2_i32_365, %c6_i32 : i32
    %c7_i32_366 = arith.constant 7 : i32
    %699 = arith.subi %c7_i32_366, %698 : i32
    %700 = arith.muli %697, %699 : i32
    %701 = arith.addi %c6_i32, %700 : i32
    %c8_i32_367 = arith.constant 8 : i32
    %702 = arith.muli %701, %c8_i32_367 : i32
    %c0_i32_368 = arith.constant 0 : i32
    %703 = arith.addi %c0_i32_368, %702 : i32
    %704 = tpu.assume_multiple %703, 8 : i32
    %705 = arith.index_cast %704 : i32 to index
    %c0_369 = arith.constant 0 : index
    %706 = vector.load %arg6[%705, %c0_369] : memref<128x512xf32, #tpu.memory_space<vmem>>, vector<8x512xf32>
    %c0_370 = arith.constant 0 : index
    %c0_371 = arith.constant 0 : index
    %c0_372 = arith.constant 0 : index
    %707 = vector.load %arg7[%c0_370, %c0_371, %c0_372] : memref<2x8x128xf32, #tpu.memory_space<vmem>>, vector<1x8x128xf32>
    %708 = vector.shape_cast %707 : vector<1x8x128xf32> to vector<8x128xf32>
    %709 = arith.truncf %708 : vector<8x128xf32> to vector<8x128xbf16>
    %cst_373 = arith.constant dense<0.000000e+00> : vector<8x512xf32>
    %710 = tpu.matmul %709, %45, %cst_373 {dimension_numbers = #tpu.dot_dimension_numbers<[1], [0], [0], [1], [0, 0, 1, 1], [], []>} : vector<8x128xbf16>, vector<128x512xbf16>, vector<8x512xf32> -> vector<8x512xf32>
    %711 = arith.addf %706, %710 : vector<8x512xf32>
    %712 = vector.extract_strided_slice %711 {offsets = [0, 0], sizes = [8, 128], strides = [1, 1]} : vector<8x512xf32> to vector<8x128xf32>
    %713 = arith.negf %712 : vector<8x128xf32>
    %714 = math.exp %713 : vector<8x128xf32>
    %cst_374 = arith.constant 1.000000e+00 : f32
    %715 = vector.broadcast %cst_374 : f32 to vector<8x128xf32>
    %716 = arith.addf %715, %714 : vector<8x128xf32>
    %717 = arith.divf %715, %716 : vector<8x128xf32>
    %718 = vector.extract_strided_slice %711 {offsets = [0, 128], sizes = [8, 128], strides = [1, 1]} : vector<8x512xf32> to vector<8x128xf32>
    %719 = arith.negf %718 : vector<8x128xf32>
    %720 = math.exp %719 : vector<8x128xf32>
    %cst_375 = arith.constant 1.000000e+00 : f32
    %721 = vector.broadcast %cst_375 : f32 to vector<8x128xf32>
    %722 = arith.addf %721, %720 : vector<8x128xf32>
    %723 = arith.divf %721, %722 : vector<8x128xf32>
    %724 = vector.extract_strided_slice %711 {offsets = [0, 256], sizes = [8, 128], strides = [1, 1]} : vector<8x512xf32> to vector<8x128xf32>
    %725 = math.tanh %724 : vector<8x128xf32>
    %726 = vector.extract_strided_slice %711 {offsets = [0, 384], sizes = [8, 128], strides = [1, 1]} : vector<8x512xf32> to vector<8x128xf32>
    %727 = arith.negf %726 : vector<8x128xf32>
    %728 = math.exp %727 : vector<8x128xf32>
    %cst_376 = arith.constant 1.000000e+00 : f32
    %729 = vector.broadcast %cst_376 : f32 to vector<8x128xf32>
    %730 = arith.addf %729, %728 : vector<8x128xf32>
    %731 = arith.divf %729, %730 : vector<8x128xf32>
    %c0_377 = arith.constant 0 : index
    %c0_378 = arith.constant 0 : index
    %c0_379 = arith.constant 0 : index
    %732 = vector.load %arg8[%c0_377, %c0_378, %c0_379] : memref<2x8x128xf32, #tpu.memory_space<vmem>>, vector<1x8x128xf32>
    %733 = vector.shape_cast %732 : vector<1x8x128xf32> to vector<8x128xf32>
    %734 = arith.mulf %723, %733 : vector<8x128xf32>
    %735 = arith.mulf %717, %725 : vector<8x128xf32>
    %736 = arith.addf %734, %735 : vector<8x128xf32>
    %737 = math.tanh %736 : vector<8x128xf32>
    %738 = arith.mulf %731, %737 : vector<8x128xf32>
    %c0_380 = arith.constant 0 : index
    %c0_381 = arith.constant 0 : index
    %c0_382 = arith.constant 0 : index
    %739 = vector.load %arg8[%c0_380, %c0_381, %c0_382] : memref<2x8x128xf32, #tpu.memory_space<vmem>>, vector<1x8x128xf32>
    %740 = vector.shape_cast %739 : vector<1x8x128xf32> to vector<8x128xf32>
    %741 = vector.shape_cast %736 : vector<8x128xf32> to vector<1x8x128xf32>
    tpu.vector_store %arg8[%c0_380, %c0_381, %c0_382], %741 {strides = array<i32>} : memref<2x8x128xf32, #tpu.memory_space<vmem>>, vector<1x8x128xf32>,
    %c0_383 = arith.constant 0 : index
    %c0_384 = arith.constant 0 : index
    %c0_385 = arith.constant 0 : index
    %742 = vector.load %arg7[%c0_383, %c0_384, %c0_385] : memref<2x8x128xf32, #tpu.memory_space<vmem>>, vector<1x8x128xf32>
    %743 = vector.shape_cast %742 : vector<1x8x128xf32> to vector<8x128xf32>
    %744 = vector.shape_cast %738 : vector<8x128xf32> to vector<1x8x128xf32>
    tpu.vector_store %arg7[%c0_383, %c0_384, %c0_385], %744 {strides = array<i32>} : memref<2x8x128xf32, #tpu.memory_space<vmem>>, vector<1x8x128xf32>,
    %745 = arith.truncf %738 : vector<8x128xf32> to vector<8x128xbf16>
    %c0_386 = arith.constant 0 : index
    %746 = arith.index_cast %701 : i32 to index
    %c0_387 = arith.constant 0 : index
    %c0_388 = arith.constant 0 : index
    %747 = vector.load %arg5[%c0_386, %746, %c0_387, %c0_388] : memref<2x8x8x128xbf16, #tpu.memory_space<vmem>>, vector<1x1x8x128xbf16>
    %748 = vector.shape_cast %747 : vector<1x1x8x128xbf16> to vector<8x128xbf16>
    %749 = vector.shape_cast %745 : vector<8x128xbf16> to vector<1x1x8x128xbf16>
    tpu.vector_store %arg5[%c0_386, %746, %c0_387, %c0_388], %749 {strides = array<i32>} : memref<2x8x8x128xbf16, #tpu.memory_space<vmem>>, vector<1x1x8x128xbf16>,
    %c2_i32_389 = arith.constant 2 : i32
    %750 = arith.muli %arg0, %c2_i32_389 : i32
    %c1_i32_390 = arith.constant 1 : i32
    %751 = arith.addi %750, %c1_i32_390 : i32
    %c2_i32_391 = arith.constant 2 : i32
    %752 = arith.muli %c2_i32_391, %c6_i32 : i32
    %c7_i32_392 = arith.constant 7 : i32
    %753 = arith.subi %c7_i32_392, %752 : i32
    %754 = arith.muli %751, %753 : i32
    %755 = arith.addi %c6_i32, %754 : i32
    %c8_i32_393 = arith.constant 8 : i32
    %756 = arith.muli %755, %c8_i32_393 : i32
    %c64_i32_394 = arith.constant 64 : i32
    %757 = arith.addi %c64_i32_394, %756 : i32
    %758 = tpu.assume_multiple %757, 8 : i32
    %759 = arith.index_cast %758 : i32 to index
    %c0_395 = arith.constant 0 : index
    %760 = vector.load %arg6[%759, %c0_395] : memref<128x512xf32, #tpu.memory_space<vmem>>, vector<8x512xf32>
    %c1_396 = arith.constant 1 : index
    %c0_397 = arith.constant 0 : index
    %c0_398 = arith.constant 0 : index
    %761 = vector.load %arg7[%c1_396, %c0_397, %c0_398] : memref<2x8x128xf32, #tpu.memory_space<vmem>>, vector<1x8x128xf32>
    %762 = vector.shape_cast %761 : vector<1x8x128xf32> to vector<8x128xf32>
    %763 = arith.truncf %762 : vector<8x128xf32> to vector<8x128xbf16>
    %cst_399 = arith.constant dense<0.000000e+00> : vector<8x512xf32>
    %764 = tpu.matmul %763, %47, %cst_399 {dimension_numbers = #tpu.dot_dimension_numbers<[1], [0], [0], [1], [0, 0, 1, 1], [], []>} : vector<8x128xbf16>, vector<128x512xbf16>, vector<8x512xf32> -> vector<8x512xf32>
    %765 = arith.addf %760, %764 : vector<8x512xf32>
    %766 = vector.extract_strided_slice %765 {offsets = [0, 0], sizes = [8, 128], strides = [1, 1]} : vector<8x512xf32> to vector<8x128xf32>
    %767 = arith.negf %766 : vector<8x128xf32>
    %768 = math.exp %767 : vector<8x128xf32>
    %cst_400 = arith.constant 1.000000e+00 : f32
    %769 = vector.broadcast %cst_400 : f32 to vector<8x128xf32>
    %770 = arith.addf %769, %768 : vector<8x128xf32>
    %771 = arith.divf %769, %770 : vector<8x128xf32>
    %772 = vector.extract_strided_slice %765 {offsets = [0, 128], sizes = [8, 128], strides = [1, 1]} : vector<8x512xf32> to vector<8x128xf32>
    %773 = arith.negf %772 : vector<8x128xf32>
    %774 = math.exp %773 : vector<8x128xf32>
    %cst_401 = arith.constant 1.000000e+00 : f32
    %775 = vector.broadcast %cst_401 : f32 to vector<8x128xf32>
    %776 = arith.addf %775, %774 : vector<8x128xf32>
    %777 = arith.divf %775, %776 : vector<8x128xf32>
    %778 = vector.extract_strided_slice %765 {offsets = [0, 256], sizes = [8, 128], strides = [1, 1]} : vector<8x512xf32> to vector<8x128xf32>
    %779 = math.tanh %778 : vector<8x128xf32>
    %780 = vector.extract_strided_slice %765 {offsets = [0, 384], sizes = [8, 128], strides = [1, 1]} : vector<8x512xf32> to vector<8x128xf32>
    %781 = arith.negf %780 : vector<8x128xf32>
    %782 = math.exp %781 : vector<8x128xf32>
    %cst_402 = arith.constant 1.000000e+00 : f32
    %783 = vector.broadcast %cst_402 : f32 to vector<8x128xf32>
    %784 = arith.addf %783, %782 : vector<8x128xf32>
    %785 = arith.divf %783, %784 : vector<8x128xf32>
    %c1_403 = arith.constant 1 : index
    %c0_404 = arith.constant 0 : index
    %c0_405 = arith.constant 0 : index
    %786 = vector.load %arg8[%c1_403, %c0_404, %c0_405] : memref<2x8x128xf32, #tpu.memory_space<vmem>>, vector<1x8x128xf32>
    %787 = vector.shape_cast %786 : vector<1x8x128xf32> to vector<8x128xf32>
    %788 = arith.mulf %777, %787 : vector<8x128xf32>
    %789 = arith.mulf %771, %779 : vector<8x128xf32>
    %790 = arith.addf %788, %789 : vector<8x128xf32>
    %791 = math.tanh %790 : vector<8x128xf32>
    %792 = arith.mulf %785, %791 : vector<8x128xf32>
    %c1_406 = arith.constant 1 : index
    %c0_407 = arith.constant 0 : index
    %c0_408 = arith.constant 0 : index
    %793 = vector.load %arg8[%c1_406, %c0_407, %c0_408] : memref<2x8x128xf32, #tpu.memory_space<vmem>>, vector<1x8x128xf32>
    %794 = vector.shape_cast %793 : vector<1x8x128xf32> to vector<8x128xf32>
    %795 = vector.shape_cast %790 : vector<8x128xf32> to vector<1x8x128xf32>
    tpu.vector_store %arg8[%c1_406, %c0_407, %c0_408], %795 {strides = array<i32>} : memref<2x8x128xf32, #tpu.memory_space<vmem>>, vector<1x8x128xf32>,
    %c1_409 = arith.constant 1 : index
    %c0_410 = arith.constant 0 : index
    %c0_411 = arith.constant 0 : index
    %796 = vector.load %arg7[%c1_409, %c0_410, %c0_411] : memref<2x8x128xf32, #tpu.memory_space<vmem>>, vector<1x8x128xf32>
    %797 = vector.shape_cast %796 : vector<1x8x128xf32> to vector<8x128xf32>
    %798 = vector.shape_cast %792 : vector<8x128xf32> to vector<1x8x128xf32>
    tpu.vector_store %arg7[%c1_409, %c0_410, %c0_411], %798 {strides = array<i32>} : memref<2x8x128xf32, #tpu.memory_space<vmem>>, vector<1x8x128xf32>,
    %799 = arith.truncf %792 : vector<8x128xf32> to vector<8x128xbf16>
    %c1_412 = arith.constant 1 : index
    %800 = arith.index_cast %755 : i32 to index
    %c0_413 = arith.constant 0 : index
    %c0_414 = arith.constant 0 : index
    %801 = vector.load %arg5[%c1_412, %800, %c0_413, %c0_414] : memref<2x8x8x128xbf16, #tpu.memory_space<vmem>>, vector<1x1x8x128xbf16>
    %802 = vector.shape_cast %801 : vector<1x1x8x128xbf16> to vector<8x128xbf16>
    %803 = vector.shape_cast %799 : vector<8x128xbf16> to vector<1x1x8x128xbf16>
    tpu.vector_store %arg5[%c1_412, %800, %c0_413, %c0_414], %803 {strides = array<i32>} : memref<2x8x8x128xbf16, #tpu.memory_space<vmem>>, vector<1x1x8x128xbf16>,
    %c7_i32_415 = arith.constant 7 : i32
    %c2_i32_416 = arith.constant 2 : i32
    %804 = arith.muli %arg0, %c2_i32_416 : i32
    %c0_i32_417 = arith.constant 0 : i32
    %805 = arith.addi %804, %c0_i32_417 : i32
    %c2_i32_418 = arith.constant 2 : i32
    %806 = arith.muli %c2_i32_418, %c7_i32_415 : i32
    %c7_i32_419 = arith.constant 7 : i32
    %807 = arith.subi %c7_i32_419, %806 : i32
    %808 = arith.muli %805, %807 : i32
    %809 = arith.addi %c7_i32_415, %808 : i32
    %c8_i32_420 = arith.constant 8 : i32
    %810 = arith.muli %809, %c8_i32_420 : i32
    %c0_i32_421 = arith.constant 0 : i32
    %811 = arith.addi %c0_i32_421, %810 : i32
    %812 = tpu.assume_multiple %811, 8 : i32
    %813 = arith.index_cast %812 : i32 to index
    %c0_422 = arith.constant 0 : index
    %814 = vector.load %arg6[%813, %c0_422] : memref<128x512xf32, #tpu.memory_space<vmem>>, vector<8x512xf32>
    %c0_423 = arith.constant 0 : index
    %c0_424 = arith.constant 0 : index
    %c0_425 = arith.constant 0 : index
    %815 = vector.load %arg7[%c0_423, %c0_424, %c0_425] : memref<2x8x128xf32, #tpu.memory_space<vmem>>, vector<1x8x128xf32>
    %816 = vector.shape_cast %815 : vector<1x8x128xf32> to vector<8x128xf32>
    %817 = arith.truncf %816 : vector<8x128xf32> to vector<8x128xbf16>
    %cst_426 = arith.constant dense<0.000000e+00> : vector<8x512xf32>
    %818 = tpu.matmul %817, %45, %cst_426 {dimension_numbers = #tpu.dot_dimension_numbers<[1], [0], [0], [1], [0, 0, 1, 1], [], []>} : vector<8x128xbf16>, vector<128x512xbf16>, vector<8x512xf32> -> vector<8x512xf32>
    %819 = arith.addf %814, %818 : vector<8x512xf32>
    %820 = vector.extract_strided_slice %819 {offsets = [0, 0], sizes = [8, 128], strides = [1, 1]} : vector<8x512xf32> to vector<8x128xf32>
    %821 = arith.negf %820 : vector<8x128xf32>
    %822 = math.exp %821 : vector<8x128xf32>
    %cst_427 = arith.constant 1.000000e+00 : f32
    %823 = vector.broadcast %cst_427 : f32 to vector<8x128xf32>
    %824 = arith.addf %823, %822 : vector<8x128xf32>
    %825 = arith.divf %823, %824 : vector<8x128xf32>
    %826 = vector.extract_strided_slice %819 {offsets = [0, 128], sizes = [8, 128], strides = [1, 1]} : vector<8x512xf32> to vector<8x128xf32>
    %827 = arith.negf %826 : vector<8x128xf32>
    %828 = math.exp %827 : vector<8x128xf32>
    %cst_428 = arith.constant 1.000000e+00 : f32
    %829 = vector.broadcast %cst_428 : f32 to vector<8x128xf32>
    %830 = arith.addf %829, %828 : vector<8x128xf32>
    %831 = arith.divf %829, %830 : vector<8x128xf32>
    %832 = vector.extract_strided_slice %819 {offsets = [0, 256], sizes = [8, 128], strides = [1, 1]} : vector<8x512xf32> to vector<8x128xf32>
    %833 = math.tanh %832 : vector<8x128xf32>
    %834 = vector.extract_strided_slice %819 {offsets = [0, 384], sizes = [8, 128], strides = [1, 1]} : vector<8x512xf32> to vector<8x128xf32>
    %835 = arith.negf %834 : vector<8x128xf32>
    %836 = math.exp %835 : vector<8x128xf32>
    %cst_429 = arith.constant 1.000000e+00 : f32
    %837 = vector.broadcast %cst_429 : f32 to vector<8x128xf32>
    %838 = arith.addf %837, %836 : vector<8x128xf32>
    %839 = arith.divf %837, %838 : vector<8x128xf32>
    %c0_430 = arith.constant 0 : index
    %c0_431 = arith.constant 0 : index
    %c0_432 = arith.constant 0 : index
    %840 = vector.load %arg8[%c0_430, %c0_431, %c0_432] : memref<2x8x128xf32, #tpu.memory_space<vmem>>, vector<1x8x128xf32>
    %841 = vector.shape_cast %840 : vector<1x8x128xf32> to vector<8x128xf32>
    %842 = arith.mulf %831, %841 : vector<8x128xf32>
    %843 = arith.mulf %825, %833 : vector<8x128xf32>
    %844 = arith.addf %842, %843 : vector<8x128xf32>
    %845 = math.tanh %844 : vector<8x128xf32>
    %846 = arith.mulf %839, %845 : vector<8x128xf32>
    %c0_433 = arith.constant 0 : index
    %c0_434 = arith.constant 0 : index
    %c0_435 = arith.constant 0 : index
    %847 = vector.load %arg8[%c0_433, %c0_434, %c0_435] : memref<2x8x128xf32, #tpu.memory_space<vmem>>, vector<1x8x128xf32>
    %848 = vector.shape_cast %847 : vector<1x8x128xf32> to vector<8x128xf32>
    %849 = vector.shape_cast %844 : vector<8x128xf32> to vector<1x8x128xf32>
    tpu.vector_store %arg8[%c0_433, %c0_434, %c0_435], %849 {strides = array<i32>} : memref<2x8x128xf32, #tpu.memory_space<vmem>>, vector<1x8x128xf32>,
    %c0_436 = arith.constant 0 : index
    %c0_437 = arith.constant 0 : index
    %c0_438 = arith.constant 0 : index
    %850 = vector.load %arg7[%c0_436, %c0_437, %c0_438] : memref<2x8x128xf32, #tpu.memory_space<vmem>>, vector<1x8x128xf32>
    %851 = vector.shape_cast %850 : vector<1x8x128xf32> to vector<8x128xf32>
    %852 = vector.shape_cast %846 : vector<8x128xf32> to vector<1x8x128xf32>
    tpu.vector_store %arg7[%c0_436, %c0_437, %c0_438], %852 {strides = array<i32>} : memref<2x8x128xf32, #tpu.memory_space<vmem>>, vector<1x8x128xf32>,
    %853 = arith.truncf %846 : vector<8x128xf32> to vector<8x128xbf16>
    %c0_439 = arith.constant 0 : index
    %854 = arith.index_cast %809 : i32 to index
    %c0_440 = arith.constant 0 : index
    %c0_441 = arith.constant 0 : index
    %855 = vector.load %arg5[%c0_439, %854, %c0_440, %c0_441] : memref<2x8x8x128xbf16, #tpu.memory_space<vmem>>, vector<1x1x8x128xbf16>
    %856 = vector.shape_cast %855 : vector<1x1x8x128xbf16> to vector<8x128xbf16>
    %857 = vector.shape_cast %853 : vector<8x128xbf16> to vector<1x1x8x128xbf16>
    tpu.vector_store %arg5[%c0_439, %854, %c0_440, %c0_441], %857 {strides = array<i32>} : memref<2x8x8x128xbf16, #tpu.memory_space<vmem>>, vector<1x1x8x128xbf16>,
    %c2_i32_442 = arith.constant 2 : i32
    %858 = arith.muli %arg0, %c2_i32_442 : i32
    %c1_i32_443 = arith.constant 1 : i32
    %859 = arith.addi %858, %c1_i32_443 : i32
    %c2_i32_444 = arith.constant 2 : i32
    %860 = arith.muli %c2_i32_444, %c7_i32_415 : i32
    %c7_i32_445 = arith.constant 7 : i32
    %861 = arith.subi %c7_i32_445, %860 : i32
    %862 = arith.muli %859, %861 : i32
    %863 = arith.addi %c7_i32_415, %862 : i32
    %c8_i32_446 = arith.constant 8 : i32
    %864 = arith.muli %863, %c8_i32_446 : i32
    %c64_i32_447 = arith.constant 64 : i32
    %865 = arith.addi %c64_i32_447, %864 : i32
    %866 = tpu.assume_multiple %865, 8 : i32
    %867 = arith.index_cast %866 : i32 to index
    %c0_448 = arith.constant 0 : index
    %868 = vector.load %arg6[%867, %c0_448] : memref<128x512xf32, #tpu.memory_space<vmem>>, vector<8x512xf32>
    %c1_449 = arith.constant 1 : index
    %c0_450 = arith.constant 0 : index
    %c0_451 = arith.constant 0 : index
    %869 = vector.load %arg7[%c1_449, %c0_450, %c0_451] : memref<2x8x128xf32, #tpu.memory_space<vmem>>, vector<1x8x128xf32>
    %870 = vector.shape_cast %869 : vector<1x8x128xf32> to vector<8x128xf32>
    %871 = arith.truncf %870 : vector<8x128xf32> to vector<8x128xbf16>
    %cst_452 = arith.constant dense<0.000000e+00> : vector<8x512xf32>
    %872 = tpu.matmul %871, %47, %cst_452 {dimension_numbers = #tpu.dot_dimension_numbers<[1], [0], [0], [1], [0, 0, 1, 1], [], []>} : vector<8x128xbf16>, vector<128x512xbf16>, vector<8x512xf32> -> vector<8x512xf32>
    %873 = arith.addf %868, %872 : vector<8x512xf32>
    %874 = vector.extract_strided_slice %873 {offsets = [0, 0], sizes = [8, 128], strides = [1, 1]} : vector<8x512xf32> to vector<8x128xf32>
    %875 = arith.negf %874 : vector<8x128xf32>
    %876 = math.exp %875 : vector<8x128xf32>
    %cst_453 = arith.constant 1.000000e+00 : f32
    %877 = vector.broadcast %cst_453 : f32 to vector<8x128xf32>
    %878 = arith.addf %877, %876 : vector<8x128xf32>
    %879 = arith.divf %877, %878 : vector<8x128xf32>
    %880 = vector.extract_strided_slice %873 {offsets = [0, 128], sizes = [8, 128], strides = [1, 1]} : vector<8x512xf32> to vector<8x128xf32>
    %881 = arith.negf %880 : vector<8x128xf32>
    %882 = math.exp %881 : vector<8x128xf32>
    %cst_454 = arith.constant 1.000000e+00 : f32
    %883 = vector.broadcast %cst_454 : f32 to vector<8x128xf32>
    %884 = arith.addf %883, %882 : vector<8x128xf32>
    %885 = arith.divf %883, %884 : vector<8x128xf32>
    %886 = vector.extract_strided_slice %873 {offsets = [0, 256], sizes = [8, 128], strides = [1, 1]} : vector<8x512xf32> to vector<8x128xf32>
    %887 = math.tanh %886 : vector<8x128xf32>
    %888 = vector.extract_strided_slice %873 {offsets = [0, 384], sizes = [8, 128], strides = [1, 1]} : vector<8x512xf32> to vector<8x128xf32>
    %889 = arith.negf %888 : vector<8x128xf32>
    %890 = math.exp %889 : vector<8x128xf32>
    %cst_455 = arith.constant 1.000000e+00 : f32
    %891 = vector.broadcast %cst_455 : f32 to vector<8x128xf32>
    %892 = arith.addf %891, %890 : vector<8x128xf32>
    %893 = arith.divf %891, %892 : vector<8x128xf32>
    %c1_456 = arith.constant 1 : index
    %c0_457 = arith.constant 0 : index
    %c0_458 = arith.constant 0 : index
    %894 = vector.load %arg8[%c1_456, %c0_457, %c0_458] : memref<2x8x128xf32, #tpu.memory_space<vmem>>, vector<1x8x128xf32>
    %895 = vector.shape_cast %894 : vector<1x8x128xf32> to vector<8x128xf32>
    %896 = arith.mulf %885, %895 : vector<8x128xf32>
    %897 = arith.mulf %879, %887 : vector<8x128xf32>
    %898 = arith.addf %896, %897 : vector<8x128xf32>
    %899 = math.tanh %898 : vector<8x128xf32>
    %900 = arith.mulf %893, %899 : vector<8x128xf32>
    %c1_459 = arith.constant 1 : index
    %c0_460 = arith.constant 0 : index
    %c0_461 = arith.constant 0 : index
    %901 = vector.load %arg8[%c1_459, %c0_460, %c0_461] : memref<2x8x128xf32, #tpu.memory_space<vmem>>, vector<1x8x128xf32>
    %902 = vector.shape_cast %901 : vector<1x8x128xf32> to vector<8x128xf32>
    %903 = vector.shape_cast %898 : vector<8x128xf32> to vector<1x8x128xf32>
    tpu.vector_store %arg8[%c1_459, %c0_460, %c0_461], %903 {strides = array<i32>} : memref<2x8x128xf32, #tpu.memory_space<vmem>>, vector<1x8x128xf32>,
    %c1_462 = arith.constant 1 : index
    %c0_463 = arith.constant 0 : index
    %c0_464 = arith.constant 0 : index
    %904 = vector.load %arg7[%c1_462, %c0_463, %c0_464] : memref<2x8x128xf32, #tpu.memory_space<vmem>>, vector<1x8x128xf32>
    %905 = vector.shape_cast %904 : vector<1x8x128xf32> to vector<8x128xf32>
    %906 = vector.shape_cast %900 : vector<8x128xf32> to vector<1x8x128xf32>
    tpu.vector_store %arg7[%c1_462, %c0_463, %c0_464], %906 {strides = array<i32>} : memref<2x8x128xf32, #tpu.memory_space<vmem>>, vector<1x8x128xf32>,
    %907 = arith.truncf %900 : vector<8x128xf32> to vector<8x128xbf16>
    %c1_465 = arith.constant 1 : index
    %908 = arith.index_cast %863 : i32 to index
    %c0_466 = arith.constant 0 : index
    %c0_467 = arith.constant 0 : index
    %909 = vector.load %arg5[%c1_465, %908, %c0_466, %c0_467] : memref<2x8x8x128xbf16, #tpu.memory_space<vmem>>, vector<1x1x8x128xbf16>
    %910 = vector.shape_cast %909 : vector<1x1x8x128xbf16> to vector<8x128xbf16>
    %911 = vector.shape_cast %907 : vector<8x128xbf16> to vector<1x1x8x128xbf16>
    tpu.vector_store %arg5[%c1_465, %908, %c0_466, %c0_467], %911 {strides = array<i32>} : memref<2x8x8x128xbf16, #tpu.memory_space<vmem>>, vector<1x1x8x128xbf16>,
    %c8_i32_468 = arith.constant 8 : i32
    return
  }
  func.func @transform_0(%arg0: i32) -> (i32, i32, i32) {
    %c0_i32 = arith.constant 0 : i32
    %c0_i32_0 = arith.constant 0 : i32
    %c0_i32_1 = arith.constant 0 : i32
    %c0_i32_2 = arith.constant 0 : i32
    return %c0_i32, %c0_i32_0, %c0_i32_1 : i32, i32, i32
  }
  func.func @transform_1(%arg0: i32) -> (i32, i32, i32, i32) {
    %c0_i32 = arith.constant 0 : i32
    %c0_i32_0 = arith.constant 0 : i32
    %c0_i32_1 = arith.constant 0 : i32
    %c0_i32_2 = arith.constant 0 : i32
    return %arg0, %c0_i32, %c0_i32_0, %c0_i32_1 : i32, i32, i32, i32
  }
  func.func @transform_2(%arg0: i32) -> (i32, i32, i32) {
    %c0_i32 = arith.constant 0 : i32
    %c0_i32_0 = arith.constant 0 : i32
    %c0_i32_1 = arith.constant 0 : i32
    return %arg0, %c0_i32, %c0_i32_0 : i32, i32, i32
  }
  func.func @transform_3(%arg0: i32) -> (i32, i32, i32) {
    %c0_i32 = arith.constant 0 : i32
    %c0_i32_0 = arith.constant 0 : i32
    %c0_i32_1 = arith.constant 0 : i32
    return %arg0, %c0_i32, %c0_i32_0 : i32, i32, i32
  }
  func.func @transform_4(%arg0: i32) -> (i32, i32, i32, i32) {
    %c0_i32 = arith.constant 0 : i32
    %c0_i32_0 = arith.constant 0 : i32
    %c0_i32_1 = arith.constant 0 : i32
    %c0_i32_2 = arith.constant 0 : i32
    return %arg0, %c0_i32, %c0_i32_0, %c0_i32_1 : i32, i32, i32, i32
  }
}

</mosaic_0001>

<llo_original>
// kernel: lstm_model_forward.2
$region0: #{lstm_model_forward.2}
  #allocation0 [shape = 'u32[]', space=smem, size = 0x4, offset = 0x4, fixed_abs, tag = 'smem constant byte address 0x4 - core index']
  #allocation1 [shape = 'u32[144,128]{1,0:T(1,128)}', space=vmem, size = 0x12000, scoped, tag = 'internal scratch']
  #allocation2 [shape = 'f32[128,512]{1,0:T(8,128)}', space=vmem, size = 0x40000, scoped, tag = 'scratch operand']
  #allocation3 [shape = 'f32[2,8,128]{2,1,0:T(8,128)}', space=vmem, size = 0x2000, scoped, tag = 'scratch operand']
  #allocation4 [shape = 'f32[2,8,128]{2,1,0:T(8,128)}', space=vmem, size = 0x2000, scoped, tag = 'scratch operand']
  %s0 = inlined_call_operand.vmem [shape: bf16[1,64,128], index: 0, kind: input, shape index: {}]
  %s1 = inlined_call_operand.hbm [shape: bf16[2,1,128,512], index: 1, kind: input, shape index: {}]
  %s2 = inlined_call_operand.hbm [shape: bf16[2,128,512], index: 2, kind: input, shape index: {}]
  %s3 = inlined_call_operand.vmem [shape: f32[2,1,512], index: 3, kind: input, shape index: {}]
  %s4 = inlined_call_operand.vmem [shape: bf16[2,8,8,128], index: 4, kind: output, shape index: {}]
  %s5 = sld [smem:[#allocation0]]
  $region34: #{lstm_model_forward.2} parent=0
    _
  %s7 = ssub.s32 1, %s5
  %s8 = scalar_select 0, %s7, %s5
  $region1: #{lstm_model_forward.2} parent=0
    #allocation5 [shape = 'u8[262144]{0}', space=vmem, size = 0x40000, scoped, tag = 'input window, operand 1, single buffered']
    #allocation6 [shape = 's32[1]{0}', space=sflag, size = 0x4, scoped, tag = 'scoped memory for lstm_model_forward.2']
    #allocation7 [shape = 'u8[262144]{0}', space=vmem, size = 0x40000, scoped, tag = 'input window, operand 2, single buffered']
    #allocation8 [shape = 's32[1]{0}', space=sflag, size = 0x4, scoped, tag = 'scoped memory for lstm_model_forward.2']
    %9 = vsyncpa [#allocation6], 0
    %10 = vsyncpa [#allocation8], 0
    // Predicated region
    $region2: #{lstm_model_forward.2} parent=1 // pred_check
      _
    $region3: #{lstm_model_forward.2} parent=1 // pred_check_branch
      %12 = sbr.rel (0) target = $region5
    $region4: #{lstm_model_forward.2} parent=1 // pred_region
      _
    $region5: #{lstm_model_forward.2} parent=1 // pred_fallthru
      _
    // Predicated region
    $region6: #{lstm_model_forward.2} parent=1 // pred_check
      _
    $region7: #{lstm_model_forward.2} parent=1 // pred_check_branch
      %14 = sbr.rel (0) target = $region9
    $region8: #{lstm_model_forward.2} parent=1 // pred_region
      %s16 = ssub.s32 8192, 8192
      %17 = vsyncadd [#allocation6], %s16
      %s18 = sshll.u32 [#allocation5], 4
      %s19 = int_to_ptr.vmem [resolvable:$true] %s18
      %24 = dma.hbm_to_vmem [thread:$0]  %s1, 8192, %s19, [#allocation6], 256, 256, 16
    $region9: #{lstm_model_forward.2} parent=1 // pred_fallthru
      _
    // Predicated region
    $region10: #{lstm_model_forward.2} parent=1 // pred_check
      _
    $region11: #{lstm_model_forward.2} parent=1 // pred_check_branch
      %26 = sbr.rel (0) target = $region13
    $region12: #{lstm_model_forward.2} parent=1 // pred_region
      %s28 = ssub.s32 8192, 8192
      %29 = vsyncadd [#allocation8], %s28
      %s30 = sshll.u32 [#allocation7], 4
      %s31 = int_to_ptr.vmem [resolvable:$true] %s30
      %36 = dma.hbm_to_vmem [thread:$0]  %s2, 8192, %s31, [#allocation8], 256, 256, 16
    $region13: #{lstm_model_forward.2} parent=1 // pred_fallthru
      _
    // Predicated region
    $region14: #{lstm_model_forward.2} parent=1 // pred_check
      _
    $region15: #{lstm_model_forward.2} parent=1 // pred_check_branch
      %38 = sbr.rel (0) target = $region17
    $region16: #{lstm_model_forward.2} parent=1 // pred_region
      _
    $region17: #{lstm_model_forward.2} parent=1 // pred_fallthru
      _
    // Predicated region
    $region18: #{lstm_model_forward.2} parent=1 // pred_check
      _
    $region19: #{lstm_model_forward.2} parent=1 // pred_check_branch
      %40 = sbr.rel (0) target = $region21
    $region20: #{lstm_model_forward.2} parent=1 // pred_region
      %41 = dma.done [#allocation6], 8192
    $region21: #{lstm_model_forward.2} parent=1 // pred_fallthru
      _
    // Predicated region
    $region22: #{lstm_model_forward.2} parent=1 // pred_check
      _
    $region23: #{lstm_model_forward.2} parent=1 // pred_check_branch
      %43 = sbr.rel (0) target = $region25
    $region24: #{lstm_model_forward.2} parent=1 // pred_region
      %44 = dma.done [#allocation8], 8192
    $region25: #{lstm_model_forward.2} parent=1 // pred_fallthru
      _
    %v46 = vld [vmem:[%s0] sm:$0xf]
    %v47 = vld [vmem:[%s0 + $0x4] sm:$0xf]
    %v48 = vld [vmem:[%s0 + $0x8] sm:$0xf]
    %v49 = vld [vmem:[%s0 + $0xc] sm:$0xf]
    %v50 = vld [vmem:[%s0 + $0x10] sm:$0xf]
    %v51 = vld [vmem:[%s0 + $0x14] sm:$0xf]
    %v52 = vld [vmem:[%s0 + $0x18] sm:$0xf]
    %v53 = vld [vmem:[%s0 + $0x1c] sm:$0xf]
    %v54 = vld [vmem:[#allocation5] sm:$0xff]
    %v55 = vld [vmem:[#allocation5 + $0x8] sm:$0xff]
    %v56 = vld [vmem:[#allocation5 + $0x10] sm:$0xff]
    %v57 = vld [vmem:[#allocation5 + $0x18] sm:$0xff]
    %v58 = vld [vmem:[#allocation5 + $0x20] sm:$0xff]
    %v59 = vld [vmem:[#allocation5 + $0x28] sm:$0xff]
    %v60 = vld [vmem:[#allocation5 + $0x30] sm:$0xff]
    %v61 = vld [vmem:[#allocation5 + $0x38] sm:$0xff]
    %v62 = vld [vmem:[#allocation5 + $0x40] sm:$0xff]
    %v63 = vld [vmem:[#allocation5 + $0x48] sm:$0xff]
    %v64 = vld [vmem:[#allocation5 + $0x50] sm:$0xff]
    %v65 = vld [vmem:[#allocation5 + $0x58] sm:$0xff]
    %v66 = vld [vmem:[#allocation5 + $0x60] sm:$0xff]
    %v67 = vld [vmem:[#allocation5 + $0x68] sm:$0xff]
    %v68 = vld [vmem:[#allocation5 + $0x70] sm:$0xff]
    %v69 = vld [vmem:[#allocation5 + $0x78] sm:$0xff]
    %v70 = vld [vmem:[#allocation5 + $0x80] sm:$0xff]
    %v71 = vld [vmem:[#allocation5 + $0x88] sm:$0xff]
    %v72 = vld [vmem:[#allocation5 + $0x90] sm:$0xff]
    %v73 = vld [vmem:[#allocation5 + $0x98] sm:$0xff]
    %v74 = vld [vmem:[#allocation5 + $0xa0] sm:$0xff]
    %v75 = vld [vmem:[#allocation5 + $0xa8] sm:$0xff]
    %v76 = vld [vmem:[#allocation5 + $0xb0] sm:$0xff]
    %v77 = vld [vmem:[#allocation5 + $0xb8] sm:$0xff]
    %v78 = vld [vmem:[#allocation5 + $0xc0] sm:$0xff]
    %v79 = vld [vmem:[#allocation5 + $0xc8] sm:$0xff]
    %v80 = vld [vmem:[#allocation5 + $0xd0] sm:$0xff]
    %v81 = vld [vmem:[#allocation5 + $0xd8] sm:$0xff]
    %v82 = vld [vmem:[#allocation5 + $0xe0] sm:$0xff]
    %v83 = vld [vmem:[#allocation5 + $0xe8] sm:$0xff]
    %v84 = vld [vmem:[#allocation5 + $0xf0] sm:$0xff]
    %v85 = vld [vmem:[#allocation5 + $0xf8] sm:$0xff]
    %v86 = vld [vmem:[%s3] sm:$0xf]
    %v88 = vlaneseq
    %v89 = vshrl.u32 %v88, 7
    %v90 = vsub.s32 0, %v89
    %v91 = vrot.slane %v86, %v90
    %v92 = vlaneseq
    %v93 = vshrl.u32 %v92, 7
    %v94 = vsub.s32 1, %v93
    %v95 = vrot.slane %v86, %v94
    %v96 = vlaneseq
    %v97 = vshrl.u32 %v96, 7
    %v98 = vsub.s32 2, %v97
    %v99 = vrot.slane %v86, %v98
    %v100 = vlaneseq
    %v101 = vshrl.u32 %v100, 7
    %v102 = vsub.s32 3, %v101
    %v103 = vrot.slane %v86, %v102
    %v116 = vunpack.c.l.b16 %v46
    %v117 = vunpack.c.l.b16 %v47
    %v118 = vunpack.c.l.b16 %v48
    %v119 = vunpack.c.l.b16 %v49
    %v120 = vunpack.c.l.b16 %v50
    %v121 = vunpack.c.l.b16 %v51
    %v122 = vunpack.c.l.b16 %v52
    %v123 = vunpack.c.l.b16 %v53
    %v124 = vpack.c.b16 %v117, %v116
    %v125 = vpack.c.b16 %v119, %v118
    %v126 = vpack.c.b16 %v121, %v120
    %v127 = vpack.c.b16 %v123, %v122
    %v164 = vunpack.c.l.b16 %v54
    %v165 = vunpack.c.h.b16 %v54
    %v166 = vunpack.c.l.b16 %v55
    %v167 = vunpack.c.h.b16 %v55
    %v168 = vunpack.c.l.b16 %v56
    %v169 = vunpack.c.h.b16 %v56
    %v170 = vunpack.c.l.b16 %v57
    %v171 = vunpack.c.h.b16 %v57
    %v172 = vunpack.c.l.b16 %v58
    %v173 = vunpack.c.h.b16 %v58
    %v174 = vunpack.c.l.b16 %v59
    %v175 = vunpack.c.h.b16 %v59
    %v176 = vunpack.c.l.b16 %v60
    %v177 = vunpack.c.h.b16 %v60
    %v178 = vunpack.c.l.b16 %v61
    %v179 = vunpack.c.h.b16 %v61
    %v180 = vunpack.c.l.b16 %v62
    %v181 = vunpack.c.h.b16 %v62
    %v182 = vunpack.c.l.b16 %v63
    %v183 = vunpack.c.h.b16 %v63
    %v184 = vunpack.c.l.b16 %v64
    %v185 = vunpack.c.h.b16 %v64
    %v186 = vunpack.c.l.b16 %v65
    %v187 = vunpack.c.h.b16 %v65
    %v188 = vunpack.c.l.b16 %v66
    %v189 = vunpack.c.h.b16 %v66
    %v190 = vunpack.c.l.b16 %v67
    %v191 = vunpack.c.h.b16 %v67
    %v192 = vunpack.c.l.b16 %v68
    %v193 = vunpack.c.h.b16 %v68
    %v194 = vunpack.c.l.b16 %v69
    %v195 = vunpack.c.h.b16 %v69
    %v196 = vunpack.c.l.b16 %v70
    %v197 = vunpack.c.h.b16 %v70
    %v198 = vunpack.c.l.b16 %v71
    %v199 = vunpack.c.h.b16 %v71
    %v200 = vunpack.c.l.b16 %v72
    %v201 = vunpack.c.h.b16 %v72
    %v202 = vunpack.c.l.b16 %v73
    %v203 = vunpack.c.h.b16 %v73
    %v204 = vunpack.c.l.b16 %v74
    %v205 = vunpack.c.h.b16 %v74
    %v206 = vunpack.c.l.b16 %v75
    %v207 = vunpack.c.h.b16 %v75
    %v208 = vunpack.c.l.b16 %v76
    %v209 = vunpack.c.h.b16 %v76
    %v210 = vunpack.c.l.b16 %v77
    %v211 = vunpack.c.h.b16 %v77
    %v212 = vunpack.c.l.b16 %v78
    %v213 = vunpack.c.h.b16 %v78
    %v214 = vunpack.c.l.b16 %v79
    %v215 = vunpack.c.h.b16 %v79
    %v216 = vunpack.c.l.b16 %v80
    %v217 = vunpack.c.h.b16 %v80
    %v218 = vunpack.c.l.b16 %v81
    %v219 = vunpack.c.h.b16 %v81
    %v220 = vunpack.c.l.b16 %v82
    %v221 = vunpack.c.h.b16 %v82
    %v222 = vunpack.c.l.b16 %v83
    %v223 = vunpack.c.h.b16 %v83
    %v224 = vunpack.c.l.b16 %v84
    %v225 = vunpack.c.h.b16 %v84
    %v226 = vunpack.c.l.b16 %v85
    %v227 = vunpack.c.h.b16 %v85
    %v228 = vpack.c.b16 %v168, %v164
    %v229 = vpack.c.b16 %v169, %v165
    %v230 = vpack.c.b16 %v170, %v166
    %v231 = vpack.c.b16 %v171, %v167
    %v232 = vpack.c.b16 %v176, %v172
    %v233 = vpack.c.b16 %v177, %v173
    %v234 = vpack.c.b16 %v178, %v174
    %v235 = vpack.c.b16 %v179, %v175
    %v236 = vpack.c.b16 %v184, %v180
    %v237 = vpack.c.b16 %v185, %v181
    %v238 = vpack.c.b16 %v186, %v182
    %v239 = vpack.c.b16 %v187, %v183
    %v240 = vpack.c.b16 %v192, %v188
    %v241 = vpack.c.b16 %v193, %v189
    %v242 = vpack.c.b16 %v194, %v190
    %v243 = vpack.c.b16 %v195, %v191
    %v244 = vpack.c.b16 %v200, %v196
    %v245 = vpack.c.b16 %v201, %v197
    %v246 = vpack.c.b16 %v202, %v198
    %v247 = vpack.c.b16 %v203, %v199
    %v248 = vpack.c.b16 %v208, %v204
    %v249 = vpack.c.b16 %v209, %v205
    %v250 = vpack.c.b16 %v210, %v206
    %v251 = vpack.c.b16 %v211, %v207
    %v252 = vpack.c.b16 %v216, %v212
    %v253 = vpack.c.b16 %v217, %v213
    %v254 = vpack.c.b16 %v218, %v214
    %v255 = vpack.c.b16 %v219, %v215
    %v256 = vpack.c.b16 %v224, %v220
    %v257 = vpack.c.b16 %v225, %v221
    %v258 = vpack.c.b16 %v226, %v222
    %v259 = vpack.c.b16 %v227, %v223
    %292 = vmatprep.subr.bf16.mxu0 %v257
    %293 = vmatpush1.bf16.msra.mxu0 %v256
    %294 = vmatprep.subr.bf16.mxu0 %v253
    %295 = vmatpush1.bf16.msra.mxu0 %v252
    %296 = vmatprep.subr.bf16.mxu0 %v249
    %297 = vmatpush1.bf16.msra.mxu0 %v248
    %298 = vmatprep.subr.bf16.mxu0 %v245
    %299 = vmatpush1.bf16.msra.mxu0 %v244
    %300 = vmatprep.subr.bf16.mxu0 %v241
    %301 = vmatpush1.bf16.msra.mxu0 %v240
    %302 = vmatprep.subr.bf16.mxu0 %v237
    %303 = vmatpush1.bf16.msra.mxu0 %v236
    %304 = vmatprep.subr.bf16.mxu0 %v233
    %305 = vmatpush1.bf16.msra.mxu0 %v232
    %306 = vmatprep.subr.bf16.mxu0 %v229
    %307 = vmatpush1.bf16.msra.mxu0 %v228
    %308 = vmatprep.subr.bf16.mxu0 0
    %309 = vmatpush2.bf16.msra.mxu0 0
    %310 = vmatprep.subr.bf16.mxu0 0
    %311 = vmatpush2.bf16.msra.mxu0 0
    %312 = vmatprep.subr.bf16.mxu0 0
    %313 = vmatpush2.bf16.msra.mxu0 0
    %314 = vmatprep.subr.bf16.mxu0 0
    %315 = vmatpush2.bf16.msra.mxu0 0
    %316 = vmatprep.subr.bf16.mxu0 0
    %317 = vmatpush2.bf16.msra.mxu0 0
    %318 = vmatprep.subr.bf16.mxu0 0
    %319 = vmatpush2.bf16.msra.mxu0 0
    %320 = vmatprep.subr.bf16.mxu0 0
    %321 = vmatpush2.bf16.msra.mxu0 0
    %322 = vmatprep.subr.bf16.mxu0 0
    %323 = vmatpush2.bf16.msra.mxu0 0
    %324 = vmatprep.mubr.bf16.mxu0 0
    %325 = vmatmul.mubr.bf16.gmra.mxu0 %v124
    %v326 = vpop.f32.mrf.mxu0
    %v327 = vadd.f32 %v91, %v326
    %v328 = vpop.f32.mrf.mxu0
    %v329 = vadd.f32 %v95, %v328
    %v330 = vpop.f32.mrf.mxu0
    %v331 = vadd.f32 %v91, %v330
    %v332 = vpop.f32.mrf.mxu0
    %v333 = vadd.f32 %v95, %v332
    %334 = vmatprep.mubr.bf16.mxu0 0
    %335 = vmatmul.mubr.bf16.gmra.mxu0 %v125
    %v336 = vpop.f32.mrf.mxu0
    %v337 = vadd.f32 %v91, %v336
    %v338 = vpop.f32.mrf.mxu0
    %v339 = vadd.f32 %v95, %v338
    %v340 = vpop.f32.mrf.mxu0
    %v341 = vadd.f32 %v91, %v340
    %v342 = vpop.f32.mrf.mxu0
    %v343 = vadd.f32 %v95, %v342
    %344 = vmatprep.mubr.bf16.mxu0 0
    %345 = vmatmul.mubr.bf16.gmra.mxu0 %v126
    %v346 = vpop.f32.mrf.mxu0
    %v347 = vadd.f32 %v91, %v346
    %v348 = vpop.f32.mrf.mxu0
    %v349 = vadd.f32 %v95, %v348
    %v350 = vpop.f32.mrf.mxu0
    %v351 = vadd.f32 %v91, %v350
    %v352 = vpop.f32.mrf.mxu0
    %v353 = vadd.f32 %v95, %v352
    %354 = vmatprep.mubr.bf16.mxu0 0
    %355 = vmatmul.mubr.bf16.gmra.mxu0 %v127
    %v356 = vpop.f32.mrf.mxu0
    %v357 = vadd.f32 %v91, %v356
    %v358 = vpop.f32.mrf.mxu0
    %v359 = vadd.f32 %v95, %v358
    %v360 = vpop.f32.mrf.mxu0
    %v361 = vadd.f32 %v91, %v360
    %v362 = vpop.f32.mrf.mxu0
    %v363 = vadd.f32 %v95, %v362
    %364 = vdwg.mxu0
    %365 = vmatprep.subr.bf16.mxu0 %v259
    %366 = vmatpush1.bf16.msra.mxu0 %v258
    %367 = vmatprep.subr.bf16.mxu0 %v255
    %368 = vmatpush1.bf16.msra.mxu0 %v254
    %369 = vmatprep.subr.bf16.mxu0 %v251
    %370 = vmatpush1.bf16.msra.mxu0 %v250
    %371 = vmatprep.subr.bf16.mxu0 %v247
    %372 = vmatpush1.bf16.msra.mxu0 %v246
    %373 = vmatprep.subr.bf16.mxu0 %v243
    %374 = vmatpush1.bf16.msra.mxu0 %v242
    %375 = vmatprep.subr.bf16.mxu0 %v239
    %376 = vmatpush1.bf16.msra.mxu0 %v238
    %377 = vmatprep.subr.bf16.mxu0 %v235
    %378 = vmatpush1.bf16.msra.mxu0 %v234
    %379 = vmatprep.subr.bf16.mxu0 %v231
    %380 = vmatpush1.bf16.msra.mxu0 %v230
    %381 = vmatprep.subr.bf16.mxu0 0
    %382 = vmatpush2.bf16.msra.mxu0 0
    %383 = vmatprep.subr.bf16.mxu0 0
    %384 = vmatpush2.bf16.msra.mxu0 0
    %385 = vmatprep.subr.bf16.mxu0 0
    %386 = vmatpush2.bf16.msra.mxu0 0
    %387 = vmatprep.subr.bf16.mxu0 0
    %388 = vmatpush2.bf16.msra.mxu0 0
    %389 = vmatprep.subr.bf16.mxu0 0
    %390 = vmatpush2.bf16.msra.mxu0 0
    %391 = vmatprep.subr.bf16.mxu0 0
    %392 = vmatpush2.bf16.msra.mxu0 0
    %393 = vmatprep.subr.bf16.mxu0 0
    %394 = vmatpush2.bf16.msra.mxu0 0
    %395 = vmatprep.subr.bf16.mxu0 0
    %396 = vmatpush2.bf16.msra.mxu0 0
    %397 = vmatprep.mubr.bf16.mxu0 0
    %398 = vmatmul.mubr.bf16.gmra.mxu0 %v124
    %v399 = vpop.f32.mrf.mxu0
    %v400 = vadd.f32 %v99, %v399
    %v401 = vpop.f32.mrf.mxu0
    %v402 = vadd.f32 %v103, %v401
    %v403 = vpop.f32.mrf.mxu0
    %v404 = vadd.f32 %v99, %v403
    %v405 = vpop.f32.mrf.mxu0
    %v406 = vadd.f32 %v103, %v405
    %407 = vmatprep.mubr.bf16.mxu0 0
    %408 = vmatmul.mubr.bf16.gmra.mxu0 %v125
    %v409 = vpop.f32.mrf.mxu0
    %v410 = vadd.f32 %v99, %v409
    %v411 = vpop.f32.mrf.mxu0
    %v412 = vadd.f32 %v103, %v411
    %v413 = vpop.f32.mrf.mxu0
    %v414 = vadd.f32 %v99, %v413
    %v415 = vpop.f32.mrf.mxu0
    %v416 = vadd.f32 %v103, %v415
    %417 = vmatprep.mubr.bf16.mxu0 0
    %418 = vmatmul.mubr.bf16.gmra.mxu0 %v126
    %v419 = vpop.f32.mrf.mxu0
    %v420 = vadd.f32 %v99, %v419
    %v421 = vpop.f32.mrf.mxu0
    %v422 = vadd.f32 %v103, %v421
    %v423 = vpop.f32.mrf.mxu0
    %v424 = vadd.f32 %v99, %v423
    %v425 = vpop.f32.mrf.mxu0
    %v426 = vadd.f32 %v103, %v425
    %427 = vmatprep.mubr.bf16.mxu0 0
    %428 = vmatmul.mubr.bf16.gmra.mxu0 %v127
    %v429 = vpop.f32.mrf.mxu0
    %v430 = vadd.f32 %v99, %v429
    %v431 = vpop.f32.mrf.mxu0
    %v432 = vadd.f32 %v103, %v431
    %v433 = vpop.f32.mrf.mxu0
    %v434 = vadd.f32 %v99, %v433
    %v435 = vpop.f32.mrf.mxu0
    %v436 = vadd.f32 %v103, %v435
    %437 = vdwg.mxu0
    %438 = vst [vmem:[#allocation2] sm:$0xff] %v327
    %439 = vst [vmem:[#allocation2 + $0x8] sm:$0xff] %v329
    %440 = vst [vmem:[#allocation2 + $0x10] sm:$0xff] %v400
    %441 = vst [vmem:[#allocation2 + $0x18] sm:$0xff] %v402
    %442 = vst [vmem:[#allocation2 + $0x20] sm:$0xff] %v331
    %443 = vst [vmem:[#allocation2 + $0x28] sm:$0xff] %v333
    %444 = vst [vmem:[#allocation2 + $0x30] sm:$0xff] %v404
    %445 = vst [vmem:[#allocation2 + $0x38] sm:$0xff] %v406
    %446 = vst [vmem:[#allocation2 + $0x40] sm:$0xff] %v337
    %447 = vst [vmem:[#allocation2 + $0x48] sm:$0xff] %v339
    %448 = vst [vmem:[#allocation2 + $0x50] sm:$0xff] %v410
    %449 = vst [vmem:[#allocation2 + $0x58] sm:$0xff] %v412
    %450 = vst [vmem:[#allocation2 + $0x60] sm:$0xff] %v341
    %451 = vst [vmem:[#allocation2 + $0x68] sm:$0xff] %v343
    %452 = vst [vmem:[#allocation2 + $0x70] sm:$0xff] %v414
    %453 = vst [vmem:[#allocation2 + $0x78] sm:$0xff] %v416
    %454 = vst [vmem:[#allocation2 + $0x80] sm:$0xff] %v347
    %455 = vst [vmem:[#allocation2 + $0x88] sm:$0xff] %v349
    %456 = vst [vmem:[#allocation2 + $0x90] sm:$0xff] %v420
    %457 = vst [vmem:[#allocation2 + $0x98] sm:$0xff] %v422
    %458 = vst [vmem:[#allocation2 + $0xa0] sm:$0xff] %v351
    %459 = vst [vmem:[#allocation2 + $0xa8] sm:$0xff] %v353
    %460 = vst [vmem:[#allocation2 + $0xb0] sm:$0xff] %v424
    %461 = vst [vmem:[#allocation2 + $0xb8] sm:$0xff] %v426
    %462 = vst [vmem:[#allocation2 + $0xc0] sm:$0xff] %v357
    %463 = vst [vmem:[#allocation2 + $0xc8] sm:$0xff] %v359
    %464 = vst [vmem:[#allocation2 + $0xd0] sm:$0xff] %v430
    %465 = vst [vmem:[#allocation2 + $0xd8] sm:$0xff] %v432
    %466 = vst [vmem:[#allocation2 + $0xe0] sm:$0xff] %v361
    %467 = vst [vmem:[#allocation2 + $0xe8] sm:$0xff] %v363
    %468 = vst [vmem:[#allocation2 + $0xf0] sm:$0xff] %v434
    %469 = vst [vmem:[#allocation2 + $0xf8] sm:$0xff] %v436
    %470 = vst [vmem:[#allocation3] sm:$0xff] 0.0
    %471 = vst [vmem:[#allocation4] sm:$0xff] 0.0
    %s472 = scalar_lea.vmem [#allocation5], 256
    %v473 = vld [vmem:[%s472] sm:$0xff]
    %v474 = vld [vmem:[%s472 + $0x8] sm:$0xff]
    %v475 = vld [vmem:[%s472 + $0x10] sm:$0xff]
    %v476 = vld [vmem:[%s472 + $0x18] sm:$0xff]
    %v477 = vld [vmem:[%s472 + $0x20] sm:$0xff]
    %v478 = vld [vmem:[%s472 + $0x28] sm:$0xff]
    %v479 = vld [vmem:[%s472 + $0x30] sm:$0xff]
    %v480 = vld [vmem:[%s472 + $0x38] sm:$0xff]
    %v481 = vld [vmem:[%s472 + $0x40] sm:$0xff]
    %v482 = vld [vmem:[%s472 + $0x48] sm:$0xff]
    %v483 = vld [vmem:[%s472 + $0x50] sm:$0xff]
    %v484 = vld [vmem:[%s472 + $0x58] sm:$0xff]
    %v485 = vld [vmem:[%s472 + $0x60] sm:$0xff]
    %v486 = vld [vmem:[%s472 + $0x68] sm:$0xff]
    %v487 = vld [vmem:[%s472 + $0x70] sm:$0xff]
    %v488 = vld [vmem:[%s472 + $0x78] sm:$0xff]
    %v489 = vld [vmem:[%s472 + $0x80] sm:$0xff]
    %v490 = vld [vmem:[%s472 + $0x88] sm:$0xff]
    %v491 = vld [vmem:[%s472 + $0x90] sm:$0xff]
    %v492 = vld [vmem:[%s472 + $0x98] sm:$0xff]
    %v493 = vld [vmem:[%s472 + $0xa0] sm:$0xff]
    %v494 = vld [vmem:[%s472 + $0xa8] sm:$0xff]
    %v495 = vld [vmem:[%s472 + $0xb0] sm:$0xff]
    %v496 = vld [vmem:[%s472 + $0xb8] sm:$0xff]
    %v497 = vld [vmem:[%s472 + $0xc0] sm:$0xff]
    %v498 = vld [vmem:[%s472 + $0xc8] sm:$0xff]
    %v499 = vld [vmem:[%s472 + $0xd0] sm:$0xff]
    %v500 = vld [vmem:[%s472 + $0xd8] sm:$0xff]
    %v501 = vld [vmem:[%s472 + $0xe0] sm:$0xff]
    %v502 = vld [vmem:[%s472 + $0xe8] sm:$0xff]
    %v503 = vld [vmem:[%s472 + $0xf0] sm:$0xff]
    %v504 = vld [vmem:[%s472 + $0xf8] sm:$0xff]
    %s505 = scalar_lea.vmem %s3, 4
    %v506 = vld [vmem:[%s505] sm:$0xf]
    %v508 = vlaneseq
    %v509 = vshrl.u32 %v508, 7
    %v510 = vsub.s32 0, %v509
    %v511 = vrot.slane %v506, %v510
    %v512 = vlaneseq
    %v513 = vshrl.u32 %v512, 7
    %v514 = vsub.s32 1, %v513
    %v515 = vrot.slane %v506, %v514
    %v516 = vlaneseq
    %v517 = vshrl.u32 %v516, 7
    %v518 = vsub.s32 2, %v517
    %v519 = vrot.slane %v506, %v518
    %v520 = vlaneseq
    %v521 = vshrl.u32 %v520, 7
    %v522 = vsub.s32 3, %v521
    %v523 = vrot.slane %v506, %v522
    %v560 = vunpack.c.l.b16 %v473
    %v561 = vunpack.c.h.b16 %v473
    %v562 = vunpack.c.l.b16 %v474
    %v563 = vunpack.c.h.b16 %v474
    %v564 = vunpack.c.l.b16 %v475
    %v565 = vunpack.c.h.b16 %v475
    %v566 = vunpack.c.l.b16 %v476
    %v567 = vunpack.c.h.b16 %v476
    %v568 = vunpack.c.l.b16 %v477
    %v569 = vunpack.c.h.b16 %v477
    %v570 = vunpack.c.l.b16 %v478
    %v571 = vunpack.c.h.b16 %v478
    %v572 = vunpack.c.l.b16 %v479
    %v573 = vunpack.c.h.b16 %v479
    %v574 = vunpack.c.l.b16 %v480
    %v575 = vunpack.c.h.b16 %v480
    %v576 = vunpack.c.l.b16 %v481
    %v577 = vunpack.c.h.b16 %v481
    %v578 = vunpack.c.l.b16 %v482
    %v579 = vunpack.c.h.b16 %v482
    %v580 = vunpack.c.l.b16 %v483
    %v581 = vunpack.c.h.b16 %v483
    %v582 = vunpack.c.l.b16 %v484
    %v583 = vunpack.c.h.b16 %v484
    %v584 = vunpack.c.l.b16 %v485
    %v585 = vunpack.c.h.b16 %v485
    %v586 = vunpack.c.l.b16 %v486
    %v587 = vunpack.c.h.b16 %v486
    %v588 = vunpack.c.l.b16 %v487
    %v589 = vunpack.c.h.b16 %v487
    %v590 = vunpack.c.l.b16 %v488
    %v591 = vunpack.c.h.b16 %v488
    %v592 = vunpack.c.l.b16 %v489
    %v593 = vunpack.c.h.b16 %v489
    %v594 = vunpack.c.l.b16 %v490
    %v595 = vunpack.c.h.b16 %v490
    %v596 = vunpack.c.l.b16 %v491
    %v597 = vunpack.c.h.b16 %v491
    %v598 = vunpack.c.l.b16 %v492
    %v599 = vunpack.c.h.b16 %v492
    %v600 = vunpack.c.l.b16 %v493
    %v601 = vunpack.c.h.b16 %v493
    %v602 = vunpack.c.l.b16 %v494
    %v603 = vunpack.c.h.b16 %v494
    %v604 = vunpack.c.l.b16 %v495
    %v605 = vunpack.c.h.b16 %v495
    %v606 = vunpack.c.l.b16 %v496
    %v607 = vunpack.c.h.b16 %v496
    %v608 = vunpack.c.l.b16 %v497
    %v609 = vunpack.c.h.b16 %v497
    %v610 = vunpack.c.l.b16 %v498
    %v611 = vunpack.c.h.b16 %v498
    %v612 = vunpack.c.l.b16 %v499
    %v613 = vunpack.c.h.b16 %v499
    %v614 = vunpack.c.l.b16 %v500
    %v615 = vunpack.c.h.b16 %v500
    %v616 = vunpack.c.l.b16 %v501
    %v617 = vunpack.c.h.b16 %v501
    %v618 = vunpack.c.l.b16 %v502
    %v619 = vunpack.c.h.b16 %v502
    %v620 = vunpack.c.l.b16 %v503
    %v621 = vunpack.c.h.b16 %v503
    %v622 = vunpack.c.l.b16 %v504
    %v623 = vunpack.c.h.b16 %v504
    %v624 = vpack.c.b16 %v564, %v560
    %v625 = vpack.c.b16 %v565, %v561
    %v626 = vpack.c.b16 %v566, %v562
    %v627 = vpack.c.b16 %v567, %v563
    %v628 = vpack.c.b16 %v572, %v568
    %v629 = vpack.c.b16 %v573, %v569
    %v630 = vpack.c.b16 %v574, %v570
    %v631 = vpack.c.b16 %v575, %v571
    %v632 = vpack.c.b16 %v580, %v576
    %v633 = vpack.c.b16 %v581, %v577
    %v634 = vpack.c.b16 %v582, %v578
    %v635 = vpack.c.b16 %v583, %v579
    %v636 = vpack.c.b16 %v588, %v584
    %v637 = vpack.c.b16 %v589, %v585
    %v638 = vpack.c.b16 %v590, %v586
    %v639 = vpack.c.b16 %v591, %v587
    %v640 = vpack.c.b16 %v596, %v592
    %v641 = vpack.c.b16 %v597, %v593
    %v642 = vpack.c.b16 %v598, %v594
    %v643 = vpack.c.b16 %v599, %v595
    %v644 = vpack.c.b16 %v604, %v600
    %v645 = vpack.c.b16 %v605, %v601
    %v646 = vpack.c.b16 %v606, %v602
    %v647 = vpack.c.b16 %v607, %v603
    %v648 = vpack.c.b16 %v612, %v608
    %v649 = vpack.c.b16 %v613, %v609
    %v650 = vpack.c.b16 %v614, %v610
    %v651 = vpack.c.b16 %v615, %v611
    %v652 = vpack.c.b16 %v620, %v616
    %v653 = vpack.c.b16 %v621, %v617
    %v654 = vpack.c.b16 %v622, %v618
    %v655 = vpack.c.b16 %v623, %v619
    %688 = vmatprep.subr.bf16.mxu0 %v653
    %689 = vmatpush1.bf16.msra.mxu0 %v652
    %690 = vmatprep.subr.bf16.mxu0 %v649
    %691 = vmatpush1.bf16.msra.mxu0 %v648
    %692 = vmatprep.subr.bf16.mxu0 %v645
    %693 = vmatpush1.bf16.msra.mxu0 %v644
    %694 = vmatprep.subr.bf16.mxu0 %v641
    %695 = vmatpush1.bf16.msra.mxu0 %v640
    %696 = vmatprep.subr.bf16.mxu0 %v637
    %697 = vmatpush1.bf16.msra.mxu0 %v636
    %698 = vmatprep.subr.bf16.mxu0 %v633
    %699 = vmatpush1.bf16.msra.mxu0 %v632
    %700 = vmatprep.subr.bf16.mxu0 %v629
    %701 = vmatpush1.bf16.msra.mxu0 %v628
    %702 = vmatprep.subr.bf16.mxu0 %v625
    %703 = vmatpush1.bf16.msra.mxu0 %v624
    %704 = vmatprep.subr.bf16.mxu0 0
    %705 = vmatpush2.bf16.msra.mxu0 0
    %706 = vmatprep.subr.bf16.mxu0 0
    %707 = vmatpush2.bf16.msra.mxu0 0
    %708 = vmatprep.subr.bf16.mxu0 0
    %709 = vmatpush2.bf16.msra.mxu0 0
    %710 = vmatprep.subr.bf16.mxu0 0
    %711 = vmatpush2.bf16.msra.mxu0 0
    %712 = vmatprep.subr.bf16.mxu0 0
    %713 = vmatpush2.bf16.msra.mxu0 0
    %714 = vmatprep.subr.bf16.mxu0 0
    %715 = vmatpush2.bf16.msra.mxu0 0
    %716 = vmatprep.subr.bf16.mxu0 0
    %717 = vmatpush2.bf16.msra.mxu0 0
    %718 = vmatprep.subr.bf16.mxu0 0
    %719 = vmatpush2.bf16.msra.mxu0 0
    %720 = vmatprep.mubr.bf16.mxu0 0
    %721 = vmatmul.mubr.bf16.gmra.mxu0 %v124
    %v722 = vpop.f32.mrf.mxu0
    %v723 = vadd.f32 %v511, %v722
    %v724 = vpop.f32.mrf.mxu0
    %v725 = vadd.f32 %v515, %v724
    %v726 = vpop.f32.mrf.mxu0
    %v727 = vadd.f32 %v511, %v726
    %v728 = vpop.f32.mrf.mxu0
    %v729 = vadd.f32 %v515, %v728
    %730 = vmatprep.mubr.bf16.mxu0 0
    %731 = vmatmul.mubr.bf16.gmra.mxu0 %v125
    %v732 = vpop.f32.mrf.mxu0
    %v733 = vadd.f32 %v511, %v732
    %v734 = vpop.f32.mrf.mxu0
    %v735 = vadd.f32 %v515, %v734
    %v736 = vpop.f32.mrf.mxu0
    %v737 = vadd.f32 %v511, %v736
    %v738 = vpop.f32.mrf.mxu0
    %v739 = vadd.f32 %v515, %v738
    %740 = vmatprep.mubr.bf16.mxu0 0
    %741 = vmatmul.mubr.bf16.gmra.mxu0 %v126
    %v742 = vpop.f32.mrf.mxu0
    %v743 = vadd.f32 %v511, %v742
    %v744 = vpop.f32.mrf.mxu0
    %v745 = vadd.f32 %v515, %v744
    %v746 = vpop.f32.mrf.mxu0
    %v747 = vadd.f32 %v511, %v746
    %v748 = vpop.f32.mrf.mxu0
    %v749 = vadd.f32 %v515, %v748
    %750 = vmatprep.mubr.bf16.mxu0 0
    %751 = vmatmul.mubr.bf16.gmra.mxu0 %v127
    %v752 = vpop.f32.mrf.mxu0
    %v753 = vadd.f32 %v511, %v752
    %v754 = vpop.f32.mrf.mxu0
    %v755 = vadd.f32 %v515, %v754
    %v756 = vpop.f32.mrf.mxu0
    %v757 = vadd.f32 %v511, %v756
    %v758 = vpop.f32.mrf.mxu0
    %v759 = vadd.f32 %v515, %v758
    %760 = vdwg.mxu0
    %761 = vmatprep.subr.bf16.mxu0 %v655
    %762 = vmatpush1.bf16.msra.mxu0 %v654
    %763 = vmatprep.subr.bf16.mxu0 %v651
    %764 = vmatpush1.bf16.msra.mxu0 %v650
    %765 = vmatprep.subr.bf16.mxu0 %v647
    %766 = vmatpush1.bf16.msra.mxu0 %v646
    %767 = vmatprep.subr.bf16.mxu0 %v643
    %768 = vmatpush1.bf16.msra.mxu0 %v642
    %769 = vmatprep.subr.bf16.mxu0 %v639
    %770 = vmatpush1.bf16.msra.mxu0 %v638
    %771 = vmatprep.subr.bf16.mxu0 %v635
    %772 = vmatpush1.bf16.msra.mxu0 %v634
    %773 = vmatprep.subr.bf16.mxu0 %v631
    %774 = vmatpush1.bf16.msra.mxu0 %v630
    %775 = vmatprep.subr.bf16.mxu0 %v627
    %776 = vmatpush1.bf16.msra.mxu0 %v626
    %777 = vmatprep.subr.bf16.mxu0 0
    %778 = vmatpush2.bf16.msra.mxu0 0
    %779 = vmatprep.subr.bf16.mxu0 0
    %780 = vmatpush2.bf16.msra.mxu0 0
    %781 = vmatprep.subr.bf16.mxu0 0
    %782 = vmatpush2.bf16.msra.mxu0 0
    %783 = vmatprep.subr.bf16.mxu0 0
    %784 = vmatpush2.bf16.msra.mxu0 0
    %785 = vmatprep.subr.bf16.mxu0 0
    %786 = vmatpush2.bf16.msra.mxu0 0
    %787 = vmatprep.subr.bf16.mxu0 0
    %788 = vmatpush2.bf16.msra.mxu0 0
    %789 = vmatprep.subr.bf16.mxu0 0
    %790 = vmatpush2.bf16.msra.mxu0 0
    %791 = vmatprep.subr.bf16.mxu0 0
    %792 = vmatpush2.bf16.msra.mxu0 0
    %793 = vmatprep.mubr.bf16.mxu0 0
    %794 = vmatmul.mubr.bf16.gmra.mxu0 %v124
    %v795 = vpop.f32.mrf.mxu0
    %v796 = vadd.f32 %v519, %v795
    %v797 = vpop.f32.mrf.mxu0
    %v798 = vadd.f32 %v523, %v797
    %v799 = vpop.f32.mrf.mxu0
    %v800 = vadd.f32 %v519, %v799
    %v801 = vpop.f32.mrf.mxu0
    %v802 = vadd.f32 %v523, %v801
    %803 = vmatprep.mubr.bf16.mxu0 0
    %804 = vmatmul.mubr.bf16.gmra.mxu0 %v125
    %v805 = vpop.f32.mrf.mxu0
    %v806 = vadd.f32 %v519, %v805
    %v807 = vpop.f32.mrf.mxu0
    %v808 = vadd.f32 %v523, %v807
    %v809 = vpop.f32.mrf.mxu0
    %v810 = vadd.f32 %v519, %v809
    %v811 = vpop.f32.mrf.mxu0
    %v812 = vadd.f32 %v523, %v811
    %813 = vmatprep.mubr.bf16.mxu0 0
    %814 = vmatmul.mubr.bf16.gmra.mxu0 %v126
    %v815 = vpop.f32.mrf.mxu0
    %v816 = vadd.f32 %v519, %v815
    %v817 = vpop.f32.mrf.mxu0
    %v818 = vadd.f32 %v523, %v817
    %v819 = vpop.f32.mrf.mxu0
    %v820 = vadd.f32 %v519, %v819
    %v821 = vpop.f32.mrf.mxu0
    %v822 = vadd.f32 %v523, %v821
    %823 = vmatprep.mubr.bf16.mxu0 0
    %824 = vmatmul.mubr.bf16.gmra.mxu0 %v127
    %v825 = vpop.f32.mrf.mxu0
    %v826 = vadd.f32 %v519, %v825
    %v827 = vpop.f32.mrf.mxu0
    %v828 = vadd.f32 %v523, %v827
    %v829 = vpop.f32.mrf.mxu0
    %v830 = vadd.f32 %v519, %v829
    %v831 = vpop.f32.mrf.mxu0
    %v832 = vadd.f32 %v523, %v831
    %833 = vdwg.mxu0
    %834 = vst [vmem:[#allocation2 + $0x100] sm:$0xff] %v723
    %835 = vst [vmem:[#allocation2 + $0x108] sm:$0xff] %v725
    %836 = vst [vmem:[#allocation2 + $0x110] sm:$0xff] %v796
    %837 = vst [vmem:[#allocation2 + $0x118] sm:$0xff] %v798
    %838 = vst [vmem:[#allocation2 + $0x120] sm:$0xff] %v727
    %839 = vst [vmem:[#allocation2 + $0x128] sm:$0xff] %v729
    %840 = vst [vmem:[#allocation2 + $0x130] sm:$0xff] %v800
    %841 = vst [vmem:[#allocation2 + $0x138] sm:$0xff] %v802
    %842 = vst [vmem:[#allocation2 + $0x140] sm:$0xff] %v733
    %843 = vst [vmem:[#allocation2 + $0x148] sm:$0xff] %v735
    %844 = vst [vmem:[#allocation2 + $0x150] sm:$0xff] %v806
    %845 = vst [vmem:[#allocation2 + $0x158] sm:$0xff] %v808
    %846 = vst [vmem:[#allocation2 + $0x160] sm:$0xff] %v737
    %847 = vst [vmem:[#allocation2 + $0x168] sm:$0xff] %v739
    %848 = vst [vmem:[#allocation2 + $0x170] sm:$0xff] %v810
    %849 = vst [vmem:[#allocation2 + $0x178] sm:$0xff] %v812
    %850 = vst [vmem:[#allocation2 + $0x180] sm:$0xff] %v743
    %851 = vst [vmem:[#allocation2 + $0x188] sm:$0xff] %v745
    %852 = vst [vmem:[#allocation2 + $0x190] sm:$0xff] %v816
    %853 = vst [vmem:[#allocation2 + $0x198] sm:$0xff] %v818
    %854 = vst [vmem:[#allocation2 + $0x1a0] sm:$0xff] %v747
    %855 = vst [vmem:[#allocation2 + $0x1a8] sm:$0xff] %v749
    %856 = vst [vmem:[#allocation2 + $0x1b0] sm:$0xff] %v820
    %857 = vst [vmem:[#allocation2 + $0x1b8] sm:$0xff] %v822
    %858 = vst [vmem:[#allocation2 + $0x1c0] sm:$0xff] %v753
    %859 = vst [vmem:[#allocation2 + $0x1c8] sm:$0xff] %v755
    %860 = vst [vmem:[#allocation2 + $0x1d0] sm:$0xff] %v826
    %861 = vst [vmem:[#allocation2 + $0x1d8] sm:$0xff] %v828
    %862 = vst [vmem:[#allocation2 + $0x1e0] sm:$0xff] %v757
    %863 = vst [vmem:[#allocation2 + $0x1e8] sm:$0xff] %v759
    %864 = vst [vmem:[#allocation2 + $0x1f0] sm:$0xff] %v830
    %865 = vst [vmem:[#allocation2 + $0x1f8] sm:$0xff] %v832
    %s866 = scalar_lea.vmem [#allocation3], 8
    %867 = vst [vmem:[%s866] sm:$0xff] 0.0
    %s868 = scalar_lea.vmem [#allocation4], 8
    %869 = vst [vmem:[%s868] sm:$0xff] 0.0
    %v870 = vld [vmem:[#allocation7] sm:$0xff]
    %v871 = vld [vmem:[#allocation7 + $0x8] sm:$0xff]
    %v872 = vld [vmem:[#allocation7 + $0x10] sm:$0xff]
    %v873 = vld [vmem:[#allocation7 + $0x18] sm:$0xff]
    %v874 = vld [vmem:[#allocation7 + $0x20] sm:$0xff]
    %v875 = vld [vmem:[#allocation7 + $0x28] sm:$0xff]
    %v876 = vld [vmem:[#allocation7 + $0x30] sm:$0xff]
    %v877 = vld [vmem:[#allocation7 + $0x38] sm:$0xff]
    %v878 = vld [vmem:[#allocation7 + $0x40] sm:$0xff]
    %v879 = vld [vmem:[#allocation7 + $0x48] sm:$0xff]
    %v880 = vld [vmem:[#allocation7 + $0x50] sm:$0xff]
    %v881 = vld [vmem:[#allocation7 + $0x58] sm:$0xff]
    %v882 = vld [vmem:[#allocation7 + $0x60] sm:$0xff]
    %v883 = vld [vmem:[#allocation7 + $0x68] sm:$0xff]
    %v884 = vld [vmem:[#allocation7 + $0x70] sm:$0xff]
    %v885 = vld [vmem:[#allocation7 + $0x78] sm:$0xff]
    %v886 = vld [vmem:[#allocation7 + $0x80] sm:$0xff]
    %v887 = vld [vmem:[#allocation7 + $0x88] sm:$0xff]
    %v888 = vld [vmem:[#allocation7 + $0x90] sm:$0xff]
    %v889 = vld [vmem:[#allocation7 + $0x98] sm:$0xff]
    %v890 = vld [vmem:[#allocation7 + $0xa0] sm:$0xff]
    %v891 = vld [vmem:[#allocation7 + $0xa8] sm:$0xff]
    %v892 = vld [vmem:[#allocation7 + $0xb0] sm:$0xff]
    %v893 = vld [vmem:[#allocation7 + $0xb8] sm:$0xff]
    %v894 = vld [vmem:[#allocation7 + $0xc0] sm:$0xff]
    %v895 = vld [vmem:[#allocation7 + $0xc8] sm:$0xff]
    %v896 = vld [vmem:[#allocation7 + $0xd0] sm:$0xff]
    %v897 = vld [vmem:[#allocation7 + $0xd8] sm:$0xff]
    %v898 = vld [vmem:[#allocation7 + $0xe0] sm:$0xff]
    %v899 = vld [vmem:[#allocation7 + $0xe8] sm:$0xff]
    %v900 = vld [vmem:[#allocation7 + $0xf0] sm:$0xff]
    %v901 = vld [vmem:[#allocation7 + $0xf8] sm:$0xff]
    %s902 = scalar_lea.vmem [#allocation7], 256
    %v903 = vld [vmem:[%s902] sm:$0xff]
    %v904 = vld [vmem:[%s902 + $0x8] sm:$0xff]
    %v905 = vld [vmem:[%s902 + $0x10] sm:$0xff]
    %v906 = vld [vmem:[%s902 + $0x18] sm:$0xff]
    %v907 = vld [vmem:[%s902 + $0x20] sm:$0xff]
    %v908 = vld [vmem:[%s902 + $0x28] sm:$0xff]
    %v909 = vld [vmem:[%s902 + $0x30] sm:$0xff]
    %v910 = vld [vmem:[%s902 + $0x38] sm:$0xff]
    %v911 = vld [vmem:[%s902 + $0x40] sm:$0xff]
    %v912 = vld [vmem:[%s902 + $0x48] sm:$0xff]
    %v913 = vld [vmem:[%s902 + $0x50] sm:$0xff]
    %v914 = vld [vmem:[%s902 + $0x58] sm:$0xff]
    %v915 = vld [vmem:[%s902 + $0x60] sm:$0xff]
    %v916 = vld [vmem:[%s902 + $0x68] sm:$0xff]
    %v917 = vld [vmem:[%s902 + $0x70] sm:$0xff]
    %v918 = vld [vmem:[%s902 + $0x78] sm:$0xff]
    %v919 = vld [vmem:[%s902 + $0x80] sm:$0xff]
    %v920 = vld [vmem:[%s902 + $0x88] sm:$0xff]
    %v921 = vld [vmem:[%s902 + $0x90] sm:$0xff]
    %v922 = vld [vmem:[%s902 + $0x98] sm:$0xff]
    %v923 = vld [vmem:[%s902 + $0xa0] sm:$0xff]
    %v924 = vld [vmem:[%s902 + $0xa8] sm:$0xff]
    %v925 = vld [vmem:[%s902 + $0xb0] sm:$0xff]
    %v926 = vld [vmem:[%s902 + $0xb8] sm:$0xff]
    %v927 = vld [vmem:[%s902 + $0xc0] sm:$0xff]
    %v928 = vld [vmem:[%s902 + $0xc8] sm:$0xff]
    %v929 = vld [vmem:[%s902 + $0xd0] sm:$0xff]
    %v930 = vld [vmem:[%s902 + $0xd8] sm:$0xff]
    %v931 = vld [vmem:[%s902 + $0xe0] sm:$0xff]
    %v932 = vld [vmem:[%s902 + $0xe8] sm:$0xff]
    %v933 = vld [vmem:[%s902 + $0xf0] sm:$0xff]
    %v934 = vld [vmem:[%s902 + $0xf8] sm:$0xff]
    %s935 = smul.u32 0, 14
    %s936 = smul.u32 0, 112
    %s937 = sshra.s32 %s936, 3
    %s938 = sand.u32 %s936, 7
    %s939 = smul.u32 %s937, 4
    %s940 = smul.addr %s939, 8
    %s941 = scalar_lea.vmem [#allocation2], %s940
    %v942 = vld [vmem:[%s941] sm:$0xff]
    %v943 = vld [vmem:[%s941 + $0x8] sm:$0xff]
    %v944 = vld [vmem:[%s941 + $0x10] sm:$0xff]
    %v945 = vld [vmem:[%s941 + $0x18] sm:$0xff]
    %v946 = vld [vmem:[#allocation3] sm:$0xff]
    %v947 = vpack.c.bf16 %v946, %v946
    %v980 = vunpack.c.l.b16 %v870
    %v981 = vunpack.c.h.b16 %v870
    %v982 = vunpack.c.l.b16 %v871
    %v983 = vunpack.c.h.b16 %v871
    %v984 = vunpack.c.l.b16 %v872
    %v985 = vunpack.c.h.b16 %v872
    %v986 = vunpack.c.l.b16 %v873
    %v987 = vunpack.c.h.b16 %v873
    %v988 = vunpack.c.l.b16 %v874
    %v989 = vunpack.c.h.b16 %v874
    %v990 = vunpack.c.l.b16 %v875
    %v991 = vunpack.c.h.b16 %v875
    %v992 = vunpack.c.l.b16 %v876
    %v993 = vunpack.c.h.b16 %v876
    %v994 = vunpack.c.l.b16 %v877
    %v995 = vunpack.c.h.b16 %v877
    %v996 = vunpack.c.l.b16 %v878
    %v997 = vunpack.c.h.b16 %v878
    %v998 = vunpack.c.l.b16 %v879
    %v999 = vunpack.c.h.b16 %v879
    %v1000 = vunpack.c.l.b16 %v880
    %v1001 = vunpack.c.h.b16 %v880
    %v1002 = vunpack.c.l.b16 %v881
    %v1003 = vunpack.c.h.b16 %v881
    %v1004 = vunpack.c.l.b16 %v882
    %v1005 = vunpack.c.h.b16 %v882
    %v1006 = vunpack.c.l.b16 %v883
    %v1007 = vunpack.c.h.b16 %v883
    %v1008 = vunpack.c.l.b16 %v884
    %v1009 = vunpack.c.h.b16 %v884
    %v1010 = vunpack.c.l.b16 %v885
    %v1011 = vunpack.c.h.b16 %v885
    %v1012 = vunpack.c.l.b16 %v886
    %v1013 = vunpack.c.h.b16 %v886
    %v1014 = vunpack.c.l.b16 %v887
    %v1015 = vunpack.c.h.b16 %v887
    %v1016 = vunpack.c.l.b16 %v888
    %v1017 = vunpack.c.h.b16 %v888
    %v1018 = vunpack.c.l.b16 %v889
    %v1019 = vunpack.c.h.b16 %v889
    %v1020 = vunpack.c.l.b16 %v890
    %v1021 = vunpack.c.h.b16 %v890
    %v1022 = vunpack.c.l.b16 %v891
    %v1023 = vunpack.c.h.b16 %v891
    %v1024 = vunpack.c.l.b16 %v892
    %v1025 = vunpack.c.h.b16 %v892
    %v1026 = vunpack.c.l.b16 %v893
    %v1027 = vunpack.c.h.b16 %v893
    %v1028 = vunpack.c.l.b16 %v894
    %v1029 = vunpack.c.h.b16 %v894
    %v1030 = vunpack.c.l.b16 %v895
    %v1031 = vunpack.c.h.b16 %v895
    %v1032 = vunpack.c.l.b16 %v896
    %v1033 = vunpack.c.h.b16 %v896
    %v1034 = vunpack.c.l.b16 %v897
    %v1035 = vunpack.c.h.b16 %v897
    %v1036 = vunpack.c.l.b16 %v898
    %v1037 = vunpack.c.h.b16 %v898
    %v1038 = vunpack.c.l.b16 %v899
    %v1039 = vunpack.c.h.b16 %v899
    %v1040 = vunpack.c.l.b16 %v900
    %v1041 = vunpack.c.h.b16 %v900
    %v1042 = vunpack.c.l.b16 %v901
    %v1043 = vunpack.c.h.b16 %v901
    %v1044 = vpack.c.b16 %v984, %v980
    %v1045 = vpack.c.b16 %v985, %v981
    %v1046 = vpack.c.b16 %v986, %v982
    %v1047 = vpack.c.b16 %v987, %v983
    %v1048 = vpack.c.b16 %v992, %v988
    %v1049 = vpack.c.b16 %v993, %v989
    %v1050 = vpack.c.b16 %v994, %v990
    %v1051 = vpack.c.b16 %v995, %v991
    %v1052 = vpack.c.b16 %v1000, %v996
    %v1053 = vpack.c.b16 %v1001, %v997
    %v1054 = vpack.c.b16 %v1002, %v998
    %v1055 = vpack.c.b16 %v1003, %v999
    %v1056 = vpack.c.b16 %v1008, %v1004
    %v1057 = vpack.c.b16 %v1009, %v1005
    %v1058 = vpack.c.b16 %v1010, %v1006
    %v1059 = vpack.c.b16 %v1011, %v1007
    %v1060 = vpack.c.b16 %v1016, %v1012
    %v1061 = vpack.c.b16 %v1017, %v1013
    %v1062 = vpack.c.b16 %v1018, %v1014
    %v1063 = vpack.c.b16 %v1019, %v1015
    %v1064 = vpack.c.b16 %v1024, %v1020
    %v1065 = vpack.c.b16 %v1025, %v1021
    %v1066 = vpack.c.b16 %v1026, %v1022
    %v1067 = vpack.c.b16 %v1027, %v1023
    %v1068 = vpack.c.b16 %v1032, %v1028
    %v1069 = vpack.c.b16 %v1033, %v1029
    %v1070 = vpack.c.b16 %v1034, %v1030
    %v1071 = vpack.c.b16 %v1035, %v1031
    %v1072 = vpack.c.b16 %v1040, %v1036
    %v1073 = vpack.c.b16 %v1041, %v1037
    %v1074 = vpack.c.b16 %v1042, %v1038
    %v1075 = vpack.c.b16 %v1043, %v1039
    %1108 = vmatprep.subr.bf16.mxu0 %v1073
    %1109 = vmatpush1.bf16.msra.mxu0 %v1072
    %1110 = vmatprep.subr.bf16.mxu0 %v1069
    %1111 = vmatpush1.bf16.msra.mxu0 %v1068
    %1112 = vmatprep.subr.bf16.mxu0 %v1065
    %1113 = vmatpush1.bf16.msra.mxu0 %v1064
    %1114 = vmatprep.subr.bf16.mxu0 %v1061
    %1115 = vmatpush1.bf16.msra.mxu0 %v1060
    %1116 = vmatprep.subr.bf16.mxu0 %v1057
    %1117 = vmatpush1.bf16.msra.mxu0 %v1056
    %1118 = vmatprep.subr.bf16.mxu0 %v1053
    %1119 = vmatpush1.bf16.msra.mxu0 %v1052
    %1120 = vmatprep.subr.bf16.mxu0 %v1049
    %1121 = vmatpush1.bf16.msra.mxu0 %v1048
    %1122 = vmatprep.subr.bf16.mxu0 %v1045
    %1123 = vmatpush1.bf16.msra.mxu0 %v1044
    %1124 = vmatprep.subr.bf16.mxu0 0
    %1125 = vmatpush2.bf16.msra.mxu0 0
    %1126 = vmatprep.subr.bf16.mxu0 0
    %1127 = vmatpush2.bf16.msra.mxu0 0
    %1128 = vmatprep.subr.bf16.mxu0 0
    %1129 = vmatpush2.bf16.msra.mxu0 0
    %1130 = vmatprep.subr.bf16.mxu0 0
    %1131 = vmatpush2.bf16.msra.mxu0 0
    %1132 = vmatprep.subr.bf16.mxu0 0
    %1133 = vmatpush2.bf16.msra.mxu0 0
    %1134 = vmatprep.subr.bf16.mxu0 0
    %1135 = vmatpush2.bf16.msra.mxu0 0
    %1136 = vmatprep.subr.bf16.mxu0 0
    %1137 = vmatpush2.bf16.msra.mxu0 0
    %1138 = vmatprep.subr.bf16.mxu0 0
    %1139 = vmatpush2.bf16.msra.mxu0 0
    %1140 = vmatprep.mubr.bf16.mxu0 0
    %1141 = vmatmul.mubr.bf16.gmra.mxu0 %v947
    %v1142 = vpop.f32.mrf.mxu0
    %v1143 = vadd.f32 0.0, %v1142
    %v1144 = vpop.f32.mrf.mxu0
    %v1145 = vadd.f32 0.0, %v1144
    %v1146 = vpop.f32.mrf.mxu0
    %v1147 = vpop.f32.mrf.mxu0
    %1148 = vdwg.mxu0
    %1149 = vmatprep.subr.bf16.mxu0 %v1075
    %1150 = vmatpush1.bf16.msra.mxu0 %v1074
    %1151 = vmatprep.subr.bf16.mxu0 %v1071
    %1152 = vmatpush1.bf16.msra.mxu0 %v1070
    %1153 = vmatprep.subr.bf16.mxu0 %v1067
    %1154 = vmatpush1.bf16.msra.mxu0 %v1066
    %1155 = vmatprep.subr.bf16.mxu0 %v1063
    %1156 = vmatpush1.bf16.msra.mxu0 %v1062
    %1157 = vmatprep.subr.bf16.mxu0 %v1059
    %1158 = vmatpush1.bf16.msra.mxu0 %v1058
    %1159 = vmatprep.subr.bf16.mxu0 %v1055
    %1160 = vmatpush1.bf16.msra.mxu0 %v1054
    %1161 = vmatprep.subr.bf16.mxu0 %v1051
    %1162 = vmatpush1.bf16.msra.mxu0 %v1050
    %1163 = vmatprep.subr.bf16.mxu0 %v1047
    %1164 = vmatpush1.bf16.msra.mxu0 %v1046
    %1165 = vmatprep.subr.bf16.mxu0 0
    %1166 = vmatpush2.bf16.msra.mxu0 0
    %1167 = vmatprep.subr.bf16.mxu0 0
    %1168 = vmatpush2.bf16.msra.mxu0 0
    %1169 = vmatprep.subr.bf16.mxu0 0
    %1170 = vmatpush2.bf16.msra.mxu0 0
    %1171 = vmatprep.subr.bf16.mxu0 0
    %1172 = vmatpush2.bf16.msra.mxu0 0
    %1173 = vmatprep.subr.bf16.mxu0 0
    %1174 = vmatpush2.bf16.msra.mxu0 0
    %1175 = vmatprep.subr.bf16.mxu0 0
    %1176 = vmatpush2.bf16.msra.mxu0 0
    %1177 = vmatprep.subr.bf16.mxu0 0
    %1178 = vmatpush2.bf16.msra.mxu0 0
    %1179 = vmatprep.subr.bf16.mxu0 0
    %1180 = vmatpush2.bf16.msra.mxu0 0
    %1181 = vmatprep.mubr.bf16.mxu0 0
    %1182 = vmatmul.mubr.bf16.gmra.mxu0 %v947
    %v1183 = vpop.f32.mrf.mxu0
    %v1184 = vadd.f32 0.0, %v1183
    %v1185 = vpop.f32.mrf.mxu0
    %v1186 = vadd.f32 0.0, %v1185
    %v1187 = vpop.f32.mrf.mxu0
    %v1188 = vpop.f32.mrf.mxu0
    %1189 = vdwg.mxu0
    %v1190 = vadd.f32 %v942, %v1143
    %v1191 = vadd.f32 %v943, %v1145
    %v1192 = vadd.f32 %v944, %v1184
    %v1193 = vadd.f32 %v945, %v1186
    %v1194 = vxor.u32 %v1190, 2147483648
    %v1195 = vmul.f32 %v1194, 1.442695
    %v1196 = vpow.pop %v1195
    %v1197 = vadd.f32 %v1196, 1.0
    %v1198 = vrcp.pop %v1197
    %v1199 = vmul.f32 1.0, %v1198
    %v1200 = vxor.u32 %v1191, 2147483648
    %v1201 = vmul.f32 %v1200, 1.442695
    %v1202 = vpow.pop %v1201
    %v1203 = vadd.f32 %v1202, 1.0
    %v1204 = vrcp.pop %v1203
    %v1205 = vmul.f32 1.0, %v1204
    %v1206 = vtanh.pop %v1192
    %v1207 = vxor.u32 %v1193, 2147483648
    %v1208 = vmul.f32 %v1207, 1.442695
    %v1209 = vpow.pop %v1208
    %v1210 = vadd.f32 %v1209, 1.0
    %v1211 = vrcp.pop %v1210
    %v1212 = vmul.f32 1.0, %v1211
    %v1213 = vld [vmem:[#allocation4] sm:$0xff]
    %v1214 = vmul.f32 %v1205, %v1213
    %v1215 = vmul.f32 %v1199, %v1206
    %v1216 = vadd.f32 %v1214, %v1215
    %v1217 = vtanh.pop %v1216
    %v1218 = vmul.f32 %v1212, %v1217
    %1219 = vst [vmem:[#allocation4] sm:$0xff] %v1216
    %1220 = vst [vmem:[#allocation3] sm:$0xff] %v1218
    %v1221 = vpack.c.bf16 %v1218, %v1218
    %s1222 = smul.addr %s935, 4
    %s1223 = scalar_lea.vmem %s4, %s1222
    %1224 = vst [vmem:[%s1223] sm:$0xf] %v1221
    %s1225 = smul.u32 0, 2
    %s1226 = sadd.s32 %s1225, 1
    %s1227 = smul.u32 %s1226, 7
    %s1228 = smul.u32 %s1226, 56
    %s1229 = sadd.s32 %s1228, 64
    %s1230 = sshra.s32 %s1229, 3
    %s1231 = sand.u32 %s1229, 7
    %s1232 = smul.u32 %s1230, 4
    %s1233 = smul.addr %s1232, 8
    %s1234 = scalar_lea.vmem [#allocation2], %s1233
    %v1235 = vld [vmem:[%s1234] sm:$0xff]
    %v1236 = vld [vmem:[%s1234 + $0x8] sm:$0xff]
    %v1237 = vld [vmem:[%s1234 + $0x10] sm:$0xff]
    %v1238 = vld [vmem:[%s1234 + $0x18] sm:$0xff]
    %v1239 = vld [vmem:[%s866] sm:$0xff]
    %v1240 = vpack.c.bf16 %v1239, %v1239
    %v1273 = vunpack.c.l.b16 %v903
    %v1274 = vunpack.c.h.b16 %v903
    %v1275 = vunpack.c.l.b16 %v904
    %v1276 = vunpack.c.h.b16 %v904
    %v1277 = vunpack.c.l.b16 %v905
    %v1278 = vunpack.c.h.b16 %v905
    %v1279 = vunpack.c.l.b16 %v906
    %v1280 = vunpack.c.h.b16 %v906
    %v1281 = vunpack.c.l.b16 %v907
    %v1282 = vunpack.c.h.b16 %v907
    %v1283 = vunpack.c.l.b16 %v908
    %v1284 = vunpack.c.h.b16 %v908
    %v1285 = vunpack.c.l.b16 %v909
    %v1286 = vunpack.c.h.b16 %v909
    %v1287 = vunpack.c.l.b16 %v910
    %v1288 = vunpack.c.h.b16 %v910
    %v1289 = vunpack.c.l.b16 %v911
    %v1290 = vunpack.c.h.b16 %v911
    %v1291 = vunpack.c.l.b16 %v912
    %v1292 = vunpack.c.h.b16 %v912
    %v1293 = vunpack.c.l.b16 %v913
    %v1294 = vunpack.c.h.b16 %v913
    %v1295 = vunpack.c.l.b16 %v914
    %v1296 = vunpack.c.h.b16 %v914
    %v1297 = vunpack.c.l.b16 %v915
    %v1298 = vunpack.c.h.b16 %v915
    %v1299 = vunpack.c.l.b16 %v916
    %v1300 = vunpack.c.h.b16 %v916
    %v1301 = vunpack.c.l.b16 %v917
    %v1302 = vunpack.c.h.b16 %v917
    %v1303 = vunpack.c.l.b16 %v918
    %v1304 = vunpack.c.h.b16 %v918
    %v1305 = vunpack.c.l.b16 %v919
    %v1306 = vunpack.c.h.b16 %v919
    %v1307 = vunpack.c.l.b16 %v920
    %v1308 = vunpack.c.h.b16 %v920
    %v1309 = vunpack.c.l.b16 %v921
    %v1310 = vunpack.c.h.b16 %v921
    %v1311 = vunpack.c.l.b16 %v922
    %v1312 = vunpack.c.h.b16 %v922
    %v1313 = vunpack.c.l.b16 %v923
    %v1314 = vunpack.c.h.b16 %v923
    %v1315 = vunpack.c.l.b16 %v924
    %v1316 = vunpack.c.h.b16 %v924
    %v1317 = vunpack.c.l.b16 %v925
    %v1318 = vunpack.c.h.b16 %v925
    %v1319 = vunpack.c.l.b16 %v926
    %v1320 = vunpack.c.h.b16 %v926
    %v1321 = vunpack.c.l.b16 %v927
    %v1322 = vunpack.c.h.b16 %v927
    %v1323 = vunpack.c.l.b16 %v928
    %v1324 = vunpack.c.h.b16 %v928
    %v1325 = vunpack.c.l.b16 %v929
    %v1326 = vunpack.c.h.b16 %v929
    %v1327 = vunpack.c.l.b16 %v930
    %v1328 = vunpack.c.h.b16 %v930
    %v1329 = vunpack.c.l.b16 %v931
    %v1330 = vunpack.c.h.b16 %v931
    %v1331 = vunpack.c.l.b16 %v932
    %v1332 = vunpack.c.h.b16 %v932
    %v1333 = vunpack.c.l.b16 %v933
    %v1334 = vunpack.c.h.b16 %v933
    %v1335 = vunpack.c.l.b16 %v934
    %v1336 = vunpack.c.h.b16 %v934
    %v1337 = vpack.c.b16 %v1277, %v1273
    %v1338 = vpack.c.b16 %v1278, %v1274
    %v1339 = vpack.c.b16 %v1279, %v1275
    %v1340 = vpack.c.b16 %v1280, %v1276
    %v1341 = vpack.c.b16 %v1285, %v1281
    %v1342 = vpack.c.b16 %v1286, %v1282
    %v1343 = vpack.c.b16 %v1287, %v1283
    %v1344 = vpack.c.b16 %v1288, %v1284
    %v1345 = vpack.c.b16 %v1293, %v1289
    %v1346 = vpack.c.b16 %v1294, %v1290
    %v1347 = vpack.c.b16 %v1295, %v1291
    %v1348 = vpack.c.b16 %v1296, %v1292
    %v1349 = vpack.c.b16 %v1301, %v1297
    %v1350 = vpack.c.b16 %v1302, %v1298
    %v1351 = vpack.c.b16 %v1303, %v1299
    %v1352 = vpack.c.b16 %v1304, %v1300
    %v1353 = vpack.c.b16 %v1309, %v1305
    %v1354 = vpack.c.b16 %v1310, %v1306
    %v1355 = vpack.c.b16 %v1311, %v1307
    %v1356 = vpack.c.b16 %v1312, %v1308
    %v1357 = vpack.c.b16 %v1317, %v1313
    %v1358 = vpack.c.b16 %v1318, %v1314
    %v1359 = vpack.c.b16 %v1319, %v1315
    %v1360 = vpack.c.b16 %v1320, %v1316
    %v1361 = vpack.c.b16 %v1325, %v1321
    %v1362 = vpack.c.b16 %v1326, %v1322
    %v1363 = vpack.c.b16 %v1327, %v1323
    %v1364 = vpack.c.b16 %v1328, %v1324
    %v1365 = vpack.c.b16 %v1333, %v1329
    %v1366 = vpack.c.b16 %v1334, %v1330
    %v1367 = vpack.c.b16 %v1335, %v1331
    %v1368 = vpack.c.b16 %v1336, %v1332
    %1401 = vmatprep.subr.bf16.mxu0 %v1366
    %1402 = vmatpush1.bf16.msra.mxu0 %v1365
    %1403 = vmatprep.subr.bf16.mxu0 %v1362
    %1404 = vmatpush1.bf16.msra.mxu0 %v1361
    %1405 = vmatprep.subr.bf16.mxu0 %v1358
    %1406 = vmatpush1.bf16.msra.mxu0 %v1357
    %1407 = vmatprep.subr.bf16.mxu0 %v1354
    %1408 = vmatpush1.bf16.msra.mxu0 %v1353
    %1409 = vmatprep.subr.bf16.mxu0 %v1350
    %1410 = vmatpush1.bf16.msra.mxu0 %v1349
    %1411 = vmatprep.subr.bf16.mxu0 %v1346
    %1412 = vmatpush1.bf16.msra.mxu0 %v1345
    %1413 = vmatprep.subr.bf16.mxu0 %v1342
    %1414 = vmatpush1.bf16.msra.mxu0 %v1341
    %1415 = vmatprep.subr.bf16.mxu0 %v1338
    %1416 = vmatpush1.bf16.msra.mxu0 %v1337
    %1417 = vmatprep.subr.bf16.mxu0 0
    %1418 = vmatpush2.bf16.msra.mxu0 0
    %1419 = vmatprep.subr.bf16.mxu0 0
    %1420 = vmatpush2.bf16.msra.mxu0 0
    %1421 = vmatprep.subr.bf16.mxu0 0
    %1422 = vmatpush2.bf16.msra.mxu0 0
    %1423 = vmatprep.subr.bf16.mxu0 0
    %1424 = vmatpush2.bf16.msra.mxu0 0
    %1425 = vmatprep.subr.bf16.mxu0 0
    %1426 = vmatpush2.bf16.msra.mxu0 0
    %1427 = vmatprep.subr.bf16.mxu0 0
    %1428 = vmatpush2.bf16.msra.mxu0 0
    %1429 = vmatprep.subr.bf16.mxu0 0
    %1430 = vmatpush2.bf16.msra.mxu0 0
    %1431 = vmatprep.subr.bf16.mxu0 0
    %1432 = vmatpush2.bf16.msra.mxu0 0
    %1433 = vmatprep.mubr.bf16.mxu0 0
    %1434 = vmatmul.mubr.bf16.gmra.mxu0 %v1240
    %v1435 = vpop.f32.mrf.mxu0
    %v1436 = vadd.f32 0.0, %v1435
    %v1437 = vpop.f32.mrf.mxu0
    %v1438 = vadd.f32 0.0, %v1437
    %v1439 = vpop.f32.mrf.mxu0
    %v1440 = vpop.f32.mrf.mxu0
    %1441 = vdwg.mxu0
    %1442 = vmatprep.subr.bf16.mxu0 %v1368
    %1443 = vmatpush1.bf16.msra.mxu0 %v1367
    %1444 = vmatprep.subr.bf16.mxu0 %v1364
    %1445 = vmatpush1.bf16.msra.mxu0 %v1363
    %1446 = vmatprep.subr.bf16.mxu0 %v1360
    %1447 = vmatpush1.bf16.msra.mxu0 %v1359
    %1448 = vmatprep.subr.bf16.mxu0 %v1356
    %1449 = vmatpush1.bf16.msra.mxu0 %v1355
    %1450 = vmatprep.subr.bf16.mxu0 %v1352
    %1451 = vmatpush1.bf16.msra.mxu0 %v1351
    %1452 = vmatprep.subr.bf16.mxu0 %v1348
    %1453 = vmatpush1.bf16.msra.mxu0 %v1347
    %1454 = vmatprep.subr.bf16.mxu0 %v1344
    %1455 = vmatpush1.bf16.msra.mxu0 %v1343
    %1456 = vmatprep.subr.bf16.mxu0 %v1340
    %1457 = vmatpush1.bf16.msra.mxu0 %v1339
    %1458 = vmatprep.subr.bf16.mxu0 0
    %1459 = vmatpush2.bf16.msra.mxu0 0
    %1460 = vmatprep.subr.bf16.mxu0 0
    %1461 = vmatpush2.bf16.msra.mxu0 0
    %1462 = vmatprep.subr.bf16.mxu0 0
    %1463 = vmatpush2.bf16.msra.mxu0 0
    %1464 = vmatprep.subr.bf16.mxu0 0
    %1465 = vmatpush2.bf16.msra.mxu0 0
    %1466 = vmatprep.subr.bf16.mxu0 0
    %1467 = vmatpush2.bf16.msra.mxu0 0
    %1468 = vmatprep.subr.bf16.mxu0 0
    %1469 = vmatpush2.bf16.msra.mxu0 0
    %1470 = vmatprep.subr.bf16.mxu0 0
    %1471 = vmatpush2.bf16.msra.mxu0 0
    %1472 = vmatprep.subr.bf16.mxu0 0
    %1473 = vmatpush2.bf16.msra.mxu0 0
    %1474 = vmatprep.mubr.bf16.mxu0 0
    %1475 = vmatmul.mubr.bf16.gmra.mxu0 %v1240
    %v1476 = vpop.f32.mrf.mxu0
    %v1477 = vadd.f32 0.0, %v1476
    %v1478 = vpop.f32.mrf.mxu0
    %v1479 = vadd.f32 0.0, %v1478
    %v1480 = vpop.f32.mrf.mxu0
    %v1481 = vpop.f32.mrf.mxu0
    %1482 = vdwg.mxu0
    %v1483 = vadd.f32 %v1235, %v1436
    %v1484 = vadd.f32 %v1236, %v1438
    %v1485 = vadd.f32 %v1237, %v1477
    %v1486 = vadd.f32 %v1238, %v1479
    %v1487 = vxor.u32 %v1483, 2147483648
    %v1488 = vmul.f32 %v1487, 1.442695
    %v1489 = vpow.pop %v1488
    %v1490 = vadd.f32 %v1489, 1.0
    %v1491 = vrcp.pop %v1490
    %v1492 = vmul.f32 1.0, %v1491
    %v1493 = vxor.u32 %v1484, 2147483648
    %v1494 = vmul.f32 %v1493, 1.442695
    %v1495 = vpow.pop %v1494
    %v1496 = vadd.f32 %v1495, 1.0
    %v1497 = vrcp.pop %v1496
    %v1498 = vmul.f32 1.0, %v1497
    %v1499 = vtanh.pop %v1485
    %v1500 = vxor.u32 %v1486, 2147483648
    %v1501 = vmul.f32 %v1500, 1.442695
    %v1502 = vpow.pop %v1501
    %v1503 = vadd.f32 %v1502, 1.0
    %v1504 = vrcp.pop %v1503
    %v1505 = vmul.f32 1.0, %v1504
    %v1506 = vld [vmem:[%s868] sm:$0xff]
    %v1507 = vmul.f32 %v1498, %v1506
    %v1508 = vmul.f32 %v1492, %v1499
    %v1509 = vadd.f32 %v1507, %v1508
    %v1510 = vtanh.pop %v1509
    %v1511 = vmul.f32 %v1505, %v1510
    %1512 = vst [vmem:[%s868] sm:$0xff] %v1509
    %1513 = vst [vmem:[%s866] sm:$0xff] %v1511
    %v1514 = vpack.c.bf16 %v1511, %v1511
    %s1515 = sadd.s32 %s1227, 8
    %s1516 = smul.addr %s1515, 4
    %s1517 = scalar_lea.vmem %s4, %s1516
    %1518 = vst [vmem:[%s1517] sm:$0xf] %v1514
    %s1519 = smul.u32 0, 10
    %s1520 = sadd.s32 %s1519, 1
    %s1521 = smul.u32 %s1520, 8
    %s1522 = sshra.s32 %s1521, 3
    %s1523 = sand.u32 %s1521, 7
    %s1524 = smul.u32 %s1522, 4
    %s1525 = smul.addr %s1524, 8
    %s1526 = scalar_lea.vmem [#allocation2], %s1525
    %v1527 = vld [vmem:[%s1526] sm:$0xff]
    %v1528 = vld [vmem:[%s1526 + $0x8] sm:$0xff]
    %v1529 = vld [vmem:[%s1526 + $0x10] sm:$0xff]
    %v1530 = vld [vmem:[%s1526 + $0x18] sm:$0xff]
    %v1531 = vld [vmem:[#allocation3] sm:$0xff]
    %v1532 = vpack.c.bf16 %v1531, %v1531
    %1533 = vmatprep.subr.bf16.mxu0 %v1073
    %1534 = vmatpush1.bf16.msra.mxu0 %v1072
    %1535 = vmatprep.subr.bf16.mxu0 %v1069
    %1536 = vmatpush1.bf16.msra.mxu0 %v1068
    %1537 = vmatprep.subr.bf16.mxu0 %v1065
    %1538 = vmatpush1.bf16.msra.mxu0 %v1064
    %1539 = vmatprep.subr.bf16.mxu0 %v1061
    %1540 = vmatpush1.bf16.msra.mxu0 %v1060
    %1541 = vmatprep.subr.bf16.mxu0 %v1057
    %1542 = vmatpush1.bf16.msra.mxu0 %v1056
    %1543 = vmatprep.subr.bf16.mxu0 %v1053
    %1544 = vmatpush1.bf16.msra.mxu0 %v1052
    %1545 = vmatprep.subr.bf16.mxu0 %v1049
    %1546 = vmatpush1.bf16.msra.mxu0 %v1048
    %1547 = vmatprep.subr.bf16.mxu0 %v1045
    %1548 = vmatpush1.bf16.msra.mxu0 %v1044
    %1549 = vmatprep.subr.bf16.mxu0 0
    %1550 = vmatpush2.bf16.msra.mxu0 0
    %1551 = vmatprep.subr.bf16.mxu0 0
    %1552 = vmatpush2.bf16.msra.mxu0 0
    %1553 = vmatprep.subr.bf16.mxu0 0
    %1554 = vmatpush2.bf16.msra.mxu0 0
    %1555 = vmatprep.subr.bf16.mxu0 0
    %1556 = vmatpush2.bf16.msra.mxu0 0
    %1557 = vmatprep.subr.bf16.mxu0 0
    %1558 = vmatpush2.bf16.msra.mxu0 0
    %1559 = vmatprep.subr.bf16.mxu0 0
    %1560 = vmatpush2.bf16.msra.mxu0 0
    %1561 = vmatprep.subr.bf16.mxu0 0
    %1562 = vmatpush2.bf16.msra.mxu0 0
    %1563 = vmatprep.subr.bf16.mxu0 0
    %1564 = vmatpush2.bf16.msra.mxu0 0
    %1565 = vmatprep.mubr.bf16.mxu0 0
    %1566 = vmatmul.mubr.bf16.gmra.mxu0 %v1532
    %v1567 = vpop.f32.mrf.mxu0
    %v1568 = vadd.f32 0.0, %v1567
    %v1569 = vpop.f32.mrf.mxu0
    %v1570 = vadd.f32 0.0, %v1569
    %v1571 = vpop.f32.mrf.mxu0
    %v1572 = vpop.f32.mrf.mxu0
    %1573 = vdwg.mxu0
    %1574 = vmatprep.subr.bf16.mxu0 %v1075
    %1575 = vmatpush1.bf16.msra.mxu0 %v1074
    %1576 = vmatprep.subr.bf16.mxu0 %v1071
    %1577 = vmatpush1.bf16.msra.mxu0 %v1070
    %1578 = vmatprep.subr.bf16.mxu0 %v1067
    %1579 = vmatpush1.bf16.msra.mxu0 %v1066
    %1580 = vmatprep.subr.bf16.mxu0 %v1063
    %1581 = vmatpush1.bf16.msra.mxu0 %v1062
    %1582 = vmatprep.subr.bf16.mxu0 %v1059
    %1583 = vmatpush1.bf16.msra.mxu0 %v1058
    %1584 = vmatprep.subr.bf16.mxu0 %v1055
    %1585 = vmatpush1.bf16.msra.mxu0 %v1054
    %1586 = vmatprep.subr.bf16.mxu0 %v1051
    %1587 = vmatpush1.bf16.msra.mxu0 %v1050
    %1588 = vmatprep.subr.bf16.mxu0 %v1047
    %1589 = vmatpush1.bf16.msra.mxu0 %v1046
    %1590 = vmatprep.subr.bf16.mxu0 0
    %1591 = vmatpush2.bf16.msra.mxu0 0
    %1592 = vmatprep.subr.bf16.mxu0 0
    %1593 = vmatpush2.bf16.msra.mxu0 0
    %1594 = vmatprep.subr.bf16.mxu0 0
    %1595 = vmatpush2.bf16.msra.mxu0 0
    %1596 = vmatprep.subr.bf16.mxu0 0
    %1597 = vmatpush2.bf16.msra.mxu0 0
    %1598 = vmatprep.subr.bf16.mxu0 0
    %1599 = vmatpush2.bf16.msra.mxu0 0
    %1600 = vmatprep.subr.bf16.mxu0 0
    %1601 = vmatpush2.bf16.msra.mxu0 0
    %1602 = vmatprep.subr.bf16.mxu0 0
    %1603 = vmatpush2.bf16.msra.mxu0 0
    %1604 = vmatprep.subr.bf16.mxu0 0
    %1605 = vmatpush2.bf16.msra.mxu0 0
    %1606 = vmatprep.mubr.bf16.mxu0 0
    %1607 = vmatmul.mubr.bf16.gmra.mxu0 %v1532
    %v1608 = vpop.f32.mrf.mxu0
    %v1609 = vadd.f32 0.0, %v1608
    %v1610 = vpop.f32.mrf.mxu0
    %v1611 = vadd.f32 0.0, %v1610
    %v1612 = vpop.f32.mrf.mxu0
    %v1613 = vpop.f32.mrf.mxu0
    %1614 = vdwg.mxu0
    %v1615 = vadd.f32 %v1527, %v1568
    %v1616 = vadd.f32 %v1528, %v1570
    %v1617 = vadd.f32 %v1529, %v1609
    %v1618 = vadd.f32 %v1530, %v1611
    %v1619 = vxor.u32 %v1615, 2147483648
    %v1620 = vmul.f32 %v1619, 1.442695
    %v1621 = vpow.pop %v1620
    %v1622 = vadd.f32 %v1621, 1.0
    %v1623 = vrcp.pop %v1622
    %v1624 = vmul.f32 1.0, %v1623
    %v1625 = vxor.u32 %v1616, 2147483648
    %v1626 = vmul.f32 %v1625, 1.442695
    %v1627 = vpow.pop %v1626
    %v1628 = vadd.f32 %v1627, 1.0
    %v1629 = vrcp.pop %v1628
    %v1630 = vmul.f32 1.0, %v1629
    %v1631 = vtanh.pop %v1617
    %v1632 = vxor.u32 %v1618, 2147483648
    %v1633 = vmul.f32 %v1632, 1.442695
    %v1634 = vpow.pop %v1633
    %v1635 = vadd.f32 %v1634, 1.0
    %v1636 = vrcp.pop %v1635
    %v1637 = vmul.f32 1.0, %v1636
    %v1638 = vld [vmem:[#allocation4] sm:$0xff]
    %v1639 = vmul.f32 %v1630, %v1638
    %v1640 = vmul.f32 %v1624, %v1631
    %v1641 = vadd.f32 %v1639, %v1640
    %v1642 = vtanh.pop %v1641
    %v1643 = vmul.f32 %v1637, %v1642
    %1644 = vst [vmem:[#allocation4] sm:$0xff] %v1641
    %1645 = vst [vmem:[#allocation3] sm:$0xff] %v1643
    %v1646 = vpack.c.bf16 %v1643, %v1643
    %s1647 = smul.addr %s1520, 4
    %s1648 = scalar_lea.vmem %s4, %s1647
    %1649 = vst [vmem:[%s1648] sm:$0xf] %v1646
    %s1650 = smul.u32 %s1226, 5
    %s1651 = sadd.s32 %s1650, 1
    %s1652 = smul.u32 %s1651, 8
    %s1653 = sadd.s32 %s1652, 64
    %s1654 = sshra.s32 %s1653, 3
    %s1655 = sand.u32 %s1653, 7
    %s1656 = smul.u32 %s1654, 4
    %s1657 = smul.addr %s1656, 8
    %s1658 = scalar_lea.vmem [#allocation2], %s1657
    %v1659 = vld [vmem:[%s1658] sm:$0xff]
    %v1660 = vld [vmem:[%s1658 + $0x8] sm:$0xff]
    %v1661 = vld [vmem:[%s1658 + $0x10] sm:$0xff]
    %v1662 = vld [vmem:[%s1658 + $0x18] sm:$0xff]
    %v1663 = vld [vmem:[%s866] sm:$0xff]
    %v1664 = vpack.c.bf16 %v1663, %v1663
    %1665 = vmatprep.subr.bf16.mxu0 %v1366
    %1666 = vmatpush1.bf16.msra.mxu0 %v1365
    %1667 = vmatprep.subr.bf16.mxu0 %v1362
    %1668 = vmatpush1.bf16.msra.mxu0 %v1361
    %1669 = vmatprep.subr.bf16.mxu0 %v1358
    %1670 = vmatpush1.bf16.msra.mxu0 %v1357
    %1671 = vmatprep.subr.bf16.mxu0 %v1354
    %1672 = vmatpush1.bf16.msra.mxu0 %v1353
    %1673 = vmatprep.subr.bf16.mxu0 %v1350
    %1674 = vmatpush1.bf16.msra.mxu0 %v1349
    %1675 = vmatprep.subr.bf16.mxu0 %v1346
    %1676 = vmatpush1.bf16.msra.mxu0 %v1345
    %1677 = vmatprep.subr.bf16.mxu0 %v1342
    %1678 = vmatpush1.bf16.msra.mxu0 %v1341
    %1679 = vmatprep.subr.bf16.mxu0 %v1338
    %1680 = vmatpush1.bf16.msra.mxu0 %v1337
    %1681 = vmatprep.subr.bf16.mxu0 0
    %1682 = vmatpush2.bf16.msra.mxu0 0
    %1683 = vmatprep.subr.bf16.mxu0 0
    %1684 = vmatpush2.bf16.msra.mxu0 0
    %1685 = vmatprep.subr.bf16.mxu0 0
    %1686 = vmatpush2.bf16.msra.mxu0 0
    %1687 = vmatprep.subr.bf16.mxu0 0
    %1688 = vmatpush2.bf16.msra.mxu0 0
    %1689 = vmatprep.subr.bf16.mxu0 0
    %1690 = vmatpush2.bf16.msra.mxu0 0
    %1691 = vmatprep.subr.bf16.mxu0 0
    %1692 = vmatpush2.bf16.msra.mxu0 0
    %1693 = vmatprep.subr.bf16.mxu0 0
    %1694 = vmatpush2.bf16.msra.mxu0 0
    %1695 = vmatprep.subr.bf16.mxu0 0
    %1696 = vmatpush2.bf16.msra.mxu0 0
    %1697 = vmatprep.mubr.bf16.mxu0 0
    %1698 = vmatmul.mubr.bf16.gmra.mxu0 %v1664
    %v1699 = vpop.f32.mrf.mxu0
    %v1700 = vadd.f32 0.0, %v1699
    %v1701 = vpop.f32.mrf.mxu0
    %v1702 = vadd.f32 0.0, %v1701
    %v1703 = vpop.f32.mrf.mxu0
    %v1704 = vpop.f32.mrf.mxu0
    %1705 = vdwg.mxu0
    %1706 = vmatprep.subr.bf16.mxu0 %v1368
    %1707 = vmatpush1.bf16.msra.mxu0 %v1367
    %1708 = vmatprep.subr.bf16.mxu0 %v1364
    %1709 = vmatpush1.bf16.msra.mxu0 %v1363
    %1710 = vmatprep.subr.bf16.mxu0 %v1360
    %1711 = vmatpush1.bf16.msra.mxu0 %v1359
    %1712 = vmatprep.subr.bf16.mxu0 %v1356
    %1713 = vmatpush1.bf16.msra.mxu0 %v1355
    %1714 = vmatprep.subr.bf16.mxu0 %v1352
    %1715 = vmatpush1.bf16.msra.mxu0 %v1351
    %1716 = vmatprep.subr.bf16.mxu0 %v1348
    %1717 = vmatpush1.bf16.msra.mxu0 %v1347
    %1718 = vmatprep.subr.bf16.mxu0 %v1344
    %1719 = vmatpush1.bf16.msra.mxu0 %v1343
    %1720 = vmatprep.subr.bf16.mxu0 %v1340
    %1721 = vmatpush1.bf16.msra.mxu0 %v1339
    %1722 = vmatprep.subr.bf16.mxu0 0
    %1723 = vmatpush2.bf16.msra.mxu0 0
    %1724 = vmatprep.subr.bf16.mxu0 0
    %1725 = vmatpush2.bf16.msra.mxu0 0
    %1726 = vmatprep.subr.bf16.mxu0 0
    %1727 = vmatpush2.bf16.msra.mxu0 0
    %1728 = vmatprep.subr.bf16.mxu0 0
    %1729 = vmatpush2.bf16.msra.mxu0 0
    %1730 = vmatprep.subr.bf16.mxu0 0
    %1731 = vmatpush2.bf16.msra.mxu0 0
    %1732 = vmatprep.subr.bf16.mxu0 0
    %1733 = vmatpush2.bf16.msra.mxu0 0
    %1734 = vmatprep.subr.bf16.mxu0 0
    %1735 = vmatpush2.bf16.msra.mxu0 0
    %1736 = vmatprep.subr.bf16.mxu0 0
    %1737 = vmatpush2.bf16.msra.mxu0 0
    %1738 = vmatprep.mubr.bf16.mxu0 0
    %1739 = vmatmul.mubr.bf16.gmra.mxu0 %v1664
    %v1740 = vpop.f32.mrf.mxu0
    %v1741 = vadd.f32 0.0, %v1740
    %v1742 = vpop.f32.mrf.mxu0
    %v1743 = vadd.f32 0.0, %v1742
    %v1744 = vpop.f32.mrf.mxu0
    %v1745 = vpop.f32.mrf.mxu0
    %1746 = vdwg.mxu0
    %v1747 = vadd.f32 %v1659, %v1700
    %v1748 = vadd.f32 %v1660, %v1702
    %v1749 = vadd.f32 %v1661, %v1741
    %v1750 = vadd.f32 %v1662, %v1743
    %v1751 = vxor.u32 %v1747, 2147483648
    %v1752 = vmul.f32 %v1751, 1.442695
    %v1753 = vpow.pop %v1752
    %v1754 = vadd.f32 %v1753, 1.0
    %v1755 = vrcp.pop %v1754
    %v1756 = vmul.f32 1.0, %v1755
    %v1757 = vxor.u32 %v1748, 2147483648
    %v1758 = vmul.f32 %v1757, 1.442695
    %v1759 = vpow.pop %v1758
    %v1760 = vadd.f32 %v1759, 1.0
    %v1761 = vrcp.pop %v1760
    %v1762 = vmul.f32 1.0, %v1761
    %v1763 = vtanh.pop %v1749
    %v1764 = vxor.u32 %v1750, 2147483648
    %v1765 = vmul.f32 %v1764, 1.442695
    %v1766 = vpow.pop %v1765
    %v1767 = vadd.f32 %v1766, 1.0
    %v1768 = vrcp.pop %v1767
    %v1769 = vmul.f32 1.0, %v1768
    %v1770 = vld [vmem:[%s868] sm:$0xff]
    %v1771 = vmul.f32 %v1762, %v1770
    %v1772 = vmul.f32 %v1756, %v1763
    %v1773 = vadd.f32 %v1771, %v1772
    %v1774 = vtanh.pop %v1773
    %v1775 = vmul.f32 %v1769, %v1774
    %1776 = vst [vmem:[%s868] sm:$0xff] %v1773
    %1777 = vst [vmem:[%s866] sm:$0xff] %v1775
    %v1778 = vpack.c.bf16 %v1775, %v1775
    %s1779 = sadd.s32 %s1651, 8
    %s1780 = smul.addr %s1779, 4
    %s1781 = scalar_lea.vmem %s4, %s1780
    %1782 = vst [vmem:[%s1781] sm:$0xf] %v1778
    %s1783 = smul.u32 0, 6
    %s1784 = sadd.s32 %s1783, 2
    %s1785 = smul.u32 %s1784, 8
    %s1786 = sshra.s32 %s1785, 3
    %s1787 = sand.u32 %s1785, 7
    %s1788 = smul.u32 %s1786, 4
    %s1789 = smul.addr %s1788, 8
    %s1790 = scalar_lea.vmem [#allocation2], %s1789
    %v1791 = vld [vmem:[%s1790] sm:$0xff]
    %v1792 = vld [vmem:[%s1790 + $0x8] sm:$0xff]
    %v1793 = vld [vmem:[%s1790 + $0x10] sm:$0xff]
    %v1794 = vld [vmem:[%s1790 + $0x18] sm:$0xff]
    %v1795 = vld [vmem:[#allocation3] sm:$0xff]
    %v1796 = vpack.c.bf16 %v1795, %v1795
    %1797 = vmatprep.subr.bf16.mxu0 %v1073
    %1798 = vmatpush1.bf16.msra.mxu0 %v1072
    %1799 = vmatprep.subr.bf16.mxu0 %v1069
    %1800 = vmatpush1.bf16.msra.mxu0 %v1068
    %1801 = vmatprep.subr.bf16.mxu0 %v1065
    %1802 = vmatpush1.bf16.msra.mxu0 %v1064
    %1803 = vmatprep.subr.bf16.mxu0 %v1061
    %1804 = vmatpush1.bf16.msra.mxu0 %v1060
    %1805 = vmatprep.subr.bf16.mxu0 %v1057
    %1806 = vmatpush1.bf16.msra.mxu0 %v1056
    %1807 = vmatprep.subr.bf16.mxu0 %v1053
    %1808 = vmatpush1.bf16.msra.mxu0 %v1052
    %1809 = vmatprep.subr.bf16.mxu0 %v1049
    %1810 = vmatpush1.bf16.msra.mxu0 %v1048
    %1811 = vmatprep.subr.bf16.mxu0 %v1045
    %1812 = vmatpush1.bf16.msra.mxu0 %v1044
    %1813 = vmatprep.subr.bf16.mxu0 0
    %1814 = vmatpush2.bf16.msra.mxu0 0
    %1815 = vmatprep.subr.bf16.mxu0 0
    %1816 = vmatpush2.bf16.msra.mxu0 0
    %1817 = vmatprep.subr.bf16.mxu0 0
    %1818 = vmatpush2.bf16.msra.mxu0 0
    %1819 = vmatprep.subr.bf16.mxu0 0
    %1820 = vmatpush2.bf16.msra.mxu0 0
    %1821 = vmatprep.subr.bf16.mxu0 0
    %1822 = vmatpush2.bf16.msra.mxu0 0
    %1823 = vmatprep.subr.bf16.mxu0 0
    %1824 = vmatpush2.bf16.msra.mxu0 0
    %1825 = vmatprep.subr.bf16.mxu0 0
    %1826 = vmatpush2.bf16.msra.mxu0 0
    %1827 = vmatprep.subr.bf16.mxu0 0
    %1828 = vmatpush2.bf16.msra.mxu0 0
    %1829 = vmatprep.mubr.bf16.mxu0 0
    %1830 = vmatmul.mubr.bf16.gmra.mxu0 %v1796
    %v1831 = vpop.f32.mrf.mxu0
    %v1832 = vadd.f32 0.0, %v1831
    %v1833 = vpop.f32.mrf.mxu0
    %v1834 = vadd.f32 0.0, %v1833
    %v1835 = vpop.f32.mrf.mxu0
    %v1836 = vpop.f32.mrf.mxu0
    %1837 = vdwg.mxu0
    %1838 = vmatprep.subr.bf16.mxu0 %v1075
    %1839 = vmatpush1.bf16.msra.mxu0 %v1074
    %1840 = vmatprep.subr.bf16.mxu0 %v1071
    %1841 = vmatpush1.bf16.msra.mxu0 %v1070
    %1842 = vmatprep.subr.bf16.mxu0 %v1067
    %1843 = vmatpush1.bf16.msra.mxu0 %v1066
    %1844 = vmatprep.subr.bf16.mxu0 %v1063
    %1845 = vmatpush1.bf16.msra.mxu0 %v1062
    %1846 = vmatprep.subr.bf16.mxu0 %v1059
    %1847 = vmatpush1.bf16.msra.mxu0 %v1058
    %1848 = vmatprep.subr.bf16.mxu0 %v1055
    %1849 = vmatpush1.bf16.msra.mxu0 %v1054
    %1850 = vmatprep.subr.bf16.mxu0 %v1051
    %1851 = vmatpush1.bf16.msra.mxu0 %v1050
    %1852 = vmatprep.subr.bf16.mxu0 %v1047
    %1853 = vmatpush1.bf16.msra.mxu0 %v1046
    %1854 = vmatprep.subr.bf16.mxu0 0
    %1855 = vmatpush2.bf16.msra.mxu0 0
    %1856 = vmatprep.subr.bf16.mxu0 0
    %1857 = vmatpush2.bf16.msra.mxu0 0
    %1858 = vmatprep.subr.bf16.mxu0 0
    %1859 = vmatpush2.bf16.msra.mxu0 0
    %1860 = vmatprep.subr.bf16.mxu0 0
    %1861 = vmatpush2.bf16.msra.mxu0 0
    %1862 = vmatprep.subr.bf16.mxu0 0
    %1863 = vmatpush2.bf16.msra.mxu0 0
    %1864 = vmatprep.subr.bf16.mxu0 0
    %1865 = vmatpush2.bf16.msra.mxu0 0
    %1866 = vmatprep.subr.bf16.mxu0 0
    %1867 = vmatpush2.bf16.msra.mxu0 0
    %1868 = vmatprep.subr.bf16.mxu0 0
    %1869 = vmatpush2.bf16.msra.mxu0 0
    %1870 = vmatprep.mubr.bf16.mxu0 0
    %1871 = vmatmul.mubr.bf16.gmra.mxu0 %v1796
    %v1872 = vpop.f32.mrf.mxu0
    %v1873 = vadd.f32 0.0, %v1872
    %v1874 = vpop.f32.mrf.mxu0
    %v1875 = vadd.f32 0.0, %v1874
    %v1876 = vpop.f32.mrf.mxu0
    %v1877 = vpop.f32.mrf.mxu0
    %1878 = vdwg.mxu0
    %v1879 = vadd.f32 %v1791, %v1832
    %v1880 = vadd.f32 %v1792, %v1834
    %v1881 = vadd.f32 %v1793, %v1873
    %v1882 = vadd.f32 %v1794, %v1875
    %v1883 = vxor.u32 %v1879, 2147483648
    %v1884 = vmul.f32 %v1883, 1.442695
    %v1885 = vpow.pop %v1884
    %v1886 = vadd.f32 %v1885, 1.0
    %v1887 = vrcp.pop %v1886
    %v1888 = vmul.f32 1.0, %v1887
    %v1889 = vxor.u32 %v1880, 2147483648
    %v1890 = vmul.f32 %v1889, 1.442695
    %v1891 = vpow.pop %v1890
    %v1892 = vadd.f32 %v1891, 1.0
    %v1893 = vrcp.pop %v1892
    %v1894 = vmul.f32 1.0, %v1893
    %v1895 = vtanh.pop %v1881
    %v1896 = vxor.u32 %v1882, 2147483648
    %v1897 = vmul.f32 %v1896, 1.442695
    %v1898 = vpow.pop %v1897
    %v1899 = vadd.f32 %v1898, 1.0
    %v1900 = vrcp.pop %v1899
    %v1901 = vmul.f32 1.0, %v1900
    %v1902 = vld [vmem:[#allocation4] sm:$0xff]
    %v1903 = vmul.f32 %v1894, %v1902
    %v1904 = vmul.f32 %v1888, %v1895
    %v1905 = vadd.f32 %v1903, %v1904
    %v1906 = vtanh.pop %v1905
    %v1907 = vmul.f32 %v1901, %v1906
    %1908 = vst [vmem:[#allocation4] sm:$0xff] %v1905
    %1909 = vst [vmem:[#allocation3] sm:$0xff] %v1907
    %v1910 = vpack.c.bf16 %v1907, %v1907
    %s1911 = smul.addr %s1784, 4
    %s1912 = scalar_lea.vmem %s4, %s1911
    %1913 = vst [vmem:[%s1912] sm:$0xf] %v1910
    %s1914 = smul.u32 %s1226, 3
    %s1915 = sadd.s32 %s1914, 2
    %s1916 = smul.u32 %s1915, 8
    %s1917 = sadd.s32 %s1916, 64
    %s1918 = sshra.s32 %s1917, 3
    %s1919 = sand.u32 %s1917, 7
    %s1920 = smul.u32 %s1918, 4
    %s1921 = smul.addr %s1920, 8
    %s1922 = scalar_lea.vmem [#allocation2], %s1921
    %v1923 = vld [vmem:[%s1922] sm:$0xff]
    %v1924 = vld [vmem:[%s1922 + $0x8] sm:$0xff]
    %v1925 = vld [vmem:[%s1922 + $0x10] sm:$0xff]
    %v1926 = vld [vmem:[%s1922 + $0x18] sm:$0xff]
    %v1927 = vld [vmem:[%s866] sm:$0xff]
    %v1928 = vpack.c.bf16 %v1927, %v1927
    %1929 = vmatprep.subr.bf16.mxu0 %v1366
    %1930 = vmatpush1.bf16.msra.mxu0 %v1365
    %1931 = vmatprep.subr.bf16.mxu0 %v1362
    %1932 = vmatpush1.bf16.msra.mxu0 %v1361
    %1933 = vmatprep.subr.bf16.mxu0 %v1358
    %1934 = vmatpush1.bf16.msra.mxu0 %v1357
    %1935 = vmatprep.subr.bf16.mxu0 %v1354
    %1936 = vmatpush1.bf16.msra.mxu0 %v1353
    %1937 = vmatprep.subr.bf16.mxu0 %v1350
    %1938 = vmatpush1.bf16.msra.mxu0 %v1349
    %1939 = vmatprep.subr.bf16.mxu0 %v1346
    %1940 = vmatpush1.bf16.msra.mxu0 %v1345
    %1941 = vmatprep.subr.bf16.mxu0 %v1342
    %1942 = vmatpush1.bf16.msra.mxu0 %v1341
    %1943 = vmatprep.subr.bf16.mxu0 %v1338
    %1944 = vmatpush1.bf16.msra.mxu0 %v1337
    %1945 = vmatprep.subr.bf16.mxu0 0
    %1946 = vmatpush2.bf16.msra.mxu0 0
    %1947 = vmatprep.subr.bf16.mxu0 0
    %1948 = vmatpush2.bf16.msra.mxu0 0
    %1949 = vmatprep.subr.bf16.mxu0 0
    %1950 = vmatpush2.bf16.msra.mxu0 0
    %1951 = vmatprep.subr.bf16.mxu0 0
    %1952 = vmatpush2.bf16.msra.mxu0 0
    %1953 = vmatprep.subr.bf16.mxu0 0
    %1954 = vmatpush2.bf16.msra.mxu0 0
    %1955 = vmatprep.subr.bf16.mxu0 0
    %1956 = vmatpush2.bf16.msra.mxu0 0
    %1957 = vmatprep.subr.bf16.mxu0 0
    %1958 = vmatpush2.bf16.msra.mxu0 0
    %1959 = vmatprep.subr.bf16.mxu0 0
    %1960 = vmatpush2.bf16.msra.mxu0 0
    %1961 = vmatprep.mubr.bf16.mxu0 0
    %1962 = vmatmul.mubr.bf16.gmra.mxu0 %v1928
    %v1963 = vpop.f32.mrf.mxu0
    %v1964 = vadd.f32 0.0, %v1963
    %v1965 = vpop.f32.mrf.mxu0
    %v1966 = vadd.f32 0.0, %v1965
    %v1967 = vpop.f32.mrf.mxu0
    %v1968 = vpop.f32.mrf.mxu0
    %1969 = vdwg.mxu0
    %1970 = vmatprep.subr.bf16.mxu0 %v1368
    %1971 = vmatpush1.bf16.msra.mxu0 %v1367
    %1972 = vmatprep.subr.bf16.mxu0 %v1364
    %1973 = vmatpush1.bf16.msra.mxu0 %v1363
    %1974 = vmatprep.subr.bf16.mxu0 %v1360
    %1975 = vmatpush1.bf16.msra.mxu0 %v1359
    %1976 = vmatprep.subr.bf16.mxu0 %v1356
    %1977 = vmatpush1.bf16.msra.mxu0 %v1355
    %1978 = vmatprep.subr.bf16.mxu0 %v1352
    %1979 = vmatpush1.bf16.msra.mxu0 %v1351
    %1980 = vmatprep.subr.bf16.mxu0 %v1348
    %1981 = vmatpush1.bf16.msra.mxu0 %v1347
    %1982 = vmatprep.subr.bf16.mxu0 %v1344
    %1983 = vmatpush1.bf16.msra.mxu0 %v1343
    %1984 = vmatprep.subr.bf16.mxu0 %v1340
    %1985 = vmatpush1.bf16.msra.mxu0 %v1339
    %1986 = vmatprep.subr.bf16.mxu0 0
    %1987 = vmatpush2.bf16.msra.mxu0 0
    %1988 = vmatprep.subr.bf16.mxu0 0
    %1989 = vmatpush2.bf16.msra.mxu0 0
    %1990 = vmatprep.subr.bf16.mxu0 0
    %1991 = vmatpush2.bf16.msra.mxu0 0
    %1992 = vmatprep.subr.bf16.mxu0 0
    %1993 = vmatpush2.bf16.msra.mxu0 0
    %1994 = vmatprep.subr.bf16.mxu0 0
    %1995 = vmatpush2.bf16.msra.mxu0 0
    %1996 = vmatprep.subr.bf16.mxu0 0
    %1997 = vmatpush2.bf16.msra.mxu0 0
    %1998 = vmatprep.subr.bf16.mxu0 0
    %1999 = vmatpush2.bf16.msra.mxu0 0
    %2000 = vmatprep.subr.bf16.mxu0 0
    %2001 = vmatpush2.bf16.msra.mxu0 0
    %2002 = vmatprep.mubr.bf16.mxu0 0
    %2003 = vmatmul.mubr.bf16.gmra.mxu0 %v1928
    %v2004 = vpop.f32.mrf.mxu0
    %v2005 = vadd.f32 0.0, %v2004
    %v2006 = vpop.f32.mrf.mxu0
    %v2007 = vadd.f32 0.0, %v2006
    %v2008 = vpop.f32.mrf.mxu0
    %v2009 = vpop.f32.mrf.mxu0
    %2010 = vdwg.mxu0
    %v2011 = vadd.f32 %v1923, %v1964
    %v2012 = vadd.f32 %v1924, %v1966
    %v2013 = vadd.f32 %v1925, %v2005
    %v2014 = vadd.f32 %v1926, %v2007
    %v2015 = vxor.u32 %v2011, 2147483648
    %v2016 = vmul.f32 %v2015, 1.442695
    %v2017 = vpow.pop %v2016
    %v2018 = vadd.f32 %v2017, 1.0
    %v2019 = vrcp.pop %v2018
    %v2020 = vmul.f32 1.0, %v2019
    %v2021 = vxor.u32 %v2012, 2147483648
    %v2022 = vmul.f32 %v2021, 1.442695
    %v2023 = vpow.pop %v2022
    %v2024 = vadd.f32 %v2023, 1.0
    %v2025 = vrcp.pop %v2024
    %v2026 = vmul.f32 1.0, %v2025
    %v2027 = vtanh.pop %v2013
    %v2028 = vxor.u32 %v2014, 2147483648
    %v2029 = vmul.f32 %v2028, 1.442695
    %v2030 = vpow.pop %v2029
    %v2031 = vadd.f32 %v2030, 1.0
    %v2032 = vrcp.pop %v2031
    %v2033 = vmul.f32 1.0, %v2032
    %v2034 = vld [vmem:[%s868] sm:$0xff]
    %v2035 = vmul.f32 %v2026, %v2034
    %v2036 = vmul.f32 %v2020, %v2027
    %v2037 = vadd.f32 %v2035, %v2036
    %v2038 = vtanh.pop %v2037
    %v2039 = vmul.f32 %v2033, %v2038
    %2040 = vst [vmem:[%s868] sm:$0xff] %v2037
    %2041 = vst [vmem:[%s866] sm:$0xff] %v2039
    %v2042 = vpack.c.bf16 %v2039, %v2039
    %s2043 = sadd.s32 %s1915, 8
    %s2044 = smul.addr %s2043, 4
    %s2045 = scalar_lea.vmem %s4, %s2044
    %2046 = vst [vmem:[%s2045] sm:$0xf] %v2042
    %s2047 = sadd.s32 %s1225, 3
    %s2048 = smul.u32 %s2047, 8
    %s2049 = sshra.s32 %s2048, 3
    %s2050 = sand.u32 %s2048, 7
    %s2051 = smul.u32 %s2049, 4
    %s2052 = smul.addr %s2051, 8
    %s2053 = scalar_lea.vmem [#allocation2], %s2052
    %v2054 = vld [vmem:[%s2053] sm:$0xff]
    %v2055 = vld [vmem:[%s2053 + $0x8] sm:$0xff]
    %v2056 = vld [vmem:[%s2053 + $0x10] sm:$0xff]
    %v2057 = vld [vmem:[%s2053 + $0x18] sm:$0xff]
    %v2058 = vld [vmem:[#allocation3] sm:$0xff]
    %v2059 = vpack.c.bf16 %v2058, %v2058
    %2060 = vmatprep.subr.bf16.mxu0 %v1073
    %2061 = vmatpush1.bf16.msra.mxu0 %v1072
    %2062 = vmatprep.subr.bf16.mxu0 %v1069
    %2063 = vmatpush1.bf16.msra.mxu0 %v1068
    %2064 = vmatprep.subr.bf16.mxu0 %v1065
    %2065 = vmatpush1.bf16.msra.mxu0 %v1064
    %2066 = vmatprep.subr.bf16.mxu0 %v1061
    %2067 = vmatpush1.bf16.msra.mxu0 %v1060
    %2068 = vmatprep.subr.bf16.mxu0 %v1057
    %2069 = vmatpush1.bf16.msra.mxu0 %v1056
    %2070 = vmatprep.subr.bf16.mxu0 %v1053
    %2071 = vmatpush1.bf16.msra.mxu0 %v1052
    %2072 = vmatprep.subr.bf16.mxu0 %v1049
    %2073 = vmatpush1.bf16.msra.mxu0 %v1048
    %2074 = vmatprep.subr.bf16.mxu0 %v1045
    %2075 = vmatpush1.bf16.msra.mxu0 %v1044
    %2076 = vmatprep.subr.bf16.mxu0 0
    %2077 = vmatpush2.bf16.msra.mxu0 0
    %2078 = vmatprep.subr.bf16.mxu0 0
    %2079 = vmatpush2.bf16.msra.mxu0 0
    %2080 = vmatprep.subr.bf16.mxu0 0
    %2081 = vmatpush2.bf16.msra.mxu0 0
    %2082 = vmatprep.subr.bf16.mxu0 0
    %2083 = vmatpush2.bf16.msra.mxu0 0
    %2084 = vmatprep.subr.bf16.mxu0 0
    %2085 = vmatpush2.bf16.msra.mxu0 0
    %2086 = vmatprep.subr.bf16.mxu0 0
    %2087 = vmatpush2.bf16.msra.mxu0 0
    %2088 = vmatprep.subr.bf16.mxu0 0
    %2089 = vmatpush2.bf16.msra.mxu0 0
    %2090 = vmatprep.subr.bf16.mxu0 0
    %2091 = vmatpush2.bf16.msra.mxu0 0
    %2092 = vmatprep.mubr.bf16.mxu0 0
    %2093 = vmatmul.mubr.bf16.gmra.mxu0 %v2059
    %v2094 = vpop.f32.mrf.mxu0
    %v2095 = vadd.f32 0.0, %v2094
    %v2096 = vpop.f32.mrf.mxu0
    %v2097 = vadd.f32 0.0, %v2096
    %v2098 = vpop.f32.mrf.mxu0
    %v2099 = vpop.f32.mrf.mxu0
    %2100 = vdwg.mxu0
    %2101 = vmatprep.subr.bf16.mxu0 %v1075
    %2102 = vmatpush1.bf16.msra.mxu0 %v1074
    %2103 = vmatprep.subr.bf16.mxu0 %v1071
    %2104 = vmatpush1.bf16.msra.mxu0 %v1070
    %2105 = vmatprep.subr.bf16.mxu0 %v1067
    %2106 = vmatpush1.bf16.msra.mxu0 %v1066
    %2107 = vmatprep.subr.bf16.mxu0 %v1063
    %2108 = vmatpush1.bf16.msra.mxu0 %v1062
    %2109 = vmatprep.subr.bf16.mxu0 %v1059
    %2110 = vmatpush1.bf16.msra.mxu0 %v1058
    %2111 = vmatprep.subr.bf16.mxu0 %v1055
    %2112 = vmatpush1.bf16.msra.mxu0 %v1054
    %2113 = vmatprep.subr.bf16.mxu0 %v1051
    %2114 = vmatpush1.bf16.msra.mxu0 %v1050
    %2115 = vmatprep.subr.bf16.mxu0 %v1047
    %2116 = vmatpush1.bf16.msra.mxu0 %v1046
    %2117 = vmatprep.subr.bf16.mxu0 0
    %2118 = vmatpush2.bf16.msra.mxu0 0
    %2119 = vmatprep.subr.bf16.mxu0 0
    %2120 = vmatpush2.bf16.msra.mxu0 0
    %2121 = vmatprep.subr.bf16.mxu0 0
    %2122 = vmatpush2.bf16.msra.mxu0 0
    %2123 = vmatprep.subr.bf16.mxu0 0
    %2124 = vmatpush2.bf16.msra.mxu0 0
    %2125 = vmatprep.subr.bf16.mxu0 0
    %2126 = vmatpush2.bf16.msra.mxu0 0
    %2127 = vmatprep.subr.bf16.mxu0 0
    %2128 = vmatpush2.bf16.msra.mxu0 0
    %2129 = vmatprep.subr.bf16.mxu0 0
    %2130 = vmatpush2.bf16.msra.mxu0 0
    %2131 = vmatprep.subr.bf16.mxu0 0
    %2132 = vmatpush2.bf16.msra.mxu0 0
    %2133 = vmatprep.mubr.bf16.mxu0 0
    %2134 = vmatmul.mubr.bf16.gmra.mxu0 %v2059
    %v2135 = vpop.f32.mrf.mxu0
    %v2136 = vadd.f32 0.0, %v2135
    %v2137 = vpop.f32.mrf.mxu0
    %v2138 = vadd.f32 0.0, %v2137
    %v2139 = vpop.f32.mrf.mxu0
    %v2140 = vpop.f32.mrf.mxu0
    %2141 = vdwg.mxu0
    %v2142 = vadd.f32 %v2054, %v2095
    %v2143 = vadd.f32 %v2055, %v2097
    %v2144 = vadd.f32 %v2056, %v2136
    %v2145 = vadd.f32 %v2057, %v2138
    %v2146 = vxor.u32 %v2142, 2147483648
    %v2147 = vmul.f32 %v2146, 1.442695
    %v2148 = vpow.pop %v2147
    %v2149 = vadd.f32 %v2148, 1.0
    %v2150 = vrcp.pop %v2149
    %v2151 = vmul.f32 1.0, %v2150
    %v2152 = vxor.u32 %v2143, 2147483648
    %v2153 = vmul.f32 %v2152, 1.442695
    %v2154 = vpow.pop %v2153
    %v2155 = vadd.f32 %v2154, 1.0
    %v2156 = vrcp.pop %v2155
    %v2157 = vmul.f32 1.0, %v2156
    %v2158 = vtanh.pop %v2144
    %v2159 = vxor.u32 %v2145, 2147483648
    %v2160 = vmul.f32 %v2159, 1.442695
    %v2161 = vpow.pop %v2160
    %v2162 = vadd.f32 %v2161, 1.0
    %v2163 = vrcp.pop %v2162
    %v2164 = vmul.f32 1.0, %v2163
    %v2165 = vld [vmem:[#allocation4] sm:$0xff]
    %v2166 = vmul.f32 %v2157, %v2165
    %v2167 = vmul.f32 %v2151, %v2158
    %v2168 = vadd.f32 %v2166, %v2167
    %v2169 = vtanh.pop %v2168
    %v2170 = vmul.f32 %v2164, %v2169
    %2171 = vst [vmem:[#allocation4] sm:$0xff] %v2168
    %2172 = vst [vmem:[#allocation3] sm:$0xff] %v2170
    %v2173 = vpack.c.bf16 %v2170, %v2170
    %s2174 = smul.addr %s2047, 4
    %s2175 = scalar_lea.vmem %s4, %s2174
    %2176 = vst [vmem:[%s2175] sm:$0xf] %v2173
    %s2177 = sadd.s32 %s1225, 4
    %s2178 = smul.u32 %s2177, 8
    %s2179 = sadd.s32 %s2178, 64
    %s2180 = sshra.s32 %s2179, 3
    %s2181 = sand.u32 %s2179, 7
    %s2182 = smul.u32 %s2180, 4
    %s2183 = smul.addr %s2182, 8
    %s2184 = scalar_lea.vmem [#allocation2], %s2183
    %v2185 = vld [vmem:[%s2184] sm:$0xff]
    %v2186 = vld [vmem:[%s2184 + $0x8] sm:$0xff]
    %v2187 = vld [vmem:[%s2184 + $0x10] sm:$0xff]
    %v2188 = vld [vmem:[%s2184 + $0x18] sm:$0xff]
    %v2189 = vld [vmem:[%s866] sm:$0xff]
    %v2190 = vpack.c.bf16 %v2189, %v2189
    %2191 = vmatprep.subr.bf16.mxu0 %v1366
    %2192 = vmatpush1.bf16.msra.mxu0 %v1365
    %2193 = vmatprep.subr.bf16.mxu0 %v1362
    %2194 = vmatpush1.bf16.msra.mxu0 %v1361
    %2195 = vmatprep.subr.bf16.mxu0 %v1358
    %2196 = vmatpush1.bf16.msra.mxu0 %v1357
    %2197 = vmatprep.subr.bf16.mxu0 %v1354
    %2198 = vmatpush1.bf16.msra.mxu0 %v1353
    %2199 = vmatprep.subr.bf16.mxu0 %v1350
    %2200 = vmatpush1.bf16.msra.mxu0 %v1349
    %2201 = vmatprep.subr.bf16.mxu0 %v1346
    %2202 = vmatpush1.bf16.msra.mxu0 %v1345
    %2203 = vmatprep.subr.bf16.mxu0 %v1342
    %2204 = vmatpush1.bf16.msra.mxu0 %v1341
    %2205 = vmatprep.subr.bf16.mxu0 %v1338
    %2206 = vmatpush1.bf16.msra.mxu0 %v1337
    %2207 = vmatprep.subr.bf16.mxu0 0
    %2208 = vmatpush2.bf16.msra.mxu0 0
    %2209 = vmatprep.subr.bf16.mxu0 0
    %2210 = vmatpush2.bf16.msra.mxu0 0
    %2211 = vmatprep.subr.bf16.mxu0 0
    %2212 = vmatpush2.bf16.msra.mxu0 0
    %2213 = vmatprep.subr.bf16.mxu0 0
    %2214 = vmatpush2.bf16.msra.mxu0 0
    %2215 = vmatprep.subr.bf16.mxu0 0
    %2216 = vmatpush2.bf16.msra.mxu0 0
    %2217 = vmatprep.subr.bf16.mxu0 0
    %2218 = vmatpush2.bf16.msra.mxu0 0
    %2219 = vmatprep.subr.bf16.mxu0 0
    %2220 = vmatpush2.bf16.msra.mxu0 0
    %2221 = vmatprep.subr.bf16.mxu0 0
    %2222 = vmatpush2.bf16.msra.mxu0 0
    %2223 = vmatprep.mubr.bf16.mxu0 0
    %2224 = vmatmul.mubr.bf16.gmra.mxu0 %v2190
    %v2225 = vpop.f32.mrf.mxu0
    %v2226 = vadd.f32 0.0, %v2225
    %v2227 = vpop.f32.mrf.mxu0
    %v2228 = vadd.f32 0.0, %v2227
    %v2229 = vpop.f32.mrf.mxu0
    %v2230 = vpop.f32.mrf.mxu0
    %2231 = vdwg.mxu0
    %2232 = vmatprep.subr.bf16.mxu0 %v1368
    %2233 = vmatpush1.bf16.msra.mxu0 %v1367
    %2234 = vmatprep.subr.bf16.mxu0 %v1364
    %2235 = vmatpush1.bf16.msra.mxu0 %v1363
    %2236 = vmatprep.subr.bf16.mxu0 %v1360
    %2237 = vmatpush1.bf16.msra.mxu0 %v1359
    %2238 = vmatprep.subr.bf16.mxu0 %v1356
    %2239 = vmatpush1.bf16.msra.mxu0 %v1355
    %2240 = vmatprep.subr.bf16.mxu0 %v1352
    %2241 = vmatpush1.bf16.msra.mxu0 %v1351
    %2242 = vmatprep.subr.bf16.mxu0 %v1348
    %2243 = vmatpush1.bf16.msra.mxu0 %v1347
    %2244 = vmatprep.subr.bf16.mxu0 %v1344
    %2245 = vmatpush1.bf16.msra.mxu0 %v1343
    %2246 = vmatprep.subr.bf16.mxu0 %v1340
    %2247 = vmatpush1.bf16.msra.mxu0 %v1339
    %2248 = vmatprep.subr.bf16.mxu0 0
    %2249 = vmatpush2.bf16.msra.mxu0 0
    %2250 = vmatprep.subr.bf16.mxu0 0
    %2251 = vmatpush2.bf16.msra.mxu0 0
    %2252 = vmatprep.subr.bf16.mxu0 0
    %2253 = vmatpush2.bf16.msra.mxu0 0
    %2254 = vmatprep.subr.bf16.mxu0 0
    %2255 = vmatpush2.bf16.msra.mxu0 0
    %2256 = vmatprep.subr.bf16.mxu0 0
    %2257 = vmatpush2.bf16.msra.mxu0 0
    %2258 = vmatprep.subr.bf16.mxu0 0
    %2259 = vmatpush2.bf16.msra.mxu0 0
    %2260 = vmatprep.subr.bf16.mxu0 0
    %2261 = vmatpush2.bf16.msra.mxu0 0
    %2262 = vmatprep.subr.bf16.mxu0 0
    %2263 = vmatpush2.bf16.msra.mxu0 0
    %2264 = vmatprep.mubr.bf16.mxu0 0
    %2265 = vmatmul.mubr.bf16.gmra.mxu0 %v2190
    %v2266 = vpop.f32.mrf.mxu0
    %v2267 = vadd.f32 0.0, %v2266
    %v2268 = vpop.f32.mrf.mxu0
    %v2269 = vadd.f32 0.0, %v2268
    %v2270 = vpop.f32.mrf.mxu0
    %v2271 = vpop.f32.mrf.mxu0
    %2272 = vdwg.mxu0
    %v2273 = vadd.f32 %v2185, %v2226
    %v2274 = vadd.f32 %v2186, %v2228
    %v2275 = vadd.f32 %v2187, %v2267
    %v2276 = vadd.f32 %v2188, %v2269
    %v2277 = vxor.u32 %v2273, 2147483648
    %v2278 = vmul.f32 %v2277, 1.442695
    %v2279 = vpow.pop %v2278
    %v2280 = vadd.f32 %v2279, 1.0
    %v2281 = vrcp.pop %v2280
    %v2282 = vmul.f32 1.0, %v2281
    %v2283 = vxor.u32 %v2274, 2147483648
    %v2284 = vmul.f32 %v2283, 1.442695
    %v2285 = vpow.pop %v2284
    %v2286 = vadd.f32 %v2285, 1.0
    %v2287 = vrcp.pop %v2286
    %v2288 = vmul.f32 1.0, %v2287
    %v2289 = vtanh.pop %v2275
    %v2290 = vxor.u32 %v2276, 2147483648
    %v2291 = vmul.f32 %v2290, 1.442695
    %v2292 = vpow.pop %v2291
    %v2293 = vadd.f32 %v2292, 1.0
    %v2294 = vrcp.pop %v2293
    %v2295 = vmul.f32 1.0, %v2294
    %v2296 = vld [vmem:[%s868] sm:$0xff]
    %v2297 = vmul.f32 %v2288, %v2296
    %v2298 = vmul.f32 %v2282, %v2289
    %v2299 = vadd.f32 %v2297, %v2298
    %v2300 = vtanh.pop %v2299
    %v2301 = vmul.f32 %v2295, %v2300
    %2302 = vst [vmem:[%s868] sm:$0xff] %v2299
    %2303 = vst [vmem:[%s866] sm:$0xff] %v2301
    %v2304 = vpack.c.bf16 %v2301, %v2301
    %s2305 = sadd.s32 %s2177, 8
    %s2306 = smul.addr %s2305, 4
    %s2307 = scalar_lea.vmem %s4, %s2306
    %2308 = vst [vmem:[%s2307] sm:$0xf] %v2304
    %s2309 = smul.u32 0, 4294967294
    %s2310 = sadd.s32 %s2309, 4
    %s2311 = smul.u32 %s2310, 8
    %s2312 = sshra.s32 %s2311, 3
    %s2313 = sand.u32 %s2311, 7
    %s2314 = smul.u32 %s2312, 4
    %s2315 = smul.addr %s2314, 8
    %s2316 = scalar_lea.vmem [#allocation2], %s2315
    %v2317 = vld [vmem:[%s2316] sm:$0xff]
    %v2318 = vld [vmem:[%s2316 + $0x8] sm:$0xff]
    %v2319 = vld [vmem:[%s2316 + $0x10] sm:$0xff]
    %v2320 = vld [vmem:[%s2316 + $0x18] sm:$0xff]
    %v2321 = vld [vmem:[#allocation3] sm:$0xff]
    %v2322 = vpack.c.bf16 %v2321, %v2321
    %2323 = vmatprep.subr.bf16.mxu0 %v1073
    %2324 = vmatpush1.bf16.msra.mxu0 %v1072
    %2325 = vmatprep.subr.bf16.mxu0 %v1069
    %2326 = vmatpush1.bf16.msra.mxu0 %v1068
    %2327 = vmatprep.subr.bf16.mxu0 %v1065
    %2328 = vmatpush1.bf16.msra.mxu0 %v1064
    %2329 = vmatprep.subr.bf16.mxu0 %v1061
    %2330 = vmatpush1.bf16.msra.mxu0 %v1060
    %2331 = vmatprep.subr.bf16.mxu0 %v1057
    %2332 = vmatpush1.bf16.msra.mxu0 %v1056
    %2333 = vmatprep.subr.bf16.mxu0 %v1053
    %2334 = vmatpush1.bf16.msra.mxu0 %v1052
    %2335 = vmatprep.subr.bf16.mxu0 %v1049
    %2336 = vmatpush1.bf16.msra.mxu0 %v1048
    %2337 = vmatprep.subr.bf16.mxu0 %v1045
    %2338 = vmatpush1.bf16.msra.mxu0 %v1044
    %2339 = vmatprep.subr.bf16.mxu0 0
    %2340 = vmatpush2.bf16.msra.mxu0 0
    %2341 = vmatprep.subr.bf16.mxu0 0
    %2342 = vmatpush2.bf16.msra.mxu0 0
    %2343 = vmatprep.subr.bf16.mxu0 0
    %2344 = vmatpush2.bf16.msra.mxu0 0
    %2345 = vmatprep.subr.bf16.mxu0 0
    %2346 = vmatpush2.bf16.msra.mxu0 0
    %2347 = vmatprep.subr.bf16.mxu0 0
    %2348 = vmatpush2.bf16.msra.mxu0 0
    %2349 = vmatprep.subr.bf16.mxu0 0
    %2350 = vmatpush2.bf16.msra.mxu0 0
    %2351 = vmatprep.subr.bf16.mxu0 0
    %2352 = vmatpush2.bf16.msra.mxu0 0
    %2353 = vmatprep.subr.bf16.mxu0 0
    %2354 = vmatpush2.bf16.msra.mxu0 0
    %2355 = vmatprep.mubr.bf16.mxu0 0
    %2356 = vmatmul.mubr.bf16.gmra.mxu0 %v2322
    %v2357 = vpop.f32.mrf.mxu0
    %v2358 = vadd.f32 0.0, %v2357
    %v2359 = vpop.f32.mrf.mxu0
    %v2360 = vadd.f32 0.0, %v2359
    %v2361 = vpop.f32.mrf.mxu0
    %v2362 = vpop.f32.mrf.mxu0
    %2363 = vdwg.mxu0
    %2364 = vmatprep.subr.bf16.mxu0 %v1075
    %2365 = vmatpush1.bf16.msra.mxu0 %v1074
    %2366 = vmatprep.subr.bf16.mxu0 %v1071
    %2367 = vmatpush1.bf16.msra.mxu0 %v1070
    %2368 = vmatprep.subr.bf16.mxu0 %v1067
    %2369 = vmatpush1.bf16.msra.mxu0 %v1066
    %2370 = vmatprep.subr.bf16.mxu0 %v1063
    %2371 = vmatpush1.bf16.msra.mxu0 %v1062
    %2372 = vmatprep.subr.bf16.mxu0 %v1059
    %2373 = vmatpush1.bf16.msra.mxu0 %v1058
    %2374 = vmatprep.subr.bf16.mxu0 %v1055
    %2375 = vmatpush1.bf16.msra.mxu0 %v1054
    %2376 = vmatprep.subr.bf16.mxu0 %v1051
    %2377 = vmatpush1.bf16.msra.mxu0 %v1050
    %2378 = vmatprep.subr.bf16.mxu0 %v1047
    %2379 = vmatpush1.bf16.msra.mxu0 %v1046
    %2380 = vmatprep.subr.bf16.mxu0 0
    %2381 = vmatpush2.bf16.msra.mxu0 0
    %2382 = vmatprep.subr.bf16.mxu0 0
    %2383 = vmatpush2.bf16.msra.mxu0 0
    %2384 = vmatprep.subr.bf16.mxu0 0
    %2385 = vmatpush2.bf16.msra.mxu0 0
    %2386 = vmatprep.subr.bf16.mxu0 0
    %2387 = vmatpush2.bf16.msra.mxu0 0
    %2388 = vmatprep.subr.bf16.mxu0 0
    %2389 = vmatpush2.bf16.msra.mxu0 0
    %2390 = vmatprep.subr.bf16.mxu0 0
    %2391 = vmatpush2.bf16.msra.mxu0 0
    %2392 = vmatprep.subr.bf16.mxu0 0
    %2393 = vmatpush2.bf16.msra.mxu0 0
    %2394 = vmatprep.subr.bf16.mxu0 0
    %2395 = vmatpush2.bf16.msra.mxu0 0
    %2396 = vmatprep.mubr.bf16.mxu0 0
    %2397 = vmatmul.mubr.bf16.gmra.mxu0 %v2322
    %v2398 = vpop.f32.mrf.mxu0
    %v2399 = vadd.f32 0.0, %v2398
    %v2400 = vpop.f32.mrf.mxu0
    %v2401 = vadd.f32 0.0, %v2400
    %v2402 = vpop.f32.mrf.mxu0
    %v2403 = vpop.f32.mrf.mxu0
    %2404 = vdwg.mxu0
    %v2405 = vadd.f32 %v2317, %v2358
    %v2406 = vadd.f32 %v2318, %v2360
    %v2407 = vadd.f32 %v2319, %v2399
    %v2408 = vadd.f32 %v2320, %v2401
    %v2409 = vxor.u32 %v2405, 2147483648
    %v2410 = vmul.f32 %v2409, 1.442695
    %v2411 = vpow.pop %v2410
    %v2412 = vadd.f32 %v2411, 1.0
    %v2413 = vrcp.pop %v2412
    %v2414 = vmul.f32 1.0, %v2413
    %v2415 = vxor.u32 %v2406, 2147483648
    %v2416 = vmul.f32 %v2415, 1.442695
    %v2417 = vpow.pop %v2416
    %v2418 = vadd.f32 %v2417, 1.0
    %v2419 = vrcp.pop %v2418
    %v2420 = vmul.f32 1.0, %v2419
    %v2421 = vtanh.pop %v2407
    %v2422 = vxor.u32 %v2408, 2147483648
    %v2423 = vmul.f32 %v2422, 1.442695
    %v2424 = vpow.pop %v2423
    %v2425 = vadd.f32 %v2424, 1.0
    %v2426 = vrcp.pop %v2425
    %v2427 = vmul.f32 1.0, %v2426
    %v2428 = vld [vmem:[#allocation4] sm:$0xff]
    %v2429 = vmul.f32 %v2420, %v2428
    %v2430 = vmul.f32 %v2414, %v2421
    %v2431 = vadd.f32 %v2429, %v2430
    %v2432 = vtanh.pop %v2431
    %v2433 = vmul.f32 %v2427, %v2432
    %2434 = vst [vmem:[#allocation4] sm:$0xff] %v2431
    %2435 = vst [vmem:[#allocation3] sm:$0xff] %v2433
    %v2436 = vpack.c.bf16 %v2433, %v2433
    %s2437 = smul.addr %s2310, 4
    %s2438 = scalar_lea.vmem %s4, %s2437
    %2439 = vst [vmem:[%s2438] sm:$0xf] %v2436
    %s2440 = ssub.s32 3, %s1225
    %s2441 = smul.u32 %s2440, 8
    %s2442 = sadd.s32 %s2441, 64
    %s2443 = sshra.s32 %s2442, 3
    %s2444 = sand.u32 %s2442, 7
    %s2445 = smul.u32 %s2443, 4
    %s2446 = smul.addr %s2445, 8
    %s2447 = scalar_lea.vmem [#allocation2], %s2446
    %v2448 = vld [vmem:[%s2447] sm:$0xff]
    %v2449 = vld [vmem:[%s2447 + $0x8] sm:$0xff]
    %v2450 = vld [vmem:[%s2447 + $0x10] sm:$0xff]
    %v2451 = vld [vmem:[%s2447 + $0x18] sm:$0xff]
    %v2452 = vld [vmem:[%s866] sm:$0xff]
    %v2453 = vpack.c.bf16 %v2452, %v2452
    %2454 = vmatprep.subr.bf16.mxu0 %v1366
    %2455 = vmatpush1.bf16.msra.mxu0 %v1365
    %2456 = vmatprep.subr.bf16.mxu0 %v1362
    %2457 = vmatpush1.bf16.msra.mxu0 %v1361
    %2458 = vmatprep.subr.bf16.mxu0 %v1358
    %2459 = vmatpush1.bf16.msra.mxu0 %v1357
    %2460 = vmatprep.subr.bf16.mxu0 %v1354
    %2461 = vmatpush1.bf16.msra.mxu0 %v1353
    %2462 = vmatprep.subr.bf16.mxu0 %v1350
    %2463 = vmatpush1.bf16.msra.mxu0 %v1349
    %2464 = vmatprep.subr.bf16.mxu0 %v1346
    %2465 = vmatpush1.bf16.msra.mxu0 %v1345
    %2466 = vmatprep.subr.bf16.mxu0 %v1342
    %2467 = vmatpush1.bf16.msra.mxu0 %v1341
    %2468 = vmatprep.subr.bf16.mxu0 %v1338
    %2469 = vmatpush1.bf16.msra.mxu0 %v1337
    %2470 = vmatprep.subr.bf16.mxu0 0
    %2471 = vmatpush2.bf16.msra.mxu0 0
    %2472 = vmatprep.subr.bf16.mxu0 0
    %2473 = vmatpush2.bf16.msra.mxu0 0
    %2474 = vmatprep.subr.bf16.mxu0 0
    %2475 = vmatpush2.bf16.msra.mxu0 0
    %2476 = vmatprep.subr.bf16.mxu0 0
    %2477 = vmatpush2.bf16.msra.mxu0 0
    %2478 = vmatprep.subr.bf16.mxu0 0
    %2479 = vmatpush2.bf16.msra.mxu0 0
    %2480 = vmatprep.subr.bf16.mxu0 0
    %2481 = vmatpush2.bf16.msra.mxu0 0
    %2482 = vmatprep.subr.bf16.mxu0 0
    %2483 = vmatpush2.bf16.msra.mxu0 0
    %2484 = vmatprep.subr.bf16.mxu0 0
    %2485 = vmatpush2.bf16.msra.mxu0 0
    %2486 = vmatprep.mubr.bf16.mxu0 0
    %2487 = vmatmul.mubr.bf16.gmra.mxu0 %v2453
    %v2488 = vpop.f32.mrf.mxu0
    %v2489 = vadd.f32 0.0, %v2488
    %v2490 = vpop.f32.mrf.mxu0
    %v2491 = vadd.f32 0.0, %v2490
    %v2492 = vpop.f32.mrf.mxu0
    %v2493 = vpop.f32.mrf.mxu0
    %2494 = vdwg.mxu0
    %2495 = vmatprep.subr.bf16.mxu0 %v1368
    %2496 = vmatpush1.bf16.msra.mxu0 %v1367
    %2497 = vmatprep.subr.bf16.mxu0 %v1364
    %2498 = vmatpush1.bf16.msra.mxu0 %v1363
    %2499 = vmatprep.subr.bf16.mxu0 %v1360
    %2500 = vmatpush1.bf16.msra.mxu0 %v1359
    %2501 = vmatprep.subr.bf16.mxu0 %v1356
    %2502 = vmatpush1.bf16.msra.mxu0 %v1355
    %2503 = vmatprep.subr.bf16.mxu0 %v1352
    %2504 = vmatpush1.bf16.msra.mxu0 %v1351
    %2505 = vmatprep.subr.bf16.mxu0 %v1348
    %2506 = vmatpush1.bf16.msra.mxu0 %v1347
    %2507 = vmatprep.subr.bf16.mxu0 %v1344
    %2508 = vmatpush1.bf16.msra.mxu0 %v1343
    %2509 = vmatprep.subr.bf16.mxu0 %v1340
    %2510 = vmatpush1.bf16.msra.mxu0 %v1339
    %2511 = vmatprep.subr.bf16.mxu0 0
    %2512 = vmatpush2.bf16.msra.mxu0 0
    %2513 = vmatprep.subr.bf16.mxu0 0
    %2514 = vmatpush2.bf16.msra.mxu0 0
    %2515 = vmatprep.subr.bf16.mxu0 0
    %2516 = vmatpush2.bf16.msra.mxu0 0
    %2517 = vmatprep.subr.bf16.mxu0 0
    %2518 = vmatpush2.bf16.msra.mxu0 0
    %2519 = vmatprep.subr.bf16.mxu0 0
    %2520 = vmatpush2.bf16.msra.mxu0 0
    %2521 = vmatprep.subr.bf16.mxu0 0
    %2522 = vmatpush2.bf16.msra.mxu0 0
    %2523 = vmatprep.subr.bf16.mxu0 0
    %2524 = vmatpush2.bf16.msra.mxu0 0
    %2525 = vmatprep.subr.bf16.mxu0 0
    %2526 = vmatpush2.bf16.msra.mxu0 0
    %2527 = vmatprep.mubr.bf16.mxu0 0
    %2528 = vmatmul.mubr.bf16.gmra.mxu0 %v2453
    %v2529 = vpop.f32.mrf.mxu0
    %v2530 = vadd.f32 0.0, %v2529
    %v2531 = vpop.f32.mrf.mxu0
    %v2532 = vadd.f32 0.0, %v2531
    %v2533 = vpop.f32.mrf.mxu0
    %v2534 = vpop.f32.mrf.mxu0
    %2535 = vdwg.mxu0
    %v2536 = vadd.f32 %v2448, %v2489
    %v2537 = vadd.f32 %v2449, %v2491
    %v2538 = vadd.f32 %v2450, %v2530
    %v2539 = vadd.f32 %v2451, %v2532
    %v2540 = vxor.u32 %v2536, 2147483648
    %v2541 = vmul.f32 %v2540, 1.442695
    %v2542 = vpow.pop %v2541
    %v2543 = vadd.f32 %v2542, 1.0
    %v2544 = vrcp.pop %v2543
    %v2545 = vmul.f32 1.0, %v2544
    %v2546 = vxor.u32 %v2537, 2147483648
    %v2547 = vmul.f32 %v2546, 1.442695
    %v2548 = vpow.pop %v2547
    %v2549 = vadd.f32 %v2548, 1.0
    %v2550 = vrcp.pop %v2549
    %v2551 = vmul.f32 1.0, %v2550
    %v2552 = vtanh.pop %v2538
    %v2553 = vxor.u32 %v2539, 2147483648
    %v2554 = vmul.f32 %v2553, 1.442695
    %v2555 = vpow.pop %v2554
    %v2556 = vadd.f32 %v2555, 1.0
    %v2557 = vrcp.pop %v2556
    %v2558 = vmul.f32 1.0, %v2557
    %v2559 = vld [vmem:[%s868] sm:$0xff]
    %v2560 = vmul.f32 %v2551, %v2559
    %v2561 = vmul.f32 %v2545, %v2552
    %v2562 = vadd.f32 %v2560, %v2561
    %v2563 = vtanh.pop %v2562
    %v2564 = vmul.f32 %v2558, %v2563
    %2565 = vst [vmem:[%s868] sm:$0xff] %v2562
    %2566 = vst [vmem:[%s866] sm:$0xff] %v2564
    %v2567 = vpack.c.bf16 %v2564, %v2564
    %s2568 = sadd.s32 %s2440, 8
    %s2569 = smul.addr %s2568, 4
    %s2570 = scalar_lea.vmem %s4, %s2569
    %2571 = vst [vmem:[%s2570] sm:$0xf] %v2567
    %s2572 = smul.u32 0, 4294967290
    %s2573 = sadd.s32 %s2572, 5
    %s2574 = smul.u32 %s2573, 8
    %s2575 = sshra.s32 %s2574, 3
    %s2576 = sand.u32 %s2574, 7
    %s2577 = smul.u32 %s2575, 4
    %s2578 = smul.addr %s2577, 8
    %s2579 = scalar_lea.vmem [#allocation2], %s2578
    %v2580 = vld [vmem:[%s2579] sm:$0xff]
    %v2581 = vld [vmem:[%s2579 + $0x8] sm:$0xff]
    %v2582 = vld [vmem:[%s2579 + $0x10] sm:$0xff]
    %v2583 = vld [vmem:[%s2579 + $0x18] sm:$0xff]
    %v2584 = vld [vmem:[#allocation3] sm:$0xff]
    %v2585 = vpack.c.bf16 %v2584, %v2584
    %2586 = vmatprep.subr.bf16.mxu0 %v1073
    %2587 = vmatpush1.bf16.msra.mxu0 %v1072
    %2588 = vmatprep.subr.bf16.mxu0 %v1069
    %2589 = vmatpush1.bf16.msra.mxu0 %v1068
    %2590 = vmatprep.subr.bf16.mxu0 %v1065
    %2591 = vmatpush1.bf16.msra.mxu0 %v1064
    %2592 = vmatprep.subr.bf16.mxu0 %v1061
    %2593 = vmatpush1.bf16.msra.mxu0 %v1060
    %2594 = vmatprep.subr.bf16.mxu0 %v1057
    %2595 = vmatpush1.bf16.msra.mxu0 %v1056
    %2596 = vmatprep.subr.bf16.mxu0 %v1053
    %2597 = vmatpush1.bf16.msra.mxu0 %v1052
    %2598 = vmatprep.subr.bf16.mxu0 %v1049
    %2599 = vmatpush1.bf16.msra.mxu0 %v1048
    %2600 = vmatprep.subr.bf16.mxu0 %v1045
    %2601 = vmatpush1.bf16.msra.mxu0 %v1044
    %2602 = vmatprep.subr.bf16.mxu0 0
    %2603 = vmatpush2.bf16.msra.mxu0 0
    %2604 = vmatprep.subr.bf16.mxu0 0
    %2605 = vmatpush2.bf16.msra.mxu0 0
    %2606 = vmatprep.subr.bf16.mxu0 0
    %2607 = vmatpush2.bf16.msra.mxu0 0
    %2608 = vmatprep.subr.bf16.mxu0 0
    %2609 = vmatpush2.bf16.msra.mxu0 0
    %2610 = vmatprep.subr.bf16.mxu0 0
    %2611 = vmatpush2.bf16.msra.mxu0 0
    %2612 = vmatprep.subr.bf16.mxu0 0
    %2613 = vmatpush2.bf16.msra.mxu0 0
    %2614 = vmatprep.subr.bf16.mxu0 0
    %2615 = vmatpush2.bf16.msra.mxu0 0
    %2616 = vmatprep.subr.bf16.mxu0 0
    %2617 = vmatpush2.bf16.msra.mxu0 0
    %2618 = vmatprep.mubr.bf16.mxu0 0
    %2619 = vmatmul.mubr.bf16.gmra.mxu0 %v2585
    %v2620 = vpop.f32.mrf.mxu0
    %v2621 = vadd.f32 0.0, %v2620
    %v2622 = vpop.f32.mrf.mxu0
    %v2623 = vadd.f32 0.0, %v2622
    %v2624 = vpop.f32.mrf.mxu0
    %v2625 = vpop.f32.mrf.mxu0
    %2626 = vdwg.mxu0
    %2627 = vmatprep.subr.bf16.mxu0 %v1075
    %2628 = vmatpush1.bf16.msra.mxu0 %v1074
    %2629 = vmatprep.subr.bf16.mxu0 %v1071
    %2630 = vmatpush1.bf16.msra.mxu0 %v1070
    %2631 = vmatprep.subr.bf16.mxu0 %v1067
    %2632 = vmatpush1.bf16.msra.mxu0 %v1066
    %2633 = vmatprep.subr.bf16.mxu0 %v1063
    %2634 = vmatpush1.bf16.msra.mxu0 %v1062
    %2635 = vmatprep.subr.bf16.mxu0 %v1059
    %2636 = vmatpush1.bf16.msra.mxu0 %v1058
    %2637 = vmatprep.subr.bf16.mxu0 %v1055
    %2638 = vmatpush1.bf16.msra.mxu0 %v1054
    %2639 = vmatprep.subr.bf16.mxu0 %v1051
    %2640 = vmatpush1.bf16.msra.mxu0 %v1050
    %2641 = vmatprep.subr.bf16.mxu0 %v1047
    %2642 = vmatpush1.bf16.msra.mxu0 %v1046
    %2643 = vmatprep.subr.bf16.mxu0 0
    %2644 = vmatpush2.bf16.msra.mxu0 0
    %2645 = vmatprep.subr.bf16.mxu0 0
    %2646 = vmatpush2.bf16.msra.mxu0 0
    %2647 = vmatprep.subr.bf16.mxu0 0
    %2648 = vmatpush2.bf16.msra.mxu0 0
    %2649 = vmatprep.subr.bf16.mxu0 0
    %2650 = vmatpush2.bf16.msra.mxu0 0
    %2651 = vmatprep.subr.bf16.mxu0 0
    %2652 = vmatpush2.bf16.msra.mxu0 0
    %2653 = vmatprep.subr.bf16.mxu0 0
    %2654 = vmatpush2.bf16.msra.mxu0 0
    %2655 = vmatprep.subr.bf16.mxu0 0
    %2656 = vmatpush2.bf16.msra.mxu0 0
    %2657 = vmatprep.subr.bf16.mxu0 0
    %2658 = vmatpush2.bf16.msra.mxu0 0
    %2659 = vmatprep.mubr.bf16.mxu0 0
    %2660 = vmatmul.mubr.bf16.gmra.mxu0 %v2585
    %v2661 = vpop.f32.mrf.mxu0
    %v2662 = vadd.f32 0.0, %v2661
    %v2663 = vpop.f32.mrf.mxu0
    %v2664 = vadd.f32 0.0, %v2663
    %v2665 = vpop.f32.mrf.mxu0
    %v2666 = vpop.f32.mrf.mxu0
    %2667 = vdwg.mxu0
    %v2668 = vadd.f32 %v2580, %v2621
    %v2669 = vadd.f32 %v2581, %v2623
    %v2670 = vadd.f32 %v2582, %v2662
    %v2671 = vadd.f32 %v2583, %v2664
    %v2672 = vxor.u32 %v2668, 2147483648
    %v2673 = vmul.f32 %v2672, 1.442695
    %v2674 = vpow.pop %v2673
    %v2675 = vadd.f32 %v2674, 1.0
    %v2676 = vrcp.pop %v2675
    %v2677 = vmul.f32 1.0, %v2676
    %v2678 = vxor.u32 %v2669, 2147483648
    %v2679 = vmul.f32 %v2678, 1.442695
    %v2680 = vpow.pop %v2679
    %v2681 = vadd.f32 %v2680, 1.0
    %v2682 = vrcp.pop %v2681
    %v2683 = vmul.f32 1.0, %v2682
    %v2684 = vtanh.pop %v2670
    %v2685 = vxor.u32 %v2671, 2147483648
    %v2686 = vmul.f32 %v2685, 1.442695
    %v2687 = vpow.pop %v2686
    %v2688 = vadd.f32 %v2687, 1.0
    %v2689 = vrcp.pop %v2688
    %v2690 = vmul.f32 1.0, %v2689
    %v2691 = vld [vmem:[#allocation4] sm:$0xff]
    %v2692 = vmul.f32 %v2683, %v2691
    %v2693 = vmul.f32 %v2677, %v2684
    %v2694 = vadd.f32 %v2692, %v2693
    %v2695 = vtanh.pop %v2694
    %v2696 = vmul.f32 %v2690, %v2695
    %2697 = vst [vmem:[#allocation4] sm:$0xff] %v2694
    %2698 = vst [vmem:[#allocation3] sm:$0xff] %v2696
    %v2699 = vpack.c.bf16 %v2696, %v2696
    %s2700 = smul.addr %s2573, 4
    %s2701 = scalar_lea.vmem %s4, %s2700
    %2702 = vst [vmem:[%s2701] sm:$0xf] %v2699
    %s2703 = smul.u32 %s1226, 4294967293
    %s2704 = sadd.s32 %s2703, 5
    %s2705 = smul.u32 %s2704, 8
    %s2706 = sadd.s32 %s2705, 64
    %s2707 = sshra.s32 %s2706, 3
    %s2708 = sand.u32 %s2706, 7
    %s2709 = smul.u32 %s2707, 4
    %s2710 = smul.addr %s2709, 8
    %s2711 = scalar_lea.vmem [#allocation2], %s2710
    %v2712 = vld [vmem:[%s2711] sm:$0xff]
    %v2713 = vld [vmem:[%s2711 + $0x8] sm:$0xff]
    %v2714 = vld [vmem:[%s2711 + $0x10] sm:$0xff]
    %v2715 = vld [vmem:[%s2711 + $0x18] sm:$0xff]
    %v2716 = vld [vmem:[%s866] sm:$0xff]
    %v2717 = vpack.c.bf16 %v2716, %v2716
    %2718 = vmatprep.subr.bf16.mxu0 %v1366
    %2719 = vmatpush1.bf16.msra.mxu0 %v1365
    %2720 = vmatprep.subr.bf16.mxu0 %v1362
    %2721 = vmatpush1.bf16.msra.mxu0 %v1361
    %2722 = vmatprep.subr.bf16.mxu0 %v1358
    %2723 = vmatpush1.bf16.msra.mxu0 %v1357
    %2724 = vmatprep.subr.bf16.mxu0 %v1354
    %2725 = vmatpush1.bf16.msra.mxu0 %v1353
    %2726 = vmatprep.subr.bf16.mxu0 %v1350
    %2727 = vmatpush1.bf16.msra.mxu0 %v1349
    %2728 = vmatprep.subr.bf16.mxu0 %v1346
    %2729 = vmatpush1.bf16.msra.mxu0 %v1345
    %2730 = vmatprep.subr.bf16.mxu0 %v1342
    %2731 = vmatpush1.bf16.msra.mxu0 %v1341
    %2732 = vmatprep.subr.bf16.mxu0 %v1338
    %2733 = vmatpush1.bf16.msra.mxu0 %v1337
    %2734 = vmatprep.subr.bf16.mxu0 0
    %2735 = vmatpush2.bf16.msra.mxu0 0
    %2736 = vmatprep.subr.bf16.mxu0 0
    %2737 = vmatpush2.bf16.msra.mxu0 0
    %2738 = vmatprep.subr.bf16.mxu0 0
    %2739 = vmatpush2.bf16.msra.mxu0 0
    %2740 = vmatprep.subr.bf16.mxu0 0
    %2741 = vmatpush2.bf16.msra.mxu0 0
    %2742 = vmatprep.subr.bf16.mxu0 0
    %2743 = vmatpush2.bf16.msra.mxu0 0
    %2744 = vmatprep.subr.bf16.mxu0 0
    %2745 = vmatpush2.bf16.msra.mxu0 0
    %2746 = vmatprep.subr.bf16.mxu0 0
    %2747 = vmatpush2.bf16.msra.mxu0 0
    %2748 = vmatprep.subr.bf16.mxu0 0
    %2749 = vmatpush2.bf16.msra.mxu0 0
    %2750 = vmatprep.mubr.bf16.mxu0 0
    %2751 = vmatmul.mubr.bf16.gmra.mxu0 %v2717
    %v2752 = vpop.f32.mrf.mxu0
    %v2753 = vadd.f32 0.0, %v2752
    %v2754 = vpop.f32.mrf.mxu0
    %v2755 = vadd.f32 0.0, %v2754
    %v2756 = vpop.f32.mrf.mxu0
    %v2757 = vpop.f32.mrf.mxu0
    %2758 = vdwg.mxu0
    %2759 = vmatprep.subr.bf16.mxu0 %v1368
    %2760 = vmatpush1.bf16.msra.mxu0 %v1367
    %2761 = vmatprep.subr.bf16.mxu0 %v1364
    %2762 = vmatpush1.bf16.msra.mxu0 %v1363
    %2763 = vmatprep.subr.bf16.mxu0 %v1360
    %2764 = vmatpush1.bf16.msra.mxu0 %v1359
    %2765 = vmatprep.subr.bf16.mxu0 %v1356
    %2766 = vmatpush1.bf16.msra.mxu0 %v1355
    %2767 = vmatprep.subr.bf16.mxu0 %v1352
    %2768 = vmatpush1.bf16.msra.mxu0 %v1351
    %2769 = vmatprep.subr.bf16.mxu0 %v1348
    %2770 = vmatpush1.bf16.msra.mxu0 %v1347
    %2771 = vmatprep.subr.bf16.mxu0 %v1344
    %2772 = vmatpush1.bf16.msra.mxu0 %v1343
    %2773 = vmatprep.subr.bf16.mxu0 %v1340
    %2774 = vmatpush1.bf16.msra.mxu0 %v1339
    %2775 = vmatprep.subr.bf16.mxu0 0
    %2776 = vmatpush2.bf16.msra.mxu0 0
    %2777 = vmatprep.subr.bf16.mxu0 0
    %2778 = vmatpush2.bf16.msra.mxu0 0
    %2779 = vmatprep.subr.bf16.mxu0 0
    %2780 = vmatpush2.bf16.msra.mxu0 0
    %2781 = vmatprep.subr.bf16.mxu0 0
    %2782 = vmatpush2.bf16.msra.mxu0 0
    %2783 = vmatprep.subr.bf16.mxu0 0
    %2784 = vmatpush2.bf16.msra.mxu0 0
    %2785 = vmatprep.subr.bf16.mxu0 0
    %2786 = vmatpush2.bf16.msra.mxu0 0
    %2787 = vmatprep.subr.bf16.mxu0 0
    %2788 = vmatpush2.bf16.msra.mxu0 0
    %2789 = vmatprep.subr.bf16.mxu0 0
    %2790 = vmatpush2.bf16.msra.mxu0 0
    %2791 = vmatprep.mubr.bf16.mxu0 0
    %2792 = vmatmul.mubr.bf16.gmra.mxu0 %v2717
    %v2793 = vpop.f32.mrf.mxu0
    %v2794 = vadd.f32 0.0, %v2793
    %v2795 = vpop.f32.mrf.mxu0
    %v2796 = vadd.f32 0.0, %v2795
    %v2797 = vpop.f32.mrf.mxu0
    %v2798 = vpop.f32.mrf.mxu0
    %2799 = vdwg.mxu0
    %v2800 = vadd.f32 %v2712, %v2753
    %v2801 = vadd.f32 %v2713, %v2755
    %v2802 = vadd.f32 %v2714, %v2794
    %v2803 = vadd.f32 %v2715, %v2796
    %v2804 = vxor.u32 %v2800, 2147483648
    %v2805 = vmul.f32 %v2804, 1.442695
    %v2806 = vpow.pop %v2805
    %v2807 = vadd.f32 %v2806, 1.0
    %v2808 = vrcp.pop %v2807
    %v2809 = vmul.f32 1.0, %v2808
    %v2810 = vxor.u32 %v2801, 2147483648
    %v2811 = vmul.f32 %v2810, 1.442695
    %v2812 = vpow.pop %v2811
    %v2813 = vadd.f32 %v2812, 1.0
    %v2814 = vrcp.pop %v2813
    %v2815 = vmul.f32 1.0, %v2814
    %v2816 = vtanh.pop %v2802
    %v2817 = vxor.u32 %v2803, 2147483648
    %v2818 = vmul.f32 %v2817, 1.442695
    %v2819 = vpow.pop %v2818
    %v2820 = vadd.f32 %v2819, 1.0
    %v2821 = vrcp.pop %v2820
    %v2822 = vmul.f32 1.0, %v2821
    %v2823 = vld [vmem:[%s868] sm:$0xff]
    %v2824 = vmul.f32 %v2815, %v2823
    %v2825 = vmul.f32 %v2809, %v2816
    %v2826 = vadd.f32 %v2824, %v2825
    %v2827 = vtanh.pop %v2826
    %v2828 = vmul.f32 %v2822, %v2827
    %2829 = vst [vmem:[%s868] sm:$0xff] %v2826
    %2830 = vst [vmem:[%s866] sm:$0xff] %v2828
    %v2831 = vpack.c.bf16 %v2828, %v2828
    %s2832 = sadd.s32 %s2704, 8
    %s2833 = smul.addr %s2832, 4
    %s2834 = scalar_lea.vmem %s4, %s2833
    %2835 = vst [vmem:[%s2834] sm:$0xf] %v2831
    %s2836 = smul.u32 0, 4294967286
    %s2837 = sadd.s32 %s2836, 6
    %s2838 = smul.u32 %s2837, 8
    %s2839 = sshra.s32 %s2838, 3
    %s2840 = sand.u32 %s2838, 7
    %s2841 = smul.u32 %s2839, 4
    %s2842 = smul.addr %s2841, 8
    %s2843 = scalar_lea.vmem [#allocation2], %s2842
    %v2844 = vld [vmem:[%s2843] sm:$0xff]
    %v2845 = vld [vmem:[%s2843 + $0x8] sm:$0xff]
    %v2846 = vld [vmem:[%s2843 + $0x10] sm:$0xff]
    %v2847 = vld [vmem:[%s2843 + $0x18] sm:$0xff]
    %v2848 = vld [vmem:[#allocation3] sm:$0xff]
    %v2849 = vpack.c.bf16 %v2848, %v2848
    %2850 = vmatprep.subr.bf16.mxu0 %v1073
    %2851 = vmatpush1.bf16.msra.mxu0 %v1072
    %2852 = vmatprep.subr.bf16.mxu0 %v1069
    %2853 = vmatpush1.bf16.msra.mxu0 %v1068
    %2854 = vmatprep.subr.bf16.mxu0 %v1065
    %2855 = vmatpush1.bf16.msra.mxu0 %v1064
    %2856 = vmatprep.subr.bf16.mxu0 %v1061
    %2857 = vmatpush1.bf16.msra.mxu0 %v1060
    %2858 = vmatprep.subr.bf16.mxu0 %v1057
    %2859 = vmatpush1.bf16.msra.mxu0 %v1056
    %2860 = vmatprep.subr.bf16.mxu0 %v1053
    %2861 = vmatpush1.bf16.msra.mxu0 %v1052
    %2862 = vmatprep.subr.bf16.mxu0 %v1049
    %2863 = vmatpush1.bf16.msra.mxu0 %v1048
    %2864 = vmatprep.subr.bf16.mxu0 %v1045
    %2865 = vmatpush1.bf16.msra.mxu0 %v1044
    %2866 = vmatprep.subr.bf16.mxu0 0
    %2867 = vmatpush2.bf16.msra.mxu0 0
    %2868 = vmatprep.subr.bf16.mxu0 0
    %2869 = vmatpush2.bf16.msra.mxu0 0
    %2870 = vmatprep.subr.bf16.mxu0 0
    %2871 = vmatpush2.bf16.msra.mxu0 0
    %2872 = vmatprep.subr.bf16.mxu0 0
    %2873 = vmatpush2.bf16.msra.mxu0 0
    %2874 = vmatprep.subr.bf16.mxu0 0
    %2875 = vmatpush2.bf16.msra.mxu0 0
    %2876 = vmatprep.subr.bf16.mxu0 0
    %2877 = vmatpush2.bf16.msra.mxu0 0
    %2878 = vmatprep.subr.bf16.mxu0 0
    %2879 = vmatpush2.bf16.msra.mxu0 0
    %2880 = vmatprep.subr.bf16.mxu0 0
    %2881 = vmatpush2.bf16.msra.mxu0 0
    %2882 = vmatprep.mubr.bf16.mxu0 0
    %2883 = vmatmul.mubr.bf16.gmra.mxu0 %v2849
    %v2884 = vpop.f32.mrf.mxu0
    %v2885 = vadd.f32 0.0, %v2884
    %v2886 = vpop.f32.mrf.mxu0
    %v2887 = vadd.f32 0.0, %v2886
    %v2888 = vpop.f32.mrf.mxu0
    %v2889 = vpop.f32.mrf.mxu0
    %2890 = vdwg.mxu0
    %2891 = vmatprep.subr.bf16.mxu0 %v1075
    %2892 = vmatpush1.bf16.msra.mxu0 %v1074
    %2893 = vmatprep.subr.bf16.mxu0 %v1071
    %2894 = vmatpush1.bf16.msra.mxu0 %v1070
    %2895 = vmatprep.subr.bf16.mxu0 %v1067
    %2896 = vmatpush1.bf16.msra.mxu0 %v1066
    %2897 = vmatprep.subr.bf16.mxu0 %v1063
    %2898 = vmatpush1.bf16.msra.mxu0 %v1062
    %2899 = vmatprep.subr.bf16.mxu0 %v1059
    %2900 = vmatpush1.bf16.msra.mxu0 %v1058
    %2901 = vmatprep.subr.bf16.mxu0 %v1055
    %2902 = vmatpush1.bf16.msra.mxu0 %v1054
    %2903 = vmatprep.subr.bf16.mxu0 %v1051
    %2904 = vmatpush1.bf16.msra.mxu0 %v1050
    %2905 = vmatprep.subr.bf16.mxu0 %v1047
    %2906 = vmatpush1.bf16.msra.mxu0 %v1046
    %2907 = vmatprep.subr.bf16.mxu0 0
    %2908 = vmatpush2.bf16.msra.mxu0 0
    %2909 = vmatprep.subr.bf16.mxu0 0
    %2910 = vmatpush2.bf16.msra.mxu0 0
    %2911 = vmatprep.subr.bf16.mxu0 0
    %2912 = vmatpush2.bf16.msra.mxu0 0
    %2913 = vmatprep.subr.bf16.mxu0 0
    %2914 = vmatpush2.bf16.msra.mxu0 0
    %2915 = vmatprep.subr.bf16.mxu0 0
    %2916 = vmatpush2.bf16.msra.mxu0 0
    %2917 = vmatprep.subr.bf16.mxu0 0
    %2918 = vmatpush2.bf16.msra.mxu0 0
    %2919 = vmatprep.subr.bf16.mxu0 0
    %2920 = vmatpush2.bf16.msra.mxu0 0
    %2921 = vmatprep.subr.bf16.mxu0 0
    %2922 = vmatpush2.bf16.msra.mxu0 0
    %2923 = vmatprep.mubr.bf16.mxu0 0
    %2924 = vmatmul.mubr.bf16.gmra.mxu0 %v2849
    %v2925 = vpop.f32.mrf.mxu0
    %v2926 = vadd.f32 0.0, %v2925
    %v2927 = vpop.f32.mrf.mxu0
    %v2928 = vadd.f32 0.0, %v2927
    %v2929 = vpop.f32.mrf.mxu0
    %v2930 = vpop.f32.mrf.mxu0
    %2931 = vdwg.mxu0
    %v2932 = vadd.f32 %v2844, %v2885
    %v2933 = vadd.f32 %v2845, %v2887
    %v2934 = vadd.f32 %v2846, %v2926
    %v2935 = vadd.f32 %v2847, %v2928
    %v2936 = vxor.u32 %v2932, 2147483648
    %v2937 = vmul.f32 %v2936, 1.442695
    %v2938 = vpow.pop %v2937
    %v2939 = vadd.f32 %v2938, 1.0
    %v2940 = vrcp.pop %v2939
    %v2941 = vmul.f32 1.0, %v2940
    %v2942 = vxor.u32 %v2933, 2147483648
    %v2943 = vmul.f32 %v2942, 1.442695
    %v2944 = vpow.pop %v2943
    %v2945 = vadd.f32 %v2944, 1.0
    %v2946 = vrcp.pop %v2945
    %v2947 = vmul.f32 1.0, %v2946
    %v2948 = vtanh.pop %v2934
    %v2949 = vxor.u32 %v2935, 2147483648
    %v2950 = vmul.f32 %v2949, 1.442695
    %v2951 = vpow.pop %v2950
    %v2952 = vadd.f32 %v2951, 1.0
    %v2953 = vrcp.pop %v2952
    %v2954 = vmul.f32 1.0, %v2953
    %v2955 = vld [vmem:[#allocation4] sm:$0xff]
    %v2956 = vmul.f32 %v2947, %v2955
    %v2957 = vmul.f32 %v2941, %v2948
    %v2958 = vadd.f32 %v2956, %v2957
    %v2959 = vtanh.pop %v2958
    %v2960 = vmul.f32 %v2954, %v2959
    %2961 = vst [vmem:[#allocation4] sm:$0xff] %v2958
    %2962 = vst [vmem:[#allocation3] sm:$0xff] %v2960
    %v2963 = vpack.c.bf16 %v2960, %v2960
    %s2964 = smul.addr %s2837, 4
    %s2965 = scalar_lea.vmem %s4, %s2964
    %2966 = vst [vmem:[%s2965] sm:$0xf] %v2963
    %s2967 = smul.u32 %s1226, 4294967291
    %s2968 = sadd.s32 %s2967, 6
    %s2969 = smul.u32 %s2968, 8
    %s2970 = sadd.s32 %s2969, 64
    %s2971 = sshra.s32 %s2970, 3
    %s2972 = sand.u32 %s2970, 7
    %s2973 = smul.u32 %s2971, 4
    %s2974 = smul.addr %s2973, 8
    %s2975 = scalar_lea.vmem [#allocation2], %s2974
    %v2976 = vld [vmem:[%s2975] sm:$0xff]
    %v2977 = vld [vmem:[%s2975 + $0x8] sm:$0xff]
    %v2978 = vld [vmem:[%s2975 + $0x10] sm:$0xff]
    %v2979 = vld [vmem:[%s2975 + $0x18] sm:$0xff]
    %v2980 = vld [vmem:[%s866] sm:$0xff]
    %v2981 = vpack.c.bf16 %v2980, %v2980
    %2982 = vmatprep.subr.bf16.mxu0 %v1366
    %2983 = vmatpush1.bf16.msra.mxu0 %v1365
    %2984 = vmatprep.subr.bf16.mxu0 %v1362
    %2985 = vmatpush1.bf16.msra.mxu0 %v1361
    %2986 = vmatprep.subr.bf16.mxu0 %v1358
    %2987 = vmatpush1.bf16.msra.mxu0 %v1357
    %2988 = vmatprep.subr.bf16.mxu0 %v1354
    %2989 = vmatpush1.bf16.msra.mxu0 %v1353
    %2990 = vmatprep.subr.bf16.mxu0 %v1350
    %2991 = vmatpush1.bf16.msra.mxu0 %v1349
    %2992 = vmatprep.subr.bf16.mxu0 %v1346
    %2993 = vmatpush1.bf16.msra.mxu0 %v1345
    %2994 = vmatprep.subr.bf16.mxu0 %v1342
    %2995 = vmatpush1.bf16.msra.mxu0 %v1341
    %2996 = vmatprep.subr.bf16.mxu0 %v1338
    %2997 = vmatpush1.bf16.msra.mxu0 %v1337
    %2998 = vmatprep.subr.bf16.mxu0 0
    %2999 = vmatpush2.bf16.msra.mxu0 0
    %3000 = vmatprep.subr.bf16.mxu0 0
    %3001 = vmatpush2.bf16.msra.mxu0 0
    %3002 = vmatprep.subr.bf16.mxu0 0
    %3003 = vmatpush2.bf16.msra.mxu0 0
    %3004 = vmatprep.subr.bf16.mxu0 0
    %3005 = vmatpush2.bf16.msra.mxu0 0
    %3006 = vmatprep.subr.bf16.mxu0 0
    %3007 = vmatpush2.bf16.msra.mxu0 0
    %3008 = vmatprep.subr.bf16.mxu0 0
    %3009 = vmatpush2.bf16.msra.mxu0 0
    %3010 = vmatprep.subr.bf16.mxu0 0
    %3011 = vmatpush2.bf16.msra.mxu0 0
    %3012 = vmatprep.subr.bf16.mxu0 0
    %3013 = vmatpush2.bf16.msra.mxu0 0
    %3014 = vmatprep.mubr.bf16.mxu0 0
    %3015 = vmatmul.mubr.bf16.gmra.mxu0 %v2981
    %v3016 = vpop.f32.mrf.mxu0
    %v3017 = vadd.f32 0.0, %v3016
    %v3018 = vpop.f32.mrf.mxu0
    %v3019 = vadd.f32 0.0, %v3018
    %v3020 = vpop.f32.mrf.mxu0
    %v3021 = vpop.f32.mrf.mxu0
    %3022 = vdwg.mxu0
    %3023 = vmatprep.subr.bf16.mxu0 %v1368
    %3024 = vmatpush1.bf16.msra.mxu0 %v1367
    %3025 = vmatprep.subr.bf16.mxu0 %v1364
    %3026 = vmatpush1.bf16.msra.mxu0 %v1363
    %3027 = vmatprep.subr.bf16.mxu0 %v1360
    %3028 = vmatpush1.bf16.msra.mxu0 %v1359
    %3029 = vmatprep.subr.bf16.mxu0 %v1356
    %3030 = vmatpush1.bf16.msra.mxu0 %v1355
    %3031 = vmatprep.subr.bf16.mxu0 %v1352
    %3032 = vmatpush1.bf16.msra.mxu0 %v1351
    %3033 = vmatprep.subr.bf16.mxu0 %v1348
    %3034 = vmatpush1.bf16.msra.mxu0 %v1347
    %3035 = vmatprep.subr.bf16.mxu0 %v1344
    %3036 = vmatpush1.bf16.msra.mxu0 %v1343
    %3037 = vmatprep.subr.bf16.mxu0 %v1340
    %3038 = vmatpush1.bf16.msra.mxu0 %v1339
    %3039 = vmatprep.subr.bf16.mxu0 0
    %3040 = vmatpush2.bf16.msra.mxu0 0
    %3041 = vmatprep.subr.bf16.mxu0 0
    %3042 = vmatpush2.bf16.msra.mxu0 0
    %3043 = vmatprep.subr.bf16.mxu0 0
    %3044 = vmatpush2.bf16.msra.mxu0 0
    %3045 = vmatprep.subr.bf16.mxu0 0
    %3046 = vmatpush2.bf16.msra.mxu0 0
    %3047 = vmatprep.subr.bf16.mxu0 0
    %3048 = vmatpush2.bf16.msra.mxu0 0
    %3049 = vmatprep.subr.bf16.mxu0 0
    %3050 = vmatpush2.bf16.msra.mxu0 0
    %3051 = vmatprep.subr.bf16.mxu0 0
    %3052 = vmatpush2.bf16.msra.mxu0 0
    %3053 = vmatprep.subr.bf16.mxu0 0
    %3054 = vmatpush2.bf16.msra.mxu0 0
    %3055 = vmatprep.mubr.bf16.mxu0 0
    %3056 = vmatmul.mubr.bf16.gmra.mxu0 %v2981
    %v3057 = vpop.f32.mrf.mxu0
    %v3058 = vadd.f32 0.0, %v3057
    %v3059 = vpop.f32.mrf.mxu0
    %v3060 = vadd.f32 0.0, %v3059
    %v3061 = vpop.f32.mrf.mxu0
    %v3062 = vpop.f32.mrf.mxu0
    %3063 = vdwg.mxu0
    %v3064 = vadd.f32 %v2976, %v3017
    %v3065 = vadd.f32 %v2977, %v3019
    %v3066 = vadd.f32 %v2978, %v3058
    %v3067 = vadd.f32 %v2979, %v3060
    %v3068 = vxor.u32 %v3064, 2147483648
    %v3069 = vmul.f32 %v3068, 1.442695
    %v3070 = vpow.pop %v3069
    %v3071 = vadd.f32 %v3070, 1.0
    %v3072 = vrcp.pop %v3071
    %v3073 = vmul.f32 1.0, %v3072
    %v3074 = vxor.u32 %v3065, 2147483648
    %v3075 = vmul.f32 %v3074, 1.442695
    %v3076 = vpow.pop %v3075
    %v3077 = vadd.f32 %v3076, 1.0
    %v3078 = vrcp.pop %v3077
    %v3079 = vmul.f32 1.0, %v3078
    %v3080 = vtanh.pop %v3066
    %v3081 = vxor.u32 %v3067, 2147483648
    %v3082 = vmul.f32 %v3081, 1.442695
    %v3083 = vpow.pop %v3082
    %v3084 = vadd.f32 %v3083, 1.0
    %v3085 = vrcp.pop %v3084
    %v3086 = vmul.f32 1.0, %v3085
    %v3087 = vld [vmem:[%s868] sm:$0xff]
    %v3088 = vmul.f32 %v3079, %v3087
    %v3089 = vmul.f32 %v3073, %v3080
    %v3090 = vadd.f32 %v3088, %v3089
    %v3091 = vtanh.pop %v3090
    %v3092 = vmul.f32 %v3086, %v3091
    %3093 = vst [vmem:[%s868] sm:$0xff] %v3090
    %3094 = vst [vmem:[%s866] sm:$0xff] %v3092
    %v3095 = vpack.c.bf16 %v3092, %v3092
    %s3096 = sadd.s32 %s2968, 8
    %s3097 = smul.addr %s3096, 4
    %s3098 = scalar_lea.vmem %s4, %s3097
    %3099 = vst [vmem:[%s3098] sm:$0xf] %v3095
    %s3100 = smul.u32 0, 4294967282
    %s3101 = sadd.s32 %s3100, 7
    %s3102 = smul.u32 %s3101, 8
    %s3103 = sshra.s32 %s3102, 3
    %s3104 = sand.u32 %s3102, 7
    %s3105 = smul.u32 %s3103, 4
    %s3106 = smul.addr %s3105, 8
    %s3107 = scalar_lea.vmem [#allocation2], %s3106
    %v3108 = vld [vmem:[%s3107] sm:$0xff]
    %v3109 = vld [vmem:[%s3107 + $0x8] sm:$0xff]
    %v3110 = vld [vmem:[%s3107 + $0x10] sm:$0xff]
    %v3111 = vld [vmem:[%s3107 + $0x18] sm:$0xff]
    %v3112 = vld [vmem:[#allocation3] sm:$0xff]
    %v3113 = vpack.c.bf16 %v3112, %v3112
    %3114 = vmatprep.subr.bf16.mxu0 %v1073
    %3115 = vmatpush1.bf16.msra.mxu0 %v1072
    %3116 = vmatprep.subr.bf16.mxu0 %v1069
    %3117 = vmatpush1.bf16.msra.mxu0 %v1068
    %3118 = vmatprep.subr.bf16.mxu0 %v1065
    %3119 = vmatpush1.bf16.msra.mxu0 %v1064
    %3120 = vmatprep.subr.bf16.mxu0 %v1061
    %3121 = vmatpush1.bf16.msra.mxu0 %v1060
    %3122 = vmatprep.subr.bf16.mxu0 %v1057
    %3123 = vmatpush1.bf16.msra.mxu0 %v1056
    %3124 = vmatprep.subr.bf16.mxu0 %v1053
    %3125 = vmatpush1.bf16.msra.mxu0 %v1052
    %3126 = vmatprep.subr.bf16.mxu0 %v1049
    %3127 = vmatpush1.bf16.msra.mxu0 %v1048
    %3128 = vmatprep.subr.bf16.mxu0 %v1045
    %3129 = vmatpush1.bf16.msra.mxu0 %v1044
    %3130 = vmatprep.subr.bf16.mxu0 0
    %3131 = vmatpush2.bf16.msra.mxu0 0
    %3132 = vmatprep.subr.bf16.mxu0 0
    %3133 = vmatpush2.bf16.msra.mxu0 0
    %3134 = vmatprep.subr.bf16.mxu0 0
    %3135 = vmatpush2.bf16.msra.mxu0 0
    %3136 = vmatprep.subr.bf16.mxu0 0
    %3137 = vmatpush2.bf16.msra.mxu0 0
    %3138 = vmatprep.subr.bf16.mxu0 0
    %3139 = vmatpush2.bf16.msra.mxu0 0
    %3140 = vmatprep.subr.bf16.mxu0 0
    %3141 = vmatpush2.bf16.msra.mxu0 0
    %3142 = vmatprep.subr.bf16.mxu0 0
    %3143 = vmatpush2.bf16.msra.mxu0 0
    %3144 = vmatprep.subr.bf16.mxu0 0
    %3145 = vmatpush2.bf16.msra.mxu0 0
    %3146 = vmatprep.mubr.bf16.mxu0 0
    %3147 = vmatmul.mubr.bf16.gmra.mxu0 %v3113
    %v3148 = vpop.f32.mrf.mxu0
    %v3149 = vadd.f32 0.0, %v3148
    %v3150 = vpop.f32.mrf.mxu0
    %v3151 = vadd.f32 0.0, %v3150
    %v3152 = vpop.f32.mrf.mxu0
    %v3153 = vpop.f32.mrf.mxu0
    %3154 = vdwg.mxu0
    %3155 = vmatprep.subr.bf16.mxu0 %v1075
    %3156 = vmatpush1.bf16.msra.mxu0 %v1074
    %3157 = vmatprep.subr.bf16.mxu0 %v1071
    %3158 = vmatpush1.bf16.msra.mxu0 %v1070
    %3159 = vmatprep.subr.bf16.mxu0 %v1067
    %3160 = vmatpush1.bf16.msra.mxu0 %v1066
    %3161 = vmatprep.subr.bf16.mxu0 %v1063
    %3162 = vmatpush1.bf16.msra.mxu0 %v1062
    %3163 = vmatprep.subr.bf16.mxu0 %v1059
    %3164 = vmatpush1.bf16.msra.mxu0 %v1058
    %3165 = vmatprep.subr.bf16.mxu0 %v1055
    %3166 = vmatpush1.bf16.msra.mxu0 %v1054
    %3167 = vmatprep.subr.bf16.mxu0 %v1051
    %3168 = vmatpush1.bf16.msra.mxu0 %v1050
    %3169 = vmatprep.subr.bf16.mxu0 %v1047
    %3170 = vmatpush1.bf16.msra.mxu0 %v1046
    %3171 = vmatprep.subr.bf16.mxu0 0
    %3172 = vmatpush2.bf16.msra.mxu0 0
    %3173 = vmatprep.subr.bf16.mxu0 0
    %3174 = vmatpush2.bf16.msra.mxu0 0
    %3175 = vmatprep.subr.bf16.mxu0 0
    %3176 = vmatpush2.bf16.msra.mxu0 0
    %3177 = vmatprep.subr.bf16.mxu0 0
    %3178 = vmatpush2.bf16.msra.mxu0 0
    %3179 = vmatprep.subr.bf16.mxu0 0
    %3180 = vmatpush2.bf16.msra.mxu0 0
    %3181 = vmatprep.subr.bf16.mxu0 0
    %3182 = vmatpush2.bf16.msra.mxu0 0
    %3183 = vmatprep.subr.bf16.mxu0 0
    %3184 = vmatpush2.bf16.msra.mxu0 0
    %3185 = vmatprep.subr.bf16.mxu0 0
    %3186 = vmatpush2.bf16.msra.mxu0 0
    %3187 = vmatprep.mubr.bf16.mxu0 0
    %3188 = vmatmul.mubr.bf16.gmra.mxu0 %v3113
    %v3189 = vpop.f32.mrf.mxu0
    %v3190 = vadd.f32 0.0, %v3189
    %v3191 = vpop.f32.mrf.mxu0
    %v3192 = vadd.f32 0.0, %v3191
    %v3193 = vpop.f32.mrf.mxu0
    %v3194 = vpop.f32.mrf.mxu0
    %3195 = vdwg.mxu0
    %v3196 = vadd.f32 %v3108, %v3149
    %v3197 = vadd.f32 %v3109, %v3151
    %v3198 = vadd.f32 %v3110, %v3190
    %v3199 = vadd.f32 %v3111, %v3192
    %v3200 = vxor.u32 %v3196, 2147483648
    %v3201 = vmul.f32 %v3200, 1.442695
    %v3202 = vpow.pop %v3201
    %v3203 = vadd.f32 %v3202, 1.0
    %v3204 = vrcp.pop %v3203
    %v3205 = vmul.f32 1.0, %v3204
    %v3206 = vxor.u32 %v3197, 2147483648
    %v3207 = vmul.f32 %v3206, 1.442695
    %v3208 = vpow.pop %v3207
    %v3209 = vadd.f32 %v3208, 1.0
    %v3210 = vrcp.pop %v3209
    %v3211 = vmul.f32 1.0, %v3210
    %v3212 = vtanh.pop %v3198
    %v3213 = vxor.u32 %v3199, 2147483648
    %v3214 = vmul.f32 %v3213, 1.442695
    %v3215 = vpow.pop %v3214
    %v3216 = vadd.f32 %v3215, 1.0
    %v3217 = vrcp.pop %v3216
    %v3218 = vmul.f32 1.0, %v3217
    %v3219 = vld [vmem:[#allocation4] sm:$0xff]
    %v3220 = vmul.f32 %v3211, %v3219
    %v3221 = vmul.f32 %v3205, %v3212
    %v3222 = vadd.f32 %v3220, %v3221
    %v3223 = vtanh.pop %v3222
    %v3224 = vmul.f32 %v3218, %v3223
    %3225 = vst [vmem:[#allocation4] sm:$0xff] %v3222
    %3226 = vst [vmem:[#allocation3] sm:$0xff] %v3224
    %v3227 = vpack.c.bf16 %v3224, %v3224
    %s3228 = smul.addr %s3101, 4
    %s3229 = scalar_lea.vmem %s4, %s3228
    %3230 = vst [vmem:[%s3229] sm:$0xf] %v3227
    %s3231 = smul.u32 %s1226, 4294967289
    %s3232 = sadd.s32 %s3231, 7
    %s3233 = smul.u32 %s3232, 8
    %s3234 = sadd.s32 %s3233, 64
    %s3235 = sshra.s32 %s3234, 3
    %s3236 = sand.u32 %s3234, 7
    %s3237 = smul.u32 %s3235, 4
    %s3238 = smul.addr %s3237, 8
    %s3239 = scalar_lea.vmem [#allocation2], %s3238
    %v3240 = vld [vmem:[%s3239] sm:$0xff]
    %v3241 = vld [vmem:[%s3239 + $0x8] sm:$0xff]
    %v3242 = vld [vmem:[%s3239 + $0x10] sm:$0xff]
    %v3243 = vld [vmem:[%s3239 + $0x18] sm:$0xff]
    %v3244 = vld [vmem:[%s866] sm:$0xff]
    %v3245 = vpack.c.bf16 %v3244, %v3244
    %3246 = vmatprep.subr.bf16.mxu0 %v1366
    %3247 = vmatpush1.bf16.msra.mxu0 %v1365
    %3248 = vmatprep.subr.bf16.mxu0 %v1362
    %3249 = vmatpush1.bf16.msra.mxu0 %v1361
    %3250 = vmatprep.subr.bf16.mxu0 %v1358
    %3251 = vmatpush1.bf16.msra.mxu0 %v1357
    %3252 = vmatprep.subr.bf16.mxu0 %v1354
    %3253 = vmatpush1.bf16.msra.mxu0 %v1353
    %3254 = vmatprep.subr.bf16.mxu0 %v1350
    %3255 = vmatpush1.bf16.msra.mxu0 %v1349
    %3256 = vmatprep.subr.bf16.mxu0 %v1346
    %3257 = vmatpush1.bf16.msra.mxu0 %v1345
    %3258 = vmatprep.subr.bf16.mxu0 %v1342
    %3259 = vmatpush1.bf16.msra.mxu0 %v1341
    %3260 = vmatprep.subr.bf16.mxu0 %v1338
    %3261 = vmatpush1.bf16.msra.mxu0 %v1337
    %3262 = vmatprep.subr.bf16.mxu0 0
    %3263 = vmatpush2.bf16.msra.mxu0 0
    %3264 = vmatprep.subr.bf16.mxu0 0
    %3265 = vmatpush2.bf16.msra.mxu0 0
    %3266 = vmatprep.subr.bf16.mxu0 0
    %3267 = vmatpush2.bf16.msra.mxu0 0
    %3268 = vmatprep.subr.bf16.mxu0 0
    %3269 = vmatpush2.bf16.msra.mxu0 0
    %3270 = vmatprep.subr.bf16.mxu0 0
    %3271 = vmatpush2.bf16.msra.mxu0 0
    %3272 = vmatprep.subr.bf16.mxu0 0
    %3273 = vmatpush2.bf16.msra.mxu0 0
    %3274 = vmatprep.subr.bf16.mxu0 0
    %3275 = vmatpush2.bf16.msra.mxu0 0
    %3276 = vmatprep.subr.bf16.mxu0 0
    %3277 = vmatpush2.bf16.msra.mxu0 0
    %3278 = vmatprep.mubr.bf16.mxu0 0
    %3279 = vmatmul.mubr.bf16.gmra.mxu0 %v3245
    %v3280 = vpop.f32.mrf.mxu0
    %v3281 = vadd.f32 0.0, %v3280
    %v3282 = vpop.f32.mrf.mxu0
    %v3283 = vadd.f32 0.0, %v3282
    %v3284 = vpop.f32.mrf.mxu0
    %v3285 = vpop.f32.mrf.mxu0
    %3286 = vdwg.mxu0
    %3287 = vmatprep.subr.bf16.mxu0 %v1368
    %3288 = vmatpush1.bf16.msra.mxu0 %v1367
    %3289 = vmatprep.subr.bf16.mxu0 %v1364
    %3290 = vmatpush1.bf16.msra.mxu0 %v1363
    %3291 = vmatprep.subr.bf16.mxu0 %v1360
    %3292 = vmatpush1.bf16.msra.mxu0 %v1359
    %3293 = vmatprep.subr.bf16.mxu0 %v1356
    %3294 = vmatpush1.bf16.msra.mxu0 %v1355
    %3295 = vmatprep.subr.bf16.mxu0 %v1352
    %3296 = vmatpush1.bf16.msra.mxu0 %v1351
    %3297 = vmatprep.subr.bf16.mxu0 %v1348
    %3298 = vmatpush1.bf16.msra.mxu0 %v1347
    %3299 = vmatprep.subr.bf16.mxu0 %v1344
    %3300 = vmatpush1.bf16.msra.mxu0 %v1343
    %3301 = vmatprep.subr.bf16.mxu0 %v1340
    %3302 = vmatpush1.bf16.msra.mxu0 %v1339
    %3303 = vmatprep.subr.bf16.mxu0 0
    %3304 = vmatpush2.bf16.msra.mxu0 0
    %3305 = vmatprep.subr.bf16.mxu0 0
    %3306 = vmatpush2.bf16.msra.mxu0 0
    %3307 = vmatprep.subr.bf16.mxu0 0
    %3308 = vmatpush2.bf16.msra.mxu0 0
    %3309 = vmatprep.subr.bf16.mxu0 0
    %3310 = vmatpush2.bf16.msra.mxu0 0
    %3311 = vmatprep.subr.bf16.mxu0 0
    %3312 = vmatpush2.bf16.msra.mxu0 0
    %3313 = vmatprep.subr.bf16.mxu0 0
    %3314 = vmatpush2.bf16.msra.mxu0 0
    %3315 = vmatprep.subr.bf16.mxu0 0
    %3316 = vmatpush2.bf16.msra.mxu0 0
    %3317 = vmatprep.subr.bf16.mxu0 0
    %3318 = vmatpush2.bf16.msra.mxu0 0
    %3319 = vmatprep.mubr.bf16.mxu0 0
    %3320 = vmatmul.mubr.bf16.gmra.mxu0 %v3245
    %v3321 = vpop.f32.mrf.mxu0
    %v3322 = vadd.f32 0.0, %v3321
    %v3323 = vpop.f32.mrf.mxu0
    %v3324 = vadd.f32 0.0, %v3323
    %v3325 = vpop.f32.mrf.mxu0
    %v3326 = vpop.f32.mrf.mxu0
    %3327 = vdwg.mxu0
    %v3328 = vadd.f32 %v3240, %v3281
    %v3329 = vadd.f32 %v3241, %v3283
    %v3330 = vadd.f32 %v3242, %v3322
    %v3331 = vadd.f32 %v3243, %v3324
    %v3332 = vxor.u32 %v3328, 2147483648
    %v3333 = vmul.f32 %v3332, 1.442695
    %v3334 = vpow.pop %v3333
    %v3335 = vadd.f32 %v3334, 1.0
    %v3336 = vrcp.pop %v3335
    %v3337 = vmul.f32 1.0, %v3336
    %v3338 = vxor.u32 %v3329, 2147483648
    %v3339 = vmul.f32 %v3338, 1.442695
    %v3340 = vpow.pop %v3339
    %v3341 = vadd.f32 %v3340, 1.0
    %v3342 = vrcp.pop %v3341
    %v3343 = vmul.f32 1.0, %v3342
    %v3344 = vtanh.pop %v3330
    %v3345 = vxor.u32 %v3331, 2147483648
    %v3346 = vmul.f32 %v3345, 1.442695
    %v3347 = vpow.pop %v3346
    %v3348 = vadd.f32 %v3347, 1.0
    %v3349 = vrcp.pop %v3348
    %v3350 = vmul.f32 1.0, %v3349
    %v3351 = vld [vmem:[%s868] sm:$0xff]
    %v3352 = vmul.f32 %v3343, %v3351
    %v3353 = vmul.f32 %v3337, %v3344
    %v3354 = vadd.f32 %v3352, %v3353
    %v3355 = vtanh.pop %v3354
    %v3356 = vmul.f32 %v3350, %v3355
    %3357 = vst [vmem:[%s868] sm:$0xff] %v3354
    %3358 = vst [vmem:[%s866] sm:$0xff] %v3356
    %v3359 = vpack.c.bf16 %v3356, %v3356
    %s3360 = sadd.s32 %s3232, 8
    %s3361 = smul.addr %s3360, 4
    %s3362 = scalar_lea.vmem %s4, %s3361
    %3363 = vst [vmem:[%s3362] sm:$0xf] %v3359
    // Predicated region
    $region26: #{lstm_model_forward.2} parent=1 // pred_check
      _
    $region27: #{lstm_model_forward.2} parent=1 // pred_check_branch
      %3365 = sbr.rel (0) target = $region29
    $region28: #{lstm_model_forward.2} parent=1 // pred_region
      _
    $region29: #{lstm_model_forward.2} parent=1 // pred_fallthru
      _
    // Predicated region
    $region30: #{lstm_model_forward.2} parent=1 // pred_check
      _
    $region31: #{lstm_model_forward.2} parent=1 // pred_check_branch
      %3367 = sbr.rel (0) target = $region33
    $region32: #{lstm_model_forward.2} parent=1 // pred_region
      _
    $region33: #{lstm_model_forward.2} parent=1 // pred_fallthru
      _
    %3368 = vsyncpa [#allocation6], 1
    %3369 = vsyncpa [#allocation8], 1

// kernel: lstm_model_forward.3
$region0: #{lstm_model_forward.3}
  #allocation0 [shape = 'u32[]', space=smem, size = 0x4, offset = 0x4, fixed_abs, tag = 'smem constant byte address 0x4 - core index']
  #allocation1 [shape = 'u32[144,128]{1,0:T(1,128)}', space=vmem, size = 0x12000, scoped, tag = 'internal scratch']
  #allocation2 [shape = 'f32[128,512]{1,0:T(8,128)}', space=vmem, size = 0x40000, scoped, tag = 'scratch operand']
  #allocation3 [shape = 'f32[2,8,128]{2,1,0:T(8,128)}', space=vmem, size = 0x2000, scoped, tag = 'scratch operand']
  #allocation4 [shape = 'f32[2,8,128]{2,1,0:T(8,128)}', space=vmem, size = 0x2000, scoped, tag = 'scratch operand']
  %s0 = inlined_call_operand.vmem [shape: bf16[2,64,128], index: 0, kind: input, shape index: {}]
  %s1 = inlined_call_operand.vmem [shape: bf16[2,2,128,512], index: 1, kind: input, shape index: {}]
  %s2 = inlined_call_operand.hbm [shape: bf16[2,128,512], index: 2, kind: input, shape index: {}]
  %s3 = inlined_call_operand.vmem [shape: f32[2,1,512], index: 3, kind: input, shape index: {}]
  %s4 = inlined_call_operand.vmem [shape: bf16[2,8,8,128], index: 4, kind: output, shape index: {}]
  %s5 = sld [smem:[#allocation0]]
  $region30: #{lstm_model_forward.3} parent=0
    _
  %s7 = ssub.s32 1, %s5
  %s8 = scalar_select 0, %s7, %s5
  $region1: #{lstm_model_forward.3} parent=0
    #allocation5 [shape = 'u8[262144]{0}', space=vmem, size = 0x40000, scoped, tag = 'input window, operand 2, single buffered']
    #allocation6 [shape = 's32[1]{0}', space=sflag, size = 0x4, scoped, tag = 'scoped memory for lstm_model_forward.3']
    %9 = vsyncpa [#allocation6], 0
    // Predicated region
    $region2: #{lstm_model_forward.3} parent=1 // pred_check
      _
    $region3: #{lstm_model_forward.3} parent=1 // pred_check_branch
      %11 = sbr.rel (0) target = $region5
    $region4: #{lstm_model_forward.3} parent=1 // pred_region
      _
    $region5: #{lstm_model_forward.3} parent=1 // pred_fallthru
      _
    // Predicated region
    $region6: #{lstm_model_forward.3} parent=1 // pred_check
      _
    $region7: #{lstm_model_forward.3} parent=1 // pred_check_branch
      %13 = sbr.rel (0) target = $region9
    $region8: #{lstm_model_forward.3} parent=1 // pred_region
      _
    $region9: #{lstm_model_forward.3} parent=1 // pred_fallthru
      _
    // Predicated region
    $region10: #{lstm_model_forward.3} parent=1 // pred_check
      _
    $region11: #{lstm_model_forward.3} parent=1 // pred_check_branch
      %15 = sbr.rel (0) target = $region13
    $region12: #{lstm_model_forward.3} parent=1 // pred_region
      %s17 = ssub.s32 8192, 8192
      %18 = vsyncadd [#allocation6], %s17
      %s19 = sshll.u32 [#allocation5], 4
      %s20 = int_to_ptr.vmem [resolvable:$true] %s19
      %25 = dma.hbm_to_vmem [thread:$0]  %s2, 8192, %s20, [#allocation6], 256, 256, 16
    $region13: #{lstm_model_forward.3} parent=1 // pred_fallthru
      _
    // Predicated region
    $region14: #{lstm_model_forward.3} parent=1 // pred_check
      _
    $region15: #{lstm_model_forward.3} parent=1 // pred_check_branch
      %27 = sbr.rel (0) target = $region17
    $region16: #{lstm_model_forward.3} parent=1 // pred_region
      _
    $region17: #{lstm_model_forward.3} parent=1 // pred_fallthru
      _
    // Predicated region
    $region18: #{lstm_model_forward.3} parent=1 // pred_check
      _
    $region19: #{lstm_model_forward.3} parent=1 // pred_check_branch
      %29 = sbr.rel (0) target = $region21
    $region20: #{lstm_model_forward.3} parent=1 // pred_region
      %30 = dma.done [#allocation6], 8192
    $region21: #{lstm_model_forward.3} parent=1 // pred_fallthru
      _
    %v32 = vld [vmem:[%s0] sm:$0xf]
    %v33 = vld [vmem:[%s0 + $0x4] sm:$0xf]
    %v34 = vld [vmem:[%s0 + $0x8] sm:$0xf]
    %v35 = vld [vmem:[%s0 + $0xc] sm:$0xf]
    %v36 = vld [vmem:[%s0 + $0x10] sm:$0xf]
    %v37 = vld [vmem:[%s0 + $0x14] sm:$0xf]
    %v38 = vld [vmem:[%s0 + $0x18] sm:$0xf]
    %v39 = vld [vmem:[%s0 + $0x1c] sm:$0xf]
    %s40 = scalar_lea.vmem %s0, 32
    %v41 = vld [vmem:[%s40] sm:$0xf]
    %v42 = vld [vmem:[%s40 + $0x4] sm:$0xf]
    %v43 = vld [vmem:[%s40 + $0x8] sm:$0xf]
    %v44 = vld [vmem:[%s40 + $0xc] sm:$0xf]
    %v45 = vld [vmem:[%s40 + $0x10] sm:$0xf]
    %v46 = vld [vmem:[%s40 + $0x14] sm:$0xf]
    %v47 = vld [vmem:[%s40 + $0x18] sm:$0xf]
    %v48 = vld [vmem:[%s40 + $0x1c] sm:$0xf]
    %v49 = vld [vmem:[%s1] sm:$0xff]
    %v50 = vld [vmem:[%s1 + $0x8] sm:$0xff]
    %v51 = vld [vmem:[%s1 + $0x10] sm:$0xff]
    %v52 = vld [vmem:[%s1 + $0x18] sm:$0xff]
    %v53 = vld [vmem:[%s1 + $0x20] sm:$0xff]
    %v54 = vld [vmem:[%s1 + $0x28] sm:$0xff]
    %v55 = vld [vmem:[%s1 + $0x30] sm:$0xff]
    %v56 = vld [vmem:[%s1 + $0x38] sm:$0xff]
    %v57 = vld [vmem:[%s1 + $0x40] sm:$0xff]
    %v58 = vld [vmem:[%s1 + $0x48] sm:$0xff]
    %v59 = vld [vmem:[%s1 + $0x50] sm:$0xff]
    %v60 = vld [vmem:[%s1 + $0x58] sm:$0xff]
    %v61 = vld [vmem:[%s1 + $0x60] sm:$0xff]
    %v62 = vld [vmem:[%s1 + $0x68] sm:$0xff]
    %v63 = vld [vmem:[%s1 + $0x70] sm:$0xff]
    %v64 = vld [vmem:[%s1 + $0x78] sm:$0xff]
    %v65 = vld [vmem:[%s1 + $0x80] sm:$0xff]
    %v66 = vld [vmem:[%s1 + $0x88] sm:$0xff]
    %v67 = vld [vmem:[%s1 + $0x90] sm:$0xff]
    %v68 = vld [vmem:[%s1 + $0x98] sm:$0xff]
    %v69 = vld [vmem:[%s1 + $0xa0] sm:$0xff]
    %v70 = vld [vmem:[%s1 + $0xa8] sm:$0xff]
    %v71 = vld [vmem:[%s1 + $0xb0] sm:$0xff]
    %v72 = vld [vmem:[%s1 + $0xb8] sm:$0xff]
    %v73 = vld [vmem:[%s1 + $0xc0] sm:$0xff]
    %v74 = vld [vmem:[%s1 + $0xc8] sm:$0xff]
    %v75 = vld [vmem:[%s1 + $0xd0] sm:$0xff]
    %v76 = vld [vmem:[%s1 + $0xd8] sm:$0xff]
    %v77 = vld [vmem:[%s1 + $0xe0] sm:$0xff]
    %v78 = vld [vmem:[%s1 + $0xe8] sm:$0xff]
    %v79 = vld [vmem:[%s1 + $0xf0] sm:$0xff]
    %v80 = vld [vmem:[%s1 + $0xf8] sm:$0xff]
    %s81 = scalar_lea.vmem %s1, 256
    %v82 = vld [vmem:[%s81] sm:$0xff]
    %v83 = vld [vmem:[%s81 + $0x8] sm:$0xff]
    %v84 = vld [vmem:[%s81 + $0x10] sm:$0xff]
    %v85 = vld [vmem:[%s81 + $0x18] sm:$0xff]
    %v86 = vld [vmem:[%s81 + $0x20] sm:$0xff]
    %v87 = vld [vmem:[%s81 + $0x28] sm:$0xff]
    %v88 = vld [vmem:[%s81 + $0x30] sm:$0xff]
    %v89 = vld [vmem:[%s81 + $0x38] sm:$0xff]
    %v90 = vld [vmem:[%s81 + $0x40] sm:$0xff]
    %v91 = vld [vmem:[%s81 + $0x48] sm:$0xff]
    %v92 = vld [vmem:[%s81 + $0x50] sm:$0xff]
    %v93 = vld [vmem:[%s81 + $0x58] sm:$0xff]
    %v94 = vld [vmem:[%s81 + $0x60] sm:$0xff]
    %v95 = vld [vmem:[%s81 + $0x68] sm:$0xff]
    %v96 = vld [vmem:[%s81 + $0x70] sm:$0xff]
    %v97 = vld [vmem:[%s81 + $0x78] sm:$0xff]
    %v98 = vld [vmem:[%s81 + $0x80] sm:$0xff]
    %v99 = vld [vmem:[%s81 + $0x88] sm:$0xff]
    %v100 = vld [vmem:[%s81 + $0x90] sm:$0xff]
    %v101 = vld [vmem:[%s81 + $0x98] sm:$0xff]
    %v102 = vld [vmem:[%s81 + $0xa0] sm:$0xff]
    %v103 = vld [vmem:[%s81 + $0xa8] sm:$0xff]
    %v104 = vld [vmem:[%s81 + $0xb0] sm:$0xff]
    %v105 = vld [vmem:[%s81 + $0xb8] sm:$0xff]
    %v106 = vld [vmem:[%s81 + $0xc0] sm:$0xff]
    %v107 = vld [vmem:[%s81 + $0xc8] sm:$0xff]
    %v108 = vld [vmem:[%s81 + $0xd0] sm:$0xff]
    %v109 = vld [vmem:[%s81 + $0xd8] sm:$0xff]
    %v110 = vld [vmem:[%s81 + $0xe0] sm:$0xff]
    %v111 = vld [vmem:[%s81 + $0xe8] sm:$0xff]
    %v112 = vld [vmem:[%s81 + $0xf0] sm:$0xff]
    %v113 = vld [vmem:[%s81 + $0xf8] sm:$0xff]
    %v122 = vunpack.c.l.b16 %v41
    %v123 = vunpack.c.l.b16 %v42
    %v124 = vunpack.c.l.b16 %v43
    %v125 = vunpack.c.l.b16 %v44
    %v126 = vunpack.c.l.b16 %v45
    %v127 = vunpack.c.l.b16 %v46
    %v128 = vunpack.c.l.b16 %v47
    %v129 = vunpack.c.l.b16 %v48
    %v130 = vpack.c.b16 %v123, %v122
    %v131 = vpack.c.b16 %v125, %v124
    %v132 = vpack.c.b16 %v127, %v126
    %v133 = vpack.c.b16 %v129, %v128
    %v170 = vunpack.c.l.b16 %v82
    %v171 = vunpack.c.h.b16 %v82
    %v172 = vunpack.c.l.b16 %v83
    %v173 = vunpack.c.h.b16 %v83
    %v174 = vunpack.c.l.b16 %v84
    %v175 = vunpack.c.h.b16 %v84
    %v176 = vunpack.c.l.b16 %v85
    %v177 = vunpack.c.h.b16 %v85
    %v178 = vunpack.c.l.b16 %v86
    %v179 = vunpack.c.h.b16 %v86
    %v180 = vunpack.c.l.b16 %v87
    %v181 = vunpack.c.h.b16 %v87
    %v182 = vunpack.c.l.b16 %v88
    %v183 = vunpack.c.h.b16 %v88
    %v184 = vunpack.c.l.b16 %v89
    %v185 = vunpack.c.h.b16 %v89
    %v186 = vunpack.c.l.b16 %v90
    %v187 = vunpack.c.h.b16 %v90
    %v188 = vunpack.c.l.b16 %v91
    %v189 = vunpack.c.h.b16 %v91
    %v190 = vunpack.c.l.b16 %v92
    %v191 = vunpack.c.h.b16 %v92
    %v192 = vunpack.c.l.b16 %v93
    %v193 = vunpack.c.h.b16 %v93
    %v194 = vunpack.c.l.b16 %v94
    %v195 = vunpack.c.h.b16 %v94
    %v196 = vunpack.c.l.b16 %v95
    %v197 = vunpack.c.h.b16 %v95
    %v198 = vunpack.c.l.b16 %v96
    %v199 = vunpack.c.h.b16 %v96
    %v200 = vunpack.c.l.b16 %v97
    %v201 = vunpack.c.h.b16 %v97
    %v202 = vunpack.c.l.b16 %v98
    %v203 = vunpack.c.h.b16 %v98
    %v204 = vunpack.c.l.b16 %v99
    %v205 = vunpack.c.h.b16 %v99
    %v206 = vunpack.c.l.b16 %v100
    %v207 = vunpack.c.h.b16 %v100
    %v208 = vunpack.c.l.b16 %v101
    %v209 = vunpack.c.h.b16 %v101
    %v210 = vunpack.c.l.b16 %v102
    %v211 = vunpack.c.h.b16 %v102
    %v212 = vunpack.c.l.b16 %v103
    %v213 = vunpack.c.h.b16 %v103
    %v214 = vunpack.c.l.b16 %v104
    %v215 = vunpack.c.h.b16 %v104
    %v216 = vunpack.c.l.b16 %v105
    %v217 = vunpack.c.h.b16 %v105
    %v218 = vunpack.c.l.b16 %v106
    %v219 = vunpack.c.h.b16 %v106
    %v220 = vunpack.c.l.b16 %v107
    %v221 = vunpack.c.h.b16 %v107
    %v222 = vunpack.c.l.b16 %v108
    %v223 = vunpack.c.h.b16 %v108
    %v224 = vunpack.c.l.b16 %v109
    %v225 = vunpack.c.h.b16 %v109
    %v226 = vunpack.c.l.b16 %v110
    %v227 = vunpack.c.h.b16 %v110
    %v228 = vunpack.c.l.b16 %v111
    %v229 = vunpack.c.h.b16 %v111
    %v230 = vunpack.c.l.b16 %v112
    %v231 = vunpack.c.h.b16 %v112
    %v232 = vunpack.c.l.b16 %v113
    %v233 = vunpack.c.h.b16 %v113
    %v234 = vpack.c.b16 %v174, %v170
    %v235 = vpack.c.b16 %v175, %v171
    %v236 = vpack.c.b16 %v176, %v172
    %v237 = vpack.c.b16 %v177, %v173
    %v238 = vpack.c.b16 %v182, %v178
    %v239 = vpack.c.b16 %v183, %v179
    %v240 = vpack.c.b16 %v184, %v180
    %v241 = vpack.c.b16 %v185, %v181
    %v242 = vpack.c.b16 %v190, %v186
    %v243 = vpack.c.b16 %v191, %v187
    %v244 = vpack.c.b16 %v192, %v188
    %v245 = vpack.c.b16 %v193, %v189
    %v246 = vpack.c.b16 %v198, %v194
    %v247 = vpack.c.b16 %v199, %v195
    %v248 = vpack.c.b16 %v200, %v196
    %v249 = vpack.c.b16 %v201, %v197
    %v250 = vpack.c.b16 %v206, %v202
    %v251 = vpack.c.b16 %v207, %v203
    %v252 = vpack.c.b16 %v208, %v204
    %v253 = vpack.c.b16 %v209, %v205
    %v254 = vpack.c.b16 %v214, %v210
    %v255 = vpack.c.b16 %v215, %v211
    %v256 = vpack.c.b16 %v216, %v212
    %v257 = vpack.c.b16 %v217, %v213
    %v258 = vpack.c.b16 %v222, %v218
    %v259 = vpack.c.b16 %v223, %v219
    %v260 = vpack.c.b16 %v224, %v220
    %v261 = vpack.c.b16 %v225, %v221
    %v262 = vpack.c.b16 %v230, %v226
    %v263 = vpack.c.b16 %v231, %v227
    %v264 = vpack.c.b16 %v232, %v228
    %v265 = vpack.c.b16 %v233, %v229
    %298 = vmatprep.subr.bf16.mxu0 %v263
    %299 = vmatpush1.bf16.msra.mxu0 %v262
    %300 = vmatprep.subr.bf16.mxu0 %v259
    %301 = vmatpush1.bf16.msra.mxu0 %v258
    %302 = vmatprep.subr.bf16.mxu0 %v255
    %303 = vmatpush1.bf16.msra.mxu0 %v254
    %304 = vmatprep.subr.bf16.mxu0 %v251
    %305 = vmatpush1.bf16.msra.mxu0 %v250
    %306 = vmatprep.subr.bf16.mxu0 %v247
    %307 = vmatpush1.bf16.msra.mxu0 %v246
    %308 = vmatprep.subr.bf16.mxu0 %v243
    %309 = vmatpush1.bf16.msra.mxu0 %v242
    %310 = vmatprep.subr.bf16.mxu0 %v239
    %311 = vmatpush1.bf16.msra.mxu0 %v238
    %312 = vmatprep.subr.bf16.mxu0 %v235
    %313 = vmatpush1.bf16.msra.mxu0 %v234
    %314 = vmatprep.subr.bf16.mxu0 0
    %315 = vmatpush2.bf16.msra.mxu0 0
    %316 = vmatprep.subr.bf16.mxu0 0
    %317 = vmatpush2.bf16.msra.mxu0 0
    %318 = vmatprep.subr.bf16.mxu0 0
    %319 = vmatpush2.bf16.msra.mxu0 0
    %320 = vmatprep.subr.bf16.mxu0 0
    %321 = vmatpush2.bf16.msra.mxu0 0
    %322 = vmatprep.subr.bf16.mxu0 0
    %323 = vmatpush2.bf16.msra.mxu0 0
    %324 = vmatprep.subr.bf16.mxu0 0
    %325 = vmatpush2.bf16.msra.mxu0 0
    %326 = vmatprep.subr.bf16.mxu0 0
    %327 = vmatpush2.bf16.msra.mxu0 0
    %328 = vmatprep.subr.bf16.mxu0 0
    %329 = vmatpush2.bf16.msra.mxu0 0
    %330 = vmatprep.mubr.bf16.mxu0 0
    %331 = vmatmul.mubr.bf16.gmra.mxu0 %v130
    %v332 = vpop.f32.mrf.mxu0
    %v333 = vadd.f32 0.0, %v332
    %v334 = vpop.f32.mrf.mxu0
    %v335 = vadd.f32 0.0, %v334
    %v336 = vpop.f32.mrf.mxu0
    %v337 = vadd.f32 0.0, %v336
    %v338 = vpop.f32.mrf.mxu0
    %v339 = vadd.f32 0.0, %v338
    %340 = vmatprep.mubr.bf16.mxu0 0
    %341 = vmatmul.mubr.bf16.gmra.mxu0 %v131
    %v342 = vpop.f32.mrf.mxu0
    %v343 = vadd.f32 0.0, %v342
    %v344 = vpop.f32.mrf.mxu0
    %v345 = vadd.f32 0.0, %v344
    %v346 = vpop.f32.mrf.mxu0
    %v347 = vadd.f32 0.0, %v346
    %v348 = vpop.f32.mrf.mxu0
    %v349 = vadd.f32 0.0, %v348
    %350 = vmatprep.mubr.bf16.mxu0 0
    %351 = vmatmul.mubr.bf16.gmra.mxu0 %v132
    %v352 = vpop.f32.mrf.mxu0
    %v353 = vadd.f32 0.0, %v352
    %v354 = vpop.f32.mrf.mxu0
    %v355 = vadd.f32 0.0, %v354
    %v356 = vpop.f32.mrf.mxu0
    %v357 = vadd.f32 0.0, %v356
    %v358 = vpop.f32.mrf.mxu0
    %v359 = vadd.f32 0.0, %v358
    %360 = vmatprep.mubr.bf16.mxu0 0
    %361 = vmatmul.mubr.bf16.gmra.mxu0 %v133
    %v362 = vpop.f32.mrf.mxu0
    %v363 = vadd.f32 0.0, %v362
    %v364 = vpop.f32.mrf.mxu0
    %v365 = vadd.f32 0.0, %v364
    %v366 = vpop.f32.mrf.mxu0
    %v367 = vadd.f32 0.0, %v366
    %v368 = vpop.f32.mrf.mxu0
    %v369 = vadd.f32 0.0, %v368
    %370 = vdwg.mxu0
    %371 = vmatprep.subr.bf16.mxu0 %v265
    %372 = vmatpush1.bf16.msra.mxu0 %v264
    %373 = vmatprep.subr.bf16.mxu0 %v261
    %374 = vmatpush1.bf16.msra.mxu0 %v260
    %375 = vmatprep.subr.bf16.mxu0 %v257
    %376 = vmatpush1.bf16.msra.mxu0 %v256
    %377 = vmatprep.subr.bf16.mxu0 %v253
    %378 = vmatpush1.bf16.msra.mxu0 %v252
    %379 = vmatprep.subr.bf16.mxu0 %v249
    %380 = vmatpush1.bf16.msra.mxu0 %v248
    %381 = vmatprep.subr.bf16.mxu0 %v245
    %382 = vmatpush1.bf16.msra.mxu0 %v244
    %383 = vmatprep.subr.bf16.mxu0 %v241
    %384 = vmatpush1.bf16.msra.mxu0 %v240
    %385 = vmatprep.subr.bf16.mxu0 %v237
    %386 = vmatpush1.bf16.msra.mxu0 %v236
    %387 = vmatprep.subr.bf16.mxu0 0
    %388 = vmatpush2.bf16.msra.mxu0 0
    %389 = vmatprep.subr.bf16.mxu0 0
    %390 = vmatpush2.bf16.msra.mxu0 0
    %391 = vmatprep.subr.bf16.mxu0 0
    %392 = vmatpush2.bf16.msra.mxu0 0
    %393 = vmatprep.subr.bf16.mxu0 0
    %394 = vmatpush2.bf16.msra.mxu0 0
    %395 = vmatprep.subr.bf16.mxu0 0
    %396 = vmatpush2.bf16.msra.mxu0 0
    %397 = vmatprep.subr.bf16.mxu0 0
    %398 = vmatpush2.bf16.msra.mxu0 0
    %399 = vmatprep.subr.bf16.mxu0 0
    %400 = vmatpush2.bf16.msra.mxu0 0
    %401 = vmatprep.subr.bf16.mxu0 0
    %402 = vmatpush2.bf16.msra.mxu0 0
    %403 = vmatprep.mubr.bf16.mxu0 0
    %404 = vmatmul.mubr.bf16.gmra.mxu0 %v130
    %v405 = vpop.f32.mrf.mxu0
    %v406 = vadd.f32 0.0, %v405
    %v407 = vpop.f32.mrf.mxu0
    %v408 = vadd.f32 0.0, %v407
    %v409 = vpop.f32.mrf.mxu0
    %v410 = vadd.f32 0.0, %v409
    %v411 = vpop.f32.mrf.mxu0
    %v412 = vadd.f32 0.0, %v411
    %413 = vmatprep.mubr.bf16.mxu0 0
    %414 = vmatmul.mubr.bf16.gmra.mxu0 %v131
    %v415 = vpop.f32.mrf.mxu0
    %v416 = vadd.f32 0.0, %v415
    %v417 = vpop.f32.mrf.mxu0
    %v418 = vadd.f32 0.0, %v417
    %v419 = vpop.f32.mrf.mxu0
    %v420 = vadd.f32 0.0, %v419
    %v421 = vpop.f32.mrf.mxu0
    %v422 = vadd.f32 0.0, %v421
    %423 = vmatprep.mubr.bf16.mxu0 0
    %424 = vmatmul.mubr.bf16.gmra.mxu0 %v132
    %v425 = vpop.f32.mrf.mxu0
    %v426 = vadd.f32 0.0, %v425
    %v427 = vpop.f32.mrf.mxu0
    %v428 = vadd.f32 0.0, %v427
    %v429 = vpop.f32.mrf.mxu0
    %v430 = vadd.f32 0.0, %v429
    %v431 = vpop.f32.mrf.mxu0
    %v432 = vadd.f32 0.0, %v431
    %433 = vmatprep.mubr.bf16.mxu0 0
    %434 = vmatmul.mubr.bf16.gmra.mxu0 %v133
    %v435 = vpop.f32.mrf.mxu0
    %v436 = vadd.f32 0.0, %v435
    %v437 = vpop.f32.mrf.mxu0
    %v438 = vadd.f32 0.0, %v437
    %v439 = vpop.f32.mrf.mxu0
    %v440 = vadd.f32 0.0, %v439
    %v441 = vpop.f32.mrf.mxu0
    %v442 = vadd.f32 0.0, %v441
    %443 = vdwg.mxu0
    %v452 = vunpack.c.l.b16 %v32
    %v453 = vunpack.c.l.b16 %v33
    %v454 = vunpack.c.l.b16 %v34
    %v455 = vunpack.c.l.b16 %v35
    %v456 = vunpack.c.l.b16 %v36
    %v457 = vunpack.c.l.b16 %v37
    %v458 = vunpack.c.l.b16 %v38
    %v459 = vunpack.c.l.b16 %v39
    %v460 = vpack.c.b16 %v453, %v452
    %v461 = vpack.c.b16 %v455, %v454
    %v462 = vpack.c.b16 %v457, %v456
    %v463 = vpack.c.b16 %v459, %v458
    %v500 = vunpack.c.l.b16 %v49
    %v501 = vunpack.c.h.b16 %v49
    %v502 = vunpack.c.l.b16 %v50
    %v503 = vunpack.c.h.b16 %v50
    %v504 = vunpack.c.l.b16 %v51
    %v505 = vunpack.c.h.b16 %v51
    %v506 = vunpack.c.l.b16 %v52
    %v507 = vunpack.c.h.b16 %v52
    %v508 = vunpack.c.l.b16 %v53
    %v509 = vunpack.c.h.b16 %v53
    %v510 = vunpack.c.l.b16 %v54
    %v511 = vunpack.c.h.b16 %v54
    %v512 = vunpack.c.l.b16 %v55
    %v513 = vunpack.c.h.b16 %v55
    %v514 = vunpack.c.l.b16 %v56
    %v515 = vunpack.c.h.b16 %v56
    %v516 = vunpack.c.l.b16 %v57
    %v517 = vunpack.c.h.b16 %v57
    %v518 = vunpack.c.l.b16 %v58
    %v519 = vunpack.c.h.b16 %v58
    %v520 = vunpack.c.l.b16 %v59
    %v521 = vunpack.c.h.b16 %v59
    %v522 = vunpack.c.l.b16 %v60
    %v523 = vunpack.c.h.b16 %v60
    %v524 = vunpack.c.l.b16 %v61
    %v525 = vunpack.c.h.b16 %v61
    %v526 = vunpack.c.l.b16 %v62
    %v527 = vunpack.c.h.b16 %v62
    %v528 = vunpack.c.l.b16 %v63
    %v529 = vunpack.c.h.b16 %v63
    %v530 = vunpack.c.l.b16 %v64
    %v531 = vunpack.c.h.b16 %v64
    %v532 = vunpack.c.l.b16 %v65
    %v533 = vunpack.c.h.b16 %v65
    %v534 = vunpack.c.l.b16 %v66
    %v535 = vunpack.c.h.b16 %v66
    %v536 = vunpack.c.l.b16 %v67
    %v537 = vunpack.c.h.b16 %v67
    %v538 = vunpack.c.l.b16 %v68
    %v539 = vunpack.c.h.b16 %v68
    %v540 = vunpack.c.l.b16 %v69
    %v541 = vunpack.c.h.b16 %v69
    %v542 = vunpack.c.l.b16 %v70
    %v543 = vunpack.c.h.b16 %v70
    %v544 = vunpack.c.l.b16 %v71
    %v545 = vunpack.c.h.b16 %v71
    %v546 = vunpack.c.l.b16 %v72
    %v547 = vunpack.c.h.b16 %v72
    %v548 = vunpack.c.l.b16 %v73
    %v549 = vunpack.c.h.b16 %v73
    %v550 = vunpack.c.l.b16 %v74
    %v551 = vunpack.c.h.b16 %v74
    %v552 = vunpack.c.l.b16 %v75
    %v553 = vunpack.c.h.b16 %v75
    %v554 = vunpack.c.l.b16 %v76
    %v555 = vunpack.c.h.b16 %v76
    %v556 = vunpack.c.l.b16 %v77
    %v557 = vunpack.c.h.b16 %v77
    %v558 = vunpack.c.l.b16 %v78
    %v559 = vunpack.c.h.b16 %v78
    %v560 = vunpack.c.l.b16 %v79
    %v561 = vunpack.c.h.b16 %v79
    %v562 = vunpack.c.l.b16 %v80
    %v563 = vunpack.c.h.b16 %v80
    %v564 = vpack.c.b16 %v504, %v500
    %v565 = vpack.c.b16 %v505, %v501
    %v566 = vpack.c.b16 %v506, %v502
    %v567 = vpack.c.b16 %v507, %v503
    %v568 = vpack.c.b16 %v512, %v508
    %v569 = vpack.c.b16 %v513, %v509
    %v570 = vpack.c.b16 %v514, %v510
    %v571 = vpack.c.b16 %v515, %v511
    %v572 = vpack.c.b16 %v520, %v516
    %v573 = vpack.c.b16 %v521, %v517
    %v574 = vpack.c.b16 %v522, %v518
    %v575 = vpack.c.b16 %v523, %v519
    %v576 = vpack.c.b16 %v528, %v524
    %v577 = vpack.c.b16 %v529, %v525
    %v578 = vpack.c.b16 %v530, %v526
    %v579 = vpack.c.b16 %v531, %v527
    %v580 = vpack.c.b16 %v536, %v532
    %v581 = vpack.c.b16 %v537, %v533
    %v582 = vpack.c.b16 %v538, %v534
    %v583 = vpack.c.b16 %v539, %v535
    %v584 = vpack.c.b16 %v544, %v540
    %v585 = vpack.c.b16 %v545, %v541
    %v586 = vpack.c.b16 %v546, %v542
    %v587 = vpack.c.b16 %v547, %v543
    %v588 = vpack.c.b16 %v552, %v548
    %v589 = vpack.c.b16 %v553, %v549
    %v590 = vpack.c.b16 %v554, %v550
    %v591 = vpack.c.b16 %v555, %v551
    %v592 = vpack.c.b16 %v560, %v556
    %v593 = vpack.c.b16 %v561, %v557
    %v594 = vpack.c.b16 %v562, %v558
    %v595 = vpack.c.b16 %v563, %v559
    %628 = vmatprep.subr.bf16.mxu0 %v593
    %629 = vmatpush1.bf16.msra.mxu0 %v592
    %630 = vmatprep.subr.bf16.mxu0 %v589
    %631 = vmatpush1.bf16.msra.mxu0 %v588
    %632 = vmatprep.subr.bf16.mxu0 %v585
    %633 = vmatpush1.bf16.msra.mxu0 %v584
    %634 = vmatprep.subr.bf16.mxu0 %v581
    %635 = vmatpush1.bf16.msra.mxu0 %v580
    %636 = vmatprep.subr.bf16.mxu0 %v577
    %637 = vmatpush1.bf16.msra.mxu0 %v576
    %638 = vmatprep.subr.bf16.mxu0 %v573
    %639 = vmatpush1.bf16.msra.mxu0 %v572
    %640 = vmatprep.subr.bf16.mxu0 %v569
    %641 = vmatpush1.bf16.msra.mxu0 %v568
    %642 = vmatprep.subr.bf16.mxu0 %v565
    %643 = vmatpush1.bf16.msra.mxu0 %v564
    %644 = vmatprep.subr.bf16.mxu0 0
    %645 = vmatpush2.bf16.msra.mxu0 0
    %646 = vmatprep.subr.bf16.mxu0 0
    %647 = vmatpush2.bf16.msra.mxu0 0
    %648 = vmatprep.subr.bf16.mxu0 0
    %649 = vmatpush2.bf16.msra.mxu0 0
    %650 = vmatprep.subr.bf16.mxu0 0
    %651 = vmatpush2.bf16.msra.mxu0 0
    %652 = vmatprep.subr.bf16.mxu0 0
    %653 = vmatpush2.bf16.msra.mxu0 0
    %654 = vmatprep.subr.bf16.mxu0 0
    %655 = vmatpush2.bf16.msra.mxu0 0
    %656 = vmatprep.subr.bf16.mxu0 0
    %657 = vmatpush2.bf16.msra.mxu0 0
    %658 = vmatprep.subr.bf16.mxu0 0
    %659 = vmatpush2.bf16.msra.mxu0 0
    %660 = vmatprep.mubr.bf16.mxu0 0
    %661 = vmatmul.mubr.bf16.gmra.mxu0 %v460
    %v662 = vpop.f32.mrf.mxu0
    %v663 = vadd.f32 %v333, %v662
    %v664 = vpop.f32.mrf.mxu0
    %v665 = vadd.f32 %v335, %v664
    %v666 = vpop.f32.mrf.mxu0
    %v667 = vadd.f32 %v337, %v666
    %v668 = vpop.f32.mrf.mxu0
    %v669 = vadd.f32 %v339, %v668
    %670 = vmatprep.mubr.bf16.mxu0 0
    %671 = vmatmul.mubr.bf16.gmra.mxu0 %v461
    %v672 = vpop.f32.mrf.mxu0
    %v673 = vadd.f32 %v343, %v672
    %v674 = vpop.f32.mrf.mxu0
    %v675 = vadd.f32 %v345, %v674
    %v676 = vpop.f32.mrf.mxu0
    %v677 = vadd.f32 %v347, %v676
    %v678 = vpop.f32.mrf.mxu0
    %v679 = vadd.f32 %v349, %v678
    %680 = vmatprep.mubr.bf16.mxu0 0
    %681 = vmatmul.mubr.bf16.gmra.mxu0 %v462
    %v682 = vpop.f32.mrf.mxu0
    %v683 = vadd.f32 %v353, %v682
    %v684 = vpop.f32.mrf.mxu0
    %v685 = vadd.f32 %v355, %v684
    %v686 = vpop.f32.mrf.mxu0
    %v687 = vadd.f32 %v357, %v686
    %v688 = vpop.f32.mrf.mxu0
    %v689 = vadd.f32 %v359, %v688
    %690 = vmatprep.mubr.bf16.mxu0 0
    %691 = vmatmul.mubr.bf16.gmra.mxu0 %v463
    %v692 = vpop.f32.mrf.mxu0
    %v693 = vadd.f32 %v363, %v692
    %v694 = vpop.f32.mrf.mxu0
    %v695 = vadd.f32 %v365, %v694
    %v696 = vpop.f32.mrf.mxu0
    %v697 = vadd.f32 %v367, %v696
    %v698 = vpop.f32.mrf.mxu0
    %v699 = vadd.f32 %v369, %v698
    %700 = vdwg.mxu0
    %701 = vmatprep.subr.bf16.mxu0 %v595
    %702 = vmatpush1.bf16.msra.mxu0 %v594
    %703 = vmatprep.subr.bf16.mxu0 %v591
    %704 = vmatpush1.bf16.msra.mxu0 %v590
    %705 = vmatprep.subr.bf16.mxu0 %v587
    %706 = vmatpush1.bf16.msra.mxu0 %v586
    %707 = vmatprep.subr.bf16.mxu0 %v583
    %708 = vmatpush1.bf16.msra.mxu0 %v582
    %709 = vmatprep.subr.bf16.mxu0 %v579
    %710 = vmatpush1.bf16.msra.mxu0 %v578
    %711 = vmatprep.subr.bf16.mxu0 %v575
    %712 = vmatpush1.bf16.msra.mxu0 %v574
    %713 = vmatprep.subr.bf16.mxu0 %v571
    %714 = vmatpush1.bf16.msra.mxu0 %v570
    %715 = vmatprep.subr.bf16.mxu0 %v567
    %716 = vmatpush1.bf16.msra.mxu0 %v566
    %717 = vmatprep.subr.bf16.mxu0 0
    %718 = vmatpush2.bf16.msra.mxu0 0
    %719 = vmatprep.subr.bf16.mxu0 0
    %720 = vmatpush2.bf16.msra.mxu0 0
    %721 = vmatprep.subr.bf16.mxu0 0
    %722 = vmatpush2.bf16.msra.mxu0 0
    %723 = vmatprep.subr.bf16.mxu0 0
    %724 = vmatpush2.bf16.msra.mxu0 0
    %725 = vmatprep.subr.bf16.mxu0 0
    %726 = vmatpush2.bf16.msra.mxu0 0
    %727 = vmatprep.subr.bf16.mxu0 0
    %728 = vmatpush2.bf16.msra.mxu0 0
    %729 = vmatprep.subr.bf16.mxu0 0
    %730 = vmatpush2.bf16.msra.mxu0 0
    %731 = vmatprep.subr.bf16.mxu0 0
    %732 = vmatpush2.bf16.msra.mxu0 0
    %733 = vmatprep.mubr.bf16.mxu0 0
    %734 = vmatmul.mubr.bf16.gmra.mxu0 %v460
    %v735 = vpop.f32.mrf.mxu0
    %v736 = vadd.f32 %v406, %v735
    %v737 = vpop.f32.mrf.mxu0
    %v738 = vadd.f32 %v408, %v737
    %v739 = vpop.f32.mrf.mxu0
    %v740 = vadd.f32 %v410, %v739
    %v741 = vpop.f32.mrf.mxu0
    %v742 = vadd.f32 %v412, %v741
    %743 = vmatprep.mubr.bf16.mxu0 0
    %744 = vmatmul.mubr.bf16.gmra.mxu0 %v461
    %v745 = vpop.f32.mrf.mxu0
    %v746 = vadd.f32 %v416, %v745
    %v747 = vpop.f32.mrf.mxu0
    %v748 = vadd.f32 %v418, %v747
    %v749 = vpop.f32.mrf.mxu0
    %v750 = vadd.f32 %v420, %v749
    %v751 = vpop.f32.mrf.mxu0
    %v752 = vadd.f32 %v422, %v751
    %753 = vmatprep.mubr.bf16.mxu0 0
    %754 = vmatmul.mubr.bf16.gmra.mxu0 %v462
    %v755 = vpop.f32.mrf.mxu0
    %v756 = vadd.f32 %v426, %v755
    %v757 = vpop.f32.mrf.mxu0
    %v758 = vadd.f32 %v428, %v757
    %v759 = vpop.f32.mrf.mxu0
    %v760 = vadd.f32 %v430, %v759
    %v761 = vpop.f32.mrf.mxu0
    %v762 = vadd.f32 %v432, %v761
    %763 = vmatprep.mubr.bf16.mxu0 0
    %764 = vmatmul.mubr.bf16.gmra.mxu0 %v463
    %v765 = vpop.f32.mrf.mxu0
    %v766 = vadd.f32 %v436, %v765
    %v767 = vpop.f32.mrf.mxu0
    %v768 = vadd.f32 %v438, %v767
    %v769 = vpop.f32.mrf.mxu0
    %v770 = vadd.f32 %v440, %v769
    %v771 = vpop.f32.mrf.mxu0
    %v772 = vadd.f32 %v442, %v771
    %773 = vdwg.mxu0
    %v774 = vld [vmem:[%s3] sm:$0xf]
    %v776 = vlaneseq
    %v777 = vshrl.u32 %v776, 7
    %v778 = vsub.s32 0, %v777
    %v779 = vrot.slane %v774, %v778
    %v780 = vlaneseq
    %v781 = vshrl.u32 %v780, 7
    %v782 = vsub.s32 1, %v781
    %v783 = vrot.slane %v774, %v782
    %v784 = vlaneseq
    %v785 = vshrl.u32 %v784, 7
    %v786 = vsub.s32 2, %v785
    %v787 = vrot.slane %v774, %v786
    %v788 = vlaneseq
    %v789 = vshrl.u32 %v788, 7
    %v790 = vsub.s32 3, %v789
    %v791 = vrot.slane %v774, %v790
    %v796 = vadd.f32 %v663, %v779
    %v797 = vadd.f32 %v665, %v783
    %v798 = vadd.f32 %v736, %v787
    %v799 = vadd.f32 %v738, %v791
    %v800 = vadd.f32 %v667, %v779
    %v801 = vadd.f32 %v669, %v783
    %v802 = vadd.f32 %v740, %v787
    %v803 = vadd.f32 %v742, %v791
    %v804 = vadd.f32 %v673, %v779
    %v805 = vadd.f32 %v675, %v783
    %v806 = vadd.f32 %v746, %v787
    %v807 = vadd.f32 %v748, %v791
    %v808 = vadd.f32 %v677, %v779
    %v809 = vadd.f32 %v679, %v783
    %v810 = vadd.f32 %v750, %v787
    %v811 = vadd.f32 %v752, %v791
    %v812 = vadd.f32 %v683, %v779
    %v813 = vadd.f32 %v685, %v783
    %v814 = vadd.f32 %v756, %v787
    %v815 = vadd.f32 %v758, %v791
    %v816 = vadd.f32 %v687, %v779
    %v817 = vadd.f32 %v689, %v783
    %v818 = vadd.f32 %v760, %v787
    %v819 = vadd.f32 %v762, %v791
    %v820 = vadd.f32 %v693, %v779
    %v821 = vadd.f32 %v695, %v783
    %v822 = vadd.f32 %v766, %v787
    %v823 = vadd.f32 %v768, %v791
    %v824 = vadd.f32 %v697, %v779
    %v825 = vadd.f32 %v699, %v783
    %v826 = vadd.f32 %v770, %v787
    %v827 = vadd.f32 %v772, %v791
    %828 = vst [vmem:[#allocation2] sm:$0xff] %v796
    %829 = vst [vmem:[#allocation2 + $0x8] sm:$0xff] %v797
    %830 = vst [vmem:[#allocation2 + $0x10] sm:$0xff] %v798
    %831 = vst [vmem:[#allocation2 + $0x18] sm:$0xff] %v799
    %832 = vst [vmem:[#allocation2 + $0x20] sm:$0xff] %v800
    %833 = vst [vmem:[#allocation2 + $0x28] sm:$0xff] %v801
    %834 = vst [vmem:[#allocation2 + $0x30] sm:$0xff] %v802
    %835 = vst [vmem:[#allocation2 + $0x38] sm:$0xff] %v803
    %836 = vst [vmem:[#allocation2 + $0x40] sm:$0xff] %v804
    %837 = vst [vmem:[#allocation2 + $0x48] sm:$0xff] %v805
    %838 = vst [vmem:[#allocation2 + $0x50] sm:$0xff] %v806
    %839 = vst [vmem:[#allocation2 + $0x58] sm:$0xff] %v807
    %840 = vst [vmem:[#allocation2 + $0x60] sm:$0xff] %v808
    %841 = vst [vmem:[#allocation2 + $0x68] sm:$0xff] %v809
    %842 = vst [vmem:[#allocation2 + $0x70] sm:$0xff] %v810
    %843 = vst [vmem:[#allocation2 + $0x78] sm:$0xff] %v811
    %844 = vst [vmem:[#allocation2 + $0x80] sm:$0xff] %v812
    %845 = vst [vmem:[#allocation2 + $0x88] sm:$0xff] %v813
    %846 = vst [vmem:[#allocation2 + $0x90] sm:$0xff] %v814
    %847 = vst [vmem:[#allocation2 + $0x98] sm:$0xff] %v815
    %848 = vst [vmem:[#allocation2 + $0xa0] sm:$0xff] %v816
    %849 = vst [vmem:[#allocation2 + $0xa8] sm:$0xff] %v817
    %850 = vst [vmem:[#allocation2 + $0xb0] sm:$0xff] %v818
    %851 = vst [vmem:[#allocation2 + $0xb8] sm:$0xff] %v819
    %852 = vst [vmem:[#allocation2 + $0xc0] sm:$0xff] %v820
    %853 = vst [vmem:[#allocation2 + $0xc8] sm:$0xff] %v821
    %854 = vst [vmem:[#allocation2 + $0xd0] sm:$0xff] %v822
    %855 = vst [vmem:[#allocation2 + $0xd8] sm:$0xff] %v823
    %856 = vst [vmem:[#allocation2 + $0xe0] sm:$0xff] %v824
    %857 = vst [vmem:[#allocation2 + $0xe8] sm:$0xff] %v825
    %858 = vst [vmem:[#allocation2 + $0xf0] sm:$0xff] %v826
    %859 = vst [vmem:[#allocation2 + $0xf8] sm:$0xff] %v827
    %860 = vst [vmem:[#allocation3] sm:$0xff] 0.0
    %861 = vst [vmem:[#allocation4] sm:$0xff] 0.0
    %s862 = scalar_lea.vmem %s1, 512
    %v863 = vld [vmem:[%s862] sm:$0xff]
    %v864 = vld [vmem:[%s862 + $0x8] sm:$0xff]
    %v865 = vld [vmem:[%s862 + $0x10] sm:$0xff]
    %v866 = vld [vmem:[%s862 + $0x18] sm:$0xff]
    %v867 = vld [vmem:[%s862 + $0x20] sm:$0xff]
    %v868 = vld [vmem:[%s862 + $0x28] sm:$0xff]
    %v869 = vld [vmem:[%s862 + $0x30] sm:$0xff]
    %v870 = vld [vmem:[%s862 + $0x38] sm:$0xff]
    %v871 = vld [vmem:[%s862 + $0x40] sm:$0xff]
    %v872 = vld [vmem:[%s862 + $0x48] sm:$0xff]
    %v873 = vld [vmem:[%s862 + $0x50] sm:$0xff]
    %v874 = vld [vmem:[%s862 + $0x58] sm:$0xff]
    %v875 = vld [vmem:[%s862 + $0x60] sm:$0xff]
    %v876 = vld [vmem:[%s862 + $0x68] sm:$0xff]
    %v877 = vld [vmem:[%s862 + $0x70] sm:$0xff]
    %v878 = vld [vmem:[%s862 + $0x78] sm:$0xff]
    %v879 = vld [vmem:[%s862 + $0x80] sm:$0xff]
    %v880 = vld [vmem:[%s862 + $0x88] sm:$0xff]
    %v881 = vld [vmem:[%s862 + $0x90] sm:$0xff]
    %v882 = vld [vmem:[%s862 + $0x98] sm:$0xff]
    %v883 = vld [vmem:[%s862 + $0xa0] sm:$0xff]
    %v884 = vld [vmem:[%s862 + $0xa8] sm:$0xff]
    %v885 = vld [vmem:[%s862 + $0xb0] sm:$0xff]
    %v886 = vld [vmem:[%s862 + $0xb8] sm:$0xff]
    %v887 = vld [vmem:[%s862 + $0xc0] sm:$0xff]
    %v888 = vld [vmem:[%s862 + $0xc8] sm:$0xff]
    %v889 = vld [vmem:[%s862 + $0xd0] sm:$0xff]
    %v890 = vld [vmem:[%s862 + $0xd8] sm:$0xff]
    %v891 = vld [vmem:[%s862 + $0xe0] sm:$0xff]
    %v892 = vld [vmem:[%s862 + $0xe8] sm:$0xff]
    %v893 = vld [vmem:[%s862 + $0xf0] sm:$0xff]
    %v894 = vld [vmem:[%s862 + $0xf8] sm:$0xff]
    %s895 = scalar_lea.vmem %s1, 768
    %v896 = vld [vmem:[%s895] sm:$0xff]
    %v897 = vld [vmem:[%s895 + $0x8] sm:$0xff]
    %v898 = vld [vmem:[%s895 + $0x10] sm:$0xff]
    %v899 = vld [vmem:[%s895 + $0x18] sm:$0xff]
    %v900 = vld [vmem:[%s895 + $0x20] sm:$0xff]
    %v901 = vld [vmem:[%s895 + $0x28] sm:$0xff]
    %v902 = vld [vmem:[%s895 + $0x30] sm:$0xff]
    %v903 = vld [vmem:[%s895 + $0x38] sm:$0xff]
    %v904 = vld [vmem:[%s895 + $0x40] sm:$0xff]
    %v905 = vld [vmem:[%s895 + $0x48] sm:$0xff]
    %v906 = vld [vmem:[%s895 + $0x50] sm:$0xff]
    %v907 = vld [vmem:[%s895 + $0x58] sm:$0xff]
    %v908 = vld [vmem:[%s895 + $0x60] sm:$0xff]
    %v909 = vld [vmem:[%s895 + $0x68] sm:$0xff]
    %v910 = vld [vmem:[%s895 + $0x70] sm:$0xff]
    %v911 = vld [vmem:[%s895 + $0x78] sm:$0xff]
    %v912 = vld [vmem:[%s895 + $0x80] sm:$0xff]
    %v913 = vld [vmem:[%s895 + $0x88] sm:$0xff]
    %v914 = vld [vmem:[%s895 + $0x90] sm:$0xff]
    %v915 = vld [vmem:[%s895 + $0x98] sm:$0xff]
    %v916 = vld [vmem:[%s895 + $0xa0] sm:$0xff]
    %v917 = vld [vmem:[%s895 + $0xa8] sm:$0xff]
    %v918 = vld [vmem:[%s895 + $0xb0] sm:$0xff]
    %v919 = vld [vmem:[%s895 + $0xb8] sm:$0xff]
    %v920 = vld [vmem:[%s895 + $0xc0] sm:$0xff]
    %v921 = vld [vmem:[%s895 + $0xc8] sm:$0xff]
    %v922 = vld [vmem:[%s895 + $0xd0] sm:$0xff]
    %v923 = vld [vmem:[%s895 + $0xd8] sm:$0xff]
    %v924 = vld [vmem:[%s895 + $0xe0] sm:$0xff]
    %v925 = vld [vmem:[%s895 + $0xe8] sm:$0xff]
    %v926 = vld [vmem:[%s895 + $0xf0] sm:$0xff]
    %v927 = vld [vmem:[%s895 + $0xf8] sm:$0xff]
    %v960 = vunpack.c.l.b16 %v896
    %v961 = vunpack.c.h.b16 %v896
    %v962 = vunpack.c.l.b16 %v897
    %v963 = vunpack.c.h.b16 %v897
    %v964 = vunpack.c.l.b16 %v898
    %v965 = vunpack.c.h.b16 %v898
    %v966 = vunpack.c.l.b16 %v899
    %v967 = vunpack.c.h.b16 %v899
    %v968 = vunpack.c.l.b16 %v900
    %v969 = vunpack.c.h.b16 %v900
    %v970 = vunpack.c.l.b16 %v901
    %v971 = vunpack.c.h.b16 %v901
    %v972 = vunpack.c.l.b16 %v902
    %v973 = vunpack.c.h.b16 %v902
    %v974 = vunpack.c.l.b16 %v903
    %v975 = vunpack.c.h.b16 %v903
    %v976 = vunpack.c.l.b16 %v904
    %v977 = vunpack.c.h.b16 %v904
    %v978 = vunpack.c.l.b16 %v905
    %v979 = vunpack.c.h.b16 %v905
    %v980 = vunpack.c.l.b16 %v906
    %v981 = vunpack.c.h.b16 %v906
    %v982 = vunpack.c.l.b16 %v907
    %v983 = vunpack.c.h.b16 %v907
    %v984 = vunpack.c.l.b16 %v908
    %v985 = vunpack.c.h.b16 %v908
    %v986 = vunpack.c.l.b16 %v909
    %v987 = vunpack.c.h.b16 %v909
    %v988 = vunpack.c.l.b16 %v910
    %v989 = vunpack.c.h.b16 %v910
    %v990 = vunpack.c.l.b16 %v911
    %v991 = vunpack.c.h.b16 %v911
    %v992 = vunpack.c.l.b16 %v912
    %v993 = vunpack.c.h.b16 %v912
    %v994 = vunpack.c.l.b16 %v913
    %v995 = vunpack.c.h.b16 %v913
    %v996 = vunpack.c.l.b16 %v914
    %v997 = vunpack.c.h.b16 %v914
    %v998 = vunpack.c.l.b16 %v915
    %v999 = vunpack.c.h.b16 %v915
    %v1000 = vunpack.c.l.b16 %v916
    %v1001 = vunpack.c.h.b16 %v916
    %v1002 = vunpack.c.l.b16 %v917
    %v1003 = vunpack.c.h.b16 %v917
    %v1004 = vunpack.c.l.b16 %v918
    %v1005 = vunpack.c.h.b16 %v918
    %v1006 = vunpack.c.l.b16 %v919
    %v1007 = vunpack.c.h.b16 %v919
    %v1008 = vunpack.c.l.b16 %v920
    %v1009 = vunpack.c.h.b16 %v920
    %v1010 = vunpack.c.l.b16 %v921
    %v1011 = vunpack.c.h.b16 %v921
    %v1012 = vunpack.c.l.b16 %v922
    %v1013 = vunpack.c.h.b16 %v922
    %v1014 = vunpack.c.l.b16 %v923
    %v1015 = vunpack.c.h.b16 %v923
    %v1016 = vunpack.c.l.b16 %v924
    %v1017 = vunpack.c.h.b16 %v924
    %v1018 = vunpack.c.l.b16 %v925
    %v1019 = vunpack.c.h.b16 %v925
    %v1020 = vunpack.c.l.b16 %v926
    %v1021 = vunpack.c.h.b16 %v926
    %v1022 = vunpack.c.l.b16 %v927
    %v1023 = vunpack.c.h.b16 %v927
    %v1024 = vpack.c.b16 %v964, %v960
    %v1025 = vpack.c.b16 %v965, %v961
    %v1026 = vpack.c.b16 %v966, %v962
    %v1027 = vpack.c.b16 %v967, %v963
    %v1028 = vpack.c.b16 %v972, %v968
    %v1029 = vpack.c.b16 %v973, %v969
    %v1030 = vpack.c.b16 %v974, %v970
    %v1031 = vpack.c.b16 %v975, %v971
    %v1032 = vpack.c.b16 %v980, %v976
    %v1033 = vpack.c.b16 %v981, %v977
    %v1034 = vpack.c.b16 %v982, %v978
    %v1035 = vpack.c.b16 %v983, %v979
    %v1036 = vpack.c.b16 %v988, %v984
    %v1037 = vpack.c.b16 %v989, %v985
    %v1038 = vpack.c.b16 %v990, %v986
    %v1039 = vpack.c.b16 %v991, %v987
    %v1040 = vpack.c.b16 %v996, %v992
    %v1041 = vpack.c.b16 %v997, %v993
    %v1042 = vpack.c.b16 %v998, %v994
    %v1043 = vpack.c.b16 %v999, %v995
    %v1044 = vpack.c.b16 %v1004, %v1000
    %v1045 = vpack.c.b16 %v1005, %v1001
    %v1046 = vpack.c.b16 %v1006, %v1002
    %v1047 = vpack.c.b16 %v1007, %v1003
    %v1048 = vpack.c.b16 %v1012, %v1008
    %v1049 = vpack.c.b16 %v1013, %v1009
    %v1050 = vpack.c.b16 %v1014, %v1010
    %v1051 = vpack.c.b16 %v1015, %v1011
    %v1052 = vpack.c.b16 %v1020, %v1016
    %v1053 = vpack.c.b16 %v1021, %v1017
    %v1054 = vpack.c.b16 %v1022, %v1018
    %v1055 = vpack.c.b16 %v1023, %v1019
    %1088 = vmatprep.subr.bf16.mxu0 %v1053
    %1089 = vmatpush1.bf16.msra.mxu0 %v1052
    %1090 = vmatprep.subr.bf16.mxu0 %v1049
    %1091 = vmatpush1.bf16.msra.mxu0 %v1048
    %1092 = vmatprep.subr.bf16.mxu0 %v1045
    %1093 = vmatpush1.bf16.msra.mxu0 %v1044
    %1094 = vmatprep.subr.bf16.mxu0 %v1041
    %1095 = vmatpush1.bf16.msra.mxu0 %v1040
    %1096 = vmatprep.subr.bf16.mxu0 %v1037
    %1097 = vmatpush1.bf16.msra.mxu0 %v1036
    %1098 = vmatprep.subr.bf16.mxu0 %v1033
    %1099 = vmatpush1.bf16.msra.mxu0 %v1032
    %1100 = vmatprep.subr.bf16.mxu0 %v1029
    %1101 = vmatpush1.bf16.msra.mxu0 %v1028
    %1102 = vmatprep.subr.bf16.mxu0 %v1025
    %1103 = vmatpush1.bf16.msra.mxu0 %v1024
    %1104 = vmatprep.subr.bf16.mxu0 0
    %1105 = vmatpush2.bf16.msra.mxu0 0
    %1106 = vmatprep.subr.bf16.mxu0 0
    %1107 = vmatpush2.bf16.msra.mxu0 0
    %1108 = vmatprep.subr.bf16.mxu0 0
    %1109 = vmatpush2.bf16.msra.mxu0 0
    %1110 = vmatprep.subr.bf16.mxu0 0
    %1111 = vmatpush2.bf16.msra.mxu0 0
    %1112 = vmatprep.subr.bf16.mxu0 0
    %1113 = vmatpush2.bf16.msra.mxu0 0
    %1114 = vmatprep.subr.bf16.mxu0 0
    %1115 = vmatpush2.bf16.msra.mxu0 0
    %1116 = vmatprep.subr.bf16.mxu0 0
    %1117 = vmatpush2.bf16.msra.mxu0 0
    %1118 = vmatprep.subr.bf16.mxu0 0
    %1119 = vmatpush2.bf16.msra.mxu0 0
    %1120 = vmatprep.mubr.bf16.mxu0 0
    %1121 = vmatmul.mubr.bf16.gmra.mxu0 %v130
    %v1122 = vpop.f32.mrf.mxu0
    %v1123 = vadd.f32 0.0, %v1122
    %v1124 = vpop.f32.mrf.mxu0
    %v1125 = vadd.f32 0.0, %v1124
    %v1126 = vpop.f32.mrf.mxu0
    %v1127 = vadd.f32 0.0, %v1126
    %v1128 = vpop.f32.mrf.mxu0
    %v1129 = vadd.f32 0.0, %v1128
    %1130 = vmatprep.mubr.bf16.mxu0 0
    %1131 = vmatmul.mubr.bf16.gmra.mxu0 %v131
    %v1132 = vpop.f32.mrf.mxu0
    %v1133 = vadd.f32 0.0, %v1132
    %v1134 = vpop.f32.mrf.mxu0
    %v1135 = vadd.f32 0.0, %v1134
    %v1136 = vpop.f32.mrf.mxu0
    %v1137 = vadd.f32 0.0, %v1136
    %v1138 = vpop.f32.mrf.mxu0
    %v1139 = vadd.f32 0.0, %v1138
    %1140 = vmatprep.mubr.bf16.mxu0 0
    %1141 = vmatmul.mubr.bf16.gmra.mxu0 %v132
    %v1142 = vpop.f32.mrf.mxu0
    %v1143 = vadd.f32 0.0, %v1142
    %v1144 = vpop.f32.mrf.mxu0
    %v1145 = vadd.f32 0.0, %v1144
    %v1146 = vpop.f32.mrf.mxu0
    %v1147 = vadd.f32 0.0, %v1146
    %v1148 = vpop.f32.mrf.mxu0
    %v1149 = vadd.f32 0.0, %v1148
    %1150 = vmatprep.mubr.bf16.mxu0 0
    %1151 = vmatmul.mubr.bf16.gmra.mxu0 %v133
    %v1152 = vpop.f32.mrf.mxu0
    %v1153 = vadd.f32 0.0, %v1152
    %v1154 = vpop.f32.mrf.mxu0
    %v1155 = vadd.f32 0.0, %v1154
    %v1156 = vpop.f32.mrf.mxu0
    %v1157 = vadd.f32 0.0, %v1156
    %v1158 = vpop.f32.mrf.mxu0
    %v1159 = vadd.f32 0.0, %v1158
    %1160 = vdwg.mxu0
    %1161 = vmatprep.subr.bf16.mxu0 %v1055
    %1162 = vmatpush1.bf16.msra.mxu0 %v1054
    %1163 = vmatprep.subr.bf16.mxu0 %v1051
    %1164 = vmatpush1.bf16.msra.mxu0 %v1050
    %1165 = vmatprep.subr.bf16.mxu0 %v1047
    %1166 = vmatpush1.bf16.msra.mxu0 %v1046
    %1167 = vmatprep.subr.bf16.mxu0 %v1043
    %1168 = vmatpush1.bf16.msra.mxu0 %v1042
    %1169 = vmatprep.subr.bf16.mxu0 %v1039
    %1170 = vmatpush1.bf16.msra.mxu0 %v1038
    %1171 = vmatprep.subr.bf16.mxu0 %v1035
    %1172 = vmatpush1.bf16.msra.mxu0 %v1034
    %1173 = vmatprep.subr.bf16.mxu0 %v1031
    %1174 = vmatpush1.bf16.msra.mxu0 %v1030
    %1175 = vmatprep.subr.bf16.mxu0 %v1027
    %1176 = vmatpush1.bf16.msra.mxu0 %v1026
    %1177 = vmatprep.subr.bf16.mxu0 0
    %1178 = vmatpush2.bf16.msra.mxu0 0
    %1179 = vmatprep.subr.bf16.mxu0 0
    %1180 = vmatpush2.bf16.msra.mxu0 0
    %1181 = vmatprep.subr.bf16.mxu0 0
    %1182 = vmatpush2.bf16.msra.mxu0 0
    %1183 = vmatprep.subr.bf16.mxu0 0
    %1184 = vmatpush2.bf16.msra.mxu0 0
    %1185 = vmatprep.subr.bf16.mxu0 0
    %1186 = vmatpush2.bf16.msra.mxu0 0
    %1187 = vmatprep.subr.bf16.mxu0 0
    %1188 = vmatpush2.bf16.msra.mxu0 0
    %1189 = vmatprep.subr.bf16.mxu0 0
    %1190 = vmatpush2.bf16.msra.mxu0 0
    %1191 = vmatprep.subr.bf16.mxu0 0
    %1192 = vmatpush2.bf16.msra.mxu0 0
    %1193 = vmatprep.mubr.bf16.mxu0 0
    %1194 = vmatmul.mubr.bf16.gmra.mxu0 %v130
    %v1195 = vpop.f32.mrf.mxu0
    %v1196 = vadd.f32 0.0, %v1195
    %v1197 = vpop.f32.mrf.mxu0
    %v1198 = vadd.f32 0.0, %v1197
    %v1199 = vpop.f32.mrf.mxu0
    %v1200 = vadd.f32 0.0, %v1199
    %v1201 = vpop.f32.mrf.mxu0
    %v1202 = vadd.f32 0.0, %v1201
    %1203 = vmatprep.mubr.bf16.mxu0 0
    %1204 = vmatmul.mubr.bf16.gmra.mxu0 %v131
    %v1205 = vpop.f32.mrf.mxu0
    %v1206 = vadd.f32 0.0, %v1205
    %v1207 = vpop.f32.mrf.mxu0
    %v1208 = vadd.f32 0.0, %v1207
    %v1209 = vpop.f32.mrf.mxu0
    %v1210 = vadd.f32 0.0, %v1209
    %v1211 = vpop.f32.mrf.mxu0
    %v1212 = vadd.f32 0.0, %v1211
    %1213 = vmatprep.mubr.bf16.mxu0 0
    %1214 = vmatmul.mubr.bf16.gmra.mxu0 %v132
    %v1215 = vpop.f32.mrf.mxu0
    %v1216 = vadd.f32 0.0, %v1215
    %v1217 = vpop.f32.mrf.mxu0
    %v1218 = vadd.f32 0.0, %v1217
    %v1219 = vpop.f32.mrf.mxu0
    %v1220 = vadd.f32 0.0, %v1219
    %v1221 = vpop.f32.mrf.mxu0
    %v1222 = vadd.f32 0.0, %v1221
    %1223 = vmatprep.mubr.bf16.mxu0 0
    %1224 = vmatmul.mubr.bf16.gmra.mxu0 %v133
    %v1225 = vpop.f32.mrf.mxu0
    %v1226 = vadd.f32 0.0, %v1225
    %v1227 = vpop.f32.mrf.mxu0
    %v1228 = vadd.f32 0.0, %v1227
    %v1229 = vpop.f32.mrf.mxu0
    %v1230 = vadd.f32 0.0, %v1229
    %v1231 = vpop.f32.mrf.mxu0
    %v1232 = vadd.f32 0.0, %v1231
    %1233 = vdwg.mxu0
    %v1266 = vunpack.c.l.b16 %v863
    %v1267 = vunpack.c.h.b16 %v863
    %v1268 = vunpack.c.l.b16 %v864
    %v1269 = vunpack.c.h.b16 %v864
    %v1270 = vunpack.c.l.b16 %v865
    %v1271 = vunpack.c.h.b16 %v865
    %v1272 = vunpack.c.l.b16 %v866
    %v1273 = vunpack.c.h.b16 %v866
    %v1274 = vunpack.c.l.b16 %v867
    %v1275 = vunpack.c.h.b16 %v867
    %v1276 = vunpack.c.l.b16 %v868
    %v1277 = vunpack.c.h.b16 %v868
    %v1278 = vunpack.c.l.b16 %v869
    %v1279 = vunpack.c.h.b16 %v869
    %v1280 = vunpack.c.l.b16 %v870
    %v1281 = vunpack.c.h.b16 %v870
    %v1282 = vunpack.c.l.b16 %v871
    %v1283 = vunpack.c.h.b16 %v871
    %v1284 = vunpack.c.l.b16 %v872
    %v1285 = vunpack.c.h.b16 %v872
    %v1286 = vunpack.c.l.b16 %v873
    %v1287 = vunpack.c.h.b16 %v873
    %v1288 = vunpack.c.l.b16 %v874
    %v1289 = vunpack.c.h.b16 %v874
    %v1290 = vunpack.c.l.b16 %v875
    %v1291 = vunpack.c.h.b16 %v875
    %v1292 = vunpack.c.l.b16 %v876
    %v1293 = vunpack.c.h.b16 %v876
    %v1294 = vunpack.c.l.b16 %v877
    %v1295 = vunpack.c.h.b16 %v877
    %v1296 = vunpack.c.l.b16 %v878
    %v1297 = vunpack.c.h.b16 %v878
    %v1298 = vunpack.c.l.b16 %v879
    %v1299 = vunpack.c.h.b16 %v879
    %v1300 = vunpack.c.l.b16 %v880
    %v1301 = vunpack.c.h.b16 %v880
    %v1302 = vunpack.c.l.b16 %v881
    %v1303 = vunpack.c.h.b16 %v881
    %v1304 = vunpack.c.l.b16 %v882
    %v1305 = vunpack.c.h.b16 %v882
    %v1306 = vunpack.c.l.b16 %v883
    %v1307 = vunpack.c.h.b16 %v883
    %v1308 = vunpack.c.l.b16 %v884
    %v1309 = vunpack.c.h.b16 %v884
    %v1310 = vunpack.c.l.b16 %v885
    %v1311 = vunpack.c.h.b16 %v885
    %v1312 = vunpack.c.l.b16 %v886
    %v1313 = vunpack.c.h.b16 %v886
    %v1314 = vunpack.c.l.b16 %v887
    %v1315 = vunpack.c.h.b16 %v887
    %v1316 = vunpack.c.l.b16 %v888
    %v1317 = vunpack.c.h.b16 %v888
    %v1318 = vunpack.c.l.b16 %v889
    %v1319 = vunpack.c.h.b16 %v889
    %v1320 = vunpack.c.l.b16 %v890
    %v1321 = vunpack.c.h.b16 %v890
    %v1322 = vunpack.c.l.b16 %v891
    %v1323 = vunpack.c.h.b16 %v891
    %v1324 = vunpack.c.l.b16 %v892
    %v1325 = vunpack.c.h.b16 %v892
    %v1326 = vunpack.c.l.b16 %v893
    %v1327 = vunpack.c.h.b16 %v893
    %v1328 = vunpack.c.l.b16 %v894
    %v1329 = vunpack.c.h.b16 %v894
    %v1330 = vpack.c.b16 %v1270, %v1266
    %v1331 = vpack.c.b16 %v1271, %v1267
    %v1332 = vpack.c.b16 %v1272, %v1268
    %v1333 = vpack.c.b16 %v1273, %v1269
    %v1334 = vpack.c.b16 %v1278, %v1274
    %v1335 = vpack.c.b16 %v1279, %v1275
    %v1336 = vpack.c.b16 %v1280, %v1276
    %v1337 = vpack.c.b16 %v1281, %v1277
    %v1338 = vpack.c.b16 %v1286, %v1282
    %v1339 = vpack.c.b16 %v1287, %v1283
    %v1340 = vpack.c.b16 %v1288, %v1284
    %v1341 = vpack.c.b16 %v1289, %v1285
    %v1342 = vpack.c.b16 %v1294, %v1290
    %v1343 = vpack.c.b16 %v1295, %v1291
    %v1344 = vpack.c.b16 %v1296, %v1292
    %v1345 = vpack.c.b16 %v1297, %v1293
    %v1346 = vpack.c.b16 %v1302, %v1298
    %v1347 = vpack.c.b16 %v1303, %v1299
    %v1348 = vpack.c.b16 %v1304, %v1300
    %v1349 = vpack.c.b16 %v1305, %v1301
    %v1350 = vpack.c.b16 %v1310, %v1306
    %v1351 = vpack.c.b16 %v1311, %v1307
    %v1352 = vpack.c.b16 %v1312, %v1308
    %v1353 = vpack.c.b16 %v1313, %v1309
    %v1354 = vpack.c.b16 %v1318, %v1314
    %v1355 = vpack.c.b16 %v1319, %v1315
    %v1356 = vpack.c.b16 %v1320, %v1316
    %v1357 = vpack.c.b16 %v1321, %v1317
    %v1358 = vpack.c.b16 %v1326, %v1322
    %v1359 = vpack.c.b16 %v1327, %v1323
    %v1360 = vpack.c.b16 %v1328, %v1324
    %v1361 = vpack.c.b16 %v1329, %v1325
    %1394 = vmatprep.subr.bf16.mxu0 %v1359
    %1395 = vmatpush1.bf16.msra.mxu0 %v1358
    %1396 = vmatprep.subr.bf16.mxu0 %v1355
    %1397 = vmatpush1.bf16.msra.mxu0 %v1354
    %1398 = vmatprep.subr.bf16.mxu0 %v1351
    %1399 = vmatpush1.bf16.msra.mxu0 %v1350
    %1400 = vmatprep.subr.bf16.mxu0 %v1347
    %1401 = vmatpush1.bf16.msra.mxu0 %v1346
    %1402 = vmatprep.subr.bf16.mxu0 %v1343
    %1403 = vmatpush1.bf16.msra.mxu0 %v1342
    %1404 = vmatprep.subr.bf16.mxu0 %v1339
    %1405 = vmatpush1.bf16.msra.mxu0 %v1338
    %1406 = vmatprep.subr.bf16.mxu0 %v1335
    %1407 = vmatpush1.bf16.msra.mxu0 %v1334
    %1408 = vmatprep.subr.bf16.mxu0 %v1331
    %1409 = vmatpush1.bf16.msra.mxu0 %v1330
    %1410 = vmatprep.subr.bf16.mxu0 0
    %1411 = vmatpush2.bf16.msra.mxu0 0
    %1412 = vmatprep.subr.bf16.mxu0 0
    %1413 = vmatpush2.bf16.msra.mxu0 0
    %1414 = vmatprep.subr.bf16.mxu0 0
    %1415 = vmatpush2.bf16.msra.mxu0 0
    %1416 = vmatprep.subr.bf16.mxu0 0
    %1417 = vmatpush2.bf16.msra.mxu0 0
    %1418 = vmatprep.subr.bf16.mxu0 0
    %1419 = vmatpush2.bf16.msra.mxu0 0
    %1420 = vmatprep.subr.bf16.mxu0 0
    %1421 = vmatpush2.bf16.msra.mxu0 0
    %1422 = vmatprep.subr.bf16.mxu0 0
    %1423 = vmatpush2.bf16.msra.mxu0 0
    %1424 = vmatprep.subr.bf16.mxu0 0
    %1425 = vmatpush2.bf16.msra.mxu0 0
    %1426 = vmatprep.mubr.bf16.mxu0 0
    %1427 = vmatmul.mubr.bf16.gmra.mxu0 %v460
    %v1428 = vpop.f32.mrf.mxu0
    %v1429 = vadd.f32 %v1123, %v1428
    %v1430 = vpop.f32.mrf.mxu0
    %v1431 = vadd.f32 %v1125, %v1430
    %v1432 = vpop.f32.mrf.mxu0
    %v1433 = vadd.f32 %v1127, %v1432
    %v1434 = vpop.f32.mrf.mxu0
    %v1435 = vadd.f32 %v1129, %v1434
    %1436 = vmatprep.mubr.bf16.mxu0 0
    %1437 = vmatmul.mubr.bf16.gmra.mxu0 %v461
    %v1438 = vpop.f32.mrf.mxu0
    %v1439 = vadd.f32 %v1133, %v1438
    %v1440 = vpop.f32.mrf.mxu0
    %v1441 = vadd.f32 %v1135, %v1440
    %v1442 = vpop.f32.mrf.mxu0
    %v1443 = vadd.f32 %v1137, %v1442
    %v1444 = vpop.f32.mrf.mxu0
    %v1445 = vadd.f32 %v1139, %v1444
    %1446 = vmatprep.mubr.bf16.mxu0 0
    %1447 = vmatmul.mubr.bf16.gmra.mxu0 %v462
    %v1448 = vpop.f32.mrf.mxu0
    %v1449 = vadd.f32 %v1143, %v1448
    %v1450 = vpop.f32.mrf.mxu0
    %v1451 = vadd.f32 %v1145, %v1450
    %v1452 = vpop.f32.mrf.mxu0
    %v1453 = vadd.f32 %v1147, %v1452
    %v1454 = vpop.f32.mrf.mxu0
    %v1455 = vadd.f32 %v1149, %v1454
    %1456 = vmatprep.mubr.bf16.mxu0 0
    %1457 = vmatmul.mubr.bf16.gmra.mxu0 %v463
    %v1458 = vpop.f32.mrf.mxu0
    %v1459 = vadd.f32 %v1153, %v1458
    %v1460 = vpop.f32.mrf.mxu0
    %v1461 = vadd.f32 %v1155, %v1460
    %v1462 = vpop.f32.mrf.mxu0
    %v1463 = vadd.f32 %v1157, %v1462
    %v1464 = vpop.f32.mrf.mxu0
    %v1465 = vadd.f32 %v1159, %v1464
    %1466 = vdwg.mxu0
    %1467 = vmatprep.subr.bf16.mxu0 %v1361
    %1468 = vmatpush1.bf16.msra.mxu0 %v1360
    %1469 = vmatprep.subr.bf16.mxu0 %v1357
    %1470 = vmatpush1.bf16.msra.mxu0 %v1356
    %1471 = vmatprep.subr.bf16.mxu0 %v1353
    %1472 = vmatpush1.bf16.msra.mxu0 %v1352
    %1473 = vmatprep.subr.bf16.mxu0 %v1349
    %1474 = vmatpush1.bf16.msra.mxu0 %v1348
    %1475 = vmatprep.subr.bf16.mxu0 %v1345
    %1476 = vmatpush1.bf16.msra.mxu0 %v1344
    %1477 = vmatprep.subr.bf16.mxu0 %v1341
    %1478 = vmatpush1.bf16.msra.mxu0 %v1340
    %1479 = vmatprep.subr.bf16.mxu0 %v1337
    %1480 = vmatpush1.bf16.msra.mxu0 %v1336
    %1481 = vmatprep.subr.bf16.mxu0 %v1333
    %1482 = vmatpush1.bf16.msra.mxu0 %v1332
    %1483 = vmatprep.subr.bf16.mxu0 0
    %1484 = vmatpush2.bf16.msra.mxu0 0
    %1485 = vmatprep.subr.bf16.mxu0 0
    %1486 = vmatpush2.bf16.msra.mxu0 0
    %1487 = vmatprep.subr.bf16.mxu0 0
    %1488 = vmatpush2.bf16.msra.mxu0 0
    %1489 = vmatprep.subr.bf16.mxu0 0
    %1490 = vmatpush2.bf16.msra.mxu0 0
    %1491 = vmatprep.subr.bf16.mxu0 0
    %1492 = vmatpush2.bf16.msra.mxu0 0
    %1493 = vmatprep.subr.bf16.mxu0 0
    %1494 = vmatpush2.bf16.msra.mxu0 0
    %1495 = vmatprep.subr.bf16.mxu0 0
    %1496 = vmatpush2.bf16.msra.mxu0 0
    %1497 = vmatprep.subr.bf16.mxu0 0
    %1498 = vmatpush2.bf16.msra.mxu0 0
    %1499 = vmatprep.mubr.bf16.mxu0 0
    %1500 = vmatmul.mubr.bf16.gmra.mxu0 %v460
    %v1501 = vpop.f32.mrf.mxu0
    %v1502 = vadd.f32 %v1196, %v1501
    %v1503 = vpop.f32.mrf.mxu0
    %v1504 = vadd.f32 %v1198, %v1503
    %v1505 = vpop.f32.mrf.mxu0
    %v1506 = vadd.f32 %v1200, %v1505
    %v1507 = vpop.f32.mrf.mxu0
    %v1508 = vadd.f32 %v1202, %v1507
    %1509 = vmatprep.mubr.bf16.mxu0 0
    %1510 = vmatmul.mubr.bf16.gmra.mxu0 %v461
    %v1511 = vpop.f32.mrf.mxu0
    %v1512 = vadd.f32 %v1206, %v1511
    %v1513 = vpop.f32.mrf.mxu0
    %v1514 = vadd.f32 %v1208, %v1513
    %v1515 = vpop.f32.mrf.mxu0
    %v1516 = vadd.f32 %v1210, %v1515
    %v1517 = vpop.f32.mrf.mxu0
    %v1518 = vadd.f32 %v1212, %v1517
    %1519 = vmatprep.mubr.bf16.mxu0 0
    %1520 = vmatmul.mubr.bf16.gmra.mxu0 %v462
    %v1521 = vpop.f32.mrf.mxu0
    %v1522 = vadd.f32 %v1216, %v1521
    %v1523 = vpop.f32.mrf.mxu0
    %v1524 = vadd.f32 %v1218, %v1523
    %v1525 = vpop.f32.mrf.mxu0
    %v1526 = vadd.f32 %v1220, %v1525
    %v1527 = vpop.f32.mrf.mxu0
    %v1528 = vadd.f32 %v1222, %v1527
    %1529 = vmatprep.mubr.bf16.mxu0 0
    %1530 = vmatmul.mubr.bf16.gmra.mxu0 %v463
    %v1531 = vpop.f32.mrf.mxu0
    %v1532 = vadd.f32 %v1226, %v1531
    %v1533 = vpop.f32.mrf.mxu0
    %v1534 = vadd.f32 %v1228, %v1533
    %v1535 = vpop.f32.mrf.mxu0
    %v1536 = vadd.f32 %v1230, %v1535
    %v1537 = vpop.f32.mrf.mxu0
    %v1538 = vadd.f32 %v1232, %v1537
    %1539 = vdwg.mxu0
    %s1540 = scalar_lea.vmem %s3, 4
    %v1541 = vld [vmem:[%s1540] sm:$0xf]
    %v1543 = vlaneseq
    %v1544 = vshrl.u32 %v1543, 7
    %v1545 = vsub.s32 0, %v1544
    %v1546 = vrot.slane %v1541, %v1545
    %v1547 = vlaneseq
    %v1548 = vshrl.u32 %v1547, 7
    %v1549 = vsub.s32 1, %v1548
    %v1550 = vrot.slane %v1541, %v1549
    %v1551 = vlaneseq
    %v1552 = vshrl.u32 %v1551, 7
    %v1553 = vsub.s32 2, %v1552
    %v1554 = vrot.slane %v1541, %v1553
    %v1555 = vlaneseq
    %v1556 = vshrl.u32 %v1555, 7
    %v1557 = vsub.s32 3, %v1556
    %v1558 = vrot.slane %v1541, %v1557
    %v1563 = vadd.f32 %v1429, %v1546
    %v1564 = vadd.f32 %v1431, %v1550
    %v1565 = vadd.f32 %v1502, %v1554
    %v1566 = vadd.f32 %v1504, %v1558
    %v1567 = vadd.f32 %v1433, %v1546
    %v1568 = vadd.f32 %v1435, %v1550
    %v1569 = vadd.f32 %v1506, %v1554
    %v1570 = vadd.f32 %v1508, %v1558
    %v1571 = vadd.f32 %v1439, %v1546
    %v1572 = vadd.f32 %v1441, %v1550
    %v1573 = vadd.f32 %v1512, %v1554
    %v1574 = vadd.f32 %v1514, %v1558
    %v1575 = vadd.f32 %v1443, %v1546
    %v1576 = vadd.f32 %v1445, %v1550
    %v1577 = vadd.f32 %v1516, %v1554
    %v1578 = vadd.f32 %v1518, %v1558
    %v1579 = vadd.f32 %v1449, %v1546
    %v1580 = vadd.f32 %v1451, %v1550
    %v1581 = vadd.f32 %v1522, %v1554
    %v1582 = vadd.f32 %v1524, %v1558
    %v1583 = vadd.f32 %v1453, %v1546
    %v1584 = vadd.f32 %v1455, %v1550
    %v1585 = vadd.f32 %v1526, %v1554
    %v1586 = vadd.f32 %v1528, %v1558
    %v1587 = vadd.f32 %v1459, %v1546
    %v1588 = vadd.f32 %v1461, %v1550
    %v1589 = vadd.f32 %v1532, %v1554
    %v1590 = vadd.f32 %v1534, %v1558
    %v1591 = vadd.f32 %v1463, %v1546
    %v1592 = vadd.f32 %v1465, %v1550
    %v1593 = vadd.f32 %v1536, %v1554
    %v1594 = vadd.f32 %v1538, %v1558
    %1595 = vst [vmem:[#allocation2 + $0x100] sm:$0xff] %v1563
    %1596 = vst [vmem:[#allocation2 + $0x108] sm:$0xff] %v1564
    %1597 = vst [vmem:[#allocation2 + $0x110] sm:$0xff] %v1565
    %1598 = vst [vmem:[#allocation2 + $0x118] sm:$0xff] %v1566
    %1599 = vst [vmem:[#allocation2 + $0x120] sm:$0xff] %v1567
    %1600 = vst [vmem:[#allocation2 + $0x128] sm:$0xff] %v1568
    %1601 = vst [vmem:[#allocation2 + $0x130] sm:$0xff] %v1569
    %1602 = vst [vmem:[#allocation2 + $0x138] sm:$0xff] %v1570
    %1603 = vst [vmem:[#allocation2 + $0x140] sm:$0xff] %v1571
    %1604 = vst [vmem:[#allocation2 + $0x148] sm:$0xff] %v1572
    %1605 = vst [vmem:[#allocation2 + $0x150] sm:$0xff] %v1573
    %1606 = vst [vmem:[#allocation2 + $0x158] sm:$0xff] %v1574
    %1607 = vst [vmem:[#allocation2 + $0x160] sm:$0xff] %v1575
    %1608 = vst [vmem:[#allocation2 + $0x168] sm:$0xff] %v1576
    %1609 = vst [vmem:[#allocation2 + $0x170] sm:$0xff] %v1577
    %1610 = vst [vmem:[#allocation2 + $0x178] sm:$0xff] %v1578
    %1611 = vst [vmem:[#allocation2 + $0x180] sm:$0xff] %v1579
    %1612 = vst [vmem:[#allocation2 + $0x188] sm:$0xff] %v1580
    %1613 = vst [vmem:[#allocation2 + $0x190] sm:$0xff] %v1581
    %1614 = vst [vmem:[#allocation2 + $0x198] sm:$0xff] %v1582
    %1615 = vst [vmem:[#allocation2 + $0x1a0] sm:$0xff] %v1583
    %1616 = vst [vmem:[#allocation2 + $0x1a8] sm:$0xff] %v1584
    %1617 = vst [vmem:[#allocation2 + $0x1b0] sm:$0xff] %v1585
    %1618 = vst [vmem:[#allocation2 + $0x1b8] sm:$0xff] %v1586
    %1619 = vst [vmem:[#allocation2 + $0x1c0] sm:$0xff] %v1587
    %1620 = vst [vmem:[#allocation2 + $0x1c8] sm:$0xff] %v1588
    %1621 = vst [vmem:[#allocation2 + $0x1d0] sm:$0xff] %v1589
    %1622 = vst [vmem:[#allocation2 + $0x1d8] sm:$0xff] %v1590
    %1623 = vst [vmem:[#allocation2 + $0x1e0] sm:$0xff] %v1591
    %1624 = vst [vmem:[#allocation2 + $0x1e8] sm:$0xff] %v1592
    %1625 = vst [vmem:[#allocation2 + $0x1f0] sm:$0xff] %v1593
    %1626 = vst [vmem:[#allocation2 + $0x1f8] sm:$0xff] %v1594
    %s1627 = scalar_lea.vmem [#allocation3], 8
    %1628 = vst [vmem:[%s1627] sm:$0xff] 0.0
    %s1629 = scalar_lea.vmem [#allocation4], 8
    %1630 = vst [vmem:[%s1629] sm:$0xff] 0.0
    %v1631 = vld [vmem:[#allocation5] sm:$0xff]
    %v1632 = vld [vmem:[#allocation5 + $0x8] sm:$0xff]
    %v1633 = vld [vmem:[#allocation5 + $0x10] sm:$0xff]
    %v1634 = vld [vmem:[#allocation5 + $0x18] sm:$0xff]
    %v1635 = vld [vmem:[#allocation5 + $0x20] sm:$0xff]
    %v1636 = vld [vmem:[#allocation5 + $0x28] sm:$0xff]
    %v1637 = vld [vmem:[#allocation5 + $0x30] sm:$0xff]
    %v1638 = vld [vmem:[#allocation5 + $0x38] sm:$0xff]
    %v1639 = vld [vmem:[#allocation5 + $0x40] sm:$0xff]
    %v1640 = vld [vmem:[#allocation5 + $0x48] sm:$0xff]
    %v1641 = vld [vmem:[#allocation5 + $0x50] sm:$0xff]
    %v1642 = vld [vmem:[#allocation5 + $0x58] sm:$0xff]
    %v1643 = vld [vmem:[#allocation5 + $0x60] sm:$0xff]
    %v1644 = vld [vmem:[#allocation5 + $0x68] sm:$0xff]
    %v1645 = vld [vmem:[#allocation5 + $0x70] sm:$0xff]
    %v1646 = vld [vmem:[#allocation5 + $0x78] sm:$0xff]
    %v1647 = vld [vmem:[#allocation5 + $0x80] sm:$0xff]
    %v1648 = vld [vmem:[#allocation5 + $0x88] sm:$0xff]
    %v1649 = vld [vmem:[#allocation5 + $0x90] sm:$0xff]
    %v1650 = vld [vmem:[#allocation5 + $0x98] sm:$0xff]
    %v1651 = vld [vmem:[#allocation5 + $0xa0] sm:$0xff]
    %v1652 = vld [vmem:[#allocation5 + $0xa8] sm:$0xff]
    %v1653 = vld [vmem:[#allocation5 + $0xb0] sm:$0xff]
    %v1654 = vld [vmem:[#allocation5 + $0xb8] sm:$0xff]
    %v1655 = vld [vmem:[#allocation5 + $0xc0] sm:$0xff]
    %v1656 = vld [vmem:[#allocation5 + $0xc8] sm:$0xff]
    %v1657 = vld [vmem:[#allocation5 + $0xd0] sm:$0xff]
    %v1658 = vld [vmem:[#allocation5 + $0xd8] sm:$0xff]
    %v1659 = vld [vmem:[#allocation5 + $0xe0] sm:$0xff]
    %v1660 = vld [vmem:[#allocation5 + $0xe8] sm:$0xff]
    %v1661 = vld [vmem:[#allocation5 + $0xf0] sm:$0xff]
    %v1662 = vld [vmem:[#allocation5 + $0xf8] sm:$0xff]
    %s1663 = scalar_lea.vmem [#allocation5], 256
    %v1664 = vld [vmem:[%s1663] sm:$0xff]
    %v1665 = vld [vmem:[%s1663 + $0x8] sm:$0xff]
    %v1666 = vld [vmem:[%s1663 + $0x10] sm:$0xff]
    %v1667 = vld [vmem:[%s1663 + $0x18] sm:$0xff]
    %v1668 = vld [vmem:[%s1663 + $0x20] sm:$0xff]
    %v1669 = vld [vmem:[%s1663 + $0x28] sm:$0xff]
    %v1670 = vld [vmem:[%s1663 + $0x30] sm:$0xff]
    %v1671 = vld [vmem:[%s1663 + $0x38] sm:$0xff]
    %v1672 = vld [vmem:[%s1663 + $0x40] sm:$0xff]
    %v1673 = vld [vmem:[%s1663 + $0x48] sm:$0xff]
    %v1674 = vld [vmem:[%s1663 + $0x50] sm:$0xff]
    %v1675 = vld [vmem:[%s1663 + $0x58] sm:$0xff]
    %v1676 = vld [vmem:[%s1663 + $0x60] sm:$0xff]
    %v1677 = vld [vmem:[%s1663 + $0x68] sm:$0xff]
    %v1678 = vld [vmem:[%s1663 + $0x70] sm:$0xff]
    %v1679 = vld [vmem:[%s1663 + $0x78] sm:$0xff]
    %v1680 = vld [vmem:[%s1663 + $0x80] sm:$0xff]
    %v1681 = vld [vmem:[%s1663 + $0x88] sm:$0xff]
    %v1682 = vld [vmem:[%s1663 + $0x90] sm:$0xff]
    %v1683 = vld [vmem:[%s1663 + $0x98] sm:$0xff]
    %v1684 = vld [vmem:[%s1663 + $0xa0] sm:$0xff]
    %v1685 = vld [vmem:[%s1663 + $0xa8] sm:$0xff]
    %v1686 = vld [vmem:[%s1663 + $0xb0] sm:$0xff]
    %v1687 = vld [vmem:[%s1663 + $0xb8] sm:$0xff]
    %v1688 = vld [vmem:[%s1663 + $0xc0] sm:$0xff]
    %v1689 = vld [vmem:[%s1663 + $0xc8] sm:$0xff]
    %v1690 = vld [vmem:[%s1663 + $0xd0] sm:$0xff]
    %v1691 = vld [vmem:[%s1663 + $0xd8] sm:$0xff]
    %v1692 = vld [vmem:[%s1663 + $0xe0] sm:$0xff]
    %v1693 = vld [vmem:[%s1663 + $0xe8] sm:$0xff]
    %v1694 = vld [vmem:[%s1663 + $0xf0] sm:$0xff]
    %v1695 = vld [vmem:[%s1663 + $0xf8] sm:$0xff]
    %s1696 = smul.u32 0, 14
    %s1697 = smul.u32 0, 112
    %s1698 = sshra.s32 %s1697, 3
    %s1699 = sand.u32 %s1697, 7
    %s1700 = smul.u32 %s1698, 4
    %s1701 = smul.addr %s1700, 8
    %s1702 = scalar_lea.vmem [#allocation2], %s1701
    %v1703 = vld [vmem:[%s1702] sm:$0xff]
    %v1704 = vld [vmem:[%s1702 + $0x8] sm:$0xff]
    %v1705 = vld [vmem:[%s1702 + $0x10] sm:$0xff]
    %v1706 = vld [vmem:[%s1702 + $0x18] sm:$0xff]
    %v1707 = vld [vmem:[#allocation3] sm:$0xff]
    %v1708 = vpack.c.bf16 %v1707, %v1707
    %v1741 = vunpack.c.l.b16 %v1631
    %v1742 = vunpack.c.h.b16 %v1631
    %v1743 = vunpack.c.l.b16 %v1632
    %v1744 = vunpack.c.h.b16 %v1632
    %v1745 = vunpack.c.l.b16 %v1633
    %v1746 = vunpack.c.h.b16 %v1633
    %v1747 = vunpack.c.l.b16 %v1634
    %v1748 = vunpack.c.h.b16 %v1634
    %v1749 = vunpack.c.l.b16 %v1635
    %v1750 = vunpack.c.h.b16 %v1635
    %v1751 = vunpack.c.l.b16 %v1636
    %v1752 = vunpack.c.h.b16 %v1636
    %v1753 = vunpack.c.l.b16 %v1637
    %v1754 = vunpack.c.h.b16 %v1637
    %v1755 = vunpack.c.l.b16 %v1638
    %v1756 = vunpack.c.h.b16 %v1638
    %v1757 = vunpack.c.l.b16 %v1639
    %v1758 = vunpack.c.h.b16 %v1639
    %v1759 = vunpack.c.l.b16 %v1640
    %v1760 = vunpack.c.h.b16 %v1640
    %v1761 = vunpack.c.l.b16 %v1641
    %v1762 = vunpack.c.h.b16 %v1641
    %v1763 = vunpack.c.l.b16 %v1642
    %v1764 = vunpack.c.h.b16 %v1642
    %v1765 = vunpack.c.l.b16 %v1643
    %v1766 = vunpack.c.h.b16 %v1643
    %v1767 = vunpack.c.l.b16 %v1644
    %v1768 = vunpack.c.h.b16 %v1644
    %v1769 = vunpack.c.l.b16 %v1645
    %v1770 = vunpack.c.h.b16 %v1645
    %v1771 = vunpack.c.l.b16 %v1646
    %v1772 = vunpack.c.h.b16 %v1646
    %v1773 = vunpack.c.l.b16 %v1647
    %v1774 = vunpack.c.h.b16 %v1647
    %v1775 = vunpack.c.l.b16 %v1648
    %v1776 = vunpack.c.h.b16 %v1648
    %v1777 = vunpack.c.l.b16 %v1649
    %v1778 = vunpack.c.h.b16 %v1649
    %v1779 = vunpack.c.l.b16 %v1650
    %v1780 = vunpack.c.h.b16 %v1650
    %v1781 = vunpack.c.l.b16 %v1651
    %v1782 = vunpack.c.h.b16 %v1651
    %v1783 = vunpack.c.l.b16 %v1652
    %v1784 = vunpack.c.h.b16 %v1652
    %v1785 = vunpack.c.l.b16 %v1653
    %v1786 = vunpack.c.h.b16 %v1653
    %v1787 = vunpack.c.l.b16 %v1654
    %v1788 = vunpack.c.h.b16 %v1654
    %v1789 = vunpack.c.l.b16 %v1655
    %v1790 = vunpack.c.h.b16 %v1655
    %v1791 = vunpack.c.l.b16 %v1656
    %v1792 = vunpack.c.h.b16 %v1656
    %v1793 = vunpack.c.l.b16 %v1657
    %v1794 = vunpack.c.h.b16 %v1657
    %v1795 = vunpack.c.l.b16 %v1658
    %v1796 = vunpack.c.h.b16 %v1658
    %v1797 = vunpack.c.l.b16 %v1659
    %v1798 = vunpack.c.h.b16 %v1659
    %v1799 = vunpack.c.l.b16 %v1660
    %v1800 = vunpack.c.h.b16 %v1660
    %v1801 = vunpack.c.l.b16 %v1661
    %v1802 = vunpack.c.h.b16 %v1661
    %v1803 = vunpack.c.l.b16 %v1662
    %v1804 = vunpack.c.h.b16 %v1662
    %v1805 = vpack.c.b16 %v1745, %v1741
    %v1806 = vpack.c.b16 %v1746, %v1742
    %v1807 = vpack.c.b16 %v1747, %v1743
    %v1808 = vpack.c.b16 %v1748, %v1744
    %v1809 = vpack.c.b16 %v1753, %v1749
    %v1810 = vpack.c.b16 %v1754, %v1750
    %v1811 = vpack.c.b16 %v1755, %v1751
    %v1812 = vpack.c.b16 %v1756, %v1752
    %v1813 = vpack.c.b16 %v1761, %v1757
    %v1814 = vpack.c.b16 %v1762, %v1758
    %v1815 = vpack.c.b16 %v1763, %v1759
    %v1816 = vpack.c.b16 %v1764, %v1760
    %v1817 = vpack.c.b16 %v1769, %v1765
    %v1818 = vpack.c.b16 %v1770, %v1766
    %v1819 = vpack.c.b16 %v1771, %v1767
    %v1820 = vpack.c.b16 %v1772, %v1768
    %v1821 = vpack.c.b16 %v1777, %v1773
    %v1822 = vpack.c.b16 %v1778, %v1774
    %v1823 = vpack.c.b16 %v1779, %v1775
    %v1824 = vpack.c.b16 %v1780, %v1776
    %v1825 = vpack.c.b16 %v1785, %v1781
    %v1826 = vpack.c.b16 %v1786, %v1782
    %v1827 = vpack.c.b16 %v1787, %v1783
    %v1828 = vpack.c.b16 %v1788, %v1784
    %v1829 = vpack.c.b16 %v1793, %v1789
    %v1830 = vpack.c.b16 %v1794, %v1790
    %v1831 = vpack.c.b16 %v1795, %v1791
    %v1832 = vpack.c.b16 %v1796, %v1792
    %v1833 = vpack.c.b16 %v1801, %v1797
    %v1834 = vpack.c.b16 %v1802, %v1798
    %v1835 = vpack.c.b16 %v1803, %v1799
    %v1836 = vpack.c.b16 %v1804, %v1800
    %1869 = vmatprep.subr.bf16.mxu0 %v1834
    %1870 = vmatpush1.bf16.msra.mxu0 %v1833
    %1871 = vmatprep.subr.bf16.mxu0 %v1830
    %1872 = vmatpush1.bf16.msra.mxu0 %v1829
    %1873 = vmatprep.subr.bf16.mxu0 %v1826
    %1874 = vmatpush1.bf16.msra.mxu0 %v1825
    %1875 = vmatprep.subr.bf16.mxu0 %v1822
    %1876 = vmatpush1.bf16.msra.mxu0 %v1821
    %1877 = vmatprep.subr.bf16.mxu0 %v1818
    %1878 = vmatpush1.bf16.msra.mxu0 %v1817
    %1879 = vmatprep.subr.bf16.mxu0 %v1814
    %1880 = vmatpush1.bf16.msra.mxu0 %v1813
    %1881 = vmatprep.subr.bf16.mxu0 %v1810
    %1882 = vmatpush1.bf16.msra.mxu0 %v1809
    %1883 = vmatprep.subr.bf16.mxu0 %v1806
    %1884 = vmatpush1.bf16.msra.mxu0 %v1805
    %1885 = vmatprep.subr.bf16.mxu0 0
    %1886 = vmatpush2.bf16.msra.mxu0 0
    %1887 = vmatprep.subr.bf16.mxu0 0
    %1888 = vmatpush2.bf16.msra.mxu0 0
    %1889 = vmatprep.subr.bf16.mxu0 0
    %1890 = vmatpush2.bf16.msra.mxu0 0
    %1891 = vmatprep.subr.bf16.mxu0 0
    %1892 = vmatpush2.bf16.msra.mxu0 0
    %1893 = vmatprep.subr.bf16.mxu0 0
    %1894 = vmatpush2.bf16.msra.mxu0 0
    %1895 = vmatprep.subr.bf16.mxu0 0
    %1896 = vmatpush2.bf16.msra.mxu0 0
    %1897 = vmatprep.subr.bf16.mxu0 0
    %1898 = vmatpush2.bf16.msra.mxu0 0
    %1899 = vmatprep.subr.bf16.mxu0 0
    %1900 = vmatpush2.bf16.msra.mxu0 0
    %1901 = vmatprep.mubr.bf16.mxu0 0
    %1902 = vmatmul.mubr.bf16.gmra.mxu0 %v1708
    %v1903 = vpop.f32.mrf.mxu0
    %v1904 = vadd.f32 0.0, %v1903
    %v1905 = vpop.f32.mrf.mxu0
    %v1906 = vadd.f32 0.0, %v1905
    %v1907 = vpop.f32.mrf.mxu0
    %v1908 = vpop.f32.mrf.mxu0
    %1909 = vdwg.mxu0
    %1910 = vmatprep.subr.bf16.mxu0 %v1836
    %1911 = vmatpush1.bf16.msra.mxu0 %v1835
    %1912 = vmatprep.subr.bf16.mxu0 %v1832
    %1913 = vmatpush1.bf16.msra.mxu0 %v1831
    %1914 = vmatprep.subr.bf16.mxu0 %v1828
    %1915 = vmatpush1.bf16.msra.mxu0 %v1827
    %1916 = vmatprep.subr.bf16.mxu0 %v1824
    %1917 = vmatpush1.bf16.msra.mxu0 %v1823
    %1918 = vmatprep.subr.bf16.mxu0 %v1820
    %1919 = vmatpush1.bf16.msra.mxu0 %v1819
    %1920 = vmatprep.subr.bf16.mxu0 %v1816
    %1921 = vmatpush1.bf16.msra.mxu0 %v1815
    %1922 = vmatprep.subr.bf16.mxu0 %v1812
    %1923 = vmatpush1.bf16.msra.mxu0 %v1811
    %1924 = vmatprep.subr.bf16.mxu0 %v1808
    %1925 = vmatpush1.bf16.msra.mxu0 %v1807
    %1926 = vmatprep.subr.bf16.mxu0 0
    %1927 = vmatpush2.bf16.msra.mxu0 0
    %1928 = vmatprep.subr.bf16.mxu0 0
    %1929 = vmatpush2.bf16.msra.mxu0 0
    %1930 = vmatprep.subr.bf16.mxu0 0
    %1931 = vmatpush2.bf16.msra.mxu0 0
    %1932 = vmatprep.subr.bf16.mxu0 0
    %1933 = vmatpush2.bf16.msra.mxu0 0
    %1934 = vmatprep.subr.bf16.mxu0 0
    %1935 = vmatpush2.bf16.msra.mxu0 0
    %1936 = vmatprep.subr.bf16.mxu0 0
    %1937 = vmatpush2.bf16.msra.mxu0 0
    %1938 = vmatprep.subr.bf16.mxu0 0
    %1939 = vmatpush2.bf16.msra.mxu0 0
    %1940 = vmatprep.subr.bf16.mxu0 0
    %1941 = vmatpush2.bf16.msra.mxu0 0
    %1942 = vmatprep.mubr.bf16.mxu0 0
    %1943 = vmatmul.mubr.bf16.gmra.mxu0 %v1708
    %v1944 = vpop.f32.mrf.mxu0
    %v1945 = vadd.f32 0.0, %v1944
    %v1946 = vpop.f32.mrf.mxu0
    %v1947 = vadd.f32 0.0, %v1946
    %v1948 = vpop.f32.mrf.mxu0
    %v1949 = vpop.f32.mrf.mxu0
    %1950 = vdwg.mxu0
    %v1951 = vadd.f32 %v1703, %v1904
    %v1952 = vadd.f32 %v1704, %v1906
    %v1953 = vadd.f32 %v1705, %v1945
    %v1954 = vadd.f32 %v1706, %v1947
    %v1955 = vxor.u32 %v1951, 2147483648
    %v1956 = vmul.f32 %v1955, 1.442695
    %v1957 = vpow.pop %v1956
    %v1958 = vadd.f32 %v1957, 1.0
    %v1959 = vrcp.pop %v1958
    %v1960 = vmul.f32 1.0, %v1959
    %v1961 = vxor.u32 %v1952, 2147483648
    %v1962 = vmul.f32 %v1961, 1.442695
    %v1963 = vpow.pop %v1962
    %v1964 = vadd.f32 %v1963, 1.0
    %v1965 = vrcp.pop %v1964
    %v1966 = vmul.f32 1.0, %v1965
    %v1967 = vtanh.pop %v1953
    %v1968 = vxor.u32 %v1954, 2147483648
    %v1969 = vmul.f32 %v1968, 1.442695
    %v1970 = vpow.pop %v1969
    %v1971 = vadd.f32 %v1970, 1.0
    %v1972 = vrcp.pop %v1971
    %v1973 = vmul.f32 1.0, %v1972
    %v1974 = vld [vmem:[#allocation4] sm:$0xff]
    %v1975 = vmul.f32 %v1966, %v1974
    %v1976 = vmul.f32 %v1960, %v1967
    %v1977 = vadd.f32 %v1975, %v1976
    %v1978 = vtanh.pop %v1977
    %v1979 = vmul.f32 %v1973, %v1978
    %1980 = vst [vmem:[#allocation4] sm:$0xff] %v1977
    %1981 = vst [vmem:[#allocation3] sm:$0xff] %v1979
    %v1982 = vpack.c.bf16 %v1979, %v1979
    %s1983 = smul.addr %s1696, 4
    %s1984 = scalar_lea.vmem %s4, %s1983
    %1985 = vst [vmem:[%s1984] sm:$0xf] %v1982
    %s1986 = smul.u32 0, 2
    %s1987 = sadd.s32 %s1986, 1
    %s1988 = smul.u32 %s1987, 7
    %s1989 = smul.u32 %s1987, 56
    %s1990 = sadd.s32 %s1989, 64
    %s1991 = sshra.s32 %s1990, 3
    %s1992 = sand.u32 %s1990, 7
    %s1993 = smul.u32 %s1991, 4
    %s1994 = smul.addr %s1993, 8
    %s1995 = scalar_lea.vmem [#allocation2], %s1994
    %v1996 = vld [vmem:[%s1995] sm:$0xff]
    %v1997 = vld [vmem:[%s1995 + $0x8] sm:$0xff]
    %v1998 = vld [vmem:[%s1995 + $0x10] sm:$0xff]
    %v1999 = vld [vmem:[%s1995 + $0x18] sm:$0xff]
    %v2000 = vld [vmem:[%s1627] sm:$0xff]
    %v2001 = vpack.c.bf16 %v2000, %v2000
    %v2034 = vunpack.c.l.b16 %v1664
    %v2035 = vunpack.c.h.b16 %v1664
    %v2036 = vunpack.c.l.b16 %v1665
    %v2037 = vunpack.c.h.b16 %v1665
    %v2038 = vunpack.c.l.b16 %v1666
    %v2039 = vunpack.c.h.b16 %v1666
    %v2040 = vunpack.c.l.b16 %v1667
    %v2041 = vunpack.c.h.b16 %v1667
    %v2042 = vunpack.c.l.b16 %v1668
    %v2043 = vunpack.c.h.b16 %v1668
    %v2044 = vunpack.c.l.b16 %v1669
    %v2045 = vunpack.c.h.b16 %v1669
    %v2046 = vunpack.c.l.b16 %v1670
    %v2047 = vunpack.c.h.b16 %v1670
    %v2048 = vunpack.c.l.b16 %v1671
    %v2049 = vunpack.c.h.b16 %v1671
    %v2050 = vunpack.c.l.b16 %v1672
    %v2051 = vunpack.c.h.b16 %v1672
    %v2052 = vunpack.c.l.b16 %v1673
    %v2053 = vunpack.c.h.b16 %v1673
    %v2054 = vunpack.c.l.b16 %v1674
    %v2055 = vunpack.c.h.b16 %v1674
    %v2056 = vunpack.c.l.b16 %v1675
    %v2057 = vunpack.c.h.b16 %v1675
    %v2058 = vunpack.c.l.b16 %v1676
    %v2059 = vunpack.c.h.b16 %v1676
    %v2060 = vunpack.c.l.b16 %v1677
    %v2061 = vunpack.c.h.b16 %v1677
    %v2062 = vunpack.c.l.b16 %v1678
    %v2063 = vunpack.c.h.b16 %v1678
    %v2064 = vunpack.c.l.b16 %v1679
    %v2065 = vunpack.c.h.b16 %v1679
    %v2066 = vunpack.c.l.b16 %v1680
    %v2067 = vunpack.c.h.b16 %v1680
    %v2068 = vunpack.c.l.b16 %v1681
    %v2069 = vunpack.c.h.b16 %v1681
    %v2070 = vunpack.c.l.b16 %v1682
    %v2071 = vunpack.c.h.b16 %v1682
    %v2072 = vunpack.c.l.b16 %v1683
    %v2073 = vunpack.c.h.b16 %v1683
    %v2074 = vunpack.c.l.b16 %v1684
    %v2075 = vunpack.c.h.b16 %v1684
    %v2076 = vunpack.c.l.b16 %v1685
    %v2077 = vunpack.c.h.b16 %v1685
    %v2078 = vunpack.c.l.b16 %v1686
    %v2079 = vunpack.c.h.b16 %v1686
    %v2080 = vunpack.c.l.b16 %v1687
    %v2081 = vunpack.c.h.b16 %v1687
    %v2082 = vunpack.c.l.b16 %v1688
    %v2083 = vunpack.c.h.b16 %v1688
    %v2084 = vunpack.c.l.b16 %v1689
    %v2085 = vunpack.c.h.b16 %v1689
    %v2086 = vunpack.c.l.b16 %v1690
    %v2087 = vunpack.c.h.b16 %v1690
    %v2088 = vunpack.c.l.b16 %v1691
    %v2089 = vunpack.c.h.b16 %v1691
    %v2090 = vunpack.c.l.b16 %v1692
    %v2091 = vunpack.c.h.b16 %v1692
    %v2092 = vunpack.c.l.b16 %v1693
    %v2093 = vunpack.c.h.b16 %v1693
    %v2094 = vunpack.c.l.b16 %v1694
    %v2095 = vunpack.c.h.b16 %v1694
    %v2096 = vunpack.c.l.b16 %v1695
    %v2097 = vunpack.c.h.b16 %v1695
    %v2098 = vpack.c.b16 %v2038, %v2034
    %v2099 = vpack.c.b16 %v2039, %v2035
    %v2100 = vpack.c.b16 %v2040, %v2036
    %v2101 = vpack.c.b16 %v2041, %v2037
    %v2102 = vpack.c.b16 %v2046, %v2042
    %v2103 = vpack.c.b16 %v2047, %v2043
    %v2104 = vpack.c.b16 %v2048, %v2044
    %v2105 = vpack.c.b16 %v2049, %v2045
    %v2106 = vpack.c.b16 %v2054, %v2050
    %v2107 = vpack.c.b16 %v2055, %v2051
    %v2108 = vpack.c.b16 %v2056, %v2052
    %v2109 = vpack.c.b16 %v2057, %v2053
    %v2110 = vpack.c.b16 %v2062, %v2058
    %v2111 = vpack.c.b16 %v2063, %v2059
    %v2112 = vpack.c.b16 %v2064, %v2060
    %v2113 = vpack.c.b16 %v2065, %v2061
    %v2114 = vpack.c.b16 %v2070, %v2066
    %v2115 = vpack.c.b16 %v2071, %v2067
    %v2116 = vpack.c.b16 %v2072, %v2068
    %v2117 = vpack.c.b16 %v2073, %v2069
    %v2118 = vpack.c.b16 %v2078, %v2074
    %v2119 = vpack.c.b16 %v2079, %v2075
    %v2120 = vpack.c.b16 %v2080, %v2076
    %v2121 = vpack.c.b16 %v2081, %v2077
    %v2122 = vpack.c.b16 %v2086, %v2082
    %v2123 = vpack.c.b16 %v2087, %v2083
    %v2124 = vpack.c.b16 %v2088, %v2084
    %v2125 = vpack.c.b16 %v2089, %v2085
    %v2126 = vpack.c.b16 %v2094, %v2090
    %v2127 = vpack.c.b16 %v2095, %v2091
    %v2128 = vpack.c.b16 %v2096, %v2092
    %v2129 = vpack.c.b16 %v2097, %v2093
    %2162 = vmatprep.subr.bf16.mxu0 %v2127
    %2163 = vmatpush1.bf16.msra.mxu0 %v2126
    %2164 = vmatprep.subr.bf16.mxu0 %v2123
    %2165 = vmatpush1.bf16.msra.mxu0 %v2122
    %2166 = vmatprep.subr.bf16.mxu0 %v2119
    %2167 = vmatpush1.bf16.msra.mxu0 %v2118
    %2168 = vmatprep.subr.bf16.mxu0 %v2115
    %2169 = vmatpush1.bf16.msra.mxu0 %v2114
    %2170 = vmatprep.subr.bf16.mxu0 %v2111
    %2171 = vmatpush1.bf16.msra.mxu0 %v2110
    %2172 = vmatprep.subr.bf16.mxu0 %v2107
    %2173 = vmatpush1.bf16.msra.mxu0 %v2106
    %2174 = vmatprep.subr.bf16.mxu0 %v2103
    %2175 = vmatpush1.bf16.msra.mxu0 %v2102
    %2176 = vmatprep.subr.bf16.mxu0 %v2099
    %2177 = vmatpush1.bf16.msra.mxu0 %v2098
    %2178 = vmatprep.subr.bf16.mxu0 0
    %2179 = vmatpush2.bf16.msra.mxu0 0
    %2180 = vmatprep.subr.bf16.mxu0 0
    %2181 = vmatpush2.bf16.msra.mxu0 0
    %2182 = vmatprep.subr.bf16.mxu0 0
    %2183 = vmatpush2.bf16.msra.mxu0 0
    %2184 = vmatprep.subr.bf16.mxu0 0
    %2185 = vmatpush2.bf16.msra.mxu0 0
    %2186 = vmatprep.subr.bf16.mxu0 0
    %2187 = vmatpush2.bf16.msra.mxu0 0
    %2188 = vmatprep.subr.bf16.mxu0 0
    %2189 = vmatpush2.bf16.msra.mxu0 0
    %2190 = vmatprep.subr.bf16.mxu0 0
    %2191 = vmatpush2.bf16.msra.mxu0 0
    %2192 = vmatprep.subr.bf16.mxu0 0
    %2193 = vmatpush2.bf16.msra.mxu0 0
    %2194 = vmatprep.mubr.bf16.mxu0 0
    %2195 = vmatmul.mubr.bf16.gmra.mxu0 %v2001
    %v2196 = vpop.f32.mrf.mxu0
    %v2197 = vadd.f32 0.0, %v2196
    %v2198 = vpop.f32.mrf.mxu0
    %v2199 = vadd.f32 0.0, %v2198
    %v2200 = vpop.f32.mrf.mxu0
    %v2201 = vpop.f32.mrf.mxu0
    %2202 = vdwg.mxu0
    %2203 = vmatprep.subr.bf16.mxu0 %v2129
    %2204 = vmatpush1.bf16.msra.mxu0 %v2128
    %2205 = vmatprep.subr.bf16.mxu0 %v2125
    %2206 = vmatpush1.bf16.msra.mxu0 %v2124
    %2207 = vmatprep.subr.bf16.mxu0 %v2121
    %2208 = vmatpush1.bf16.msra.mxu0 %v2120
    %2209 = vmatprep.subr.bf16.mxu0 %v2117
    %2210 = vmatpush1.bf16.msra.mxu0 %v2116
    %2211 = vmatprep.subr.bf16.mxu0 %v2113
    %2212 = vmatpush1.bf16.msra.mxu0 %v2112
    %2213 = vmatprep.subr.bf16.mxu0 %v2109
    %2214 = vmatpush1.bf16.msra.mxu0 %v2108
    %2215 = vmatprep.subr.bf16.mxu0 %v2105
    %2216 = vmatpush1.bf16.msra.mxu0 %v2104
    %2217 = vmatprep.subr.bf16.mxu0 %v2101
    %2218 = vmatpush1.bf16.msra.mxu0 %v2100
    %2219 = vmatprep.subr.bf16.mxu0 0
    %2220 = vmatpush2.bf16.msra.mxu0 0
    %2221 = vmatprep.subr.bf16.mxu0 0
    %2222 = vmatpush2.bf16.msra.mxu0 0
    %2223 = vmatprep.subr.bf16.mxu0 0
    %2224 = vmatpush2.bf16.msra.mxu0 0
    %2225 = vmatprep.subr.bf16.mxu0 0
    %2226 = vmatpush2.bf16.msra.mxu0 0
    %2227 = vmatprep.subr.bf16.mxu0 0
    %2228 = vmatpush2.bf16.msra.mxu0 0
    %2229 = vmatprep.subr.bf16.mxu0 0
    %2230 = vmatpush2.bf16.msra.mxu0 0
    %2231 = vmatprep.subr.bf16.mxu0 0
    %2232 = vmatpush2.bf16.msra.mxu0 0
    %2233 = vmatprep.subr.bf16.mxu0 0
    %2234 = vmatpush2.bf16.msra.mxu0 0
    %2235 = vmatprep.mubr.bf16.mxu0 0
    %2236 = vmatmul.mubr.bf16.gmra.mxu0 %v2001
    %v2237 = vpop.f32.mrf.mxu0
    %v2238 = vadd.f32 0.0, %v2237
    %v2239 = vpop.f32.mrf.mxu0
    %v2240 = vadd.f32 0.0, %v2239
    %v2241 = vpop.f32.mrf.mxu0
    %v2242 = vpop.f32.mrf.mxu0
    %2243 = vdwg.mxu0
    %v2244 = vadd.f32 %v1996, %v2197
    %v2245 = vadd.f32 %v1997, %v2199
    %v2246 = vadd.f32 %v1998, %v2238
    %v2247 = vadd.f32 %v1999, %v2240
    %v2248 = vxor.u32 %v2244, 2147483648
    %v2249 = vmul.f32 %v2248, 1.442695
    %v2250 = vpow.pop %v2249
    %v2251 = vadd.f32 %v2250, 1.0
    %v2252 = vrcp.pop %v2251
    %v2253 = vmul.f32 1.0, %v2252
    %v2254 = vxor.u32 %v2245, 2147483648
    %v2255 = vmul.f32 %v2254, 1.442695
    %v2256 = vpow.pop %v2255
    %v2257 = vadd.f32 %v2256, 1.0
    %v2258 = vrcp.pop %v2257
    %v2259 = vmul.f32 1.0, %v2258
    %v2260 = vtanh.pop %v2246
    %v2261 = vxor.u32 %v2247, 2147483648
    %v2262 = vmul.f32 %v2261, 1.442695
    %v2263 = vpow.pop %v2262
    %v2264 = vadd.f32 %v2263, 1.0
    %v2265 = vrcp.pop %v2264
    %v2266 = vmul.f32 1.0, %v2265
    %v2267 = vld [vmem:[%s1629] sm:$0xff]
    %v2268 = vmul.f32 %v2259, %v2267
    %v2269 = vmul.f32 %v2253, %v2260
    %v2270 = vadd.f32 %v2268, %v2269
    %v2271 = vtanh.pop %v2270
    %v2272 = vmul.f32 %v2266, %v2271
    %2273 = vst [vmem:[%s1629] sm:$0xff] %v2270
    %2274 = vst [vmem:[%s1627] sm:$0xff] %v2272
    %v2275 = vpack.c.bf16 %v2272, %v2272
    %s2276 = sadd.s32 %s1988, 8
    %s2277 = smul.addr %s2276, 4
    %s2278 = scalar_lea.vmem %s4, %s2277
    %2279 = vst [vmem:[%s2278] sm:$0xf] %v2275
    %s2280 = smul.u32 0, 10
    %s2281 = sadd.s32 %s2280, 1
    %s2282 = smul.u32 %s2281, 8
    %s2283 = sshra.s32 %s2282, 3
    %s2284 = sand.u32 %s2282, 7
    %s2285 = smul.u32 %s2283, 4
    %s2286 = smul.addr %s2285, 8
    %s2287 = scalar_lea.vmem [#allocation2], %s2286
    %v2288 = vld [vmem:[%s2287] sm:$0xff]
    %v2289 = vld [vmem:[%s2287 + $0x8] sm:$0xff]
    %v2290 = vld [vmem:[%s2287 + $0x10] sm:$0xff]
    %v2291 = vld [vmem:[%s2287 + $0x18] sm:$0xff]
    %v2292 = vld [vmem:[#allocation3] sm:$0xff]
    %v2293 = vpack.c.bf16 %v2292, %v2292
    %2294 = vmatprep.subr.bf16.mxu0 %v1834
    %2295 = vmatpush1.bf16.msra.mxu0 %v1833
    %2296 = vmatprep.subr.bf16.mxu0 %v1830
    %2297 = vmatpush1.bf16.msra.mxu0 %v1829
    %2298 = vmatprep.subr.bf16.mxu0 %v1826
    %2299 = vmatpush1.bf16.msra.mxu0 %v1825
    %2300 = vmatprep.subr.bf16.mxu0 %v1822
    %2301 = vmatpush1.bf16.msra.mxu0 %v1821
    %2302 = vmatprep.subr.bf16.mxu0 %v1818
    %2303 = vmatpush1.bf16.msra.mxu0 %v1817
    %2304 = vmatprep.subr.bf16.mxu0 %v1814
    %2305 = vmatpush1.bf16.msra.mxu0 %v1813
    %2306 = vmatprep.subr.bf16.mxu0 %v1810
    %2307 = vmatpush1.bf16.msra.mxu0 %v1809
    %2308 = vmatprep.subr.bf16.mxu0 %v1806
    %2309 = vmatpush1.bf16.msra.mxu0 %v1805
    %2310 = vmatprep.subr.bf16.mxu0 0
    %2311 = vmatpush2.bf16.msra.mxu0 0
    %2312 = vmatprep.subr.bf16.mxu0 0
    %2313 = vmatpush2.bf16.msra.mxu0 0
    %2314 = vmatprep.subr.bf16.mxu0 0
    %2315 = vmatpush2.bf16.msra.mxu0 0
    %2316 = vmatprep.subr.bf16.mxu0 0
    %2317 = vmatpush2.bf16.msra.mxu0 0
    %2318 = vmatprep.subr.bf16.mxu0 0
    %2319 = vmatpush2.bf16.msra.mxu0 0
    %2320 = vmatprep.subr.bf16.mxu0 0
    %2321 = vmatpush2.bf16.msra.mxu0 0
    %2322 = vmatprep.subr.bf16.mxu0 0
    %2323 = vmatpush2.bf16.msra.mxu0 0
    %2324 = vmatprep.subr.bf16.mxu0 0
    %2325 = vmatpush2.bf16.msra.mxu0 0
    %2326 = vmatprep.mubr.bf16.mxu0 0
    %2327 = vmatmul.mubr.bf16.gmra.mxu0 %v2293
    %v2328 = vpop.f32.mrf.mxu0
    %v2329 = vadd.f32 0.0, %v2328
    %v2330 = vpop.f32.mrf.mxu0
    %v2331 = vadd.f32 0.0, %v2330
    %v2332 = vpop.f32.mrf.mxu0
    %v2333 = vpop.f32.mrf.mxu0
    %2334 = vdwg.mxu0
    %2335 = vmatprep.subr.bf16.mxu0 %v1836
    %2336 = vmatpush1.bf16.msra.mxu0 %v1835
    %2337 = vmatprep.subr.bf16.mxu0 %v1832
    %2338 = vmatpush1.bf16.msra.mxu0 %v1831
    %2339 = vmatprep.subr.bf16.mxu0 %v1828
    %2340 = vmatpush1.bf16.msra.mxu0 %v1827
    %2341 = vmatprep.subr.bf16.mxu0 %v1824
    %2342 = vmatpush1.bf16.msra.mxu0 %v1823
    %2343 = vmatprep.subr.bf16.mxu0 %v1820
    %2344 = vmatpush1.bf16.msra.mxu0 %v1819
    %2345 = vmatprep.subr.bf16.mxu0 %v1816
    %2346 = vmatpush1.bf16.msra.mxu0 %v1815
    %2347 = vmatprep.subr.bf16.mxu0 %v1812
    %2348 = vmatpush1.bf16.msra.mxu0 %v1811
    %2349 = vmatprep.subr.bf16.mxu0 %v1808
    %2350 = vmatpush1.bf16.msra.mxu0 %v1807
    %2351 = vmatprep.subr.bf16.mxu0 0
    %2352 = vmatpush2.bf16.msra.mxu0 0
    %2353 = vmatprep.subr.bf16.mxu0 0
    %2354 = vmatpush2.bf16.msra.mxu0 0
    %2355 = vmatprep.subr.bf16.mxu0 0
    %2356 = vmatpush2.bf16.msra.mxu0 0
    %2357 = vmatprep.subr.bf16.mxu0 0
    %2358 = vmatpush2.bf16.msra.mxu0 0
    %2359 = vmatprep.subr.bf16.mxu0 0
    %2360 = vmatpush2.bf16.msra.mxu0 0
    %2361 = vmatprep.subr.bf16.mxu0 0
    %2362 = vmatpush2.bf16.msra.mxu0 0
    %2363 = vmatprep.subr.bf16.mxu0 0
    %2364 = vmatpush2.bf16.msra.mxu0 0
    %2365 = vmatprep.subr.bf16.mxu0 0
    %2366 = vmatpush2.bf16.msra.mxu0 0
    %2367 = vmatprep.mubr.bf16.mxu0 0
    %2368 = vmatmul.mubr.bf16.gmra.mxu0 %v2293
    %v2369 = vpop.f32.mrf.mxu0
    %v2370 = vadd.f32 0.0, %v2369
    %v2371 = vpop.f32.mrf.mxu0
    %v2372 = vadd.f32 0.0, %v2371
    %v2373 = vpop.f32.mrf.mxu0
    %v2374 = vpop.f32.mrf.mxu0
    %2375 = vdwg.mxu0
    %v2376 = vadd.f32 %v2288, %v2329
    %v2377 = vadd.f32 %v2289, %v2331
    %v2378 = vadd.f32 %v2290, %v2370
    %v2379 = vadd.f32 %v2291, %v2372
    %v2380 = vxor.u32 %v2376, 2147483648
    %v2381 = vmul.f32 %v2380, 1.442695
    %v2382 = vpow.pop %v2381
    %v2383 = vadd.f32 %v2382, 1.0
    %v2384 = vrcp.pop %v2383
    %v2385 = vmul.f32 1.0, %v2384
    %v2386 = vxor.u32 %v2377, 2147483648
    %v2387 = vmul.f32 %v2386, 1.442695
    %v2388 = vpow.pop %v2387
    %v2389 = vadd.f32 %v2388, 1.0
    %v2390 = vrcp.pop %v2389
    %v2391 = vmul.f32 1.0, %v2390
    %v2392 = vtanh.pop %v2378
    %v2393 = vxor.u32 %v2379, 2147483648
    %v2394 = vmul.f32 %v2393, 1.442695
    %v2395 = vpow.pop %v2394
    %v2396 = vadd.f32 %v2395, 1.0
    %v2397 = vrcp.pop %v2396
    %v2398 = vmul.f32 1.0, %v2397
    %v2399 = vld [vmem:[#allocation4] sm:$0xff]
    %v2400 = vmul.f32 %v2391, %v2399
    %v2401 = vmul.f32 %v2385, %v2392
    %v2402 = vadd.f32 %v2400, %v2401
    %v2403 = vtanh.pop %v2402
    %v2404 = vmul.f32 %v2398, %v2403
    %2405 = vst [vmem:[#allocation4] sm:$0xff] %v2402
    %2406 = vst [vmem:[#allocation3] sm:$0xff] %v2404
    %v2407 = vpack.c.bf16 %v2404, %v2404
    %s2408 = smul.addr %s2281, 4
    %s2409 = scalar_lea.vmem %s4, %s2408
    %2410 = vst [vmem:[%s2409] sm:$0xf] %v2407
    %s2411 = smul.u32 %s1987, 5
    %s2412 = sadd.s32 %s2411, 1
    %s2413 = smul.u32 %s2412, 8
    %s2414 = sadd.s32 %s2413, 64
    %s2415 = sshra.s32 %s2414, 3
    %s2416 = sand.u32 %s2414, 7
    %s2417 = smul.u32 %s2415, 4
    %s2418 = smul.addr %s2417, 8
    %s2419 = scalar_lea.vmem [#allocation2], %s2418
    %v2420 = vld [vmem:[%s2419] sm:$0xff]
    %v2421 = vld [vmem:[%s2419 + $0x8] sm:$0xff]
    %v2422 = vld [vmem:[%s2419 + $0x10] sm:$0xff]
    %v2423 = vld [vmem:[%s2419 + $0x18] sm:$0xff]
    %v2424 = vld [vmem:[%s1627] sm:$0xff]
    %v2425 = vpack.c.bf16 %v2424, %v2424
    %2426 = vmatprep.subr.bf16.mxu0 %v2127
    %2427 = vmatpush1.bf16.msra.mxu0 %v2126
    %2428 = vmatprep.subr.bf16.mxu0 %v2123
    %2429 = vmatpush1.bf16.msra.mxu0 %v2122
    %2430 = vmatprep.subr.bf16.mxu0 %v2119
    %2431 = vmatpush1.bf16.msra.mxu0 %v2118
    %2432 = vmatprep.subr.bf16.mxu0 %v2115
    %2433 = vmatpush1.bf16.msra.mxu0 %v2114
    %2434 = vmatprep.subr.bf16.mxu0 %v2111
    %2435 = vmatpush1.bf16.msra.mxu0 %v2110
    %2436 = vmatprep.subr.bf16.mxu0 %v2107
    %2437 = vmatpush1.bf16.msra.mxu0 %v2106
    %2438 = vmatprep.subr.bf16.mxu0 %v2103
    %2439 = vmatpush1.bf16.msra.mxu0 %v2102
    %2440 = vmatprep.subr.bf16.mxu0 %v2099
    %2441 = vmatpush1.bf16.msra.mxu0 %v2098
    %2442 = vmatprep.subr.bf16.mxu0 0
    %2443 = vmatpush2.bf16.msra.mxu0 0
    %2444 = vmatprep.subr.bf16.mxu0 0
    %2445 = vmatpush2.bf16.msra.mxu0 0
    %2446 = vmatprep.subr.bf16.mxu0 0
    %2447 = vmatpush2.bf16.msra.mxu0 0
    %2448 = vmatprep.subr.bf16.mxu0 0
    %2449 = vmatpush2.bf16.msra.mxu0 0
    %2450 = vmatprep.subr.bf16.mxu0 0
    %2451 = vmatpush2.bf16.msra.mxu0 0
    %2452 = vmatprep.subr.bf16.mxu0 0
    %2453 = vmatpush2.bf16.msra.mxu0 0
    %2454 = vmatprep.subr.bf16.mxu0 0
    %2455 = vmatpush2.bf16.msra.mxu0 0
    %2456 = vmatprep.subr.bf16.mxu0 0
    %2457 = vmatpush2.bf16.msra.mxu0 0
    %2458 = vmatprep.mubr.bf16.mxu0 0
    %2459 = vmatmul.mubr.bf16.gmra.mxu0 %v2425
    %v2460 = vpop.f32.mrf.mxu0
    %v2461 = vadd.f32 0.0, %v2460
    %v2462 = vpop.f32.mrf.mxu0
    %v2463 = vadd.f32 0.0, %v2462
    %v2464 = vpop.f32.mrf.mxu0
    %v2465 = vpop.f32.mrf.mxu0
    %2466 = vdwg.mxu0
    %2467 = vmatprep.subr.bf16.mxu0 %v2129
    %2468 = vmatpush1.bf16.msra.mxu0 %v2128
    %2469 = vmatprep.subr.bf16.mxu0 %v2125
    %2470 = vmatpush1.bf16.msra.mxu0 %v2124
    %2471 = vmatprep.subr.bf16.mxu0 %v2121
    %2472 = vmatpush1.bf16.msra.mxu0 %v2120
    %2473 = vmatprep.subr.bf16.mxu0 %v2117
    %2474 = vmatpush1.bf16.msra.mxu0 %v2116
    %2475 = vmatprep.subr.bf16.mxu0 %v2113
    %2476 = vmatpush1.bf16.msra.mxu0 %v2112
    %2477 = vmatprep.subr.bf16.mxu0 %v2109
    %2478 = vmatpush1.bf16.msra.mxu0 %v2108
    %2479 = vmatprep.subr.bf16.mxu0 %v2105
    %2480 = vmatpush1.bf16.msra.mxu0 %v2104
    %2481 = vmatprep.subr.bf16.mxu0 %v2101
    %2482 = vmatpush1.bf16.msra.mxu0 %v2100
    %2483 = vmatprep.subr.bf16.mxu0 0
    %2484 = vmatpush2.bf16.msra.mxu0 0
    %2485 = vmatprep.subr.bf16.mxu0 0
    %2486 = vmatpush2.bf16.msra.mxu0 0
    %2487 = vmatprep.subr.bf16.mxu0 0
    %2488 = vmatpush2.bf16.msra.mxu0 0
    %2489 = vmatprep.subr.bf16.mxu0 0
    %2490 = vmatpush2.bf16.msra.mxu0 0
    %2491 = vmatprep.subr.bf16.mxu0 0
    %2492 = vmatpush2.bf16.msra.mxu0 0
    %2493 = vmatprep.subr.bf16.mxu0 0
    %2494 = vmatpush2.bf16.msra.mxu0 0
    %2495 = vmatprep.subr.bf16.mxu0 0
    %2496 = vmatpush2.bf16.msra.mxu0 0
    %2497 = vmatprep.subr.bf16.mxu0 0
    %2498 = vmatpush2.bf16.msra.mxu0 0
    %2499 = vmatprep.mubr.bf16.mxu0 0
    %2500 = vmatmul.mubr.bf16.gmra.mxu0 %v2425
    %v2501 = vpop.f32.mrf.mxu0
    %v2502 = vadd.f32 0.0, %v2501
    %v2503 = vpop.f32.mrf.mxu0
    %v2504 = vadd.f32 0.0, %v2503
    %v2505 = vpop.f32.mrf.mxu0
    %v2506 = vpop.f32.mrf.mxu0
    %2507 = vdwg.mxu0
    %v2508 = vadd.f32 %v2420, %v2461
    %v2509 = vadd.f32 %v2421, %v2463
    %v2510 = vadd.f32 %v2422, %v2502
    %v2511 = vadd.f32 %v2423, %v2504
    %v2512 = vxor.u32 %v2508, 2147483648
    %v2513 = vmul.f32 %v2512, 1.442695
    %v2514 = vpow.pop %v2513
    %v2515 = vadd.f32 %v2514, 1.0
    %v2516 = vrcp.pop %v2515
    %v2517 = vmul.f32 1.0, %v2516
    %v2518 = vxor.u32 %v2509, 2147483648
    %v2519 = vmul.f32 %v2518, 1.442695
    %v2520 = vpow.pop %v2519
    %v2521 = vadd.f32 %v2520, 1.0
    %v2522 = vrcp.pop %v2521
    %v2523 = vmul.f32 1.0, %v2522
    %v2524 = vtanh.pop %v2510
    %v2525 = vxor.u32 %v2511, 2147483648
    %v2526 = vmul.f32 %v2525, 1.442695
    %v2527 = vpow.pop %v2526
    %v2528 = vadd.f32 %v2527, 1.0
    %v2529 = vrcp.pop %v2528
    %v2530 = vmul.f32 1.0, %v2529
    %v2531 = vld [vmem:[%s1629] sm:$0xff]
    %v2532 = vmul.f32 %v2523, %v2531
    %v2533 = vmul.f32 %v2517, %v2524
    %v2534 = vadd.f32 %v2532, %v2533
    %v2535 = vtanh.pop %v2534
    %v2536 = vmul.f32 %v2530, %v2535
    %2537 = vst [vmem:[%s1629] sm:$0xff] %v2534
    %2538 = vst [vmem:[%s1627] sm:$0xff] %v2536
    %v2539 = vpack.c.bf16 %v2536, %v2536
    %s2540 = sadd.s32 %s2412, 8
    %s2541 = smul.addr %s2540, 4
    %s2542 = scalar_lea.vmem %s4, %s2541
    %2543 = vst [vmem:[%s2542] sm:$0xf] %v2539
    %s2544 = smul.u32 0, 6
    %s2545 = sadd.s32 %s2544, 2
    %s2546 = smul.u32 %s2545, 8
    %s2547 = sshra.s32 %s2546, 3
    %s2548 = sand.u32 %s2546, 7
    %s2549 = smul.u32 %s2547, 4
    %s2550 = smul.addr %s2549, 8
    %s2551 = scalar_lea.vmem [#allocation2], %s2550
    %v2552 = vld [vmem:[%s2551] sm:$0xff]
    %v2553 = vld [vmem:[%s2551 + $0x8] sm:$0xff]
    %v2554 = vld [vmem:[%s2551 + $0x10] sm:$0xff]
    %v2555 = vld [vmem:[%s2551 + $0x18] sm:$0xff]
    %v2556 = vld [vmem:[#allocation3] sm:$0xff]
    %v2557 = vpack.c.bf16 %v2556, %v2556
    %2558 = vmatprep.subr.bf16.mxu0 %v1834
    %2559 = vmatpush1.bf16.msra.mxu0 %v1833
    %2560 = vmatprep.subr.bf16.mxu0 %v1830
    %2561 = vmatpush1.bf16.msra.mxu0 %v1829
    %2562 = vmatprep.subr.bf16.mxu0 %v1826
    %2563 = vmatpush1.bf16.msra.mxu0 %v1825
    %2564 = vmatprep.subr.bf16.mxu0 %v1822
    %2565 = vmatpush1.bf16.msra.mxu0 %v1821
    %2566 = vmatprep.subr.bf16.mxu0 %v1818
    %2567 = vmatpush1.bf16.msra.mxu0 %v1817
    %2568 = vmatprep.subr.bf16.mxu0 %v1814
    %2569 = vmatpush1.bf16.msra.mxu0 %v1813
    %2570 = vmatprep.subr.bf16.mxu0 %v1810
    %2571 = vmatpush1.bf16.msra.mxu0 %v1809
    %2572 = vmatprep.subr.bf16.mxu0 %v1806
    %2573 = vmatpush1.bf16.msra.mxu0 %v1805
    %2574 = vmatprep.subr.bf16.mxu0 0
    %2575 = vmatpush2.bf16.msra.mxu0 0
    %2576 = vmatprep.subr.bf16.mxu0 0
    %2577 = vmatpush2.bf16.msra.mxu0 0
    %2578 = vmatprep.subr.bf16.mxu0 0
    %2579 = vmatpush2.bf16.msra.mxu0 0
    %2580 = vmatprep.subr.bf16.mxu0 0
    %2581 = vmatpush2.bf16.msra.mxu0 0
    %2582 = vmatprep.subr.bf16.mxu0 0
    %2583 = vmatpush2.bf16.msra.mxu0 0
    %2584 = vmatprep.subr.bf16.mxu0 0
    %2585 = vmatpush2.bf16.msra.mxu0 0
    %2586 = vmatprep.subr.bf16.mxu0 0
    %2587 = vmatpush2.bf16.msra.mxu0 0
    %2588 = vmatprep.subr.bf16.mxu0 0
    %2589 = vmatpush2.bf16.msra.mxu0 0
    %2590 = vmatprep.mubr.bf16.mxu0 0
    %2591 = vmatmul.mubr.bf16.gmra.mxu0 %v2557
    %v2592 = vpop.f32.mrf.mxu0
    %v2593 = vadd.f32 0.0, %v2592
    %v2594 = vpop.f32.mrf.mxu0
    %v2595 = vadd.f32 0.0, %v2594
    %v2596 = vpop.f32.mrf.mxu0
    %v2597 = vpop.f32.mrf.mxu0
    %2598 = vdwg.mxu0
    %2599 = vmatprep.subr.bf16.mxu0 %v1836
    %2600 = vmatpush1.bf16.msra.mxu0 %v1835
    %2601 = vmatprep.subr.bf16.mxu0 %v1832
    %2602 = vmatpush1.bf16.msra.mxu0 %v1831
    %2603 = vmatprep.subr.bf16.mxu0 %v1828
    %2604 = vmatpush1.bf16.msra.mxu0 %v1827
    %2605 = vmatprep.subr.bf16.mxu0 %v1824
    %2606 = vmatpush1.bf16.msra.mxu0 %v1823
    %2607 = vmatprep.subr.bf16.mxu0 %v1820
    %2608 = vmatpush1.bf16.msra.mxu0 %v1819
    %2609 = vmatprep.subr.bf16.mxu0 %v1816
    %2610 = vmatpush1.bf16.msra.mxu0 %v1815
    %2611 = vmatprep.subr.bf16.mxu0 %v1812
    %2612 = vmatpush1.bf16.msra.mxu0 %v1811
    %2613 = vmatprep.subr.bf16.mxu0 %v1808
    %2614 = vmatpush1.bf16.msra.mxu0 %v1807
    %2615 = vmatprep.subr.bf16.mxu0 0
    %2616 = vmatpush2.bf16.msra.mxu0 0
    %2617 = vmatprep.subr.bf16.mxu0 0
    %2618 = vmatpush2.bf16.msra.mxu0 0
    %2619 = vmatprep.subr.bf16.mxu0 0
    %2620 = vmatpush2.bf16.msra.mxu0 0
    %2621 = vmatprep.subr.bf16.mxu0 0
    %2622 = vmatpush2.bf16.msra.mxu0 0
    %2623 = vmatprep.subr.bf16.mxu0 0
    %2624 = vmatpush2.bf16.msra.mxu0 0
    %2625 = vmatprep.subr.bf16.mxu0 0
    %2626 = vmatpush2.bf16.msra.mxu0 0
    %2627 = vmatprep.subr.bf16.mxu0 0
    %2628 = vmatpush2.bf16.msra.mxu0 0
    %2629 = vmatprep.subr.bf16.mxu0 0
    %2630 = vmatpush2.bf16.msra.mxu0 0
    %2631 = vmatprep.mubr.bf16.mxu0 0
    %2632 = vmatmul.mubr.bf16.gmra.mxu0 %v2557
    %v2633 = vpop.f32.mrf.mxu0
    %v2634 = vadd.f32 0.0, %v2633
    %v2635 = vpop.f32.mrf.mxu0
    %v2636 = vadd.f32 0.0, %v2635
    %v2637 = vpop.f32.mrf.mxu0
    %v2638 = vpop.f32.mrf.mxu0
    %2639 = vdwg.mxu0
    %v2640 = vadd.f32 %v2552, %v2593
    %v2641 = vadd.f32 %v2553, %v2595
    %v2642 = vadd.f32 %v2554, %v2634
    %v2643 = vadd.f32 %v2555, %v2636
    %v2644 = vxor.u32 %v2640, 2147483648
    %v2645 = vmul.f32 %v2644, 1.442695
    %v2646 = vpow.pop %v2645
    %v2647 = vadd.f32 %v2646, 1.0
    %v2648 = vrcp.pop %v2647
    %v2649 = vmul.f32 1.0, %v2648
    %v2650 = vxor.u32 %v2641, 2147483648
    %v2651 = vmul.f32 %v2650, 1.442695
    %v2652 = vpow.pop %v2651
    %v2653 = vadd.f32 %v2652, 1.0
    %v2654 = vrcp.pop %v2653
    %v2655 = vmul.f32 1.0, %v2654
    %v2656 = vtanh.pop %v2642
    %v2657 = vxor.u32 %v2643, 2147483648
    %v2658 = vmul.f32 %v2657, 1.442695
    %v2659 = vpow.pop %v2658
    %v2660 = vadd.f32 %v2659, 1.0
    %v2661 = vrcp.pop %v2660
    %v2662 = vmul.f32 1.0, %v2661
    %v2663 = vld [vmem:[#allocation4] sm:$0xff]
    %v2664 = vmul.f32 %v2655, %v2663
    %v2665 = vmul.f32 %v2649, %v2656
    %v2666 = vadd.f32 %v2664, %v2665
    %v2667 = vtanh.pop %v2666
    %v2668 = vmul.f32 %v2662, %v2667
    %2669 = vst [vmem:[#allocation4] sm:$0xff] %v2666
    %2670 = vst [vmem:[#allocation3] sm:$0xff] %v2668
    %v2671 = vpack.c.bf16 %v2668, %v2668
    %s2672 = smul.addr %s2545, 4
    %s2673 = scalar_lea.vmem %s4, %s2672
    %2674 = vst [vmem:[%s2673] sm:$0xf] %v2671
    %s2675 = smul.u32 %s1987, 3
    %s2676 = sadd.s32 %s2675, 2
    %s2677 = smul.u32 %s2676, 8
    %s2678 = sadd.s32 %s2677, 64
    %s2679 = sshra.s32 %s2678, 3
    %s2680 = sand.u32 %s2678, 7
    %s2681 = smul.u32 %s2679, 4
    %s2682 = smul.addr %s2681, 8
    %s2683 = scalar_lea.vmem [#allocation2], %s2682
    %v2684 = vld [vmem:[%s2683] sm:$0xff]
    %v2685 = vld [vmem:[%s2683 + $0x8] sm:$0xff]
    %v2686 = vld [vmem:[%s2683 + $0x10] sm:$0xff]
    %v2687 = vld [vmem:[%s2683 + $0x18] sm:$0xff]
    %v2688 = vld [vmem:[%s1627] sm:$0xff]
    %v2689 = vpack.c.bf16 %v2688, %v2688
    %2690 = vmatprep.subr.bf16.mxu0 %v2127
    %2691 = vmatpush1.bf16.msra.mxu0 %v2126
    %2692 = vmatprep.subr.bf16.mxu0 %v2123
    %2693 = vmatpush1.bf16.msra.mxu0 %v2122
    %2694 = vmatprep.subr.bf16.mxu0 %v2119
    %2695 = vmatpush1.bf16.msra.mxu0 %v2118
    %2696 = vmatprep.subr.bf16.mxu0 %v2115
    %2697 = vmatpush1.bf16.msra.mxu0 %v2114
    %2698 = vmatprep.subr.bf16.mxu0 %v2111
    %2699 = vmatpush1.bf16.msra.mxu0 %v2110
    %2700 = vmatprep.subr.bf16.mxu0 %v2107
    %2701 = vmatpush1.bf16.msra.mxu0 %v2106
    %2702 = vmatprep.subr.bf16.mxu0 %v2103
    %2703 = vmatpush1.bf16.msra.mxu0 %v2102
    %2704 = vmatprep.subr.bf16.mxu0 %v2099
    %2705 = vmatpush1.bf16.msra.mxu0 %v2098
    %2706 = vmatprep.subr.bf16.mxu0 0
    %2707 = vmatpush2.bf16.msra.mxu0 0
    %2708 = vmatprep.subr.bf16.mxu0 0
    %2709 = vmatpush2.bf16.msra.mxu0 0
    %2710 = vmatprep.subr.bf16.mxu0 0
    %2711 = vmatpush2.bf16.msra.mxu0 0
    %2712 = vmatprep.subr.bf16.mxu0 0
    %2713 = vmatpush2.bf16.msra.mxu0 0
    %2714 = vmatprep.subr.bf16.mxu0 0
    %2715 = vmatpush2.bf16.msra.mxu0 0
    %2716 = vmatprep.subr.bf16.mxu0 0
    %2717 = vmatpush2.bf16.msra.mxu0 0
    %2718 = vmatprep.subr.bf16.mxu0 0
    %2719 = vmatpush2.bf16.msra.mxu0 0
    %2720 = vmatprep.subr.bf16.mxu0 0
    %2721 = vmatpush2.bf16.msra.mxu0 0
    %2722 = vmatprep.mubr.bf16.mxu0 0
    %2723 = vmatmul.mubr.bf16.gmra.mxu0 %v2689
    %v2724 = vpop.f32.mrf.mxu0
    %v2725 = vadd.f32 0.0, %v2724
    %v2726 = vpop.f32.mrf.mxu0
    %v2727 = vadd.f32 0.0, %v2726
    %v2728 = vpop.f32.mrf.mxu0
    %v2729 = vpop.f32.mrf.mxu0
    %2730 = vdwg.mxu0
    %2731 = vmatprep.subr.bf16.mxu0 %v2129
    %2732 = vmatpush1.bf16.msra.mxu0 %v2128
    %2733 = vmatprep.subr.bf16.mxu0 %v2125
    %2734 = vmatpush1.bf16.msra.mxu0 %v2124
    %2735 = vmatprep.subr.bf16.mxu0 %v2121
    %2736 = vmatpush1.bf16.msra.mxu0 %v2120
    %2737 = vmatprep.subr.bf16.mxu0 %v2117
    %2738 = vmatpush1.bf16.msra.mxu0 %v2116
    %2739 = vmatprep.subr.bf16.mxu0 %v2113
    %2740 = vmatpush1.bf16.msra.mxu0 %v2112
    %2741 = vmatprep.subr.bf16.mxu0 %v2109
    %2742 = vmatpush1.bf16.msra.mxu0 %v2108
    %2743 = vmatprep.subr.bf16.mxu0 %v2105
    %2744 = vmatpush1.bf16.msra.mxu0 %v2104
    %2745 = vmatprep.subr.bf16.mxu0 %v2101
    %2746 = vmatpush1.bf16.msra.mxu0 %v2100
    %2747 = vmatprep.subr.bf16.mxu0 0
    %2748 = vmatpush2.bf16.msra.mxu0 0
    %2749 = vmatprep.subr.bf16.mxu0 0
    %2750 = vmatpush2.bf16.msra.mxu0 0
    %2751 = vmatprep.subr.bf16.mxu0 0
    %2752 = vmatpush2.bf16.msra.mxu0 0
    %2753 = vmatprep.subr.bf16.mxu0 0
    %2754 = vmatpush2.bf16.msra.mxu0 0
    %2755 = vmatprep.subr.bf16.mxu0 0
    %2756 = vmatpush2.bf16.msra.mxu0 0
    %2757 = vmatprep.subr.bf16.mxu0 0
    %2758 = vmatpush2.bf16.msra.mxu0 0
    %2759 = vmatprep.subr.bf16.mxu0 0
    %2760 = vmatpush2.bf16.msra.mxu0 0
    %2761 = vmatprep.subr.bf16.mxu0 0
    %2762 = vmatpush2.bf16.msra.mxu0 0
    %2763 = vmatprep.mubr.bf16.mxu0 0
    %2764 = vmatmul.mubr.bf16.gmra.mxu0 %v2689
    %v2765 = vpop.f32.mrf.mxu0
    %v2766 = vadd.f32 0.0, %v2765
    %v2767 = vpop.f32.mrf.mxu0
    %v2768 = vadd.f32 0.0, %v2767
    %v2769 = vpop.f32.mrf.mxu0
    %v2770 = vpop.f32.mrf.mxu0
    %2771 = vdwg.mxu0
    %v2772 = vadd.f32 %v2684, %v2725
    %v2773 = vadd.f32 %v2685, %v2727
    %v2774 = vadd.f32 %v2686, %v2766
    %v2775 = vadd.f32 %v2687, %v2768
    %v2776 = vxor.u32 %v2772, 2147483648
    %v2777 = vmul.f32 %v2776, 1.442695
    %v2778 = vpow.pop %v2777
    %v2779 = vadd.f32 %v2778, 1.0
    %v2780 = vrcp.pop %v2779
    %v2781 = vmul.f32 1.0, %v2780
    %v2782 = vxor.u32 %v2773, 2147483648
    %v2783 = vmul.f32 %v2782, 1.442695
    %v2784 = vpow.pop %v2783
    %v2785 = vadd.f32 %v2784, 1.0
    %v2786 = vrcp.pop %v2785
    %v2787 = vmul.f32 1.0, %v2786
    %v2788 = vtanh.pop %v2774
    %v2789 = vxor.u32 %v2775, 2147483648
    %v2790 = vmul.f32 %v2789, 1.442695
    %v2791 = vpow.pop %v2790
    %v2792 = vadd.f32 %v2791, 1.0
    %v2793 = vrcp.pop %v2792
    %v2794 = vmul.f32 1.0, %v2793
    %v2795 = vld [vmem:[%s1629] sm:$0xff]
    %v2796 = vmul.f32 %v2787, %v2795
    %v2797 = vmul.f32 %v2781, %v2788
    %v2798 = vadd.f32 %v2796, %v2797
    %v2799 = vtanh.pop %v2798
    %v2800 = vmul.f32 %v2794, %v2799
    %2801 = vst [vmem:[%s1629] sm:$0xff] %v2798
    %2802 = vst [vmem:[%s1627] sm:$0xff] %v2800
    %v2803 = vpack.c.bf16 %v2800, %v2800
    %s2804 = sadd.s32 %s2676, 8
    %s2805 = smul.addr %s2804, 4
    %s2806 = scalar_lea.vmem %s4, %s2805
    %2807 = vst [vmem:[%s2806] sm:$0xf] %v2803
    %s2808 = sadd.s32 %s1986, 3
    %s2809 = smul.u32 %s2808, 8
    %s2810 = sshra.s32 %s2809, 3
    %s2811 = sand.u32 %s2809, 7
    %s2812 = smul.u32 %s2810, 4
    %s2813 = smul.addr %s2812, 8
    %s2814 = scalar_lea.vmem [#allocation2], %s2813
    %v2815 = vld [vmem:[%s2814] sm:$0xff]
    %v2816 = vld [vmem:[%s2814 + $0x8] sm:$0xff]
    %v2817 = vld [vmem:[%s2814 + $0x10] sm:$0xff]
    %v2818 = vld [vmem:[%s2814 + $0x18] sm:$0xff]
    %v2819 = vld [vmem:[#allocation3] sm:$0xff]
    %v2820 = vpack.c.bf16 %v2819, %v2819
    %2821 = vmatprep.subr.bf16.mxu0 %v1834
    %2822 = vmatpush1.bf16.msra.mxu0 %v1833
    %2823 = vmatprep.subr.bf16.mxu0 %v1830
    %2824 = vmatpush1.bf16.msra.mxu0 %v1829
    %2825 = vmatprep.subr.bf16.mxu0 %v1826
    %2826 = vmatpush1.bf16.msra.mxu0 %v1825
    %2827 = vmatprep.subr.bf16.mxu0 %v1822
    %2828 = vmatpush1.bf16.msra.mxu0 %v1821
    %2829 = vmatprep.subr.bf16.mxu0 %v1818
    %2830 = vmatpush1.bf16.msra.mxu0 %v1817
    %2831 = vmatprep.subr.bf16.mxu0 %v1814
    %2832 = vmatpush1.bf16.msra.mxu0 %v1813
    %2833 = vmatprep.subr.bf16.mxu0 %v1810
    %2834 = vmatpush1.bf16.msra.mxu0 %v1809
    %2835 = vmatprep.subr.bf16.mxu0 %v1806
    %2836 = vmatpush1.bf16.msra.mxu0 %v1805
    %2837 = vmatprep.subr.bf16.mxu0 0
    %2838 = vmatpush2.bf16.msra.mxu0 0
    %2839 = vmatprep.subr.bf16.mxu0 0
    %2840 = vmatpush2.bf16.msra.mxu0 0
    %2841 = vmatprep.subr.bf16.mxu0 0
    %2842 = vmatpush2.bf16.msra.mxu0 0
    %2843 = vmatprep.subr.bf16.mxu0 0
    %2844 = vmatpush2.bf16.msra.mxu0 0
    %2845 = vmatprep.subr.bf16.mxu0 0
    %2846 = vmatpush2.bf16.msra.mxu0 0
    %2847 = vmatprep.subr.bf16.mxu0 0
    %2848 = vmatpush2.bf16.msra.mxu0 0
    %2849 = vmatprep.subr.bf16.mxu0 0
    %2850 = vmatpush2.bf16.msra.mxu0 0
    %2851 = vmatprep.subr.bf16.mxu0 0
    %2852 = vmatpush2.bf16.msra.mxu0 0
    %2853 = vmatprep.mubr.bf16.mxu0 0
    %2854 = vmatmul.mubr.bf16.gmra.mxu0 %v2820
    %v2855 = vpop.f32.mrf.mxu0
    %v2856 = vadd.f32 0.0, %v2855
    %v2857 = vpop.f32.mrf.mxu0
    %v2858 = vadd.f32 0.0, %v2857
    %v2859 = vpop.f32.mrf.mxu0
    %v2860 = vpop.f32.mrf.mxu0
    %2861 = vdwg.mxu0
    %2862 = vmatprep.subr.bf16.mxu0 %v1836
    %2863 = vmatpush1.bf16.msra.mxu0 %v1835
    %2864 = vmatprep.subr.bf16.mxu0 %v1832
    %2865 = vmatpush1.bf16.msra.mxu0 %v1831
    %2866 = vmatprep.subr.bf16.mxu0 %v1828
    %2867 = vmatpush1.bf16.msra.mxu0 %v1827
    %2868 = vmatprep.subr.bf16.mxu0 %v1824
    %2869 = vmatpush1.bf16.msra.mxu0 %v1823
    %2870 = vmatprep.subr.bf16.mxu0 %v1820
    %2871 = vmatpush1.bf16.msra.mxu0 %v1819
    %2872 = vmatprep.subr.bf16.mxu0 %v1816
    %2873 = vmatpush1.bf16.msra.mxu0 %v1815
    %2874 = vmatprep.subr.bf16.mxu0 %v1812
    %2875 = vmatpush1.bf16.msra.mxu0 %v1811
    %2876 = vmatprep.subr.bf16.mxu0 %v1808
    %2877 = vmatpush1.bf16.msra.mxu0 %v1807
    %2878 = vmatprep.subr.bf16.mxu0 0
    %2879 = vmatpush2.bf16.msra.mxu0 0
    %2880 = vmatprep.subr.bf16.mxu0 0
    %2881 = vmatpush2.bf16.msra.mxu0 0
    %2882 = vmatprep.subr.bf16.mxu0 0
    %2883 = vmatpush2.bf16.msra.mxu0 0
    %2884 = vmatprep.subr.bf16.mxu0 0
    %2885 = vmatpush2.bf16.msra.mxu0 0
    %2886 = vmatprep.subr.bf16.mxu0 0
    %2887 = vmatpush2.bf16.msra.mxu0 0
    %2888 = vmatprep.subr.bf16.mxu0 0
    %2889 = vmatpush2.bf16.msra.mxu0 0
    %2890 = vmatprep.subr.bf16.mxu0 0
    %2891 = vmatpush2.bf16.msra.mxu0 0
    %2892 = vmatprep.subr.bf16.mxu0 0
    %2893 = vmatpush2.bf16.msra.mxu0 0
    %2894 = vmatprep.mubr.bf16.mxu0 0
    %2895 = vmatmul.mubr.bf16.gmra.mxu0 %v2820
    %v2896 = vpop.f32.mrf.mxu0
    %v2897 = vadd.f32 0.0, %v2896
    %v2898 = vpop.f32.mrf.mxu0
    %v2899 = vadd.f32 0.0, %v2898
    %v2900 = vpop.f32.mrf.mxu0
    %v2901 = vpop.f32.mrf.mxu0
    %2902 = vdwg.mxu0
    %v2903 = vadd.f32 %v2815, %v2856
    %v2904 = vadd.f32 %v2816, %v2858
    %v2905 = vadd.f32 %v2817, %v2897
    %v2906 = vadd.f32 %v2818, %v2899
    %v2907 = vxor.u32 %v2903, 2147483648
    %v2908 = vmul.f32 %v2907, 1.442695
    %v2909 = vpow.pop %v2908
    %v2910 = vadd.f32 %v2909, 1.0
    %v2911 = vrcp.pop %v2910
    %v2912 = vmul.f32 1.0, %v2911
    %v2913 = vxor.u32 %v2904, 2147483648
    %v2914 = vmul.f32 %v2913, 1.442695
    %v2915 = vpow.pop %v2914
    %v2916 = vadd.f32 %v2915, 1.0
    %v2917 = vrcp.pop %v2916
    %v2918 = vmul.f32 1.0, %v2917
    %v2919 = vtanh.pop %v2905
    %v2920 = vxor.u32 %v2906, 2147483648
    %v2921 = vmul.f32 %v2920, 1.442695
    %v2922 = vpow.pop %v2921
    %v2923 = vadd.f32 %v2922, 1.0
    %v2924 = vrcp.pop %v2923
    %v2925 = vmul.f32 1.0, %v2924
    %v2926 = vld [vmem:[#allocation4] sm:$0xff]
    %v2927 = vmul.f32 %v2918, %v2926
    %v2928 = vmul.f32 %v2912, %v2919
    %v2929 = vadd.f32 %v2927, %v2928
    %v2930 = vtanh.pop %v2929
    %v2931 = vmul.f32 %v2925, %v2930
    %2932 = vst [vmem:[#allocation4] sm:$0xff] %v2929
    %2933 = vst [vmem:[#allocation3] sm:$0xff] %v2931
    %v2934 = vpack.c.bf16 %v2931, %v2931
    %s2935 = smul.addr %s2808, 4
    %s2936 = scalar_lea.vmem %s4, %s2935
    %2937 = vst [vmem:[%s2936] sm:$0xf] %v2934
    %s2938 = sadd.s32 %s1986, 4
    %s2939 = smul.u32 %s2938, 8
    %s2940 = sadd.s32 %s2939, 64
    %s2941 = sshra.s32 %s2940, 3
    %s2942 = sand.u32 %s2940, 7
    %s2943 = smul.u32 %s2941, 4
    %s2944 = smul.addr %s2943, 8
    %s2945 = scalar_lea.vmem [#allocation2], %s2944
    %v2946 = vld [vmem:[%s2945] sm:$0xff]
    %v2947 = vld [vmem:[%s2945 + $0x8] sm:$0xff]
    %v2948 = vld [vmem:[%s2945 + $0x10] sm:$0xff]
    %v2949 = vld [vmem:[%s2945 + $0x18] sm:$0xff]
    %v2950 = vld [vmem:[%s1627] sm:$0xff]
    %v2951 = vpack.c.bf16 %v2950, %v2950
    %2952 = vmatprep.subr.bf16.mxu0 %v2127
    %2953 = vmatpush1.bf16.msra.mxu0 %v2126
    %2954 = vmatprep.subr.bf16.mxu0 %v2123
    %2955 = vmatpush1.bf16.msra.mxu0 %v2122
    %2956 = vmatprep.subr.bf16.mxu0 %v2119
    %2957 = vmatpush1.bf16.msra.mxu0 %v2118
    %2958 = vmatprep.subr.bf16.mxu0 %v2115
    %2959 = vmatpush1.bf16.msra.mxu0 %v2114
    %2960 = vmatprep.subr.bf16.mxu0 %v2111
    %2961 = vmatpush1.bf16.msra.mxu0 %v2110
    %2962 = vmatprep.subr.bf16.mxu0 %v2107
    %2963 = vmatpush1.bf16.msra.mxu0 %v2106
    %2964 = vmatprep.subr.bf16.mxu0 %v2103
    %2965 = vmatpush1.bf16.msra.mxu0 %v2102
    %2966 = vmatprep.subr.bf16.mxu0 %v2099
    %2967 = vmatpush1.bf16.msra.mxu0 %v2098
    %2968 = vmatprep.subr.bf16.mxu0 0
    %2969 = vmatpush2.bf16.msra.mxu0 0
    %2970 = vmatprep.subr.bf16.mxu0 0
    %2971 = vmatpush2.bf16.msra.mxu0 0
    %2972 = vmatprep.subr.bf16.mxu0 0
    %2973 = vmatpush2.bf16.msra.mxu0 0
    %2974 = vmatprep.subr.bf16.mxu0 0
    %2975 = vmatpush2.bf16.msra.mxu0 0
    %2976 = vmatprep.subr.bf16.mxu0 0
    %2977 = vmatpush2.bf16.msra.mxu0 0
    %2978 = vmatprep.subr.bf16.mxu0 0
    %2979 = vmatpush2.bf16.msra.mxu0 0
    %2980 = vmatprep.subr.bf16.mxu0 0
    %2981 = vmatpush2.bf16.msra.mxu0 0
    %2982 = vmatprep.subr.bf16.mxu0 0
    %2983 = vmatpush2.bf16.msra.mxu0 0
    %2984 = vmatprep.mubr.bf16.mxu0 0
    %2985 = vmatmul.mubr.bf16.gmra.mxu0 %v2951
    %v2986 = vpop.f32.mrf.mxu0
    %v2987 = vadd.f32 0.0, %v2986
    %v2988 = vpop.f32.mrf.mxu0
    %v2989 = vadd.f32 0.0, %v2988
    %v2990 = vpop.f32.mrf.mxu0
    %v2991 = vpop.f32.mrf.mxu0
    %2992 = vdwg.mxu0
    %2993 = vmatprep.subr.bf16.mxu0 %v2129
    %2994 = vmatpush1.bf16.msra.mxu0 %v2128
    %2995 = vmatprep.subr.bf16.mxu0 %v2125
    %2996 = vmatpush1.bf16.msra.mxu0 %v2124
    %2997 = vmatprep.subr.bf16.mxu0 %v2121
    %2998 = vmatpush1.bf16.msra.mxu0 %v2120
    %2999 = vmatprep.subr.bf16.mxu0 %v2117
    %3000 = vmatpush1.bf16.msra.mxu0 %v2116
    %3001 = vmatprep.subr.bf16.mxu0 %v2113
    %3002 = vmatpush1.bf16.msra.mxu0 %v2112
    %3003 = vmatprep.subr.bf16.mxu0 %v2109
    %3004 = vmatpush1.bf16.msra.mxu0 %v2108
    %3005 = vmatprep.subr.bf16.mxu0 %v2105
    %3006 = vmatpush1.bf16.msra.mxu0 %v2104
    %3007 = vmatprep.subr.bf16.mxu0 %v2101
    %3008 = vmatpush1.bf16.msra.mxu0 %v2100
    %3009 = vmatprep.subr.bf16.mxu0 0
    %3010 = vmatpush2.bf16.msra.mxu0 0
    %3011 = vmatprep.subr.bf16.mxu0 0
    %3012 = vmatpush2.bf16.msra.mxu0 0
    %3013 = vmatprep.subr.bf16.mxu0 0
    %3014 = vmatpush2.bf16.msra.mxu0 0
    %3015 = vmatprep.subr.bf16.mxu0 0
    %3016 = vmatpush2.bf16.msra.mxu0 0
    %3017 = vmatprep.subr.bf16.mxu0 0
    %3018 = vmatpush2.bf16.msra.mxu0 0
    %3019 = vmatprep.subr.bf16.mxu0 0
    %3020 = vmatpush2.bf16.msra.mxu0 0
    %3021 = vmatprep.subr.bf16.mxu0 0
    %3022 = vmatpush2.bf16.msra.mxu0 0
    %3023 = vmatprep.subr.bf16.mxu0 0
    %3024 = vmatpush2.bf16.msra.mxu0 0
    %3025 = vmatprep.mubr.bf16.mxu0 0
    %3026 = vmatmul.mubr.bf16.gmra.mxu0 %v2951
    %v3027 = vpop.f32.mrf.mxu0
    %v3028 = vadd.f32 0.0, %v3027
    %v3029 = vpop.f32.mrf.mxu0
    %v3030 = vadd.f32 0.0, %v3029
    %v3031 = vpop.f32.mrf.mxu0
    %v3032 = vpop.f32.mrf.mxu0
    %3033 = vdwg.mxu0
    %v3034 = vadd.f32 %v2946, %v2987
    %v3035 = vadd.f32 %v2947, %v2989
    %v3036 = vadd.f32 %v2948, %v3028
    %v3037 = vadd.f32 %v2949, %v3030
    %v3038 = vxor.u32 %v3034, 2147483648
    %v3039 = vmul.f32 %v3038, 1.442695
    %v3040 = vpow.pop %v3039
    %v3041 = vadd.f32 %v3040, 1.0
    %v3042 = vrcp.pop %v3041
    %v3043 = vmul.f32 1.0, %v3042
    %v3044 = vxor.u32 %v3035, 2147483648
    %v3045 = vmul.f32 %v3044, 1.442695
    %v3046 = vpow.pop %v3045
    %v3047 = vadd.f32 %v3046, 1.0
    %v3048 = vrcp.pop %v3047
    %v3049 = vmul.f32 1.0, %v3048
    %v3050 = vtanh.pop %v3036
    %v3051 = vxor.u32 %v3037, 2147483648
    %v3052 = vmul.f32 %v3051, 1.442695
    %v3053 = vpow.pop %v3052
    %v3054 = vadd.f32 %v3053, 1.0
    %v3055 = vrcp.pop %v3054
    %v3056 = vmul.f32 1.0, %v3055
    %v3057 = vld [vmem:[%s1629] sm:$0xff]
    %v3058 = vmul.f32 %v3049, %v3057
    %v3059 = vmul.f32 %v3043, %v3050
    %v3060 = vadd.f32 %v3058, %v3059
    %v3061 = vtanh.pop %v3060
    %v3062 = vmul.f32 %v3056, %v3061
    %3063 = vst [vmem:[%s1629] sm:$0xff] %v3060
    %3064 = vst [vmem:[%s1627] sm:$0xff] %v3062
    %v3065 = vpack.c.bf16 %v3062, %v3062
    %s3066 = sadd.s32 %s2938, 8
    %s3067 = smul.addr %s3066, 4
    %s3068 = scalar_lea.vmem %s4, %s3067
    %3069 = vst [vmem:[%s3068] sm:$0xf] %v3065
    %s3070 = smul.u32 0, 4294967294
    %s3071 = sadd.s32 %s3070, 4
    %s3072 = smul.u32 %s3071, 8
    %s3073 = sshra.s32 %s3072, 3
    %s3074 = sand.u32 %s3072, 7
    %s3075 = smul.u32 %s3073, 4
    %s3076 = smul.addr %s3075, 8
    %s3077 = scalar_lea.vmem [#allocation2], %s3076
    %v3078 = vld [vmem:[%s3077] sm:$0xff]
    %v3079 = vld [vmem:[%s3077 + $0x8] sm:$0xff]
    %v3080 = vld [vmem:[%s3077 + $0x10] sm:$0xff]
    %v3081 = vld [vmem:[%s3077 + $0x18] sm:$0xff]
    %v3082 = vld [vmem:[#allocation3] sm:$0xff]
    %v3083 = vpack.c.bf16 %v3082, %v3082
    %3084 = vmatprep.subr.bf16.mxu0 %v1834
    %3085 = vmatpush1.bf16.msra.mxu0 %v1833
    %3086 = vmatprep.subr.bf16.mxu0 %v1830
    %3087 = vmatpush1.bf16.msra.mxu0 %v1829
    %3088 = vmatprep.subr.bf16.mxu0 %v1826
    %3089 = vmatpush1.bf16.msra.mxu0 %v1825
    %3090 = vmatprep.subr.bf16.mxu0 %v1822
    %3091 = vmatpush1.bf16.msra.mxu0 %v1821
    %3092 = vmatprep.subr.bf16.mxu0 %v1818
    %3093 = vmatpush1.bf16.msra.mxu0 %v1817
    %3094 = vmatprep.subr.bf16.mxu0 %v1814
    %3095 = vmatpush1.bf16.msra.mxu0 %v1813
    %3096 = vmatprep.subr.bf16.mxu0 %v1810
    %3097 = vmatpush1.bf16.msra.mxu0 %v1809
    %3098 = vmatprep.subr.bf16.mxu0 %v1806
    %3099 = vmatpush1.bf16.msra.mxu0 %v1805
    %3100 = vmatprep.subr.bf16.mxu0 0
    %3101 = vmatpush2.bf16.msra.mxu0 0
    %3102 = vmatprep.subr.bf16.mxu0 0
    %3103 = vmatpush2.bf16.msra.mxu0 0
    %3104 = vmatprep.subr.bf16.mxu0 0
    %3105 = vmatpush2.bf16.msra.mxu0 0
    %3106 = vmatprep.subr.bf16.mxu0 0
    %3107 = vmatpush2.bf16.msra.mxu0 0
    %3108 = vmatprep.subr.bf16.mxu0 0
    %3109 = vmatpush2.bf16.msra.mxu0 0
    %3110 = vmatprep.subr.bf16.mxu0 0
    %3111 = vmatpush2.bf16.msra.mxu0 0
    %3112 = vmatprep.subr.bf16.mxu0 0
    %3113 = vmatpush2.bf16.msra.mxu0 0
    %3114 = vmatprep.subr.bf16.mxu0 0
    %3115 = vmatpush2.bf16.msra.mxu0 0
    %3116 = vmatprep.mubr.bf16.mxu0 0
    %3117 = vmatmul.mubr.bf16.gmra.mxu0 %v3083
    %v3118 = vpop.f32.mrf.mxu0
    %v3119 = vadd.f32 0.0, %v3118
    %v3120 = vpop.f32.mrf.mxu0
    %v3121 = vadd.f32 0.0, %v3120
    %v3122 = vpop.f32.mrf.mxu0
    %v3123 = vpop.f32.mrf.mxu0
    %3124 = vdwg.mxu0
    %3125 = vmatprep.subr.bf16.mxu0 %v1836
    %3126 = vmatpush1.bf16.msra.mxu0 %v1835
    %3127 = vmatprep.subr.bf16.mxu0 %v1832
    %3128 = vmatpush1.bf16.msra.mxu0 %v1831
    %3129 = vmatprep.subr.bf16.mxu0 %v1828
    %3130 = vmatpush1.bf16.msra.mxu0 %v1827
    %3131 = vmatprep.subr.bf16.mxu0 %v1824
    %3132 = vmatpush1.bf16.msra.mxu0 %v1823
    %3133 = vmatprep.subr.bf16.mxu0 %v1820
    %3134 = vmatpush1.bf16.msra.mxu0 %v1819
    %3135 = vmatprep.subr.bf16.mxu0 %v1816
    %3136 = vmatpush1.bf16.msra.mxu0 %v1815
    %3137 = vmatprep.subr.bf16.mxu0 %v1812
    %3138 = vmatpush1.bf16.msra.mxu0 %v1811
    %3139 = vmatprep.subr.bf16.mxu0 %v1808
    %3140 = vmatpush1.bf16.msra.mxu0 %v1807
    %3141 = vmatprep.subr.bf16.mxu0 0
    %3142 = vmatpush2.bf16.msra.mxu0 0
    %3143 = vmatprep.subr.bf16.mxu0 0
    %3144 = vmatpush2.bf16.msra.mxu0 0
    %3145 = vmatprep.subr.bf16.mxu0 0
    %3146 = vmatpush2.bf16.msra.mxu0 0
    %3147 = vmatprep.subr.bf16.mxu0 0
    %3148 = vmatpush2.bf16.msra.mxu0 0
    %3149 = vmatprep.subr.bf16.mxu0 0
    %3150 = vmatpush2.bf16.msra.mxu0 0
    %3151 = vmatprep.subr.bf16.mxu0 0
    %3152 = vmatpush2.bf16.msra.mxu0 0
    %3153 = vmatprep.subr.bf16.mxu0 0
    %3154 = vmatpush2.bf16.msra.mxu0 0
    %3155 = vmatprep.subr.bf16.mxu0 0
    %3156 = vmatpush2.bf16.msra.mxu0 0
    %3157 = vmatprep.mubr.bf16.mxu0 0
    %3158 = vmatmul.mubr.bf16.gmra.mxu0 %v3083
    %v3159 = vpop.f32.mrf.mxu0
    %v3160 = vadd.f32 0.0, %v3159
    %v3161 = vpop.f32.mrf.mxu0
    %v3162 = vadd.f32 0.0, %v3161
    %v3163 = vpop.f32.mrf.mxu0
    %v3164 = vpop.f32.mrf.mxu0
    %3165 = vdwg.mxu0
    %v3166 = vadd.f32 %v3078, %v3119
    %v3167 = vadd.f32 %v3079, %v3121
    %v3168 = vadd.f32 %v3080, %v3160
    %v3169 = vadd.f32 %v3081, %v3162
    %v3170 = vxor.u32 %v3166, 2147483648
    %v3171 = vmul.f32 %v3170, 1.442695
    %v3172 = vpow.pop %v3171
    %v3173 = vadd.f32 %v3172, 1.0
    %v3174 = vrcp.pop %v3173
    %v3175 = vmul.f32 1.0, %v3174
    %v3176 = vxor.u32 %v3167, 2147483648
    %v3177 = vmul.f32 %v3176, 1.442695
    %v3178 = vpow.pop %v3177
    %v3179 = vadd.f32 %v3178, 1.0
    %v3180 = vrcp.pop %v3179
    %v3181 = vmul.f32 1.0, %v3180
    %v3182 = vtanh.pop %v3168
    %v3183 = vxor.u32 %v3169, 2147483648
    %v3184 = vmul.f32 %v3183, 1.442695
    %v3185 = vpow.pop %v3184
    %v3186 = vadd.f32 %v3185, 1.0
    %v3187 = vrcp.pop %v3186
    %v3188 = vmul.f32 1.0, %v3187
    %v3189 = vld [vmem:[#allocation4] sm:$0xff]
    %v3190 = vmul.f32 %v3181, %v3189
    %v3191 = vmul.f32 %v3175, %v3182
    %v3192 = vadd.f32 %v3190, %v3191
    %v3193 = vtanh.pop %v3192
    %v3194 = vmul.f32 %v3188, %v3193
    %3195 = vst [vmem:[#allocation4] sm:$0xff] %v3192
    %3196 = vst [vmem:[#allocation3] sm:$0xff] %v3194
    %v3197 = vpack.c.bf16 %v3194, %v3194
    %s3198 = smul.addr %s3071, 4
    %s3199 = scalar_lea.vmem %s4, %s3198
    %3200 = vst [vmem:[%s3199] sm:$0xf] %v3197
    %s3201 = ssub.s32 3, %s1986
    %s3202 = smul.u32 %s3201, 8
    %s3203 = sadd.s32 %s3202, 64
    %s3204 = sshra.s32 %s3203, 3
    %s3205 = sand.u32 %s3203, 7
    %s3206 = smul.u32 %s3204, 4
    %s3207 = smul.addr %s3206, 8
    %s3208 = scalar_lea.vmem [#allocation2], %s3207
    %v3209 = vld [vmem:[%s3208] sm:$0xff]
    %v3210 = vld [vmem:[%s3208 + $0x8] sm:$0xff]
    %v3211 = vld [vmem:[%s3208 + $0x10] sm:$0xff]
    %v3212 = vld [vmem:[%s3208 + $0x18] sm:$0xff]
    %v3213 = vld [vmem:[%s1627] sm:$0xff]
    %v3214 = vpack.c.bf16 %v3213, %v3213
    %3215 = vmatprep.subr.bf16.mxu0 %v2127
    %3216 = vmatpush1.bf16.msra.mxu0 %v2126
    %3217 = vmatprep.subr.bf16.mxu0 %v2123
    %3218 = vmatpush1.bf16.msra.mxu0 %v2122
    %3219 = vmatprep.subr.bf16.mxu0 %v2119
    %3220 = vmatpush1.bf16.msra.mxu0 %v2118
    %3221 = vmatprep.subr.bf16.mxu0 %v2115
    %3222 = vmatpush1.bf16.msra.mxu0 %v2114
    %3223 = vmatprep.subr.bf16.mxu0 %v2111
    %3224 = vmatpush1.bf16.msra.mxu0 %v2110
    %3225 = vmatprep.subr.bf16.mxu0 %v2107
    %3226 = vmatpush1.bf16.msra.mxu0 %v2106
    %3227 = vmatprep.subr.bf16.mxu0 %v2103
    %3228 = vmatpush1.bf16.msra.mxu0 %v2102
    %3229 = vmatprep.subr.bf16.mxu0 %v2099
    %3230 = vmatpush1.bf16.msra.mxu0 %v2098
    %3231 = vmatprep.subr.bf16.mxu0 0
    %3232 = vmatpush2.bf16.msra.mxu0 0
    %3233 = vmatprep.subr.bf16.mxu0 0
    %3234 = vmatpush2.bf16.msra.mxu0 0
    %3235 = vmatprep.subr.bf16.mxu0 0
    %3236 = vmatpush2.bf16.msra.mxu0 0
    %3237 = vmatprep.subr.bf16.mxu0 0
    %3238 = vmatpush2.bf16.msra.mxu0 0
    %3239 = vmatprep.subr.bf16.mxu0 0
    %3240 = vmatpush2.bf16.msra.mxu0 0
    %3241 = vmatprep.subr.bf16.mxu0 0
    %3242 = vmatpush2.bf16.msra.mxu0 0
    %3243 = vmatprep.subr.bf16.mxu0 0
    %3244 = vmatpush2.bf16.msra.mxu0 0
    %3245 = vmatprep.subr.bf16.mxu0 0
    %3246 = vmatpush2.bf16.msra.mxu0 0
    %3247 = vmatprep.mubr.bf16.mxu0 0
    %3248 = vmatmul.mubr.bf16.gmra.mxu0 %v3214
    %v3249 = vpop.f32.mrf.mxu0
    %v3250 = vadd.f32 0.0, %v3249
    %v3251 = vpop.f32.mrf.mxu0
    %v3252 = vadd.f32 0.0, %v3251
    %v3253 = vpop.f32.mrf.mxu0
    %v3254 = vpop.f32.mrf.mxu0
    %3255 = vdwg.mxu0
    %3256 = vmatprep.subr.bf16.mxu0 %v2129
    %3257 = vmatpush1.bf16.msra.mxu0 %v2128
    %3258 = vmatprep.subr.bf16.mxu0 %v2125
    %3259 = vmatpush1.bf16.msra.mxu0 %v2124
    %3260 = vmatprep.subr.bf16.mxu0 %v2121
    %3261 = vmatpush1.bf16.msra.mxu0 %v2120
    %3262 = vmatprep.subr.bf16.mxu0 %v2117
    %3263 = vmatpush1.bf16.msra.mxu0 %v2116
    %3264 = vmatprep.subr.bf16.mxu0 %v2113
    %3265 = vmatpush1.bf16.msra.mxu0 %v2112
    %3266 = vmatprep.subr.bf16.mxu0 %v2109
    %3267 = vmatpush1.bf16.msra.mxu0 %v2108
    %3268 = vmatprep.subr.bf16.mxu0 %v2105
    %3269 = vmatpush1.bf16.msra.mxu0 %v2104
    %3270 = vmatprep.subr.bf16.mxu0 %v2101
    %3271 = vmatpush1.bf16.msra.mxu0 %v2100
    %3272 = vmatprep.subr.bf16.mxu0 0
    %3273 = vmatpush2.bf16.msra.mxu0 0
    %3274 = vmatprep.subr.bf16.mxu0 0
    %3275 = vmatpush2.bf16.msra.mxu0 0
    %3276 = vmatprep.subr.bf16.mxu0 0
    %3277 = vmatpush2.bf16.msra.mxu0 0
    %3278 = vmatprep.subr.bf16.mxu0 0
    %3279 = vmatpush2.bf16.msra.mxu0 0
    %3280 = vmatprep.subr.bf16.mxu0 0
    %3281 = vmatpush2.bf16.msra.mxu0 0
    %3282 = vmatprep.subr.bf16.mxu0 0
    %3283 = vmatpush2.bf16.msra.mxu0 0
    %3284 = vmatprep.subr.bf16.mxu0 0
    %3285 = vmatpush2.bf16.msra.mxu0 0
    %3286 = vmatprep.subr.bf16.mxu0 0
    %3287 = vmatpush2.bf16.msra.mxu0 0
    %3288 = vmatprep.mubr.bf16.mxu0 0
    %3289 = vmatmul.mubr.bf16.gmra.mxu0 %v3214
    %v3290 = vpop.f32.mrf.mxu0
    %v3291 = vadd.f32 0.0, %v3290
    %v3292 = vpop.f32.mrf.mxu0
    %v3293 = vadd.f32 0.0, %v3292
    %v3294 = vpop.f32.mrf.mxu0
    %v3295 = vpop.f32.mrf.mxu0
    %3296 = vdwg.mxu0
    %v3297 = vadd.f32 %v3209, %v3250
    %v3298 = vadd.f32 %v3210, %v3252
    %v3299 = vadd.f32 %v3211, %v3291
    %v3300 = vadd.f32 %v3212, %v3293
    %v3301 = vxor.u32 %v3297, 2147483648
    %v3302 = vmul.f32 %v3301, 1.442695
    %v3303 = vpow.pop %v3302
    %v3304 = vadd.f32 %v3303, 1.0
    %v3305 = vrcp.pop %v3304
    %v3306 = vmul.f32 1.0, %v3305
    %v3307 = vxor.u32 %v3298, 2147483648
    %v3308 = vmul.f32 %v3307, 1.442695
    %v3309 = vpow.pop %v3308
    %v3310 = vadd.f32 %v3309, 1.0
    %v3311 = vrcp.pop %v3310
    %v3312 = vmul.f32 1.0, %v3311
    %v3313 = vtanh.pop %v3299
    %v3314 = vxor.u32 %v3300, 2147483648
    %v3315 = vmul.f32 %v3314, 1.442695
    %v3316 = vpow.pop %v3315
    %v3317 = vadd.f32 %v3316, 1.0
    %v3318 = vrcp.pop %v3317
    %v3319 = vmul.f32 1.0, %v3318
    %v3320 = vld [vmem:[%s1629] sm:$0xff]
    %v3321 = vmul.f32 %v3312, %v3320
    %v3322 = vmul.f32 %v3306, %v3313
    %v3323 = vadd.f32 %v3321, %v3322
    %v3324 = vtanh.pop %v3323
    %v3325 = vmul.f32 %v3319, %v3324
    %3326 = vst [vmem:[%s1629] sm:$0xff] %v3323
    %3327 = vst [vmem:[%s1627] sm:$0xff] %v3325
    %v3328 = vpack.c.bf16 %v3325, %v3325
    %s3329 = sadd.s32 %s3201, 8
    %s3330 = smul.addr %s3329, 4
    %s3331 = scalar_lea.vmem %s4, %s3330
    %3332 = vst [vmem:[%s3331] sm:$0xf] %v3328
    %s3333 = smul.u32 0, 4294967290
    %s3334 = sadd.s32 %s3333, 5
    %s3335 = smul.u32 %s3334, 8
    %s3336 = sshra.s32 %s3335, 3
    %s3337 = sand.u32 %s3335, 7
    %s3338 = smul.u32 %s3336, 4
    %s3339 = smul.addr %s3338, 8
    %s3340 = scalar_lea.vmem [#allocation2], %s3339
    %v3341 = vld [vmem:[%s3340] sm:$0xff]
    %v3342 = vld [vmem:[%s3340 + $0x8] sm:$0xff]
    %v3343 = vld [vmem:[%s3340 + $0x10] sm:$0xff]
    %v3344 = vld [vmem:[%s3340 + $0x18] sm:$0xff]
    %v3345 = vld [vmem:[#allocation3] sm:$0xff]
    %v3346 = vpack.c.bf16 %v3345, %v3345
    %3347 = vmatprep.subr.bf16.mxu0 %v1834
    %3348 = vmatpush1.bf16.msra.mxu0 %v1833
    %3349 = vmatprep.subr.bf16.mxu0 %v1830
    %3350 = vmatpush1.bf16.msra.mxu0 %v1829
    %3351 = vmatprep.subr.bf16.mxu0 %v1826
    %3352 = vmatpush1.bf16.msra.mxu0 %v1825
    %3353 = vmatprep.subr.bf16.mxu0 %v1822
    %3354 = vmatpush1.bf16.msra.mxu0 %v1821
    %3355 = vmatprep.subr.bf16.mxu0 %v1818
    %3356 = vmatpush1.bf16.msra.mxu0 %v1817
    %3357 = vmatprep.subr.bf16.mxu0 %v1814
    %3358 = vmatpush1.bf16.msra.mxu0 %v1813
    %3359 = vmatprep.subr.bf16.mxu0 %v1810
    %3360 = vmatpush1.bf16.msra.mxu0 %v1809
    %3361 = vmatprep.subr.bf16.mxu0 %v1806
    %3362 = vmatpush1.bf16.msra.mxu0 %v1805
    %3363 = vmatprep.subr.bf16.mxu0 0
    %3364 = vmatpush2.bf16.msra.mxu0 0
    %3365 = vmatprep.subr.bf16.mxu0 0
    %3366 = vmatpush2.bf16.msra.mxu0 0
    %3367 = vmatprep.subr.bf16.mxu0 0
    %3368 = vmatpush2.bf16.msra.mxu0 0
    %3369 = vmatprep.subr.bf16.mxu0 0
    %3370 = vmatpush2.bf16.msra.mxu0 0
    %3371 = vmatprep.subr.bf16.mxu0 0
    %3372 = vmatpush2.bf16.msra.mxu0 0
    %3373 = vmatprep.subr.bf16.mxu0 0
    %3374 = vmatpush2.bf16.msra.mxu0 0
    %3375 = vmatprep.subr.bf16.mxu0 0
    %3376 = vmatpush2.bf16.msra.mxu0 0
    %3377 = vmatprep.subr.bf16.mxu0 0
    %3378 = vmatpush2.bf16.msra.mxu0 0
    %3379 = vmatprep.mubr.bf16.mxu0 0
    %3380 = vmatmul.mubr.bf16.gmra.mxu0 %v3346
    %v3381 = vpop.f32.mrf.mxu0
    %v3382 = vadd.f32 0.0, %v3381
    %v3383 = vpop.f32.mrf.mxu0
    %v3384 = vadd.f32 0.0, %v3383
    %v3385 = vpop.f32.mrf.mxu0
    %v3386 = vpop.f32.mrf.mxu0
    %3387 = vdwg.mxu0
    %3388 = vmatprep.subr.bf16.mxu0 %v1836
    %3389 = vmatpush1.bf16.msra.mxu0 %v1835
    %3390 = vmatprep.subr.bf16.mxu0 %v1832
    %3391 = vmatpush1.bf16.msra.mxu0 %v1831
    %3392 = vmatprep.subr.bf16.mxu0 %v1828
    %3393 = vmatpush1.bf16.msra.mxu0 %v1827
    %3394 = vmatprep.subr.bf16.mxu0 %v1824
    %3395 = vmatpush1.bf16.msra.mxu0 %v1823
    %3396 = vmatprep.subr.bf16.mxu0 %v1820
    %3397 = vmatpush1.bf16.msra.mxu0 %v1819
    %3398 = vmatprep.subr.bf16.mxu0 %v1816
    %3399 = vmatpush1.bf16.msra.mxu0 %v1815
    %3400 = vmatprep.subr.bf16.mxu0 %v1812
    %3401 = vmatpush1.bf16.msra.mxu0 %v1811
    %3402 = vmatprep.subr.bf16.mxu0 %v1808
    %3403 = vmatpush1.bf16.msra.mxu0 %v1807
    %3404 = vmatprep.subr.bf16.mxu0 0
    %3405 = vmatpush2.bf16.msra.mxu0 0
    %3406 = vmatprep.subr.bf16.mxu0 0
    %3407 = vmatpush2.bf16.msra.mxu0 0
    %3408 = vmatprep.subr.bf16.mxu0 0
    %3409 = vmatpush2.bf16.msra.mxu0 0
    %3410 = vmatprep.subr.bf16.mxu0 0
    %3411 = vmatpush2.bf16.msra.mxu0 0
    %3412 = vmatprep.subr.bf16.mxu0 0
    %3413 = vmatpush2.bf16.msra.mxu0 0
    %3414 = vmatprep.subr.bf16.mxu0 0
    %3415 = vmatpush2.bf16.msra.mxu0 0
    %3416 = vmatprep.subr.bf16.mxu0 0
    %3417 = vmatpush2.bf16.msra.mxu0 0
    %3418 = vmatprep.subr.bf16.mxu0 0
    %3419 = vmatpush2.bf16.msra.mxu0 0
    %3420 = vmatprep.mubr.bf16.mxu0 0
    %3421 = vmatmul.mubr.bf16.gmra.mxu0 %v3346
    %v3422 = vpop.f32.mrf.mxu0
    %v3423 = vadd.f32 0.0, %v3422
    %v3424 = vpop.f32.mrf.mxu0
    %v3425 = vadd.f32 0.0, %v3424
    %v3426 = vpop.f32.mrf.mxu0
    %v3427 = vpop.f32.mrf.mxu0
    %3428 = vdwg.mxu0
    %v3429 = vadd.f32 %v3341, %v3382
    %v3430 = vadd.f32 %v3342, %v3384
    %v3431 = vadd.f32 %v3343, %v3423
    %v3432 = vadd.f32 %v3344, %v3425
    %v3433 = vxor.u32 %v3429, 2147483648
    %v3434 = vmul.f32 %v3433, 1.442695
    %v3435 = vpow.pop %v3434
    %v3436 = vadd.f32 %v3435, 1.0
    %v3437 = vrcp.pop %v3436
    %v3438 = vmul.f32 1.0, %v3437
    %v3439 = vxor.u32 %v3430, 2147483648
    %v3440 = vmul.f32 %v3439, 1.442695
    %v3441 = vpow.pop %v3440
    %v3442 = vadd.f32 %v3441, 1.0
    %v3443 = vrcp.pop %v3442
    %v3444 = vmul.f32 1.0, %v3443
    %v3445 = vtanh.pop %v3431
    %v3446 = vxor.u32 %v3432, 2147483648
    %v3447 = vmul.f32 %v3446, 1.442695
    %v3448 = vpow.pop %v3447
    %v3449 = vadd.f32 %v3448, 1.0
    %v3450 = vrcp.pop %v3449
    %v3451 = vmul.f32 1.0, %v3450
    %v3452 = vld [vmem:[#allocation4] sm:$0xff]
    %v3453 = vmul.f32 %v3444, %v3452
    %v3454 = vmul.f32 %v3438, %v3445
    %v3455 = vadd.f32 %v3453, %v3454
    %v3456 = vtanh.pop %v3455
    %v3457 = vmul.f32 %v3451, %v3456
    %3458 = vst [vmem:[#allocation4] sm:$0xff] %v3455
    %3459 = vst [vmem:[#allocation3] sm:$0xff] %v3457
    %v3460 = vpack.c.bf16 %v3457, %v3457
    %s3461 = smul.addr %s3334, 4
    %s3462 = scalar_lea.vmem %s4, %s3461
    %3463 = vst [vmem:[%s3462] sm:$0xf] %v3460
    %s3464 = smul.u32 %s1987, 4294967293
    %s3465 = sadd.s32 %s3464, 5
    %s3466 = smul.u32 %s3465, 8
    %s3467 = sadd.s32 %s3466, 64
    %s3468 = sshra.s32 %s3467, 3
    %s3469 = sand.u32 %s3467, 7
    %s3470 = smul.u32 %s3468, 4
    %s3471 = smul.addr %s3470, 8
    %s3472 = scalar_lea.vmem [#allocation2], %s3471
    %v3473 = vld [vmem:[%s3472] sm:$0xff]
    %v3474 = vld [vmem:[%s3472 + $0x8] sm:$0xff]
    %v3475 = vld [vmem:[%s3472 + $0x10] sm:$0xff]
    %v3476 = vld [vmem:[%s3472 + $0x18] sm:$0xff]
    %v3477 = vld [vmem:[%s1627] sm:$0xff]
    %v3478 = vpack.c.bf16 %v3477, %v3477
    %3479 = vmatprep.subr.bf16.mxu0 %v2127
    %3480 = vmatpush1.bf16.msra.mxu0 %v2126
    %3481 = vmatprep.subr.bf16.mxu0 %v2123
    %3482 = vmatpush1.bf16.msra.mxu0 %v2122
    %3483 = vmatprep.subr.bf16.mxu0 %v2119
    %3484 = vmatpush1.bf16.msra.mxu0 %v2118
    %3485 = vmatprep.subr.bf16.mxu0 %v2115
    %3486 = vmatpush1.bf16.msra.mxu0 %v2114
    %3487 = vmatprep.subr.bf16.mxu0 %v2111
    %3488 = vmatpush1.bf16.msra.mxu0 %v2110
    %3489 = vmatprep.subr.bf16.mxu0 %v2107
    %3490 = vmatpush1.bf16.msra.mxu0 %v2106
    %3491 = vmatprep.subr.bf16.mxu0 %v2103
    %3492 = vmatpush1.bf16.msra.mxu0 %v2102
    %3493 = vmatprep.subr.bf16.mxu0 %v2099
    %3494 = vmatpush1.bf16.msra.mxu0 %v2098
    %3495 = vmatprep.subr.bf16.mxu0 0
    %3496 = vmatpush2.bf16.msra.mxu0 0
    %3497 = vmatprep.subr.bf16.mxu0 0
    %3498 = vmatpush2.bf16.msra.mxu0 0
    %3499 = vmatprep.subr.bf16.mxu0 0
    %3500 = vmatpush2.bf16.msra.mxu0 0
    %3501 = vmatprep.subr.bf16.mxu0 0
    %3502 = vmatpush2.bf16.msra.mxu0 0
    %3503 = vmatprep.subr.bf16.mxu0 0
    %3504 = vmatpush2.bf16.msra.mxu0 0
    %3505 = vmatprep.subr.bf16.mxu0 0
    %3506 = vmatpush2.bf16.msra.mxu0 0
    %3507 = vmatprep.subr.bf16.mxu0 0
    %3508 = vmatpush2.bf16.msra.mxu0 0
    %3509 = vmatprep.subr.bf16.mxu0 0
    %3510 = vmatpush2.bf16.msra.mxu0 0
    %3511 = vmatprep.mubr.bf16.mxu0 0
    %3512 = vmatmul.mubr.bf16.gmra.mxu0 %v3478
    %v3513 = vpop.f32.mrf.mxu0
    %v3514 = vadd.f32 0.0, %v3513
    %v3515 = vpop.f32.mrf.mxu0
    %v3516 = vadd.f32 0.0, %v3515
    %v3517 = vpop.f32.mrf.mxu0
    %v3518 = vpop.f32.mrf.mxu0
    %3519 = vdwg.mxu0
    %3520 = vmatprep.subr.bf16.mxu0 %v2129
    %3521 = vmatpush1.bf16.msra.mxu0 %v2128
    %3522 = vmatprep.subr.bf16.mxu0 %v2125
    %3523 = vmatpush1.bf16.msra.mxu0 %v2124
    %3524 = vmatprep.subr.bf16.mxu0 %v2121
    %3525 = vmatpush1.bf16.msra.mxu0 %v2120
    %3526 = vmatprep.subr.bf16.mxu0 %v2117
    %3527 = vmatpush1.bf16.msra.mxu0 %v2116
    %3528 = vmatprep.subr.bf16.mxu0 %v2113
    %3529 = vmatpush1.bf16.msra.mxu0 %v2112
    %3530 = vmatprep.subr.bf16.mxu0 %v2109
    %3531 = vmatpush1.bf16.msra.mxu0 %v2108
    %3532 = vmatprep.subr.bf16.mxu0 %v2105
    %3533 = vmatpush1.bf16.msra.mxu0 %v2104
    %3534 = vmatprep.subr.bf16.mxu0 %v2101
    %3535 = vmatpush1.bf16.msra.mxu0 %v2100
    %3536 = vmatprep.subr.bf16.mxu0 0
    %3537 = vmatpush2.bf16.msra.mxu0 0
    %3538 = vmatprep.subr.bf16.mxu0 0
    %3539 = vmatpush2.bf16.msra.mxu0 0
    %3540 = vmatprep.subr.bf16.mxu0 0
    %3541 = vmatpush2.bf16.msra.mxu0 0
    %3542 = vmatprep.subr.bf16.mxu0 0
    %3543 = vmatpush2.bf16.msra.mxu0 0
    %3544 = vmatprep.subr.bf16.mxu0 0
    %3545 = vmatpush2.bf16.msra.mxu0 0
    %3546 = vmatprep.subr.bf16.mxu0 0
    %3547 = vmatpush2.bf16.msra.mxu0 0
    %3548 = vmatprep.subr.bf16.mxu0 0
    %3549 = vmatpush2.bf16.msra.mxu0 0
    %3550 = vmatprep.subr.bf16.mxu0 0
    %3551 = vmatpush2.bf16.msra.mxu0 0
    %3552 = vmatprep.mubr.bf16.mxu0 0
    %3553 = vmatmul.mubr.bf16.gmra.mxu0 %v3478
    %v3554 = vpop.f32.mrf.mxu0
    %v3555 = vadd.f32 0.0, %v3554
    %v3556 = vpop.f32.mrf.mxu0
    %v3557 = vadd.f32 0.0, %v3556
    %v3558 = vpop.f32.mrf.mxu0
    %v3559 = vpop.f32.mrf.mxu0
    %3560 = vdwg.mxu0
    %v3561 = vadd.f32 %v3473, %v3514
    %v3562 = vadd.f32 %v3474, %v3516
    %v3563 = vadd.f32 %v3475, %v3555
    %v3564 = vadd.f32 %v3476, %v3557
    %v3565 = vxor.u32 %v3561, 2147483648
    %v3566 = vmul.f32 %v3565, 1.442695
    %v3567 = vpow.pop %v3566
    %v3568 = vadd.f32 %v3567, 1.0
    %v3569 = vrcp.pop %v3568
    %v3570 = vmul.f32 1.0, %v3569
    %v3571 = vxor.u32 %v3562, 2147483648
    %v3572 = vmul.f32 %v3571, 1.442695
    %v3573 = vpow.pop %v3572
    %v3574 = vadd.f32 %v3573, 1.0
    %v3575 = vrcp.pop %v3574
    %v3576 = vmul.f32 1.0, %v3575
    %v3577 = vtanh.pop %v3563
    %v3578 = vxor.u32 %v3564, 2147483648
    %v3579 = vmul.f32 %v3578, 1.442695
    %v3580 = vpow.pop %v3579
    %v3581 = vadd.f32 %v3580, 1.0
    %v3582 = vrcp.pop %v3581
    %v3583 = vmul.f32 1.0, %v3582
    %v3584 = vld [vmem:[%s1629] sm:$0xff]
    %v3585 = vmul.f32 %v3576, %v3584
    %v3586 = vmul.f32 %v3570, %v3577
    %v3587 = vadd.f32 %v3585, %v3586
    %v3588 = vtanh.pop %v3587
    %v3589 = vmul.f32 %v3583, %v3588
    %3590 = vst [vmem:[%s1629] sm:$0xff] %v3587
    %3591 = vst [vmem:[%s1627] sm:$0xff] %v3589
    %v3592 = vpack.c.bf16 %v3589, %v3589
    %s3593 = sadd.s32 %s3465, 8
    %s3594 = smul.addr %s3593, 4
    %s3595 = scalar_lea.vmem %s4, %s3594
    %3596 = vst [vmem:[%s3595] sm:$0xf] %v3592
    %s3597 = smul.u32 0, 4294967286
    %s3598 = sadd.s32 %s3597, 6
    %s3599 = smul.u32 %s3598, 8
    %s3600 = sshra.s32 %s3599, 3
    %s3601 = sand.u32 %s3599, 7
    %s3602 = smul.u32 %s3600, 4
    %s3603 = smul.addr %s3602, 8
    %s3604 = scalar_lea.vmem [#allocation2], %s3603
    %v3605 = vld [vmem:[%s3604] sm:$0xff]
    %v3606 = vld [vmem:[%s3604 + $0x8] sm:$0xff]
    %v3607 = vld [vmem:[%s3604 + $0x10] sm:$0xff]
    %v3608 = vld [vmem:[%s3604 + $0x18] sm:$0xff]
    %v3609 = vld [vmem:[#allocation3] sm:$0xff]
    %v3610 = vpack.c.bf16 %v3609, %v3609
    %3611 = vmatprep.subr.bf16.mxu0 %v1834
    %3612 = vmatpush1.bf16.msra.mxu0 %v1833
    %3613 = vmatprep.subr.bf16.mxu0 %v1830
    %3614 = vmatpush1.bf16.msra.mxu0 %v1829
    %3615 = vmatprep.subr.bf16.mxu0 %v1826
    %3616 = vmatpush1.bf16.msra.mxu0 %v1825
    %3617 = vmatprep.subr.bf16.mxu0 %v1822
    %3618 = vmatpush1.bf16.msra.mxu0 %v1821
    %3619 = vmatprep.subr.bf16.mxu0 %v1818
    %3620 = vmatpush1.bf16.msra.mxu0 %v1817
    %3621 = vmatprep.subr.bf16.mxu0 %v1814
    %3622 = vmatpush1.bf16.msra.mxu0 %v1813
    %3623 = vmatprep.subr.bf16.mxu0 %v1810
    %3624 = vmatpush1.bf16.msra.mxu0 %v1809
    %3625 = vmatprep.subr.bf16.mxu0 %v1806
    %3626 = vmatpush1.bf16.msra.mxu0 %v1805
    %3627 = vmatprep.subr.bf16.mxu0 0
    %3628 = vmatpush2.bf16.msra.mxu0 0
    %3629 = vmatprep.subr.bf16.mxu0 0
    %3630 = vmatpush2.bf16.msra.mxu0 0
    %3631 = vmatprep.subr.bf16.mxu0 0
    %3632 = vmatpush2.bf16.msra.mxu0 0
    %3633 = vmatprep.subr.bf16.mxu0 0
    %3634 = vmatpush2.bf16.msra.mxu0 0
    %3635 = vmatprep.subr.bf16.mxu0 0
    %3636 = vmatpush2.bf16.msra.mxu0 0
    %3637 = vmatprep.subr.bf16.mxu0 0
    %3638 = vmatpush2.bf16.msra.mxu0 0
    %3639 = vmatprep.subr.bf16.mxu0 0
    %3640 = vmatpush2.bf16.msra.mxu0 0
    %3641 = vmatprep.subr.bf16.mxu0 0
    %3642 = vmatpush2.bf16.msra.mxu0 0
    %3643 = vmatprep.mubr.bf16.mxu0 0
    %3644 = vmatmul.mubr.bf16.gmra.mxu0 %v3610
    %v3645 = vpop.f32.mrf.mxu0
    %v3646 = vadd.f32 0.0, %v3645
    %v3647 = vpop.f32.mrf.mxu0
    %v3648 = vadd.f32 0.0, %v3647
    %v3649 = vpop.f32.mrf.mxu0
    %v3650 = vpop.f32.mrf.mxu0
    %3651 = vdwg.mxu0
    %3652 = vmatprep.subr.bf16.mxu0 %v1836
    %3653 = vmatpush1.bf16.msra.mxu0 %v1835
    %3654 = vmatprep.subr.bf16.mxu0 %v1832
    %3655 = vmatpush1.bf16.msra.mxu0 %v1831
    %3656 = vmatprep.subr.bf16.mxu0 %v1828
    %3657 = vmatpush1.bf16.msra.mxu0 %v1827
    %3658 = vmatprep.subr.bf16.mxu0 %v1824
    %3659 = vmatpush1.bf16.msra.mxu0 %v1823
    %3660 = vmatprep.subr.bf16.mxu0 %v1820
    %3661 = vmatpush1.bf16.msra.mxu0 %v1819
    %3662 = vmatprep.subr.bf16.mxu0 %v1816
    %3663 = vmatpush1.bf16.msra.mxu0 %v1815
    %3664 = vmatprep.subr.bf16.mxu0 %v1812
    %3665 = vmatpush1.bf16.msra.mxu0 %v1811
    %3666 = vmatprep.subr.bf16.mxu0 %v1808
    %3667 = vmatpush1.bf16.msra.mxu0 %v1807
    %3668 = vmatprep.subr.bf16.mxu0 0
    %3669 = vmatpush2.bf16.msra.mxu0 0
    %3670 = vmatprep.subr.bf16.mxu0 0
    %3671 = vmatpush2.bf16.msra.mxu0 0
    %3672 = vmatprep.subr.bf16.mxu0 0
    %3673 = vmatpush2.bf16.msra.mxu0 0
    %3674 = vmatprep.subr.bf16.mxu0 0
    %3675 = vmatpush2.bf16.msra.mxu0 0
    %3676 = vmatprep.subr.bf16.mxu0 0
    %3677 = vmatpush2.bf16.msra.mxu0 0
    %3678 = vmatprep.subr.bf16.mxu0 0
    %3679 = vmatpush2.bf16.msra.mxu0 0
    %3680 = vmatprep.subr.bf16.mxu0 0
    %3681 = vmatpush2.bf16.msra.mxu0 0
    %3682 = vmatprep.subr.bf16.mxu0 0
    %3683 = vmatpush2.bf16.msra.mxu0 0
    %3684 = vmatprep.mubr.bf16.mxu0 0
    %3685 = vmatmul.mubr.bf16.gmra.mxu0 %v3610
    %v3686 = vpop.f32.mrf.mxu0
    %v3687 = vadd.f32 0.0, %v3686
    %v3688 = vpop.f32.mrf.mxu0
    %v3689 = vadd.f32 0.0, %v3688
    %v3690 = vpop.f32.mrf.mxu0
    %v3691 = vpop.f32.mrf.mxu0
    %3692 = vdwg.mxu0
    %v3693 = vadd.f32 %v3605, %v3646
    %v3694 = vadd.f32 %v3606, %v3648
    %v3695 = vadd.f32 %v3607, %v3687
    %v3696 = vadd.f32 %v3608, %v3689
    %v3697 = vxor.u32 %v3693, 2147483648
    %v3698 = vmul.f32 %v3697, 1.442695
    %v3699 = vpow.pop %v3698
    %v3700 = vadd.f32 %v3699, 1.0
    %v3701 = vrcp.pop %v3700
    %v3702 = vmul.f32 1.0, %v3701
    %v3703 = vxor.u32 %v3694, 2147483648
    %v3704 = vmul.f32 %v3703, 1.442695
    %v3705 = vpow.pop %v3704
    %v3706 = vadd.f32 %v3705, 1.0
    %v3707 = vrcp.pop %v3706
    %v3708 = vmul.f32 1.0, %v3707
    %v3709 = vtanh.pop %v3695
    %v3710 = vxor.u32 %v3696, 2147483648
    %v3711 = vmul.f32 %v3710, 1.442695
    %v3712 = vpow.pop %v3711
    %v3713 = vadd.f32 %v3712, 1.0
    %v3714 = vrcp.pop %v3713
    %v3715 = vmul.f32 1.0, %v3714
    %v3716 = vld [vmem:[#allocation4] sm:$0xff]
    %v3717 = vmul.f32 %v3708, %v3716
    %v3718 = vmul.f32 %v3702, %v3709
    %v3719 = vadd.f32 %v3717, %v3718
    %v3720 = vtanh.pop %v3719
    %v3721 = vmul.f32 %v3715, %v3720
    %3722 = vst [vmem:[#allocation4] sm:$0xff] %v3719
    %3723 = vst [vmem:[#allocation3] sm:$0xff] %v3721
    %v3724 = vpack.c.bf16 %v3721, %v3721
    %s3725 = smul.addr %s3598, 4
    %s3726 = scalar_lea.vmem %s4, %s3725
    %3727 = vst [vmem:[%s3726] sm:$0xf] %v3724
    %s3728 = smul.u32 %s1987, 4294967291
    %s3729 = sadd.s32 %s3728, 6
    %s3730 = smul.u32 %s3729, 8
    %s3731 = sadd.s32 %s3730, 64
    %s3732 = sshra.s32 %s3731, 3
    %s3733 = sand.u32 %s3731, 7
    %s3734 = smul.u32 %s3732, 4
    %s3735 = smul.addr %s3734, 8
    %s3736 = scalar_lea.vmem [#allocation2], %s3735
    %v3737 = vld [vmem:[%s3736] sm:$0xff]
    %v3738 = vld [vmem:[%s3736 + $0x8] sm:$0xff]
    %v3739 = vld [vmem:[%s3736 + $0x10] sm:$0xff]
    %v3740 = vld [vmem:[%s3736 + $0x18] sm:$0xff]
    %v3741 = vld [vmem:[%s1627] sm:$0xff]
    %v3742 = vpack.c.bf16 %v3741, %v3741
    %3743 = vmatprep.subr.bf16.mxu0 %v2127
    %3744 = vmatpush1.bf16.msra.mxu0 %v2126
    %3745 = vmatprep.subr.bf16.mxu0 %v2123
    %3746 = vmatpush1.bf16.msra.mxu0 %v2122
    %3747 = vmatprep.subr.bf16.mxu0 %v2119
    %3748 = vmatpush1.bf16.msra.mxu0 %v2118
    %3749 = vmatprep.subr.bf16.mxu0 %v2115
    %3750 = vmatpush1.bf16.msra.mxu0 %v2114
    %3751 = vmatprep.subr.bf16.mxu0 %v2111
    %3752 = vmatpush1.bf16.msra.mxu0 %v2110
    %3753 = vmatprep.subr.bf16.mxu0 %v2107
    %3754 = vmatpush1.bf16.msra.mxu0 %v2106
    %3755 = vmatprep.subr.bf16.mxu0 %v2103
    %3756 = vmatpush1.bf16.msra.mxu0 %v2102
    %3757 = vmatprep.subr.bf16.mxu0 %v2099
    %3758 = vmatpush1.bf16.msra.mxu0 %v2098
    %3759 = vmatprep.subr.bf16.mxu0 0
    %3760 = vmatpush2.bf16.msra.mxu0 0
    %3761 = vmatprep.subr.bf16.mxu0 0
    %3762 = vmatpush2.bf16.msra.mxu0 0
    %3763 = vmatprep.subr.bf16.mxu0 0
    %3764 = vmatpush2.bf16.msra.mxu0 0
    %3765 = vmatprep.subr.bf16.mxu0 0
    %3766 = vmatpush2.bf16.msra.mxu0 0
    %3767 = vmatprep.subr.bf16.mxu0 0
    %3768 = vmatpush2.bf16.msra.mxu0 0
    %3769 = vmatprep.subr.bf16.mxu0 0
    %3770 = vmatpush2.bf16.msra.mxu0 0
    %3771 = vmatprep.subr.bf16.mxu0 0
    %3772 = vmatpush2.bf16.msra.mxu0 0
    %3773 = vmatprep.subr.bf16.mxu0 0
    %3774 = vmatpush2.bf16.msra.mxu0 0
    %3775 = vmatprep.mubr.bf16.mxu0 0
    %3776 = vmatmul.mubr.bf16.gmra.mxu0 %v3742
    %v3777 = vpop.f32.mrf.mxu0
    %v3778 = vadd.f32 0.0, %v3777
    %v3779 = vpop.f32.mrf.mxu0
    %v3780 = vadd.f32 0.0, %v3779
    %v3781 = vpop.f32.mrf.mxu0
    %v3782 = vpop.f32.mrf.mxu0
    %3783 = vdwg.mxu0
    %3784 = vmatprep.subr.bf16.mxu0 %v2129
    %3785 = vmatpush1.bf16.msra.mxu0 %v2128
    %3786 = vmatprep.subr.bf16.mxu0 %v2125
    %3787 = vmatpush1.bf16.msra.mxu0 %v2124
    %3788 = vmatprep.subr.bf16.mxu0 %v2121
    %3789 = vmatpush1.bf16.msra.mxu0 %v2120
    %3790 = vmatprep.subr.bf16.mxu0 %v2117
    %3791 = vmatpush1.bf16.msra.mxu0 %v2116
    %3792 = vmatprep.subr.bf16.mxu0 %v2113
    %3793 = vmatpush1.bf16.msra.mxu0 %v2112
    %3794 = vmatprep.subr.bf16.mxu0 %v2109
    %3795 = vmatpush1.bf16.msra.mxu0 %v2108
    %3796 = vmatprep.subr.bf16.mxu0 %v2105
    %3797 = vmatpush1.bf16.msra.mxu0 %v2104
    %3798 = vmatprep.subr.bf16.mxu0 %v2101
    %3799 = vmatpush1.bf16.msra.mxu0 %v2100
    %3800 = vmatprep.subr.bf16.mxu0 0
    %3801 = vmatpush2.bf16.msra.mxu0 0
    %3802 = vmatprep.subr.bf16.mxu0 0
    %3803 = vmatpush2.bf16.msra.mxu0 0
    %3804 = vmatprep.subr.bf16.mxu0 0
    %3805 = vmatpush2.bf16.msra.mxu0 0
    %3806 = vmatprep.subr.bf16.mxu0 0
    %3807 = vmatpush2.bf16.msra.mxu0 0
    %3808 = vmatprep.subr.bf16.mxu0 0
    %3809 = vmatpush2.bf16.msra.mxu0 0
    %3810 = vmatprep.subr.bf16.mxu0 0
    %3811 = vmatpush2.bf16.msra.mxu0 0
    %3812 = vmatprep.subr.bf16.mxu0 0
    %3813 = vmatpush2.bf16.msra.mxu0 0
    %3814 = vmatprep.subr.bf16.mxu0 0
    %3815 = vmatpush2.bf16.msra.mxu0 0
    %3816 = vmatprep.mubr.bf16.mxu0 0
    %3817 = vmatmul.mubr.bf16.gmra.mxu0 %v3742
    %v3818 = vpop.f32.mrf.mxu0
    %v3819 = vadd.f32 0.0, %v3818
    %v3820 = vpop.f32.mrf.mxu0
    %v3821 = vadd.f32 0.0, %v3820
    %v3822 = vpop.f32.mrf.mxu0
    %v3823 = vpop.f32.mrf.mxu0
    %3824 = vdwg.mxu0
    %v3825 = vadd.f32 %v3737, %v3778
    %v3826 = vadd.f32 %v3738, %v3780
    %v3827 = vadd.f32 %v3739, %v3819
    %v3828 = vadd.f32 %v3740, %v3821
    %v3829 = vxor.u32 %v3825, 2147483648
    %v3830 = vmul.f32 %v3829, 1.442695
    %v3831 = vpow.pop %v3830
    %v3832 = vadd.f32 %v3831, 1.0
    %v3833 = vrcp.pop %v3832
    %v3834 = vmul.f32 1.0, %v3833
    %v3835 = vxor.u32 %v3826, 2147483648
    %v3836 = vmul.f32 %v3835, 1.442695
    %v3837 = vpow.pop %v3836
    %v3838 = vadd.f32 %v3837, 1.0
    %v3839 = vrcp.pop %v3838
    %v3840 = vmul.f32 1.0, %v3839
    %v3841 = vtanh.pop %v3827
    %v3842 = vxor.u32 %v3828, 2147483648
    %v3843 = vmul.f32 %v3842, 1.442695
    %v3844 = vpow.pop %v3843
    %v3845 = vadd.f32 %v3844, 1.0
    %v3846 = vrcp.pop %v3845
    %v3847 = vmul.f32 1.0, %v3846
    %v3848 = vld [vmem:[%s1629] sm:$0xff]
    %v3849 = vmul.f32 %v3840, %v3848
    %v3850 = vmul.f32 %v3834, %v3841
    %v3851 = vadd.f32 %v3849, %v3850
    %v3852 = vtanh.pop %v3851
    %v3853 = vmul.f32 %v3847, %v3852
    %3854 = vst [vmem:[%s1629] sm:$0xff] %v3851
    %3855 = vst [vmem:[%s1627] sm:$0xff] %v3853
    %v3856 = vpack.c.bf16 %v3853, %v3853
    %s3857 = sadd.s32 %s3729, 8
    %s3858 = smul.addr %s3857, 4
    %s3859 = scalar_lea.vmem %s4, %s3858
    %3860 = vst [vmem:[%s3859] sm:$0xf] %v3856
    %s3861 = smul.u32 0, 4294967282
    %s3862 = sadd.s32 %s3861, 7
    %s3863 = smul.u32 %s3862, 8
    %s3864 = sshra.s32 %s3863, 3
    %s3865 = sand.u32 %s3863, 7
    %s3866 = smul.u32 %s3864, 4
    %s3867 = smul.addr %s3866, 8
    %s3868 = scalar_lea.vmem [#allocation2], %s3867
    %v3869 = vld [vmem:[%s3868] sm:$0xff]
    %v3870 = vld [vmem:[%s3868 + $0x8] sm:$0xff]
    %v3871 = vld [vmem:[%s3868 + $0x10] sm:$0xff]
    %v3872 = vld [vmem:[%s3868 + $0x18] sm:$0xff]
    %v3873 = vld [vmem:[#allocation3] sm:$0xff]
    %v3874 = vpack.c.bf16 %v3873, %v3873
    %3875 = vmatprep.subr.bf16.mxu0 %v1834
    %3876 = vmatpush1.bf16.msra.mxu0 %v1833
    %3877 = vmatprep.subr.bf16.mxu0 %v1830
    %3878 = vmatpush1.bf16.msra.mxu0 %v1829
    %3879 = vmatprep.subr.bf16.mxu0 %v1826
    %3880 = vmatpush1.bf16.msra.mxu0 %v1825
    %3881 = vmatprep.subr.bf16.mxu0 %v1822
    %3882 = vmatpush1.bf16.msra.mxu0 %v1821
    %3883 = vmatprep.subr.bf16.mxu0 %v1818
    %3884 = vmatpush1.bf16.msra.mxu0 %v1817
    %3885 = vmatprep.subr.bf16.mxu0 %v1814
    %3886 = vmatpush1.bf16.msra.mxu0 %v1813
    %3887 = vmatprep.subr.bf16.mxu0 %v1810
    %3888 = vmatpush1.bf16.msra.mxu0 %v1809
    %3889 = vmatprep.subr.bf16.mxu0 %v1806
    %3890 = vmatpush1.bf16.msra.mxu0 %v1805
    %3891 = vmatprep.subr.bf16.mxu0 0
    %3892 = vmatpush2.bf16.msra.mxu0 0
    %3893 = vmatprep.subr.bf16.mxu0 0
    %3894 = vmatpush2.bf16.msra.mxu0 0
    %3895 = vmatprep.subr.bf16.mxu0 0
    %3896 = vmatpush2.bf16.msra.mxu0 0
    %3897 = vmatprep.subr.bf16.mxu0 0
    %3898 = vmatpush2.bf16.msra.mxu0 0
    %3899 = vmatprep.subr.bf16.mxu0 0
    %3900 = vmatpush2.bf16.msra.mxu0 0
    %3901 = vmatprep.subr.bf16.mxu0 0
    %3902 = vmatpush2.bf16.msra.mxu0 0
    %3903 = vmatprep.subr.bf16.mxu0 0
    %3904 = vmatpush2.bf16.msra.mxu0 0
    %3905 = vmatprep.subr.bf16.mxu0 0
    %3906 = vmatpush2.bf16.msra.mxu0 0
    %3907 = vmatprep.mubr.bf16.mxu0 0
    %3908 = vmatmul.mubr.bf16.gmra.mxu0 %v3874
    %v3909 = vpop.f32.mrf.mxu0
    %v3910 = vadd.f32 0.0, %v3909
    %v3911 = vpop.f32.mrf.mxu0
    %v3912 = vadd.f32 0.0, %v3911
    %v3913 = vpop.f32.mrf.mxu0
    %v3914 = vpop.f32.mrf.mxu0
    %3915 = vdwg.mxu0
    %3916 = vmatprep.subr.bf16.mxu0 %v1836
    %3917 = vmatpush1.bf16.msra.mxu0 %v1835
    %3918 = vmatprep.subr.bf16.mxu0 %v1832
    %3919 = vmatpush1.bf16.msra.mxu0 %v1831
    %3920 = vmatprep.subr.bf16.mxu0 %v1828
    %3921 = vmatpush1.bf16.msra.mxu0 %v1827
    %3922 = vmatprep.subr.bf16.mxu0 %v1824
    %3923 = vmatpush1.bf16.msra.mxu0 %v1823
    %3924 = vmatprep.subr.bf16.mxu0 %v1820
    %3925 = vmatpush1.bf16.msra.mxu0 %v1819
    %3926 = vmatprep.subr.bf16.mxu0 %v1816
    %3927 = vmatpush1.bf16.msra.mxu0 %v1815
    %3928 = vmatprep.subr.bf16.mxu0 %v1812
    %3929 = vmatpush1.bf16.msra.mxu0 %v1811
    %3930 = vmatprep.subr.bf16.mxu0 %v1808
    %3931 = vmatpush1.bf16.msra.mxu0 %v1807
    %3932 = vmatprep.subr.bf16.mxu0 0
    %3933 = vmatpush2.bf16.msra.mxu0 0
    %3934 = vmatprep.subr.bf16.mxu0 0
    %3935 = vmatpush2.bf16.msra.mxu0 0
    %3936 = vmatprep.subr.bf16.mxu0 0
    %3937 = vmatpush2.bf16.msra.mxu0 0
    %3938 = vmatprep.subr.bf16.mxu0 0
    %3939 = vmatpush2.bf16.msra.mxu0 0
    %3940 = vmatprep.subr.bf16.mxu0 0
    %3941 = vmatpush2.bf16.msra.mxu0 0
    %3942 = vmatprep.subr.bf16.mxu0 0
    %3943 = vmatpush2.bf16.msra.mxu0 0
    %3944 = vmatprep.subr.bf16.mxu0 0
    %3945 = vmatpush2.bf16.msra.mxu0 0
    %3946 = vmatprep.subr.bf16.mxu0 0
    %3947 = vmatpush2.bf16.msra.mxu0 0
    %3948 = vmatprep.mubr.bf16.mxu0 0
    %3949 = vmatmul.mubr.bf16.gmra.mxu0 %v3874
    %v3950 = vpop.f32.mrf.mxu0
    %v3951 = vadd.f32 0.0, %v3950
    %v3952 = vpop.f32.mrf.mxu0
    %v3953 = vadd.f32 0.0, %v3952
    %v3954 = vpop.f32.mrf.mxu0
    %v3955 = vpop.f32.mrf.mxu0
    %3956 = vdwg.mxu0
    %v3957 = vadd.f32 %v3869, %v3910
    %v3958 = vadd.f32 %v3870, %v3912
    %v3959 = vadd.f32 %v3871, %v3951
    %v3960 = vadd.f32 %v3872, %v3953
    %v3961 = vxor.u32 %v3957, 2147483648
    %v3962 = vmul.f32 %v3961, 1.442695
    %v3963 = vpow.pop %v3962
    %v3964 = vadd.f32 %v3963, 1.0
    %v3965 = vrcp.pop %v3964
    %v3966 = vmul.f32 1.0, %v3965
    %v3967 = vxor.u32 %v3958, 2147483648
    %v3968 = vmul.f32 %v3967, 1.442695
    %v3969 = vpow.pop %v3968
    %v3970 = vadd.f32 %v3969, 1.0
    %v3971 = vrcp.pop %v3970
    %v3972 = vmul.f32 1.0, %v3971
    %v3973 = vtanh.pop %v3959
    %v3974 = vxor.u32 %v3960, 2147483648
    %v3975 = vmul.f32 %v3974, 1.442695
    %v3976 = vpow.pop %v3975
    %v3977 = vadd.f32 %v3976, 1.0
    %v3978 = vrcp.pop %v3977
    %v3979 = vmul.f32 1.0, %v3978
    %v3980 = vld [vmem:[#allocation4] sm:$0xff]
    %v3981 = vmul.f32 %v3972, %v3980
    %v3982 = vmul.f32 %v3966, %v3973
    %v3983 = vadd.f32 %v3981, %v3982
    %v3984 = vtanh.pop %v3983
    %v3985 = vmul.f32 %v3979, %v3984
    %3986 = vst [vmem:[#allocation4] sm:$0xff] %v3983
    %3987 = vst [vmem:[#allocation3] sm:$0xff] %v3985
    %v3988 = vpack.c.bf16 %v3985, %v3985
    %s3989 = smul.addr %s3862, 4
    %s3990 = scalar_lea.vmem %s4, %s3989
    %3991 = vst [vmem:[%s3990] sm:$0xf] %v3988
    %s3992 = smul.u32 %s1987, 4294967289
    %s3993 = sadd.s32 %s3992, 7
    %s3994 = smul.u32 %s3993, 8
    %s3995 = sadd.s32 %s3994, 64
    %s3996 = sshra.s32 %s3995, 3
    %s3997 = sand.u32 %s3995, 7
    %s3998 = smul.u32 %s3996, 4
    %s3999 = smul.addr %s3998, 8
    %s4000 = scalar_lea.vmem [#allocation2], %s3999
    %v4001 = vld [vmem:[%s4000] sm:$0xff]
    %v4002 = vld [vmem:[%s4000 + $0x8] sm:$0xff]
    %v4003 = vld [vmem:[%s4000 + $0x10] sm:$0xff]
    %v4004 = vld [vmem:[%s4000 + $0x18] sm:$0xff]
    %v4005 = vld [vmem:[%s1627] sm:$0xff]
    %v4006 = vpack.c.bf16 %v4005, %v4005
    %4007 = vmatprep.subr.bf16.mxu0 %v2127
    %4008 = vmatpush1.bf16.msra.mxu0 %v2126
    %4009 = vmatprep.subr.bf16.mxu0 %v2123
    %4010 = vmatpush1.bf16.msra.mxu0 %v2122
    %4011 = vmatprep.subr.bf16.mxu0 %v2119
    %4012 = vmatpush1.bf16.msra.mxu0 %v2118
    %4013 = vmatprep.subr.bf16.mxu0 %v2115
    %4014 = vmatpush1.bf16.msra.mxu0 %v2114
    %4015 = vmatprep.subr.bf16.mxu0 %v2111
    %4016 = vmatpush1.bf16.msra.mxu0 %v2110
    %4017 = vmatprep.subr.bf16.mxu0 %v2107
    %4018 = vmatpush1.bf16.msra.mxu0 %v2106
    %4019 = vmatprep.subr.bf16.mxu0 %v2103
    %4020 = vmatpush1.bf16.msra.mxu0 %v2102
    %4021 = vmatprep.subr.bf16.mxu0 %v2099
    %4022 = vmatpush1.bf16.msra.mxu0 %v2098
    %4023 = vmatprep.subr.bf16.mxu0 0
    %4024 = vmatpush2.bf16.msra.mxu0 0
    %4025 = vmatprep.subr.bf16.mxu0 0
    %4026 = vmatpush2.bf16.msra.mxu0 0
    %4027 = vmatprep.subr.bf16.mxu0 0
    %4028 = vmatpush2.bf16.msra.mxu0 0
    %4029 = vmatprep.subr.bf16.mxu0 0
    %4030 = vmatpush2.bf16.msra.mxu0 0
    %4031 = vmatprep.subr.bf16.mxu0 0
    %4032 = vmatpush2.bf16.msra.mxu0 0
    %4033 = vmatprep.subr.bf16.mxu0 0
    %4034 = vmatpush2.bf16.msra.mxu0 0
    %4035 = vmatprep.subr.bf16.mxu0 0
    %4036 = vmatpush2.bf16.msra.mxu0 0
    %4037 = vmatprep.subr.bf16.mxu0 0
    %4038 = vmatpush2.bf16.msra.mxu0 0
    %4039 = vmatprep.mubr.bf16.mxu0 0
    %4040 = vmatmul.mubr.bf16.gmra.mxu0 %v4006
    %v4041 = vpop.f32.mrf.mxu0
    %v4042 = vadd.f32 0.0, %v4041
    %v4043 = vpop.f32.mrf.mxu0
    %v4044 = vadd.f32 0.0, %v4043
    %v4045 = vpop.f32.mrf.mxu0
    %v4046 = vpop.f32.mrf.mxu0
    %4047 = vdwg.mxu0
    %4048 = vmatprep.subr.bf16.mxu0 %v2129
    %4049 = vmatpush1.bf16.msra.mxu0 %v2128
    %4050 = vmatprep.subr.bf16.mxu0 %v2125
    %4051 = vmatpush1.bf16.msra.mxu0 %v2124
    %4052 = vmatprep.subr.bf16.mxu0 %v2121
    %4053 = vmatpush1.bf16.msra.mxu0 %v2120
    %4054 = vmatprep.subr.bf16.mxu0 %v2117
    %4055 = vmatpush1.bf16.msra.mxu0 %v2116
    %4056 = vmatprep.subr.bf16.mxu0 %v2113
    %4057 = vmatpush1.bf16.msra.mxu0 %v2112
    %4058 = vmatprep.subr.bf16.mxu0 %v2109
    %4059 = vmatpush1.bf16.msra.mxu0 %v2108
    %4060 = vmatprep.subr.bf16.mxu0 %v2105
    %4061 = vmatpush1.bf16.msra.mxu0 %v2104
    %4062 = vmatprep.subr.bf16.mxu0 %v2101
    %4063 = vmatpush1.bf16.msra.mxu0 %v2100
    %4064 = vmatprep.subr.bf16.mxu0 0
    %4065 = vmatpush2.bf16.msra.mxu0 0
    %4066 = vmatprep.subr.bf16.mxu0 0
    %4067 = vmatpush2.bf16.msra.mxu0 0
    %4068 = vmatprep.subr.bf16.mxu0 0
    %4069 = vmatpush2.bf16.msra.mxu0 0
    %4070 = vmatprep.subr.bf16.mxu0 0
    %4071 = vmatpush2.bf16.msra.mxu0 0
    %4072 = vmatprep.subr.bf16.mxu0 0
    %4073 = vmatpush2.bf16.msra.mxu0 0
    %4074 = vmatprep.subr.bf16.mxu0 0
    %4075 = vmatpush2.bf16.msra.mxu0 0
    %4076 = vmatprep.subr.bf16.mxu0 0
    %4077 = vmatpush2.bf16.msra.mxu0 0
    %4078 = vmatprep.subr.bf16.mxu0 0
    %4079 = vmatpush2.bf16.msra.mxu0 0
    %4080 = vmatprep.mubr.bf16.mxu0 0
    %4081 = vmatmul.mubr.bf16.gmra.mxu0 %v4006
    %v4082 = vpop.f32.mrf.mxu0
    %v4083 = vadd.f32 0.0, %v4082
    %v4084 = vpop.f32.mrf.mxu0
    %v4085 = vadd.f32 0.0, %v4084
    %v4086 = vpop.f32.mrf.mxu0
    %v4087 = vpop.f32.mrf.mxu0
    %4088 = vdwg.mxu0
    %v4089 = vadd.f32 %v4001, %v4042
    %v4090 = vadd.f32 %v4002, %v4044
    %v4091 = vadd.f32 %v4003, %v4083
    %v4092 = vadd.f32 %v4004, %v4085
    %v4093 = vxor.u32 %v4089, 2147483648
    %v4094 = vmul.f32 %v4093, 1.442695
    %v4095 = vpow.pop %v4094
    %v4096 = vadd.f32 %v4095, 1.0
    %v4097 = vrcp.pop %v4096
    %v4098 = vmul.f32 1.0, %v4097
    %v4099 = vxor.u32 %v4090, 2147483648
    %v4100 = vmul.f32 %v4099, 1.442695
    %v4101 = vpow.pop %v4100
    %v4102 = vadd.f32 %v4101, 1.0
    %v4103 = vrcp.pop %v4102
    %v4104 = vmul.f32 1.0, %v4103
    %v4105 = vtanh.pop %v4091
    %v4106 = vxor.u32 %v4092, 2147483648
    %v4107 = vmul.f32 %v4106, 1.442695
    %v4108 = vpow.pop %v4107
    %v4109 = vadd.f32 %v4108, 1.0
    %v4110 = vrcp.pop %v4109
    %v4111 = vmul.f32 1.0, %v4110
    %v4112 = vld [vmem:[%s1629] sm:$0xff]
    %v4113 = vmul.f32 %v4104, %v4112
    %v4114 = vmul.f32 %v4098, %v4105
    %v4115 = vadd.f32 %v4113, %v4114
    %v4116 = vtanh.pop %v4115
    %v4117 = vmul.f32 %v4111, %v4116
    %4118 = vst [vmem:[%s1629] sm:$0xff] %v4115
    %4119 = vst [vmem:[%s1627] sm:$0xff] %v4117
    %v4120 = vpack.c.bf16 %v4117, %v4117
    %s4121 = sadd.s32 %s3993, 8
    %s4122 = smul.addr %s4121, 4
    %s4123 = scalar_lea.vmem %s4, %s4122
    %4124 = vst [vmem:[%s4123] sm:$0xf] %v4120
    // Predicated region
    $region22: #{lstm_model_forward.3} parent=1 // pred_check
      _
    $region23: #{lstm_model_forward.3} parent=1 // pred_check_branch
      %4126 = sbr.rel (0) target = $region25
    $region24: #{lstm_model_forward.3} parent=1 // pred_region
      _
    $region25: #{lstm_model_forward.3} parent=1 // pred_fallthru
      _
    // Predicated region
    $region26: #{lstm_model_forward.3} parent=1 // pred_check
      _
    $region27: #{lstm_model_forward.3} parent=1 // pred_check_branch
      %4128 = sbr.rel (0) target = $region29
    $region28: #{lstm_model_forward.3} parent=1 // pred_region
      _
    $region29: #{lstm_model_forward.3} parent=1 // pred_fallthru
      _
    %4129 = vsyncpa [#allocation6], 1

</llo_original>
